<compile_context>
chip_gen: v7x
topology: tpu7x:2x2x1
jax: 0.10.0
libtpu: 0.0.40
codegen_flags: <defaults>
</compile_context>

<pallas_src>
import functools

import jax
import jax.numpy as jnp
from jax.experimental import pallas as pl
from jax.experimental.pallas import tpu as pltpu


@functools.lru_cache(maxsize=1)
def _has_two_tensorcores():
    """True on v7x-class chips (2 TensorCores); v5e/v6e are single-TC."""
    try:
        return "v7" in jax.devices()[0].device_kind.lower()
    except Exception:
        return False


# ---------------------------------------------------------------------------
# Pallas kernel 1:  Y = relu?(A @ B + bias)   (used for the conv matmuls)
# A and B are bf16 (no in-kernel cast), accumulation is f32 on the MXU.
# ---------------------------------------------------------------------------
def _matmul_bias_relu_kernel(a_ref, b_ref, bias_ref, o_ref, *, apply_relu):
    acc = jnp.dot(a_ref[...], b_ref[...], preferred_element_type=jnp.float32)
    acc = acc + bias_ref[...]                 # (1, N) f32 broadcasts over rows
    if apply_relu:
        acc = jnp.maximum(acc, 0.0)
    o_ref[...] = acc.astype(o_ref.dtype)


def matmul_bias_relu(a_bf16, w_bf16, bias_row, *, relu=True, out_dtype=jnp.bfloat16):
    """relu?(a @ w + bias); a:[M,K] bf16, w:[K,N] bf16, bias:[1,N] f32 -> [M,N] bf16."""
    M, K = a_bf16.shape
    N = w_bf16.shape[1]
    # Single-TC chips (v5e/v6e): one full-M block -- each extra grid step costs
    # ~0.35 us of pipeline overhead on a sub-microsecond matmul, and a ragged
    # tail block would waste most of its rows.  v7x: split M in two 8-aligned
    # halves so the "parallel" grid maps one block onto each TensorCore.
    bm = M
    if _has_two_tensorcores() and M % 16 == 0:
        bm = M // 2
    grid_m = pl.cdiv(M, bm)
    return pl.pallas_call(
        functools.partial(_matmul_bias_relu_kernel, apply_relu=relu),
        out_shape=jax.ShapeDtypeStruct((M, N), out_dtype),
        grid=(grid_m,),
        in_specs=[
            pl.BlockSpec((bm, K), lambda i: (i, 0)),
            pl.BlockSpec((K, N), lambda i: (0, 0)),   # weight stays VMEM-resident
            pl.BlockSpec((1, N), lambda i: (0, 0)),
        ],
        out_specs=pl.BlockSpec((bm, N), lambda i: (i, 0)),
        compiler_params=pltpu.CompilerParams(
            dimension_semantics=("parallel",)),        # no-op on v5e/v6e (grid=(1,))
    )(a_bf16, w_bf16, bias_row)


# ---------------------------------------------------------------------------
# Pallas kernel 2: fused fc1 -> relu -> fc2 -> relu -> fc3 in one call.
# All weights (~5 MB bf16) + intermediates stay in VMEM; input x is bf16.
# ---------------------------------------------------------------------------
def _fc_fused_kernel(x_ref, w1_ref, b1_ref, w2_ref, b2_ref, w3_ref, b3_ref, o_ref):
    h = jnp.dot(x_ref[...], w1_ref[...],
                preferred_element_type=jnp.float32) + b1_ref[...]
    h = jnp.maximum(h, 0.0)
    h = jnp.dot(h.astype(jnp.bfloat16), w2_ref[...],
                preferred_element_type=jnp.float32) + b2_ref[...]
    h = jnp.maximum(h, 0.0)
    h = jnp.dot(h.astype(jnp.bfloat16), w3_ref[...],
                preferred_element_type=jnp.float32) + b3_ref[...]
    o_ref[...] = h.astype(o_ref.dtype)


def fc_fused(x_bf16, fw1, fb1, fw2, fb2, fw3, fb3):
    """fc3(relu(fc2(relu(fc1(x))))) with everything held in VMEM (single block)."""
    # NOTE(perf): in a real DQN loop the ~4.9 MB fw1 DMA is re-paid every call;
    # batching many states per call (M >= 128/256) or int8/fp8-quantizing fw1
    # (per-generation) would remove the dominant cost.  Deferred here.
    M = x_bf16.shape[0]
    N3 = fw3.shape[1]
    vmem = pl.BlockSpec(memory_space=pltpu.MemorySpace.VMEM)
    return pl.pallas_call(
        _fc_fused_kernel,
        out_shape=jax.ShapeDtypeStruct((M, N3), jnp.float32),
        in_specs=[vmem] * 7,
        out_specs=vmem,
    )(x_bf16, fw1, fb1, fw2, fb2, fw3, fb3)


# ---------------------------------------------------------------------------
# Conv = im2col (one XLA patches op, bf16) + Pallas matmul (bf16 out)
# ---------------------------------------------------------------------------
def conv2d_relu(x_nhwc_bf16, w2d_bf16, bias_row, *, ksize, stride):
    """Valid-padding Conv2d + ReLU; w2d is [C*kh*kw, OC] with (C, kh, kw) row order."""
    n, h, w, c = x_nhwc_bf16.shape
    oh = (h - ksize) // stride + 1
    ow = (w - ksize) // stride + 1
    # Patch feature order is channel-major (C, kh, kw): the op is a grouped
    # identity conv with feature_group_count=C, so it matches the PyTorch OIHW
    # weight flatten.  Input is bf16 -> patches are bf16 (identity gather, exact).
    patches = jax.lax.conv_general_dilated_patches(
        x_nhwc_bf16, (ksize, ksize), (stride, stride), "VALID",
        dimension_numbers=("NHWC", "OIHW", "NHWC"))
    a = patches.reshape(n * oh * ow, c * ksize * ksize)
    y = matmul_bias_relu(a, w2d_bf16, bias_row, relu=True, out_dtype=jnp.bfloat16)
    return y.reshape(n, oh, ow, w2d_bf16.shape[1])


# ---------------------------------------------------------------------------
# Parameters: PyTorch-style init, then a one-time conversion to kernel layout
# ---------------------------------------------------------------------------
def init_params(key):
    """Deterministic params mirroring the PyTorch init scheme (torch layouts, f32)."""
    ks = jax.random.split(key, 9)

    def kaiming_out(k, shape):  # kaiming_normal_, mode='fan_out', relu
        oc, _, kh, kw = shape
        std = (2.0 / (oc * kh * kw)) ** 0.5
        return std * jax.random.normal(k, shape, jnp.float32)

    def conv_bias(k, oc, ic, kh, kw):  # PyTorch default conv bias init
        bound = 1.0 / (ic * kh * kw) ** 0.5
        return jax.random.uniform(k, (oc,), jnp.float32, -bound, bound)

    return {
        "w1": kaiming_out(ks[0], (32, 4, 8, 8)),
        "b1": conv_bias(ks[1], 32, 4, 8, 8),
        "w2": kaiming_out(ks[2], (64, 32, 4, 4)),
        "b2": conv_bias(ks[3], 64, 32, 4, 4),
        "w3": kaiming_out(ks[4], (64, 64, 3, 3)),
        "b3": conv_bias(ks[5], 64, 64, 3, 3),
        # Linear weights stored [in, out]; fw1 rows in torch's (C,H,W) flatten
        # order; uniform(-0.01, 0.01), bias = 0.
        "fw1": jax.random.uniform(ks[6], (64 * 7 * 7, 784), jnp.float32, -0.01, 0.01),
        "fb1": jnp.zeros((784,), jnp.float32),
        "fw2": jax.random.uniform(ks[7], (784, 98), jnp.float32, -0.01, 0.01),
        "fb2": jnp.zeros((98,), jnp.float32),
        "fw3": jax.random.uniform(ks[8], (98, 2), jnp.float32, -0.01, 0.01),
        "fb3": jnp.zeros((2,), jnp.float32),
    }


def prepare_params(raw):
    """One-time conversion: conv weights -> [K, OC] bf16 (rows = (C,kh,kw)),
    fc weights -> bf16 with fw1 rows permuted from torch (C,H,W) order to the
    NHWC (H,W,C) flatten order, biases -> (1,N) f32."""
    def conv_w(w_oihw):
        oc = w_oihw.shape[0]
        return w_oihw.reshape(oc, -1).T.astype(jnp.bfloat16)   # rows = (C, kh, kw)

    fw1 = raw["fw1"].reshape(64, 7, 7, -1)                          # (C, H, W, out)
    fw1 = jnp.transpose(fw1, (1, 2, 0, 3)).reshape(64 * 7 * 7, -1)  # rows = (H, W, C)

    # TODO(synk): per-generation weight compression for fw1 (int8 on v5e/v6e,
    # fp8 e4m3 on v7x) to halve the dominant ~4.9 MB weight DMA.
    return {
        "w1": conv_w(raw["w1"]), "b1": raw["b1"].reshape(1, -1),
        "w2": conv_w(raw["w2"]), "b2": raw["b2"].reshape(1, -1),
        "w3": conv_w(raw["w3"]), "b3": raw["b3"].reshape(1, -1),
        "fw1": fw1.astype(jnp.bfloat16),          "fb1": raw["fb1"].reshape(1, -1),
        "fw2": raw["fw2"].astype(jnp.bfloat16),   "fb2": raw["fb2"].reshape(1, -1),
        "fw3": raw["fw3"].astype(jnp.bfloat16),   "fb3": raw["fb3"].reshape(1, -1),
    }


# ---------------------------------------------------------------------------
# Forward pass (matches the PyTorch DQN.forward semantics)
# ---------------------------------------------------------------------------
def dqn_forward(params, x_nchw):
    # NCHW -> NHWC and cast to bf16 ONCE: every downstream patch/activation is bf16.
    x = jnp.transpose(x_nchw, (0, 2, 3, 1)).astype(jnp.bfloat16)
    x = conv2d_relu(x, params["w1"], params["b1"], ksize=8, stride=4)  # [N,20,20,32]
    x = conv2d_relu(x, params["w2"], params["b2"], ksize=4, stride=2)  # [N, 9, 9,64]
    x = conv2d_relu(x, params["w3"], params["b3"], ksize=3, stride=1)  # [N, 7, 7,64]
    n = x.shape[0]
    x = x.reshape(n, 7 * 7 * 64)      # NHWC flatten; fw1 rows were permuted to match
    return fc_fused(x, params["fw1"], params["fb1"],
                    params["fw2"], params["fb2"],
                    params["fw3"], params["fb3"])


# ---------------------------------------------------------------------------
# Pure-JAX f32 reference (mirrors torch forward exactly) for a correctness check
# ---------------------------------------------------------------------------
def dqn_reference(raw, x_nchw):
    def conv(x, w, b, stride):
        y = jax.lax.conv_general_dilated(
            x, w, (stride, stride), "VALID",
            dimension_numbers=("NCHW", "OIHW", "NCHW"))
        return jnp.maximum(y + b[None, :, None, None], 0.0)

    x = conv(x_nchw, raw["w1"], raw["b1"], 4)
    x = conv(x, raw["w2"], raw["b2"], 2)
    x = conv(x, raw["w3"], raw["b3"], 1)
    x = x.reshape(x.shape[0], -1)                      # NCHW flatten (torch .view)
    x = jnp.maximum(x @ raw["fw1"] + raw["fb1"], 0.0)
    x = jnp.maximum(x @ raw["fw2"] + raw["fb2"], 0.0)
    return x @ raw["fw3"] + raw["fb3"]


if __name__ == "__main__":
    key = jax.random.PRNGKey(0)
    kp, kx = jax.random.split(key)
    raw = init_params(kp)
    params = prepare_params(raw)
    # fc1 (64*7*7 inputs) pins the spatial size to 84x84; batch kept small here
    # (real deployments should batch >=128 states per call -- see review).
    x = jax.random.normal(kx, (2, 4, 84, 84), jnp.float32)

    out = jax.jit(dqn_forward)(params, x)
    jax.block_until_ready(out)
    assert out.shape == (2, 2) and out.dtype == jnp.float32
    assert bool(jnp.isfinite(out).all())

    # Loose-tolerance check vs the f32 reference (kernel path is bf16 on the MXU
    # with f32 accumulation -> expect ~1e-2 relative deviation).
    ref = jax.jit(dqn_reference)(raw, x)
    jax.block_until_ready(ref)
    err = float(jnp.max(jnp.abs(out - ref)))
    scale = float(jnp.max(jnp.abs(ref)))
    assert err <= 0.1 * scale + 1e-4, f"mismatch vs reference: err={err} scale={scale}"

    print("KERNEL_OK")
</pallas_src>

<mosaic_0001>
module attributes {stable_mosaic.version = 11 : i64} {
  func.func @_matmul_bias_relu_kernel(%arg0: i32, %arg1: memref<800x256xbf16, #tpu.memory_space<vmem>>, %arg2: memref<256x32xbf16, #tpu.memory_space<vmem>>, %arg3: memref<1x32xf32, #tpu.memory_space<vmem>>, %arg4: memref<800x32xbf16, #tpu.memory_space<vmem>>) attributes {dimension_semantics = [#tpu.dimension_semantics<parallel>], iteration_bounds = array<i64: 1>, scalar_prefetch = 0 : i64, scratch_operands = 0 : i64, tpu.core_type = #tpu.core_type<tc>, window_params = [{transform_indices = @transform_0, window_bounds = array<i64: 800, 256>}, {pipeline_mode = #tpu.pipeline_mode<synchronous>, transform_indices = @transform_1, window_bounds = array<i64: 256, 32>}, {pipeline_mode = #tpu.pipeline_mode<synchronous>, transform_indices = @transform_2, window_bounds = array<i64: 1, 32>}, {transform_indices = @transform_3, window_bounds = array<i64: 800, 32>}]} {
    %c0 = arith.constant 0 : index
    %c0_0 = arith.constant 0 : index
    %0 = vector.load %arg1[%c0, %c0_0] : memref<800x256xbf16, #tpu.memory_space<vmem>>, vector<800x256xbf16>
    %c0_1 = arith.constant 0 : index
    %c0_2 = arith.constant 0 : index
    %1 = vector.load %arg2[%c0_1, %c0_2] : memref<256x32xbf16, #tpu.memory_space<vmem>>, vector<256x32xbf16>
    %cst = arith.constant dense<0.000000e+00> : vector<800x32xf32>
    %2 = tpu.matmul %0, %1, %cst {dimension_numbers = #tpu.dot_dimension_numbers<[1], [0], [0], [1], [0, 0, 1, 1], [], []>} : vector<800x256xbf16>, vector<256x32xbf16>, vector<800x32xf32> -> vector<800x32xf32>
    %c0_3 = arith.constant 0 : index
    %c0_4 = arith.constant 0 : index
    %3 = vector.load %arg3[%c0_3, %c0_4] : memref<1x32xf32, #tpu.memory_space<vmem>>, vector<1x32xf32>
    %4 = vector.broadcast %3 : vector<1x32xf32> to vector<800x32xf32>
    %5 = arith.addf %2, %4 : vector<800x32xf32>
    %cst_5 = arith.constant 0.000000e+00 : f32
    %6 = vector.broadcast %cst_5 : f32 to vector<800x32xf32>
    %7 = arith.maximumf %5, %6 : vector<800x32xf32>
    %8 = arith.truncf %7 : vector<800x32xf32> to vector<800x32xbf16>
    %c0_6 = arith.constant 0 : index
    %c0_7 = arith.constant 0 : index
    %9 = vector.load %arg4[%c0_6, %c0_7] : memref<800x32xbf16, #tpu.memory_space<vmem>>, vector<800x32xbf16>
    tpu.vector_store %arg4[%c0_6, %c0_7], %8 {strides = array<i32>} : memref<800x32xbf16, #tpu.memory_space<vmem>>, vector<800x32xbf16>,
    return
  }
  func.func @transform_0(%arg0: i32) -> (i32, i32) {
    %c0_i32 = arith.constant 0 : i32
    %c0_i32_0 = arith.constant 0 : i32
    return %arg0, %c0_i32 : i32, i32
  }
  func.func @transform_1(%arg0: i32) -> (i32, i32) {
    %c0_i32 = arith.constant 0 : i32
    %c0_i32_0 = arith.constant 0 : i32
    %c0_i32_1 = arith.constant 0 : i32
    return %c0_i32, %c0_i32_0 : i32, i32
  }
  func.func @transform_2(%arg0: i32) -> (i32, i32) {
    %c0_i32 = arith.constant 0 : i32
    %c0_i32_0 = arith.constant 0 : i32
    %c0_i32_1 = arith.constant 0 : i32
    return %c0_i32, %c0_i32_0 : i32, i32
  }
  func.func @transform_3(%arg0: i32) -> (i32, i32) {
    %c0_i32 = arith.constant 0 : i32
    %c0_i32_0 = arith.constant 0 : i32
    return %arg0, %c0_i32 : i32, i32
  }
}

module attributes {stable_mosaic.version = 11 : i64} {
  func.func @_matmul_bias_relu_kernel(%arg0: i32, %arg1: memref<162x512xbf16, #tpu.memory_space<vmem>>, %arg2: memref<512x64xbf16, #tpu.memory_space<vmem>>, %arg3: memref<1x64xf32, #tpu.memory_space<vmem>>, %arg4: memref<162x64xbf16, #tpu.memory_space<vmem>>) attributes {dimension_semantics = [#tpu.dimension_semantics<parallel>], iteration_bounds = array<i64: 1>, scalar_prefetch = 0 : i64, scratch_operands = 0 : i64, tpu.core_type = #tpu.core_type<tc>, window_params = [{transform_indices = @transform_0, window_bounds = array<i64: 162, 512>}, {pipeline_mode = #tpu.pipeline_mode<synchronous>, transform_indices = @transform_1, window_bounds = array<i64: 512, 64>}, {pipeline_mode = #tpu.pipeline_mode<synchronous>, transform_indices = @transform_2, window_bounds = array<i64: 1, 64>}, {transform_indices = @transform_3, window_bounds = array<i64: 162, 64>}]} {
    %c0 = arith.constant 0 : index
    %c0_0 = arith.constant 0 : index
    %0 = vector.load %arg1[%c0, %c0_0] : memref<162x512xbf16, #tpu.memory_space<vmem>>, vector<162x512xbf16>
    %c0_1 = arith.constant 0 : index
    %c0_2 = arith.constant 0 : index
    %1 = vector.load %arg2[%c0_1, %c0_2] : memref<512x64xbf16, #tpu.memory_space<vmem>>, vector<512x64xbf16>
    %cst = arith.constant dense<0.000000e+00> : vector<162x64xf32>
    %2 = tpu.matmul %0, %1, %cst {dimension_numbers = #tpu.dot_dimension_numbers<[1], [0], [0], [1], [0, 0, 1, 1], [], []>} : vector<162x512xbf16>, vector<512x64xbf16>, vector<162x64xf32> -> vector<162x64xf32>
    %c0_3 = arith.constant 0 : index
    %c0_4 = arith.constant 0 : index
    %3 = vector.load %arg3[%c0_3, %c0_4] : memref<1x64xf32, #tpu.memory_space<vmem>>, vector<1x64xf32>
    %4 = vector.broadcast %3 : vector<1x64xf32> to vector<162x64xf32>
    %5 = arith.addf %2, %4 : vector<162x64xf32>
    %cst_5 = arith.constant 0.000000e+00 : f32
    %6 = vector.broadcast %cst_5 : f32 to vector<162x64xf32>
    %7 = arith.maximumf %5, %6 : vector<162x64xf32>
    %8 = arith.truncf %7 : vector<162x64xf32> to vector<162x64xbf16>
    %c0_6 = arith.constant 0 : index
    %c0_7 = arith.constant 0 : index
    %9 = vector.load %arg4[%c0_6, %c0_7] : memref<162x64xbf16, #tpu.memory_space<vmem>>, vector<162x64xbf16>
    tpu.vector_store %arg4[%c0_6, %c0_7], %8 {strides = array<i32>} : memref<162x64xbf16, #tpu.memory_space<vmem>>, vector<162x64xbf16>,
    return
  }
  func.func @transform_0(%arg0: i32) -> (i32, i32) {
    %c0_i32 = arith.constant 0 : i32
    %c0_i32_0 = arith.constant 0 : i32
    return %arg0, %c0_i32 : i32, i32
  }
  func.func @transform_1(%arg0: i32) -> (i32, i32) {
    %c0_i32 = arith.constant 0 : i32
    %c0_i32_0 = arith.constant 0 : i32
    %c0_i32_1 = arith.constant 0 : i32
    return %c0_i32, %c0_i32_0 : i32, i32
  }
  func.func @transform_2(%arg0: i32) -> (i32, i32) {
    %c0_i32 = arith.constant 0 : i32
    %c0_i32_0 = arith.constant 0 : i32
    %c0_i32_1 = arith.constant 0 : i32
    return %c0_i32, %c0_i32_0 : i32, i32
  }
  func.func @transform_3(%arg0: i32) -> (i32, i32) {
    %c0_i32 = arith.constant 0 : i32
    %c0_i32_0 = arith.constant 0 : i32
    return %arg0, %c0_i32 : i32, i32
  }
}

module attributes {stable_mosaic.version = 11 : i64} {
  func.func @_matmul_bias_relu_kernel(%arg0: i32, %arg1: memref<98x576xbf16, #tpu.memory_space<vmem>>, %arg2: memref<576x64xbf16, #tpu.memory_space<vmem>>, %arg3: memref<1x64xf32, #tpu.memory_space<vmem>>, %arg4: memref<98x64xbf16, #tpu.memory_space<vmem>>) attributes {dimension_semantics = [#tpu.dimension_semantics<parallel>], iteration_bounds = array<i64: 1>, scalar_prefetch = 0 : i64, scratch_operands = 0 : i64, tpu.core_type = #tpu.core_type<tc>, window_params = [{transform_indices = @transform_0, window_bounds = array<i64: 98, 576>}, {pipeline_mode = #tpu.pipeline_mode<synchronous>, transform_indices = @transform_1, window_bounds = array<i64: 576, 64>}, {pipeline_mode = #tpu.pipeline_mode<synchronous>, transform_indices = @transform_2, window_bounds = array<i64: 1, 64>}, {transform_indices = @transform_3, window_bounds = array<i64: 98, 64>}]} {
    %c0 = arith.constant 0 : index
    %c0_0 = arith.constant 0 : index
    %0 = vector.load %arg1[%c0, %c0_0] : memref<98x576xbf16, #tpu.memory_space<vmem>>, vector<98x576xbf16>
    %c0_1 = arith.constant 0 : index
    %c0_2 = arith.constant 0 : index
    %1 = vector.load %arg2[%c0_1, %c0_2] : memref<576x64xbf16, #tpu.memory_space<vmem>>, vector<576x64xbf16>
    %cst = arith.constant dense<0.000000e+00> : vector<98x64xf32>
    %2 = tpu.matmul %0, %1, %cst {dimension_numbers = #tpu.dot_dimension_numbers<[1], [0], [0], [1], [0, 0, 1, 1], [], []>} : vector<98x576xbf16>, vector<576x64xbf16>, vector<98x64xf32> -> vector<98x64xf32>
    %c0_3 = arith.constant 0 : index
    %c0_4 = arith.constant 0 : index
    %3 = vector.load %arg3[%c0_3, %c0_4] : memref<1x64xf32, #tpu.memory_space<vmem>>, vector<1x64xf32>
    %4 = vector.broadcast %3 : vector<1x64xf32> to vector<98x64xf32>
    %5 = arith.addf %2, %4 : vector<98x64xf32>
    %cst_5 = arith.constant 0.000000e+00 : f32
    %6 = vector.broadcast %cst_5 : f32 to vector<98x64xf32>
    %7 = arith.maximumf %5, %6 : vector<98x64xf32>
    %8 = arith.truncf %7 : vector<98x64xf32> to vector<98x64xbf16>
    %c0_6 = arith.constant 0 : index
    %c0_7 = arith.constant 0 : index
    %9 = vector.load %arg4[%c0_6, %c0_7] : memref<98x64xbf16, #tpu.memory_space<vmem>>, vector<98x64xbf16>
    tpu.vector_store %arg4[%c0_6, %c0_7], %8 {strides = array<i32>} : memref<98x64xbf16, #tpu.memory_space<vmem>>, vector<98x64xbf16>,
    return
  }
  func.func @transform_0(%arg0: i32) -> (i32, i32) {
    %c0_i32 = arith.constant 0 : i32
    %c0_i32_0 = arith.constant 0 : i32
    return %arg0, %c0_i32 : i32, i32
  }
  func.func @transform_1(%arg0: i32) -> (i32, i32) {
    %c0_i32 = arith.constant 0 : i32
    %c0_i32_0 = arith.constant 0 : i32
    %c0_i32_1 = arith.constant 0 : i32
    return %c0_i32, %c0_i32_0 : i32, i32
  }
  func.func @transform_2(%arg0: i32) -> (i32, i32) {
    %c0_i32 = arith.constant 0 : i32
    %c0_i32_0 = arith.constant 0 : i32
    %c0_i32_1 = arith.constant 0 : i32
    return %c0_i32, %c0_i32_0 : i32, i32
  }
  func.func @transform_3(%arg0: i32) -> (i32, i32) {
    %c0_i32 = arith.constant 0 : i32
    %c0_i32_0 = arith.constant 0 : i32
    return %arg0, %c0_i32 : i32, i32
  }
}

module attributes {stable_mosaic.version = 11 : i64} {
  func.func @_fc_fused_kernel(%arg0: memref<2x3136xbf16, #tpu.memory_space<vmem>>, %arg1: memref<3136x784xbf16, #tpu.memory_space<vmem>>, %arg2: memref<1x784xf32, #tpu.memory_space<vmem>>, %arg3: memref<784x98xbf16, #tpu.memory_space<vmem>>, %arg4: memref<1x98xf32, #tpu.memory_space<vmem>>, %arg5: memref<98x2xbf16, #tpu.memory_space<vmem>>, %arg6: memref<1x2xf32, #tpu.memory_space<vmem>>, %arg7: memref<2x2xf32, #tpu.memory_space<vmem>>) attributes {dimension_semantics = [], scalar_prefetch = 0 : i64, scratch_operands = 0 : i64, tpu.core_type = #tpu.core_type<tc>} {
    %c0 = arith.constant 0 : index
    %c0_0 = arith.constant 0 : index
    %0 = vector.load %arg0[%c0, %c0_0] : memref<2x3136xbf16, #tpu.memory_space<vmem>>, vector<2x3136xbf16>
    %c0_1 = arith.constant 0 : index
    %c0_2 = arith.constant 0 : index
    %1 = vector.load %arg1[%c0_1, %c0_2] : memref<3136x784xbf16, #tpu.memory_space<vmem>>, vector<3136x784xbf16>
    %cst = arith.constant dense<0.000000e+00> : vector<2x784xf32>
    %2 = tpu.matmul %0, %1, %cst {dimension_numbers = #tpu.dot_dimension_numbers<[1], [0], [0], [1], [0, 0, 1, 1], [], []>} : vector<2x3136xbf16>, vector<3136x784xbf16>, vector<2x784xf32> -> vector<2x784xf32>
    %c0_3 = arith.constant 0 : index
    %c0_4 = arith.constant 0 : index
    %3 = vector.load %arg2[%c0_3, %c0_4] : memref<1x784xf32, #tpu.memory_space<vmem>>, vector<1x784xf32>
    %4 = vector.broadcast %3 : vector<1x784xf32> to vector<2x784xf32>
    %5 = arith.addf %2, %4 : vector<2x784xf32>
    %cst_5 = arith.constant 0.000000e+00 : f32
    %6 = vector.broadcast %cst_5 : f32 to vector<2x784xf32>
    %7 = arith.maximumf %5, %6 : vector<2x784xf32>
    %8 = arith.truncf %7 : vector<2x784xf32> to vector<2x784xbf16>
    %c0_6 = arith.constant 0 : index
    %c0_7 = arith.constant 0 : index
    %9 = vector.load %arg3[%c0_6, %c0_7] : memref<784x98xbf16, #tpu.memory_space<vmem>>, vector<784x98xbf16>
    %cst_8 = arith.constant dense<0.000000e+00> : vector<2x98xf32>
    %10 = tpu.matmul %8, %9, %cst_8 {dimension_numbers = #tpu.dot_dimension_numbers<[1], [0], [0], [1], [0, 0, 1, 1], [], []>} : vector<2x784xbf16>, vector<784x98xbf16>, vector<2x98xf32> -> vector<2x98xf32>
    %c0_9 = arith.constant 0 : index
    %c0_10 = arith.constant 0 : index
    %11 = vector.load %arg4[%c0_9, %c0_10] : memref<1x98xf32, #tpu.memory_space<vmem>>, vector<1x98xf32>
    %12 = vector.broadcast %11 : vector<1x98xf32> to vector<2x98xf32>
    %13 = arith.addf %10, %12 : vector<2x98xf32>
    %cst_11 = arith.constant 0.000000e+00 : f32
    %14 = vector.broadcast %cst_11 : f32 to vector<2x98xf32>
    %15 = arith.maximumf %13, %14 : vector<2x98xf32>
    %16 = arith.truncf %15 : vector<2x98xf32> to vector<2x98xbf16>
    %c0_12 = arith.constant 0 : index
    %c0_13 = arith.constant 0 : index
    %17 = vector.load %arg5[%c0_12, %c0_13] : memref<98x2xbf16, #tpu.memory_space<vmem>>, vector<98x2xbf16>
    %cst_14 = arith.constant dense<0.000000e+00> : vector<2x2xf32>
    %18 = tpu.matmul %16, %17, %cst_14 {dimension_numbers = #tpu.dot_dimension_numbers<[1], [0], [0], [1], [0, 0, 1, 1], [], []>} : vector<2x98xbf16>, vector<98x2xbf16>, vector<2x2xf32> -> vector<2x2xf32>
    %c0_15 = arith.constant 0 : index
    %c0_16 = arith.constant 0 : index
    %19 = vector.load %arg6[%c0_15, %c0_16] : memref<1x2xf32, #tpu.memory_space<vmem>>, vector<1x2xf32>
    %20 = vector.broadcast %19 : vector<1x2xf32> to vector<2x2xf32>
    %21 = arith.addf %18, %20 : vector<2x2xf32>
    %c0_17 = arith.constant 0 : index
    %c0_18 = arith.constant 0 : index
    %22 = vector.load %arg7[%c0_17, %c0_18] : memref<2x2xf32, #tpu.memory_space<vmem>>, vector<2x2xf32>
    tpu.vector_store %arg7[%c0_17, %c0_18], %21 {strides = array<i32>} : memref<2x2xf32, #tpu.memory_space<vmem>>, vector<2x2xf32>,
    return
  }
}

</mosaic_0001>

<llo_original>
// kernel: dqn_forward.4
$region0: #{dqn_forward.4}
  #allocation0 [shape = 'u32[]', space=smem, size = 0x4, offset = 0x4, fixed_abs, tag = 'smem constant byte address 0x4 - core index']
  #allocation1 [shape = 'u32[144,128]{1,0:T(1,128)}', space=vmem, size = 0x12000, scoped, tag = 'internal scratch']
  %s0 = inlined_call_operand.vmem [shape: bf16[800,256], index: 0, kind: input, shape index: {}]
  %s1 = inlined_call_operand.vmem [shape: bf16[256,32], index: 1, kind: input, shape index: {}]
  %s2 = inlined_call_operand.vmem [shape: f32[1,32], index: 2, kind: input, shape index: {}]
  %s3 = inlined_call_operand.vmem [shape: bf16[800,32], index: 3, kind: output, shape index: {}]
  %s4 = sld [smem:[#allocation0]]
  $region22: #{dqn_forward.4} parent=0
    _
  %s6 = ssub.s32 1, %s4
  %s7 = scalar_select 0, %s6, %s4
  // Predicated region
  $region2: #{dqn_forward.4} parent=0 // pred_check
    _
  $region3: #{dqn_forward.4} parent=0 // pred_check_branch
    %9 = sbr.rel (0) target = $region5
  $region4: #{dqn_forward.4} parent=0 // pred_region
    _
  $region5: #{dqn_forward.4} parent=0 // pred_fallthru
    _
  // Predicated region
  $region6: #{dqn_forward.4} parent=0 // pred_check
    _
  $region7: #{dqn_forward.4} parent=0 // pred_check_branch
    %11 = sbr.rel (0) target = $region9
  $region8: #{dqn_forward.4} parent=0 // pred_region
    _
  $region9: #{dqn_forward.4} parent=0 // pred_fallthru
    _
  // Predicated region
  $region10: #{dqn_forward.4} parent=0 // pred_check
    _
  $region11: #{dqn_forward.4} parent=0 // pred_check_branch
    %13 = sbr.rel (0) target = $region13
  $region12: #{dqn_forward.4} parent=0 // pred_region
    _
  $region13: #{dqn_forward.4} parent=0 // pred_fallthru
    _
  %v15 = vld [vmem:[%s0] sm:$0xff]
  %v16 = vld [vmem:[%s0 + $0x8] sm:$0xff]
  %v17 = vld [vmem:[%s0 + $0x10] sm:$0xff]
  %v18 = vld [vmem:[%s0 + $0x18] sm:$0xff]
  %v19 = vld [vmem:[%s0 + $0x20] sm:$0xff]
  %v20 = vld [vmem:[%s0 + $0x28] sm:$0xff]
  %v21 = vld [vmem:[%s0 + $0x30] sm:$0xff]
  %v22 = vld [vmem:[%s0 + $0x38] sm:$0xff]
  %v23 = vld [vmem:[%s0 + $0x40] sm:$0xff]
  %v24 = vld [vmem:[%s0 + $0x48] sm:$0xff]
  %v25 = vld [vmem:[%s0 + $0x50] sm:$0xff]
  %v26 = vld [vmem:[%s0 + $0x58] sm:$0xff]
  %v27 = vld [vmem:[%s0 + $0x60] sm:$0xff]
  %v28 = vld [vmem:[%s0 + $0x68] sm:$0xff]
  %v29 = vld [vmem:[%s0 + $0x70] sm:$0xff]
  %v30 = vld [vmem:[%s0 + $0x78] sm:$0xff]
  %v31 = vld [vmem:[%s0 + $0x80] sm:$0xff]
  %v32 = vld [vmem:[%s0 + $0x88] sm:$0xff]
  %v33 = vld [vmem:[%s0 + $0x90] sm:$0xff]
  %v34 = vld [vmem:[%s0 + $0x98] sm:$0xff]
  %v35 = vld [vmem:[%s0 + $0xa0] sm:$0xff]
  %v36 = vld [vmem:[%s0 + $0xa8] sm:$0xff]
  %v37 = vld [vmem:[%s0 + $0xb0] sm:$0xff]
  %v38 = vld [vmem:[%s0 + $0xb8] sm:$0xff]
  %v39 = vld [vmem:[%s0 + $0xc0] sm:$0xff]
  %v40 = vld [vmem:[%s0 + $0xc8] sm:$0xff]
  %v41 = vld [vmem:[%s0 + $0xd0] sm:$0xff]
  %v42 = vld [vmem:[%s0 + $0xd8] sm:$0xff]
  %v43 = vld [vmem:[%s0 + $0xe0] sm:$0xff]
  %v44 = vld [vmem:[%s0 + $0xe8] sm:$0xff]
  %v45 = vld [vmem:[%s0 + $0xf0] sm:$0xff]
  %v46 = vld [vmem:[%s0 + $0xf8] sm:$0xff]
  %v47 = vld [vmem:[%s0 + $0x100] sm:$0xff]
  %v48 = vld [vmem:[%s0 + $0x108] sm:$0xff]
  %v49 = vld [vmem:[%s0 + $0x110] sm:$0xff]
  %v50 = vld [vmem:[%s0 + $0x118] sm:$0xff]
  %v51 = vld [vmem:[%s0 + $0x120] sm:$0xff]
  %v52 = vld [vmem:[%s0 + $0x128] sm:$0xff]
  %v53 = vld [vmem:[%s0 + $0x130] sm:$0xff]
  %v54 = vld [vmem:[%s0 + $0x138] sm:$0xff]
  %v55 = vld [vmem:[%s0 + $0x140] sm:$0xff]
  %v56 = vld [vmem:[%s0 + $0x148] sm:$0xff]
  %v57 = vld [vmem:[%s0 + $0x150] sm:$0xff]
  %v58 = vld [vmem:[%s0 + $0x158] sm:$0xff]
  %v59 = vld [vmem:[%s0 + $0x160] sm:$0xff]
  %v60 = vld [vmem:[%s0 + $0x168] sm:$0xff]
  %v61 = vld [vmem:[%s0 + $0x170] sm:$0xff]
  %v62 = vld [vmem:[%s0 + $0x178] sm:$0xff]
  %v63 = vld [vmem:[%s0 + $0x180] sm:$0xff]
  %v64 = vld [vmem:[%s0 + $0x188] sm:$0xff]
  %v65 = vld [vmem:[%s0 + $0x190] sm:$0xff]
  %v66 = vld [vmem:[%s0 + $0x198] sm:$0xff]
  %v67 = vld [vmem:[%s0 + $0x1a0] sm:$0xff]
  %v68 = vld [vmem:[%s0 + $0x1a8] sm:$0xff]
  %v69 = vld [vmem:[%s0 + $0x1b0] sm:$0xff]
  %v70 = vld [vmem:[%s0 + $0x1b8] sm:$0xff]
  %v71 = vld [vmem:[%s0 + $0x1c0] sm:$0xff]
  %v72 = vld [vmem:[%s0 + $0x1c8] sm:$0xff]
  %v73 = vld [vmem:[%s0 + $0x1d0] sm:$0xff]
  %v74 = vld [vmem:[%s0 + $0x1d8] sm:$0xff]
  %v75 = vld [vmem:[%s0 + $0x1e0] sm:$0xff]
  %v76 = vld [vmem:[%s0 + $0x1e8] sm:$0xff]
  %v77 = vld [vmem:[%s0 + $0x1f0] sm:$0xff]
  %v78 = vld [vmem:[%s0 + $0x1f8] sm:$0xff]
  %v79 = vld [vmem:[%s0 + $0x200] sm:$0xff]
  %v80 = vld [vmem:[%s0 + $0x208] sm:$0xff]
  %v81 = vld [vmem:[%s0 + $0x210] sm:$0xff]
  %v82 = vld [vmem:[%s0 + $0x218] sm:$0xff]
  %v83 = vld [vmem:[%s0 + $0x220] sm:$0xff]
  %v84 = vld [vmem:[%s0 + $0x228] sm:$0xff]
  %v85 = vld [vmem:[%s0 + $0x230] sm:$0xff]
  %v86 = vld [vmem:[%s0 + $0x238] sm:$0xff]
  %v87 = vld [vmem:[%s0 + $0x240] sm:$0xff]
  %v88 = vld [vmem:[%s0 + $0x248] sm:$0xff]
  %v89 = vld [vmem:[%s0 + $0x250] sm:$0xff]
  %v90 = vld [vmem:[%s0 + $0x258] sm:$0xff]
  %v91 = vld [vmem:[%s0 + $0x260] sm:$0xff]
  %v92 = vld [vmem:[%s0 + $0x268] sm:$0xff]
  %v93 = vld [vmem:[%s0 + $0x270] sm:$0xff]
  %v94 = vld [vmem:[%s0 + $0x278] sm:$0xff]
  %v95 = vld [vmem:[%s0 + $0x280] sm:$0xff]
  %v96 = vld [vmem:[%s0 + $0x288] sm:$0xff]
  %v97 = vld [vmem:[%s0 + $0x290] sm:$0xff]
  %v98 = vld [vmem:[%s0 + $0x298] sm:$0xff]
  %v99 = vld [vmem:[%s0 + $0x2a0] sm:$0xff]
  %v100 = vld [vmem:[%s0 + $0x2a8] sm:$0xff]
  %v101 = vld [vmem:[%s0 + $0x2b0] sm:$0xff]
  %v102 = vld [vmem:[%s0 + $0x2b8] sm:$0xff]
  %v103 = vld [vmem:[%s0 + $0x2c0] sm:$0xff]
  %v104 = vld [vmem:[%s0 + $0x2c8] sm:$0xff]
  %v105 = vld [vmem:[%s0 + $0x2d0] sm:$0xff]
  %v106 = vld [vmem:[%s0 + $0x2d8] sm:$0xff]
  %v107 = vld [vmem:[%s0 + $0x2e0] sm:$0xff]
  %v108 = vld [vmem:[%s0 + $0x2e8] sm:$0xff]
  %v109 = vld [vmem:[%s0 + $0x2f0] sm:$0xff]
  %v110 = vld [vmem:[%s0 + $0x2f8] sm:$0xff]
  %v111 = vld [vmem:[%s0 + $0x300] sm:$0xff]
  %v112 = vld [vmem:[%s0 + $0x308] sm:$0xff]
  %v113 = vld [vmem:[%s0 + $0x310] sm:$0xff]
  %v114 = vld [vmem:[%s0 + $0x318] sm:$0xff]
  %v115 = vld [vmem:[%s1] sm:$0xf]
  %v116 = vld [vmem:[%s1 + $0x4] sm:$0xf]
  %v117 = vld [vmem:[%s1 + $0x8] sm:$0xf]
  %v118 = vld [vmem:[%s1 + $0xc] sm:$0xf]
  %v119 = vld [vmem:[%s1 + $0x10] sm:$0xf]
  %v120 = vld [vmem:[%s1 + $0x14] sm:$0xf]
  %v121 = vld [vmem:[%s1 + $0x18] sm:$0xf]
  %v122 = vld [vmem:[%s1 + $0x1c] sm:$0xf]
  %v123 = vld [vmem:[%s1 + $0x20] sm:$0xf]
  %v124 = vld [vmem:[%s1 + $0x24] sm:$0xf]
  %v125 = vld [vmem:[%s1 + $0x28] sm:$0xf]
  %v126 = vld [vmem:[%s1 + $0x2c] sm:$0xf]
  %v127 = vld [vmem:[%s1 + $0x30] sm:$0xf]
  %v128 = vld [vmem:[%s1 + $0x34] sm:$0xf]
  %v129 = vld [vmem:[%s1 + $0x38] sm:$0xf]
  %v130 = vld [vmem:[%s1 + $0x3c] sm:$0xf]
  %v131 = vld [vmem:[%s1 + $0x40] sm:$0xf]
  %v132 = vld [vmem:[%s1 + $0x44] sm:$0xf]
  %v133 = vld [vmem:[%s1 + $0x48] sm:$0xf]
  %v134 = vld [vmem:[%s1 + $0x4c] sm:$0xf]
  %v135 = vld [vmem:[%s1 + $0x50] sm:$0xf]
  %v136 = vld [vmem:[%s1 + $0x54] sm:$0xf]
  %v137 = vld [vmem:[%s1 + $0x58] sm:$0xf]
  %v138 = vld [vmem:[%s1 + $0x5c] sm:$0xf]
  %v139 = vld [vmem:[%s1 + $0x60] sm:$0xf]
  %v140 = vld [vmem:[%s1 + $0x64] sm:$0xf]
  %v141 = vld [vmem:[%s1 + $0x68] sm:$0xf]
  %v142 = vld [vmem:[%s1 + $0x6c] sm:$0xf]
  %v143 = vld [vmem:[%s1 + $0x70] sm:$0xf]
  %v144 = vld [vmem:[%s1 + $0x74] sm:$0xf]
  %v145 = vld [vmem:[%s1 + $0x78] sm:$0xf]
  %v146 = vld [vmem:[%s1 + $0x7c] sm:$0xf]
  %v147 = vld [vmem:[%s2] sm:$0x1]
  %v149 = vlaneseq
  %v150 = vshrl.u32 %v149, 7
  %v151 = vsub.s32 0, %v150
  %v152 = vrot.slane %v147, %v151
  %v254 = vunpack.c.l.b16 %v15
  %v255 = vunpack.c.h.b16 %v15
  %v256 = vunpack.c.l.b16 %v16
  %v257 = vunpack.c.h.b16 %v16
  %v258 = vunpack.c.l.b16 %v17
  %v259 = vunpack.c.h.b16 %v17
  %v260 = vunpack.c.l.b16 %v18
  %v261 = vunpack.c.h.b16 %v18
  %v262 = vunpack.c.l.b16 %v19
  %v263 = vunpack.c.h.b16 %v19
  %v264 = vunpack.c.l.b16 %v20
  %v265 = vunpack.c.h.b16 %v20
  %v266 = vunpack.c.l.b16 %v21
  %v267 = vunpack.c.h.b16 %v21
  %v268 = vunpack.c.l.b16 %v22
  %v269 = vunpack.c.h.b16 %v22
  %v270 = vunpack.c.l.b16 %v23
  %v271 = vunpack.c.h.b16 %v23
  %v272 = vunpack.c.l.b16 %v24
  %v273 = vunpack.c.h.b16 %v24
  %v274 = vunpack.c.l.b16 %v25
  %v275 = vunpack.c.h.b16 %v25
  %v276 = vunpack.c.l.b16 %v26
  %v277 = vunpack.c.h.b16 %v26
  %v278 = vunpack.c.l.b16 %v27
  %v279 = vunpack.c.h.b16 %v27
  %v280 = vunpack.c.l.b16 %v28
  %v281 = vunpack.c.h.b16 %v28
  %v282 = vunpack.c.l.b16 %v29
  %v283 = vunpack.c.h.b16 %v29
  %v284 = vunpack.c.l.b16 %v30
  %v285 = vunpack.c.h.b16 %v30
  %v286 = vunpack.c.l.b16 %v31
  %v287 = vunpack.c.h.b16 %v31
  %v288 = vunpack.c.l.b16 %v32
  %v289 = vunpack.c.h.b16 %v32
  %v290 = vunpack.c.l.b16 %v33
  %v291 = vunpack.c.h.b16 %v33
  %v292 = vunpack.c.l.b16 %v34
  %v293 = vunpack.c.h.b16 %v34
  %v294 = vunpack.c.l.b16 %v35
  %v295 = vunpack.c.h.b16 %v35
  %v296 = vunpack.c.l.b16 %v36
  %v297 = vunpack.c.h.b16 %v36
  %v298 = vunpack.c.l.b16 %v37
  %v299 = vunpack.c.h.b16 %v37
  %v300 = vunpack.c.l.b16 %v38
  %v301 = vunpack.c.h.b16 %v38
  %v302 = vunpack.c.l.b16 %v39
  %v303 = vunpack.c.h.b16 %v39
  %v304 = vunpack.c.l.b16 %v40
  %v305 = vunpack.c.h.b16 %v40
  %v306 = vunpack.c.l.b16 %v41
  %v307 = vunpack.c.h.b16 %v41
  %v308 = vunpack.c.l.b16 %v42
  %v309 = vunpack.c.h.b16 %v42
  %v310 = vunpack.c.l.b16 %v43
  %v311 = vunpack.c.h.b16 %v43
  %v312 = vunpack.c.l.b16 %v44
  %v313 = vunpack.c.h.b16 %v44
  %v314 = vunpack.c.l.b16 %v45
  %v315 = vunpack.c.h.b16 %v45
  %v316 = vunpack.c.l.b16 %v46
  %v317 = vunpack.c.h.b16 %v46
  %v318 = vunpack.c.l.b16 %v47
  %v319 = vunpack.c.h.b16 %v47
  %v320 = vunpack.c.l.b16 %v48
  %v321 = vunpack.c.h.b16 %v48
  %v322 = vunpack.c.l.b16 %v49
  %v323 = vunpack.c.h.b16 %v49
  %v324 = vunpack.c.l.b16 %v50
  %v325 = vunpack.c.h.b16 %v50
  %v326 = vunpack.c.l.b16 %v51
  %v327 = vunpack.c.h.b16 %v51
  %v328 = vunpack.c.l.b16 %v52
  %v329 = vunpack.c.h.b16 %v52
  %v330 = vunpack.c.l.b16 %v53
  %v331 = vunpack.c.h.b16 %v53
  %v332 = vunpack.c.l.b16 %v54
  %v333 = vunpack.c.h.b16 %v54
  %v334 = vunpack.c.l.b16 %v55
  %v335 = vunpack.c.h.b16 %v55
  %v336 = vunpack.c.l.b16 %v56
  %v337 = vunpack.c.h.b16 %v56
  %v338 = vunpack.c.l.b16 %v57
  %v339 = vunpack.c.h.b16 %v57
  %v340 = vunpack.c.l.b16 %v58
  %v341 = vunpack.c.h.b16 %v58
  %v342 = vunpack.c.l.b16 %v59
  %v343 = vunpack.c.h.b16 %v59
  %v344 = vunpack.c.l.b16 %v60
  %v345 = vunpack.c.h.b16 %v60
  %v346 = vunpack.c.l.b16 %v61
  %v347 = vunpack.c.h.b16 %v61
  %v348 = vunpack.c.l.b16 %v62
  %v349 = vunpack.c.h.b16 %v62
  %v350 = vunpack.c.l.b16 %v63
  %v351 = vunpack.c.h.b16 %v63
  %v352 = vunpack.c.l.b16 %v64
  %v353 = vunpack.c.h.b16 %v64
  %v354 = vunpack.c.l.b16 %v65
  %v355 = vunpack.c.h.b16 %v65
  %v356 = vunpack.c.l.b16 %v66
  %v357 = vunpack.c.h.b16 %v66
  %v358 = vunpack.c.l.b16 %v67
  %v359 = vunpack.c.h.b16 %v67
  %v360 = vunpack.c.l.b16 %v68
  %v361 = vunpack.c.h.b16 %v68
  %v362 = vunpack.c.l.b16 %v69
  %v363 = vunpack.c.h.b16 %v69
  %v364 = vunpack.c.l.b16 %v70
  %v365 = vunpack.c.h.b16 %v70
  %v366 = vunpack.c.l.b16 %v71
  %v367 = vunpack.c.h.b16 %v71
  %v368 = vunpack.c.l.b16 %v72
  %v369 = vunpack.c.h.b16 %v72
  %v370 = vunpack.c.l.b16 %v73
  %v371 = vunpack.c.h.b16 %v73
  %v372 = vunpack.c.l.b16 %v74
  %v373 = vunpack.c.h.b16 %v74
  %v374 = vunpack.c.l.b16 %v75
  %v375 = vunpack.c.h.b16 %v75
  %v376 = vunpack.c.l.b16 %v76
  %v377 = vunpack.c.h.b16 %v76
  %v378 = vunpack.c.l.b16 %v77
  %v379 = vunpack.c.h.b16 %v77
  %v380 = vunpack.c.l.b16 %v78
  %v381 = vunpack.c.h.b16 %v78
  %v382 = vunpack.c.l.b16 %v79
  %v383 = vunpack.c.h.b16 %v79
  %v384 = vunpack.c.l.b16 %v80
  %v385 = vunpack.c.h.b16 %v80
  %v386 = vunpack.c.l.b16 %v81
  %v387 = vunpack.c.h.b16 %v81
  %v388 = vunpack.c.l.b16 %v82
  %v389 = vunpack.c.h.b16 %v82
  %v390 = vunpack.c.l.b16 %v83
  %v391 = vunpack.c.h.b16 %v83
  %v392 = vunpack.c.l.b16 %v84
  %v393 = vunpack.c.h.b16 %v84
  %v394 = vunpack.c.l.b16 %v85
  %v395 = vunpack.c.h.b16 %v85
  %v396 = vunpack.c.l.b16 %v86
  %v397 = vunpack.c.h.b16 %v86
  %v398 = vunpack.c.l.b16 %v87
  %v399 = vunpack.c.h.b16 %v87
  %v400 = vunpack.c.l.b16 %v88
  %v401 = vunpack.c.h.b16 %v88
  %v402 = vunpack.c.l.b16 %v89
  %v403 = vunpack.c.h.b16 %v89
  %v404 = vunpack.c.l.b16 %v90
  %v405 = vunpack.c.h.b16 %v90
  %v406 = vunpack.c.l.b16 %v91
  %v407 = vunpack.c.h.b16 %v91
  %v408 = vunpack.c.l.b16 %v92
  %v409 = vunpack.c.h.b16 %v92
  %v410 = vunpack.c.l.b16 %v93
  %v411 = vunpack.c.h.b16 %v93
  %v412 = vunpack.c.l.b16 %v94
  %v413 = vunpack.c.h.b16 %v94
  %v414 = vunpack.c.l.b16 %v95
  %v415 = vunpack.c.h.b16 %v95
  %v416 = vunpack.c.l.b16 %v96
  %v417 = vunpack.c.h.b16 %v96
  %v418 = vunpack.c.l.b16 %v97
  %v419 = vunpack.c.h.b16 %v97
  %v420 = vunpack.c.l.b16 %v98
  %v421 = vunpack.c.h.b16 %v98
  %v422 = vunpack.c.l.b16 %v99
  %v423 = vunpack.c.h.b16 %v99
  %v424 = vunpack.c.l.b16 %v100
  %v425 = vunpack.c.h.b16 %v100
  %v426 = vunpack.c.l.b16 %v101
  %v427 = vunpack.c.h.b16 %v101
  %v428 = vunpack.c.l.b16 %v102
  %v429 = vunpack.c.h.b16 %v102
  %v430 = vunpack.c.l.b16 %v103
  %v431 = vunpack.c.h.b16 %v103
  %v432 = vunpack.c.l.b16 %v104
  %v433 = vunpack.c.h.b16 %v104
  %v434 = vunpack.c.l.b16 %v105
  %v435 = vunpack.c.h.b16 %v105
  %v436 = vunpack.c.l.b16 %v106
  %v437 = vunpack.c.h.b16 %v106
  %v438 = vunpack.c.l.b16 %v107
  %v439 = vunpack.c.h.b16 %v107
  %v440 = vunpack.c.l.b16 %v108
  %v441 = vunpack.c.h.b16 %v108
  %v442 = vunpack.c.l.b16 %v109
  %v443 = vunpack.c.h.b16 %v109
  %v444 = vunpack.c.l.b16 %v110
  %v445 = vunpack.c.h.b16 %v110
  %v446 = vunpack.c.l.b16 %v111
  %v447 = vunpack.c.h.b16 %v111
  %v448 = vunpack.c.l.b16 %v112
  %v449 = vunpack.c.h.b16 %v112
  %v450 = vunpack.c.l.b16 %v113
  %v451 = vunpack.c.h.b16 %v113
  %v452 = vunpack.c.l.b16 %v114
  %v453 = vunpack.c.h.b16 %v114
  %v454 = vpack.c.b16 %v256, %v254
  %v455 = vpack.c.b16 %v257, %v255
  %v456 = vpack.c.b16 %v260, %v258
  %v457 = vpack.c.b16 %v261, %v259
  %v458 = vpack.c.b16 %v264, %v262
  %v459 = vpack.c.b16 %v265, %v263
  %v460 = vpack.c.b16 %v268, %v266
  %v461 = vpack.c.b16 %v269, %v267
  %v462 = vpack.c.b16 %v272, %v270
  %v463 = vpack.c.b16 %v273, %v271
  %v464 = vpack.c.b16 %v276, %v274
  %v465 = vpack.c.b16 %v277, %v275
  %v466 = vpack.c.b16 %v280, %v278
  %v467 = vpack.c.b16 %v281, %v279
  %v468 = vpack.c.b16 %v284, %v282
  %v469 = vpack.c.b16 %v285, %v283
  %v470 = vpack.c.b16 %v288, %v286
  %v471 = vpack.c.b16 %v289, %v287
  %v472 = vpack.c.b16 %v292, %v290
  %v473 = vpack.c.b16 %v293, %v291
  %v474 = vpack.c.b16 %v296, %v294
  %v475 = vpack.c.b16 %v297, %v295
  %v476 = vpack.c.b16 %v300, %v298
  %v477 = vpack.c.b16 %v301, %v299
  %v478 = vpack.c.b16 %v304, %v302
  %v479 = vpack.c.b16 %v305, %v303
  %v480 = vpack.c.b16 %v308, %v306
  %v481 = vpack.c.b16 %v309, %v307
  %v482 = vpack.c.b16 %v312, %v310
  %v483 = vpack.c.b16 %v313, %v311
  %v484 = vpack.c.b16 %v316, %v314
  %v485 = vpack.c.b16 %v317, %v315
  %v486 = vpack.c.b16 %v320, %v318
  %v487 = vpack.c.b16 %v321, %v319
  %v488 = vpack.c.b16 %v324, %v322
  %v489 = vpack.c.b16 %v325, %v323
  %v490 = vpack.c.b16 %v328, %v326
  %v491 = vpack.c.b16 %v329, %v327
  %v492 = vpack.c.b16 %v332, %v330
  %v493 = vpack.c.b16 %v333, %v331
  %v494 = vpack.c.b16 %v336, %v334
  %v495 = vpack.c.b16 %v337, %v335
  %v496 = vpack.c.b16 %v340, %v338
  %v497 = vpack.c.b16 %v341, %v339
  %v498 = vpack.c.b16 %v344, %v342
  %v499 = vpack.c.b16 %v345, %v343
  %v500 = vpack.c.b16 %v348, %v346
  %v501 = vpack.c.b16 %v349, %v347
  %v502 = vpack.c.b16 %v352, %v350
  %v503 = vpack.c.b16 %v353, %v351
  %v504 = vpack.c.b16 %v356, %v354
  %v505 = vpack.c.b16 %v357, %v355
  %v506 = vpack.c.b16 %v360, %v358
  %v507 = vpack.c.b16 %v361, %v359
  %v508 = vpack.c.b16 %v364, %v362
  %v509 = vpack.c.b16 %v365, %v363
  %v510 = vpack.c.b16 %v368, %v366
  %v511 = vpack.c.b16 %v369, %v367
  %v512 = vpack.c.b16 %v372, %v370
  %v513 = vpack.c.b16 %v373, %v371
  %v514 = vpack.c.b16 %v376, %v374
  %v515 = vpack.c.b16 %v377, %v375
  %v516 = vpack.c.b16 %v380, %v378
  %v517 = vpack.c.b16 %v381, %v379
  %v518 = vpack.c.b16 %v384, %v382
  %v519 = vpack.c.b16 %v385, %v383
  %v520 = vpack.c.b16 %v388, %v386
  %v521 = vpack.c.b16 %v389, %v387
  %v522 = vpack.c.b16 %v392, %v390
  %v523 = vpack.c.b16 %v393, %v391
  %v524 = vpack.c.b16 %v396, %v394
  %v525 = vpack.c.b16 %v397, %v395
  %v526 = vpack.c.b16 %v400, %v398
  %v527 = vpack.c.b16 %v401, %v399
  %v528 = vpack.c.b16 %v404, %v402
  %v529 = vpack.c.b16 %v405, %v403
  %v530 = vpack.c.b16 %v408, %v406
  %v531 = vpack.c.b16 %v409, %v407
  %v532 = vpack.c.b16 %v412, %v410
  %v533 = vpack.c.b16 %v413, %v411
  %v534 = vpack.c.b16 %v416, %v414
  %v535 = vpack.c.b16 %v417, %v415
  %v536 = vpack.c.b16 %v420, %v418
  %v537 = vpack.c.b16 %v421, %v419
  %v538 = vpack.c.b16 %v424, %v422
  %v539 = vpack.c.b16 %v425, %v423
  %v540 = vpack.c.b16 %v428, %v426
  %v541 = vpack.c.b16 %v429, %v427
  %v542 = vpack.c.b16 %v432, %v430
  %v543 = vpack.c.b16 %v433, %v431
  %v544 = vpack.c.b16 %v436, %v434
  %v545 = vpack.c.b16 %v437, %v435
  %v546 = vpack.c.b16 %v440, %v438
  %v547 = vpack.c.b16 %v441, %v439
  %v548 = vpack.c.b16 %v444, %v442
  %v549 = vpack.c.b16 %v445, %v443
  %v550 = vpack.c.b16 %v448, %v446
  %v551 = vpack.c.b16 %v449, %v447
  %v552 = vpack.c.b16 %v452, %v450
  %v553 = vpack.c.b16 %v453, %v451
  %v686 = vunpack.c.l.b16 %v115
  %v687 = vunpack.c.l.b16 %v116
  %v688 = vunpack.c.l.b16 %v117
  %v689 = vunpack.c.l.b16 %v118
  %v690 = vunpack.c.l.b16 %v119
  %v691 = vunpack.c.l.b16 %v120
  %v692 = vunpack.c.l.b16 %v121
  %v693 = vunpack.c.l.b16 %v122
  %v694 = vunpack.c.l.b16 %v123
  %v695 = vunpack.c.l.b16 %v124
  %v696 = vunpack.c.l.b16 %v125
  %v697 = vunpack.c.l.b16 %v126
  %v698 = vunpack.c.l.b16 %v127
  %v699 = vunpack.c.l.b16 %v128
  %v700 = vunpack.c.l.b16 %v129
  %v701 = vunpack.c.l.b16 %v130
  %v702 = vunpack.c.l.b16 %v131
  %v703 = vunpack.c.l.b16 %v132
  %v704 = vunpack.c.l.b16 %v133
  %v705 = vunpack.c.l.b16 %v134
  %v706 = vunpack.c.l.b16 %v135
  %v707 = vunpack.c.l.b16 %v136
  %v708 = vunpack.c.l.b16 %v137
  %v709 = vunpack.c.l.b16 %v138
  %v710 = vunpack.c.l.b16 %v139
  %v711 = vunpack.c.l.b16 %v140
  %v712 = vunpack.c.l.b16 %v141
  %v713 = vunpack.c.l.b16 %v142
  %v714 = vunpack.c.l.b16 %v143
  %v715 = vunpack.c.l.b16 %v144
  %v716 = vunpack.c.l.b16 %v145
  %v717 = vunpack.c.l.b16 %v146
  %v718 = vpack.c.b16 %v687, %v686
  %v719 = vpack.c.b16 %v689, %v688
  %v720 = vpack.c.b16 %v691, %v690
  %v721 = vpack.c.b16 %v693, %v692
  %v722 = vpack.c.b16 %v695, %v694
  %v723 = vpack.c.b16 %v697, %v696
  %v724 = vpack.c.b16 %v699, %v698
  %v725 = vpack.c.b16 %v701, %v700
  %v726 = vpack.c.b16 %v703, %v702
  %v727 = vpack.c.b16 %v705, %v704
  %v728 = vpack.c.b16 %v707, %v706
  %v729 = vpack.c.b16 %v709, %v708
  %v730 = vpack.c.b16 %v711, %v710
  %v731 = vpack.c.b16 %v713, %v712
  %v732 = vpack.c.b16 %v715, %v714
  %v733 = vpack.c.b16 %v717, %v716
  %750 = vmatprep.subr.bf16.mxu0 0
  %751 = vmatpush1.bf16.msra.mxu0 %v718
  %752 = vmatprep.subr.bf16.mxu0 0
  %753 = vmatpush1.bf16.msra.mxu0 %v719
  %754 = vmatprep.subr.bf16.mxu0 0
  %755 = vmatpush1.bf16.msra.mxu0 %v720
  %756 = vmatprep.subr.bf16.mxu0 0
  %757 = vmatpush1.bf16.msra.mxu0 %v721
  %758 = vmatprep.subr.bf16.mxu0 0
  %759 = vmatpush1.bf16.msra.mxu0 %v722
  %760 = vmatprep.subr.bf16.mxu0 0
  %761 = vmatpush1.bf16.msra.mxu0 %v723
  %762 = vmatprep.subr.bf16.mxu0 0
  %763 = vmatpush1.bf16.msra.mxu0 %v724
  %764 = vmatprep.subr.bf16.mxu0 0
  %765 = vmatpush1.bf16.msra.mxu0 %v725
  %766 = vmatprep.subr.bf16.mxu0 0
  %767 = vmatpush1.bf16.msra.mxu0 %v726
  %768 = vmatprep.subr.bf16.mxu0 0
  %769 = vmatpush1.bf16.msra.mxu0 %v727
  %770 = vmatprep.subr.bf16.mxu0 0
  %771 = vmatpush1.bf16.msra.mxu0 %v728
  %772 = vmatprep.subr.bf16.mxu0 0
  %773 = vmatpush1.bf16.msra.mxu0 %v729
  %774 = vmatprep.subr.bf16.mxu0 0
  %775 = vmatpush1.bf16.msra.mxu0 %v730
  %776 = vmatprep.subr.bf16.mxu0 0
  %777 = vmatpush1.bf16.msra.mxu0 %v731
  %778 = vmatprep.subr.bf16.mxu0 0
  %779 = vmatpush1.bf16.msra.mxu0 %v732
  %780 = vmatprep.subr.bf16.mxu0 0
  %781 = vmatpush1.bf16.msra.mxu0 %v733
  %782 = vmatprep.mubr.bf16.mxu0 %v455
  %783 = vmatmul.mubr.bf16.gmra.mrb[0].mxu0 %v454
  %v784 = vpop.f32.mrb[0].mxu0
  %v785 = vadd.f32 %v152, %v784
  %v786 = vpop.f32.mrb[0].mxu0
  %v787 = vpop.f32.mrb[0].mxu0
  %v788 = vadd.f32 %v152, %v787
  %v789 = vpop.f32.mrb[0].mxu0
  %790 = vmatprep.mubr.bf16.mxu0 %v457
  %791 = vmatmul.mubr.bf16.gmra.mrb[0].mxu0 %v456
  %v792 = vpop.f32.mrb[0].mxu0
  %v793 = vadd.f32 %v152, %v792
  %v794 = vpop.f32.mrb[0].mxu0
  %v795 = vpop.f32.mrb[0].mxu0
  %v796 = vadd.f32 %v152, %v795
  %v797 = vpop.f32.mrb[0].mxu0
  %798 = vmatprep.mubr.bf16.mxu0 %v459
  %799 = vmatmul.mubr.bf16.gmra.mrb[0].mxu0 %v458
  %v800 = vpop.f32.mrb[0].mxu0
  %v801 = vadd.f32 %v152, %v800
  %v802 = vpop.f32.mrb[0].mxu0
  %v803 = vpop.f32.mrb[0].mxu0
  %v804 = vadd.f32 %v152, %v803
  %v805 = vpop.f32.mrb[0].mxu0
  %806 = vmatprep.mubr.bf16.mxu0 %v461
  %807 = vmatmul.mubr.bf16.gmra.mrb[0].mxu0 %v460
  %v808 = vpop.f32.mrb[0].mxu0
  %v809 = vadd.f32 %v152, %v808
  %v810 = vpop.f32.mrb[0].mxu0
  %v811 = vpop.f32.mrb[0].mxu0
  %v812 = vadd.f32 %v152, %v811
  %v813 = vpop.f32.mrb[0].mxu0
  %814 = vmatprep.mubr.bf16.mxu0 %v463
  %815 = vmatmul.mubr.bf16.gmra.mrb[0].mxu0 %v462
  %v816 = vpop.f32.mrb[0].mxu0
  %v817 = vadd.f32 %v152, %v816
  %v818 = vpop.f32.mrb[0].mxu0
  %v819 = vpop.f32.mrb[0].mxu0
  %v820 = vadd.f32 %v152, %v819
  %v821 = vpop.f32.mrb[0].mxu0
  %822 = vmatprep.mubr.bf16.mxu0 %v465
  %823 = vmatmul.mubr.bf16.gmra.mrb[0].mxu0 %v464
  %v824 = vpop.f32.mrb[0].mxu0
  %v825 = vadd.f32 %v152, %v824
  %v826 = vpop.f32.mrb[0].mxu0
  %v827 = vpop.f32.mrb[0].mxu0
  %v828 = vadd.f32 %v152, %v827
  %v829 = vpop.f32.mrb[0].mxu0
  %830 = vmatprep.mubr.bf16.mxu0 %v467
  %831 = vmatmul.mubr.bf16.gmra.mrb[0].mxu0 %v466
  %v832 = vpop.f32.mrb[0].mxu0
  %v833 = vadd.f32 %v152, %v832
  %v834 = vpop.f32.mrb[0].mxu0
  %v835 = vpop.f32.mrb[0].mxu0
  %v836 = vadd.f32 %v152, %v835
  %v837 = vpop.f32.mrb[0].mxu0
  %838 = vmatprep.mubr.bf16.mxu0 %v469
  %839 = vmatmul.mubr.bf16.gmra.mrb[0].mxu0 %v468
  %v840 = vpop.f32.mrb[0].mxu0
  %v841 = vadd.f32 %v152, %v840
  %v842 = vpop.f32.mrb[0].mxu0
  %v843 = vpop.f32.mrb[0].mxu0
  %v844 = vadd.f32 %v152, %v843
  %v845 = vpop.f32.mrb[0].mxu0
  %846 = vmatprep.mubr.bf16.mxu0 %v471
  %847 = vmatmul.mubr.bf16.gmra.mrb[0].mxu0 %v470
  %v848 = vpop.f32.mrb[0].mxu0
  %v849 = vadd.f32 %v152, %v848
  %v850 = vpop.f32.mrb[0].mxu0
  %v851 = vpop.f32.mrb[0].mxu0
  %v852 = vadd.f32 %v152, %v851
  %v853 = vpop.f32.mrb[0].mxu0
  %854 = vmatprep.mubr.bf16.mxu0 %v473
  %855 = vmatmul.mubr.bf16.gmra.mrb[0].mxu0 %v472
  %v856 = vpop.f32.mrb[0].mxu0
  %v857 = vadd.f32 %v152, %v856
  %v858 = vpop.f32.mrb[0].mxu0
  %v859 = vpop.f32.mrb[0].mxu0
  %v860 = vadd.f32 %v152, %v859
  %v861 = vpop.f32.mrb[0].mxu0
  %862 = vmatprep.mubr.bf16.mxu0 %v475
  %863 = vmatmul.mubr.bf16.gmra.mrb[0].mxu0 %v474
  %v864 = vpop.f32.mrb[0].mxu0
  %v865 = vadd.f32 %v152, %v864
  %v866 = vpop.f32.mrb[0].mxu0
  %v867 = vpop.f32.mrb[0].mxu0
  %v868 = vadd.f32 %v152, %v867
  %v869 = vpop.f32.mrb[0].mxu0
  %870 = vmatprep.mubr.bf16.mxu0 %v477
  %871 = vmatmul.mubr.bf16.gmra.mrb[0].mxu0 %v476
  %v872 = vpop.f32.mrb[0].mxu0
  %v873 = vadd.f32 %v152, %v872
  %v874 = vpop.f32.mrb[0].mxu0
  %v875 = vpop.f32.mrb[0].mxu0
  %v876 = vadd.f32 %v152, %v875
  %v877 = vpop.f32.mrb[0].mxu0
  %878 = vmatprep.mubr.bf16.mxu0 %v479
  %879 = vmatmul.mubr.bf16.gmra.mrb[0].mxu0 %v478
  %v880 = vpop.f32.mrb[0].mxu0
  %v881 = vadd.f32 %v152, %v880
  %v882 = vpop.f32.mrb[0].mxu0
  %v883 = vpop.f32.mrb[0].mxu0
  %v884 = vadd.f32 %v152, %v883
  %v885 = vpop.f32.mrb[0].mxu0
  %886 = vmatprep.mubr.bf16.mxu0 %v481
  %887 = vmatmul.mubr.bf16.gmra.mrb[0].mxu0 %v480
  %v888 = vpop.f32.mrb[0].mxu0
  %v889 = vadd.f32 %v152, %v888
  %v890 = vpop.f32.mrb[0].mxu0
  %v891 = vpop.f32.mrb[0].mxu0
  %v892 = vadd.f32 %v152, %v891
  %v893 = vpop.f32.mrb[0].mxu0
  %894 = vmatprep.mubr.bf16.mxu0 %v483
  %895 = vmatmul.mubr.bf16.gmra.mrb[0].mxu0 %v482
  %v896 = vpop.f32.mrb[0].mxu0
  %v897 = vadd.f32 %v152, %v896
  %v898 = vpop.f32.mrb[0].mxu0
  %v899 = vpop.f32.mrb[0].mxu0
  %v900 = vadd.f32 %v152, %v899
  %v901 = vpop.f32.mrb[0].mxu0
  %902 = vmatprep.mubr.bf16.mxu0 %v485
  %903 = vmatmul.mubr.bf16.gmra.mrb[0].mxu0 %v484
  %v904 = vpop.f32.mrb[0].mxu0
  %v905 = vadd.f32 %v152, %v904
  %v906 = vpop.f32.mrb[0].mxu0
  %v907 = vpop.f32.mrb[0].mxu0
  %v908 = vadd.f32 %v152, %v907
  %v909 = vpop.f32.mrb[0].mxu0
  %910 = vmatprep.mubr.bf16.mxu0 %v487
  %911 = vmatmul.mubr.bf16.gmra.mrb[0].mxu0 %v486
  %v912 = vpop.f32.mrb[0].mxu0
  %v913 = vadd.f32 %v152, %v912
  %v914 = vpop.f32.mrb[0].mxu0
  %v915 = vpop.f32.mrb[0].mxu0
  %v916 = vadd.f32 %v152, %v915
  %v917 = vpop.f32.mrb[0].mxu0
  %918 = vmatprep.mubr.bf16.mxu0 %v489
  %919 = vmatmul.mubr.bf16.gmra.mrb[0].mxu0 %v488
  %v920 = vpop.f32.mrb[0].mxu0
  %v921 = vadd.f32 %v152, %v920
  %v922 = vpop.f32.mrb[0].mxu0
  %v923 = vpop.f32.mrb[0].mxu0
  %v924 = vadd.f32 %v152, %v923
  %v925 = vpop.f32.mrb[0].mxu0
  %926 = vmatprep.mubr.bf16.mxu0 %v491
  %927 = vmatmul.mubr.bf16.gmra.mrb[0].mxu0 %v490
  %v928 = vpop.f32.mrb[0].mxu0
  %v929 = vadd.f32 %v152, %v928
  %v930 = vpop.f32.mrb[0].mxu0
  %v931 = vpop.f32.mrb[0].mxu0
  %v932 = vadd.f32 %v152, %v931
  %v933 = vpop.f32.mrb[0].mxu0
  %934 = vmatprep.mubr.bf16.mxu0 %v493
  %935 = vmatmul.mubr.bf16.gmra.mrb[0].mxu0 %v492
  %v936 = vpop.f32.mrb[0].mxu0
  %v937 = vadd.f32 %v152, %v936
  %v938 = vpop.f32.mrb[0].mxu0
  %v939 = vpop.f32.mrb[0].mxu0
  %v940 = vadd.f32 %v152, %v939
  %v941 = vpop.f32.mrb[0].mxu0
  %942 = vmatprep.mubr.bf16.mxu0 %v495
  %943 = vmatmul.mubr.bf16.gmra.mrb[0].mxu0 %v494
  %v944 = vpop.f32.mrb[0].mxu0
  %v945 = vadd.f32 %v152, %v944
  %v946 = vpop.f32.mrb[0].mxu0
  %v947 = vpop.f32.mrb[0].mxu0
  %v948 = vadd.f32 %v152, %v947
  %v949 = vpop.f32.mrb[0].mxu0
  %950 = vmatprep.mubr.bf16.mxu0 %v497
  %951 = vmatmul.mubr.bf16.gmra.mrb[0].mxu0 %v496
  %v952 = vpop.f32.mrb[0].mxu0
  %v953 = vadd.f32 %v152, %v952
  %v954 = vpop.f32.mrb[0].mxu0
  %v955 = vpop.f32.mrb[0].mxu0
  %v956 = vadd.f32 %v152, %v955
  %v957 = vpop.f32.mrb[0].mxu0
  %958 = vmatprep.mubr.bf16.mxu0 %v499
  %959 = vmatmul.mubr.bf16.gmra.mrb[0].mxu0 %v498
  %v960 = vpop.f32.mrb[0].mxu0
  %v961 = vadd.f32 %v152, %v960
  %v962 = vpop.f32.mrb[0].mxu0
  %v963 = vpop.f32.mrb[0].mxu0
  %v964 = vadd.f32 %v152, %v963
  %v965 = vpop.f32.mrb[0].mxu0
  %966 = vmatprep.mubr.bf16.mxu0 %v501
  %967 = vmatmul.mubr.bf16.gmra.mrb[0].mxu0 %v500
  %v968 = vpop.f32.mrb[0].mxu0
  %v969 = vadd.f32 %v152, %v968
  %v970 = vpop.f32.mrb[0].mxu0
  %v971 = vpop.f32.mrb[0].mxu0
  %v972 = vadd.f32 %v152, %v971
  %v973 = vpop.f32.mrb[0].mxu0
  %974 = vmatprep.mubr.bf16.mxu0 %v503
  %975 = vmatmul.mubr.bf16.gmra.mrb[0].mxu0 %v502
  %v976 = vpop.f32.mrb[0].mxu0
  %v977 = vadd.f32 %v152, %v976
  %v978 = vpop.f32.mrb[0].mxu0
  %v979 = vpop.f32.mrb[0].mxu0
  %v980 = vadd.f32 %v152, %v979
  %v981 = vpop.f32.mrb[0].mxu0
  %982 = vmatprep.mubr.bf16.mxu0 %v505
  %983 = vmatmul.mubr.bf16.gmra.mrb[0].mxu0 %v504
  %v984 = vpop.f32.mrb[0].mxu0
  %v985 = vadd.f32 %v152, %v984
  %v986 = vpop.f32.mrb[0].mxu0
  %v987 = vpop.f32.mrb[0].mxu0
  %v988 = vadd.f32 %v152, %v987
  %v989 = vpop.f32.mrb[0].mxu0
  %990 = vmatprep.mubr.bf16.mxu0 %v507
  %991 = vmatmul.mubr.bf16.gmra.mrb[0].mxu0 %v506
  %v992 = vpop.f32.mrb[0].mxu0
  %v993 = vadd.f32 %v152, %v992
  %v994 = vpop.f32.mrb[0].mxu0
  %v995 = vpop.f32.mrb[0].mxu0
  %v996 = vadd.f32 %v152, %v995
  %v997 = vpop.f32.mrb[0].mxu0
  %998 = vmatprep.mubr.bf16.mxu0 %v509
  %999 = vmatmul.mubr.bf16.gmra.mrb[0].mxu0 %v508
  %v1000 = vpop.f32.mrb[0].mxu0
  %v1001 = vadd.f32 %v152, %v1000
  %v1002 = vpop.f32.mrb[0].mxu0
  %v1003 = vpop.f32.mrb[0].mxu0
  %v1004 = vadd.f32 %v152, %v1003
  %v1005 = vpop.f32.mrb[0].mxu0
  %1006 = vmatprep.mubr.bf16.mxu0 %v511
  %1007 = vmatmul.mubr.bf16.gmra.mrb[0].mxu0 %v510
  %v1008 = vpop.f32.mrb[0].mxu0
  %v1009 = vadd.f32 %v152, %v1008
  %v1010 = vpop.f32.mrb[0].mxu0
  %v1011 = vpop.f32.mrb[0].mxu0
  %v1012 = vadd.f32 %v152, %v1011
  %v1013 = vpop.f32.mrb[0].mxu0
  %1014 = vmatprep.mubr.bf16.mxu0 %v513
  %1015 = vmatmul.mubr.bf16.gmra.mrb[0].mxu0 %v512
  %v1016 = vpop.f32.mrb[0].mxu0
  %v1017 = vadd.f32 %v152, %v1016
  %v1018 = vpop.f32.mrb[0].mxu0
  %v1019 = vpop.f32.mrb[0].mxu0
  %v1020 = vadd.f32 %v152, %v1019
  %v1021 = vpop.f32.mrb[0].mxu0
  %1022 = vmatprep.mubr.bf16.mxu0 %v515
  %1023 = vmatmul.mubr.bf16.gmra.mrb[0].mxu0 %v514
  %v1024 = vpop.f32.mrb[0].mxu0
  %v1025 = vadd.f32 %v152, %v1024
  %v1026 = vpop.f32.mrb[0].mxu0
  %v1027 = vpop.f32.mrb[0].mxu0
  %v1028 = vadd.f32 %v152, %v1027
  %v1029 = vpop.f32.mrb[0].mxu0
  %1030 = vmatprep.mubr.bf16.mxu0 %v517
  %1031 = vmatmul.mubr.bf16.gmra.mrb[0].mxu0 %v516
  %v1032 = vpop.f32.mrb[0].mxu0
  %v1033 = vadd.f32 %v152, %v1032
  %v1034 = vpop.f32.mrb[0].mxu0
  %v1035 = vpop.f32.mrb[0].mxu0
  %v1036 = vadd.f32 %v152, %v1035
  %v1037 = vpop.f32.mrb[0].mxu0
  %1038 = vmatprep.mubr.bf16.mxu0 %v519
  %1039 = vmatmul.mubr.bf16.gmra.mrb[0].mxu0 %v518
  %v1040 = vpop.f32.mrb[0].mxu0
  %v1041 = vadd.f32 %v152, %v1040
  %v1042 = vpop.f32.mrb[0].mxu0
  %v1043 = vpop.f32.mrb[0].mxu0
  %v1044 = vadd.f32 %v152, %v1043
  %v1045 = vpop.f32.mrb[0].mxu0
  %1046 = vmatprep.mubr.bf16.mxu0 %v521
  %1047 = vmatmul.mubr.bf16.gmra.mrb[0].mxu0 %v520
  %v1048 = vpop.f32.mrb[0].mxu0
  %v1049 = vadd.f32 %v152, %v1048
  %v1050 = vpop.f32.mrb[0].mxu0
  %v1051 = vpop.f32.mrb[0].mxu0
  %v1052 = vadd.f32 %v152, %v1051
  %v1053 = vpop.f32.mrb[0].mxu0
  %1054 = vmatprep.mubr.bf16.mxu0 %v523
  %1055 = vmatmul.mubr.bf16.gmra.mrb[0].mxu0 %v522
  %v1056 = vpop.f32.mrb[0].mxu0
  %v1057 = vadd.f32 %v152, %v1056
  %v1058 = vpop.f32.mrb[0].mxu0
  %v1059 = vpop.f32.mrb[0].mxu0
  %v1060 = vadd.f32 %v152, %v1059
  %v1061 = vpop.f32.mrb[0].mxu0
  %1062 = vmatprep.mubr.bf16.mxu0 %v525
  %1063 = vmatmul.mubr.bf16.gmra.mrb[0].mxu0 %v524
  %v1064 = vpop.f32.mrb[0].mxu0
  %v1065 = vadd.f32 %v152, %v1064
  %v1066 = vpop.f32.mrb[0].mxu0
  %v1067 = vpop.f32.mrb[0].mxu0
  %v1068 = vadd.f32 %v152, %v1067
  %v1069 = vpop.f32.mrb[0].mxu0
  %1070 = vmatprep.mubr.bf16.mxu0 %v527
  %1071 = vmatmul.mubr.bf16.gmra.mrb[0].mxu0 %v526
  %v1072 = vpop.f32.mrb[0].mxu0
  %v1073 = vadd.f32 %v152, %v1072
  %v1074 = vpop.f32.mrb[0].mxu0
  %v1075 = vpop.f32.mrb[0].mxu0
  %v1076 = vadd.f32 %v152, %v1075
  %v1077 = vpop.f32.mrb[0].mxu0
  %1078 = vmatprep.mubr.bf16.mxu0 %v529
  %1079 = vmatmul.mubr.bf16.gmra.mrb[0].mxu0 %v528
  %v1080 = vpop.f32.mrb[0].mxu0
  %v1081 = vadd.f32 %v152, %v1080
  %v1082 = vpop.f32.mrb[0].mxu0
  %v1083 = vpop.f32.mrb[0].mxu0
  %v1084 = vadd.f32 %v152, %v1083
  %v1085 = vpop.f32.mrb[0].mxu0
  %1086 = vmatprep.mubr.bf16.mxu0 %v531
  %1087 = vmatmul.mubr.bf16.gmra.mrb[0].mxu0 %v530
  %v1088 = vpop.f32.mrb[0].mxu0
  %v1089 = vadd.f32 %v152, %v1088
  %v1090 = vpop.f32.mrb[0].mxu0
  %v1091 = vpop.f32.mrb[0].mxu0
  %v1092 = vadd.f32 %v152, %v1091
  %v1093 = vpop.f32.mrb[0].mxu0
  %1094 = vmatprep.mubr.bf16.mxu0 %v533
  %1095 = vmatmul.mubr.bf16.gmra.mrb[0].mxu0 %v532
  %v1096 = vpop.f32.mrb[0].mxu0
  %v1097 = vadd.f32 %v152, %v1096
  %v1098 = vpop.f32.mrb[0].mxu0
  %v1099 = vpop.f32.mrb[0].mxu0
  %v1100 = vadd.f32 %v152, %v1099
  %v1101 = vpop.f32.mrb[0].mxu0
  %1102 = vmatprep.mubr.bf16.mxu0 %v535
  %1103 = vmatmul.mubr.bf16.gmra.mrb[0].mxu0 %v534
  %v1104 = vpop.f32.mrb[0].mxu0
  %v1105 = vadd.f32 %v152, %v1104
  %v1106 = vpop.f32.mrb[0].mxu0
  %v1107 = vpop.f32.mrb[0].mxu0
  %v1108 = vadd.f32 %v152, %v1107
  %v1109 = vpop.f32.mrb[0].mxu0
  %1110 = vmatprep.mubr.bf16.mxu0 %v537
  %1111 = vmatmul.mubr.bf16.gmra.mrb[0].mxu0 %v536
  %v1112 = vpop.f32.mrb[0].mxu0
  %v1113 = vadd.f32 %v152, %v1112
  %v1114 = vpop.f32.mrb[0].mxu0
  %v1115 = vpop.f32.mrb[0].mxu0
  %v1116 = vadd.f32 %v152, %v1115
  %v1117 = vpop.f32.mrb[0].mxu0
  %1118 = vmatprep.mubr.bf16.mxu0 %v539
  %1119 = vmatmul.mubr.bf16.gmra.mrb[0].mxu0 %v538
  %v1120 = vpop.f32.mrb[0].mxu0
  %v1121 = vadd.f32 %v152, %v1120
  %v1122 = vpop.f32.mrb[0].mxu0
  %v1123 = vpop.f32.mrb[0].mxu0
  %v1124 = vadd.f32 %v152, %v1123
  %v1125 = vpop.f32.mrb[0].mxu0
  %1126 = vmatprep.mubr.bf16.mxu0 %v541
  %1127 = vmatmul.mubr.bf16.gmra.mrb[0].mxu0 %v540
  %v1128 = vpop.f32.mrb[0].mxu0
  %v1129 = vadd.f32 %v152, %v1128
  %v1130 = vpop.f32.mrb[0].mxu0
  %v1131 = vpop.f32.mrb[0].mxu0
  %v1132 = vadd.f32 %v152, %v1131
  %v1133 = vpop.f32.mrb[0].mxu0
  %1134 = vmatprep.mubr.bf16.mxu0 %v543
  %1135 = vmatmul.mubr.bf16.gmra.mrb[0].mxu0 %v542
  %v1136 = vpop.f32.mrb[0].mxu0
  %v1137 = vadd.f32 %v152, %v1136
  %v1138 = vpop.f32.mrb[0].mxu0
  %v1139 = vpop.f32.mrb[0].mxu0
  %v1140 = vadd.f32 %v152, %v1139
  %v1141 = vpop.f32.mrb[0].mxu0
  %1142 = vmatprep.mubr.bf16.mxu0 %v545
  %1143 = vmatmul.mubr.bf16.gmra.mrb[0].mxu0 %v544
  %v1144 = vpop.f32.mrb[0].mxu0
  %v1145 = vadd.f32 %v152, %v1144
  %v1146 = vpop.f32.mrb[0].mxu0
  %v1147 = vpop.f32.mrb[0].mxu0
  %v1148 = vadd.f32 %v152, %v1147
  %v1149 = vpop.f32.mrb[0].mxu0
  %1150 = vmatprep.mubr.bf16.mxu0 %v547
  %1151 = vmatmul.mubr.bf16.gmra.mrb[0].mxu0 %v546
  %v1152 = vpop.f32.mrb[0].mxu0
  %v1153 = vadd.f32 %v152, %v1152
  %v1154 = vpop.f32.mrb[0].mxu0
  %v1155 = vpop.f32.mrb[0].mxu0
  %v1156 = vadd.f32 %v152, %v1155
  %v1157 = vpop.f32.mrb[0].mxu0
  %1158 = vmatprep.mubr.bf16.mxu0 %v549
  %1159 = vmatmul.mubr.bf16.gmra.mrb[0].mxu0 %v548
  %v1160 = vpop.f32.mrb[0].mxu0
  %v1161 = vadd.f32 %v152, %v1160
  %v1162 = vpop.f32.mrb[0].mxu0
  %v1163 = vpop.f32.mrb[0].mxu0
  %v1164 = vadd.f32 %v152, %v1163
  %v1165 = vpop.f32.mrb[0].mxu0
  %1166 = vmatprep.mubr.bf16.mxu0 %v551
  %1167 = vmatmul.mubr.bf16.gmra.mrb[0].mxu0 %v550
  %v1168 = vpop.f32.mrb[0].mxu0
  %v1169 = vadd.f32 %v152, %v1168
  %v1170 = vpop.f32.mrb[0].mxu0
  %v1171 = vpop.f32.mrb[0].mxu0
  %v1172 = vadd.f32 %v152, %v1171
  %v1173 = vpop.f32.mrb[0].mxu0
  %1174 = vmatprep.mubr.bf16.mxu0 %v553
  %1175 = vmatmul.mubr.bf16.gmra.mrb[0].mxu0 %v552
  %v1176 = vpop.f32.mrb[0].mxu0
  %v1177 = vadd.f32 %v152, %v1176
  %v1178 = vpop.f32.mrb[0].mxu0
  %v1179 = vpop.f32.mrb[0].mxu0
  %v1180 = vadd.f32 %v152, %v1179
  %v1181 = vpop.f32.mrb[0].mxu0
  %1182 = vdwg.mxu0
  %v1183 = vmax.f32 %v785, 0.0
  %v1184 = vmax.f32 %v788, 0.0
  %v1185 = vmax.f32 %v793, 0.0
  %v1186 = vmax.f32 %v796, 0.0
  %v1187 = vmax.f32 %v801, 0.0
  %v1188 = vmax.f32 %v804, 0.0
  %v1189 = vmax.f32 %v809, 0.0
  %v1190 = vmax.f32 %v812, 0.0
  %v1191 = vmax.f32 %v817, 0.0
  %v1192 = vmax.f32 %v820, 0.0
  %v1193 = vmax.f32 %v825, 0.0
  %v1194 = vmax.f32 %v828, 0.0
  %v1195 = vmax.f32 %v833, 0.0
  %v1196 = vmax.f32 %v836, 0.0
  %v1197 = vmax.f32 %v841, 0.0
  %v1198 = vmax.f32 %v844, 0.0
  %v1199 = vmax.f32 %v849, 0.0
  %v1200 = vmax.f32 %v852, 0.0
  %v1201 = vmax.f32 %v857, 0.0
  %v1202 = vmax.f32 %v860, 0.0
  %v1203 = vmax.f32 %v865, 0.0
  %v1204 = vmax.f32 %v868, 0.0
  %v1205 = vmax.f32 %v873, 0.0
  %v1206 = vmax.f32 %v876, 0.0
  %v1207 = vmax.f32 %v881, 0.0
  %v1208 = vmax.f32 %v884, 0.0
  %v1209 = vmax.f32 %v889, 0.0
  %v1210 = vmax.f32 %v892, 0.0
  %v1211 = vmax.f32 %v897, 0.0
  %v1212 = vmax.f32 %v900, 0.0
  %v1213 = vmax.f32 %v905, 0.0
  %v1214 = vmax.f32 %v908, 0.0
  %v1215 = vmax.f32 %v913, 0.0
  %v1216 = vmax.f32 %v916, 0.0
  %v1217 = vmax.f32 %v921, 0.0
  %v1218 = vmax.f32 %v924, 0.0
  %v1219 = vmax.f32 %v929, 0.0
  %v1220 = vmax.f32 %v932, 0.0
  %v1221 = vmax.f32 %v937, 0.0
  %v1222 = vmax.f32 %v940, 0.0
  %v1223 = vmax.f32 %v945, 0.0
  %v1224 = vmax.f32 %v948, 0.0
  %v1225 = vmax.f32 %v953, 0.0
  %v1226 = vmax.f32 %v956, 0.0
  %v1227 = vmax.f32 %v961, 0.0
  %v1228 = vmax.f32 %v964, 0.0
  %v1229 = vmax.f32 %v969, 0.0
  %v1230 = vmax.f32 %v972, 0.0
  %v1231 = vmax.f32 %v977, 0.0
  %v1232 = vmax.f32 %v980, 0.0
  %v1233 = vmax.f32 %v985, 0.0
  %v1234 = vmax.f32 %v988, 0.0
  %v1235 = vmax.f32 %v993, 0.0
  %v1236 = vmax.f32 %v996, 0.0
  %v1237 = vmax.f32 %v1001, 0.0
  %v1238 = vmax.f32 %v1004, 0.0
  %v1239 = vmax.f32 %v1009, 0.0
  %v1240 = vmax.f32 %v1012, 0.0
  %v1241 = vmax.f32 %v1017, 0.0
  %v1242 = vmax.f32 %v1020, 0.0
  %v1243 = vmax.f32 %v1025, 0.0
  %v1244 = vmax.f32 %v1028, 0.0
  %v1245 = vmax.f32 %v1033, 0.0
  %v1246 = vmax.f32 %v1036, 0.0
  %v1247 = vmax.f32 %v1041, 0.0
  %v1248 = vmax.f32 %v1044, 0.0
  %v1249 = vmax.f32 %v1049, 0.0
  %v1250 = vmax.f32 %v1052, 0.0
  %v1251 = vmax.f32 %v1057, 0.0
  %v1252 = vmax.f32 %v1060, 0.0
  %v1253 = vmax.f32 %v1065, 0.0
  %v1254 = vmax.f32 %v1068, 0.0
  %v1255 = vmax.f32 %v1073, 0.0
  %v1256 = vmax.f32 %v1076, 0.0
  %v1257 = vmax.f32 %v1081, 0.0
  %v1258 = vmax.f32 %v1084, 0.0
  %v1259 = vmax.f32 %v1089, 0.0
  %v1260 = vmax.f32 %v1092, 0.0
  %v1261 = vmax.f32 %v1097, 0.0
  %v1262 = vmax.f32 %v1100, 0.0
  %v1263 = vmax.f32 %v1105, 0.0
  %v1264 = vmax.f32 %v1108, 0.0
  %v1265 = vmax.f32 %v1113, 0.0
  %v1266 = vmax.f32 %v1116, 0.0
  %v1267 = vmax.f32 %v1121, 0.0
  %v1268 = vmax.f32 %v1124, 0.0
  %v1269 = vmax.f32 %v1129, 0.0
  %v1270 = vmax.f32 %v1132, 0.0
  %v1271 = vmax.f32 %v1137, 0.0
  %v1272 = vmax.f32 %v1140, 0.0
  %v1273 = vmax.f32 %v1145, 0.0
  %v1274 = vmax.f32 %v1148, 0.0
  %v1275 = vmax.f32 %v1153, 0.0
  %v1276 = vmax.f32 %v1156, 0.0
  %v1277 = vmax.f32 %v1161, 0.0
  %v1278 = vmax.f32 %v1164, 0.0
  %v1279 = vmax.f32 %v1169, 0.0
  %v1280 = vmax.f32 %v1172, 0.0
  %v1281 = vmax.f32 %v1177, 0.0
  %v1282 = vmax.f32 %v1180, 0.0
  %v1283 = vpack.c.bf16 %v1184, %v1183
  %v1284 = vpack.c.bf16 %v1186, %v1185
  %v1285 = vpack.c.bf16 %v1188, %v1187
  %v1286 = vpack.c.bf16 %v1190, %v1189
  %v1287 = vpack.c.bf16 %v1192, %v1191
  %v1288 = vpack.c.bf16 %v1194, %v1193
  %v1289 = vpack.c.bf16 %v1196, %v1195
  %v1290 = vpack.c.bf16 %v1198, %v1197
  %v1291 = vpack.c.bf16 %v1200, %v1199
  %v1292 = vpack.c.bf16 %v1202, %v1201
  %v1293 = vpack.c.bf16 %v1204, %v1203
  %v1294 = vpack.c.bf16 %v1206, %v1205
  %v1295 = vpack.c.bf16 %v1208, %v1207
  %v1296 = vpack.c.bf16 %v1210, %v1209
  %v1297 = vpack.c.bf16 %v1212, %v1211
  %v1298 = vpack.c.bf16 %v1214, %v1213
  %v1299 = vpack.c.bf16 %v1216, %v1215
  %v1300 = vpack.c.bf16 %v1218, %v1217
  %v1301 = vpack.c.bf16 %v1220, %v1219
  %v1302 = vpack.c.bf16 %v1222, %v1221
  %v1303 = vpack.c.bf16 %v1224, %v1223
  %v1304 = vpack.c.bf16 %v1226, %v1225
  %v1305 = vpack.c.bf16 %v1228, %v1227
  %v1306 = vpack.c.bf16 %v1230, %v1229
  %v1307 = vpack.c.bf16 %v1232, %v1231
  %v1308 = vpack.c.bf16 %v1234, %v1233
  %v1309 = vpack.c.bf16 %v1236, %v1235
  %v1310 = vpack.c.bf16 %v1238, %v1237
  %v1311 = vpack.c.bf16 %v1240, %v1239
  %v1312 = vpack.c.bf16 %v1242, %v1241
  %v1313 = vpack.c.bf16 %v1244, %v1243
  %v1314 = vpack.c.bf16 %v1246, %v1245
  %v1315 = vpack.c.bf16 %v1248, %v1247
  %v1316 = vpack.c.bf16 %v1250, %v1249
  %v1317 = vpack.c.bf16 %v1252, %v1251
  %v1318 = vpack.c.bf16 %v1254, %v1253
  %v1319 = vpack.c.bf16 %v1256, %v1255
  %v1320 = vpack.c.bf16 %v1258, %v1257
  %v1321 = vpack.c.bf16 %v1260, %v1259
  %v1322 = vpack.c.bf16 %v1262, %v1261
  %v1323 = vpack.c.bf16 %v1264, %v1263
  %v1324 = vpack.c.bf16 %v1266, %v1265
  %v1325 = vpack.c.bf16 %v1268, %v1267
  %v1326 = vpack.c.bf16 %v1270, %v1269
  %v1327 = vpack.c.bf16 %v1272, %v1271
  %v1328 = vpack.c.bf16 %v1274, %v1273
  %v1329 = vpack.c.bf16 %v1276, %v1275
  %v1330 = vpack.c.bf16 %v1278, %v1277
  %v1331 = vpack.c.bf16 %v1280, %v1279
  %v1332 = vpack.c.bf16 %v1282, %v1281
  %v1383 = vunpack.c.l.b16 %v1283
  %v1384 = vunpack.c.h.b16 %v1283
  %v1385 = vunpack.c.l.b16 %v1284
  %v1386 = vunpack.c.h.b16 %v1284
  %v1387 = vunpack.c.l.b16 %v1285
  %v1388 = vunpack.c.h.b16 %v1285
  %v1389 = vunpack.c.l.b16 %v1286
  %v1390 = vunpack.c.h.b16 %v1286
  %v1391 = vunpack.c.l.b16 %v1287
  %v1392 = vunpack.c.h.b16 %v1287
  %v1393 = vunpack.c.l.b16 %v1288
  %v1394 = vunpack.c.h.b16 %v1288
  %v1395 = vunpack.c.l.b16 %v1289
  %v1396 = vunpack.c.h.b16 %v1289
  %v1397 = vunpack.c.l.b16 %v1290
  %v1398 = vunpack.c.h.b16 %v1290
  %v1399 = vunpack.c.l.b16 %v1291
  %v1400 = vunpack.c.h.b16 %v1291
  %v1401 = vunpack.c.l.b16 %v1292
  %v1402 = vunpack.c.h.b16 %v1292
  %v1403 = vunpack.c.l.b16 %v1293
  %v1404 = vunpack.c.h.b16 %v1293
  %v1405 = vunpack.c.l.b16 %v1294
  %v1406 = vunpack.c.h.b16 %v1294
  %v1407 = vunpack.c.l.b16 %v1295
  %v1408 = vunpack.c.h.b16 %v1295
  %v1409 = vunpack.c.l.b16 %v1296
  %v1410 = vunpack.c.h.b16 %v1296
  %v1411 = vunpack.c.l.b16 %v1297
  %v1412 = vunpack.c.h.b16 %v1297
  %v1413 = vunpack.c.l.b16 %v1298
  %v1414 = vunpack.c.h.b16 %v1298
  %v1415 = vunpack.c.l.b16 %v1299
  %v1416 = vunpack.c.h.b16 %v1299
  %v1417 = vunpack.c.l.b16 %v1300
  %v1418 = vunpack.c.h.b16 %v1300
  %v1419 = vunpack.c.l.b16 %v1301
  %v1420 = vunpack.c.h.b16 %v1301
  %v1421 = vunpack.c.l.b16 %v1302
  %v1422 = vunpack.c.h.b16 %v1302
  %v1423 = vunpack.c.l.b16 %v1303
  %v1424 = vunpack.c.h.b16 %v1303
  %v1425 = vunpack.c.l.b16 %v1304
  %v1426 = vunpack.c.h.b16 %v1304
  %v1427 = vunpack.c.l.b16 %v1305
  %v1428 = vunpack.c.h.b16 %v1305
  %v1429 = vunpack.c.l.b16 %v1306
  %v1430 = vunpack.c.h.b16 %v1306
  %v1431 = vunpack.c.l.b16 %v1307
  %v1432 = vunpack.c.h.b16 %v1307
  %v1433 = vunpack.c.l.b16 %v1308
  %v1434 = vunpack.c.h.b16 %v1308
  %v1435 = vunpack.c.l.b16 %v1309
  %v1436 = vunpack.c.h.b16 %v1309
  %v1437 = vunpack.c.l.b16 %v1310
  %v1438 = vunpack.c.h.b16 %v1310
  %v1439 = vunpack.c.l.b16 %v1311
  %v1440 = vunpack.c.h.b16 %v1311
  %v1441 = vunpack.c.l.b16 %v1312
  %v1442 = vunpack.c.h.b16 %v1312
  %v1443 = vunpack.c.l.b16 %v1313
  %v1444 = vunpack.c.h.b16 %v1313
  %v1445 = vunpack.c.l.b16 %v1314
  %v1446 = vunpack.c.h.b16 %v1314
  %v1447 = vunpack.c.l.b16 %v1315
  %v1448 = vunpack.c.h.b16 %v1315
  %v1449 = vunpack.c.l.b16 %v1316
  %v1450 = vunpack.c.h.b16 %v1316
  %v1451 = vunpack.c.l.b16 %v1317
  %v1452 = vunpack.c.h.b16 %v1317
  %v1453 = vunpack.c.l.b16 %v1318
  %v1454 = vunpack.c.h.b16 %v1318
  %v1455 = vunpack.c.l.b16 %v1319
  %v1456 = vunpack.c.h.b16 %v1319
  %v1457 = vunpack.c.l.b16 %v1320
  %v1458 = vunpack.c.h.b16 %v1320
  %v1459 = vunpack.c.l.b16 %v1321
  %v1460 = vunpack.c.h.b16 %v1321
  %v1461 = vunpack.c.l.b16 %v1322
  %v1462 = vunpack.c.h.b16 %v1322
  %v1463 = vunpack.c.l.b16 %v1323
  %v1464 = vunpack.c.h.b16 %v1323
  %v1465 = vunpack.c.l.b16 %v1324
  %v1466 = vunpack.c.h.b16 %v1324
  %v1467 = vunpack.c.l.b16 %v1325
  %v1468 = vunpack.c.h.b16 %v1325
  %v1469 = vunpack.c.l.b16 %v1326
  %v1470 = vunpack.c.h.b16 %v1326
  %v1471 = vunpack.c.l.b16 %v1327
  %v1472 = vunpack.c.h.b16 %v1327
  %v1473 = vunpack.c.l.b16 %v1328
  %v1474 = vunpack.c.h.b16 %v1328
  %v1475 = vunpack.c.l.b16 %v1329
  %v1476 = vunpack.c.h.b16 %v1329
  %v1477 = vunpack.c.l.b16 %v1330
  %v1478 = vunpack.c.h.b16 %v1330
  %v1479 = vunpack.c.l.b16 %v1331
  %v1480 = vunpack.c.h.b16 %v1331
  %v1481 = vunpack.c.l.b16 %v1332
  %v1482 = vunpack.c.h.b16 %v1332
  %v1483 = vpack.c.b16 %v1383, %v1383
  %v1484 = vpack.c.b16 %v1384, %v1384
  %v1485 = vpack.c.b16 %v1385, %v1385
  %v1486 = vpack.c.b16 %v1386, %v1386
  %v1487 = vpack.c.b16 %v1387, %v1387
  %v1488 = vpack.c.b16 %v1388, %v1388
  %v1489 = vpack.c.b16 %v1389, %v1389
  %v1490 = vpack.c.b16 %v1390, %v1390
  %v1491 = vpack.c.b16 %v1391, %v1391
  %v1492 = vpack.c.b16 %v1392, %v1392
  %v1493 = vpack.c.b16 %v1393, %v1393
  %v1494 = vpack.c.b16 %v1394, %v1394
  %v1495 = vpack.c.b16 %v1395, %v1395
  %v1496 = vpack.c.b16 %v1396, %v1396
  %v1497 = vpack.c.b16 %v1397, %v1397
  %v1498 = vpack.c.b16 %v1398, %v1398
  %v1499 = vpack.c.b16 %v1399, %v1399
  %v1500 = vpack.c.b16 %v1400, %v1400
  %v1501 = vpack.c.b16 %v1401, %v1401
  %v1502 = vpack.c.b16 %v1402, %v1402
  %v1503 = vpack.c.b16 %v1403, %v1403
  %v1504 = vpack.c.b16 %v1404, %v1404
  %v1505 = vpack.c.b16 %v1405, %v1405
  %v1506 = vpack.c.b16 %v1406, %v1406
  %v1507 = vpack.c.b16 %v1407, %v1407
  %v1508 = vpack.c.b16 %v1408, %v1408
  %v1509 = vpack.c.b16 %v1409, %v1409
  %v1510 = vpack.c.b16 %v1410, %v1410
  %v1511 = vpack.c.b16 %v1411, %v1411
  %v1512 = vpack.c.b16 %v1412, %v1412
  %v1513 = vpack.c.b16 %v1413, %v1413
  %v1514 = vpack.c.b16 %v1414, %v1414
  %v1515 = vpack.c.b16 %v1415, %v1415
  %v1516 = vpack.c.b16 %v1416, %v1416
  %v1517 = vpack.c.b16 %v1417, %v1417
  %v1518 = vpack.c.b16 %v1418, %v1418
  %v1519 = vpack.c.b16 %v1419, %v1419
  %v1520 = vpack.c.b16 %v1420, %v1420
  %v1521 = vpack.c.b16 %v1421, %v1421
  %v1522 = vpack.c.b16 %v1422, %v1422
  %v1523 = vpack.c.b16 %v1423, %v1423
  %v1524 = vpack.c.b16 %v1424, %v1424
  %v1525 = vpack.c.b16 %v1425, %v1425
  %v1526 = vpack.c.b16 %v1426, %v1426
  %v1527 = vpack.c.b16 %v1427, %v1427
  %v1528 = vpack.c.b16 %v1428, %v1428
  %v1529 = vpack.c.b16 %v1429, %v1429
  %v1530 = vpack.c.b16 %v1430, %v1430
  %v1531 = vpack.c.b16 %v1431, %v1431
  %v1532 = vpack.c.b16 %v1432, %v1432
  %v1533 = vpack.c.b16 %v1433, %v1433
  %v1534 = vpack.c.b16 %v1434, %v1434
  %v1535 = vpack.c.b16 %v1435, %v1435
  %v1536 = vpack.c.b16 %v1436, %v1436
  %v1537 = vpack.c.b16 %v1437, %v1437
  %v1538 = vpack.c.b16 %v1438, %v1438
  %v1539 = vpack.c.b16 %v1439, %v1439
  %v1540 = vpack.c.b16 %v1440, %v1440
  %v1541 = vpack.c.b16 %v1441, %v1441
  %v1542 = vpack.c.b16 %v1442, %v1442
  %v1543 = vpack.c.b16 %v1443, %v1443
  %v1544 = vpack.c.b16 %v1444, %v1444
  %v1545 = vpack.c.b16 %v1445, %v1445
  %v1546 = vpack.c.b16 %v1446, %v1446
  %v1547 = vpack.c.b16 %v1447, %v1447
  %v1548 = vpack.c.b16 %v1448, %v1448
  %v1549 = vpack.c.b16 %v1449, %v1449
  %v1550 = vpack.c.b16 %v1450, %v1450
  %v1551 = vpack.c.b16 %v1451, %v1451
  %v1552 = vpack.c.b16 %v1452, %v1452
  %v1553 = vpack.c.b16 %v1453, %v1453
  %v1554 = vpack.c.b16 %v1454, %v1454
  %v1555 = vpack.c.b16 %v1455, %v1455
  %v1556 = vpack.c.b16 %v1456, %v1456
  %v1557 = vpack.c.b16 %v1457, %v1457
  %v1558 = vpack.c.b16 %v1458, %v1458
  %v1559 = vpack.c.b16 %v1459, %v1459
  %v1560 = vpack.c.b16 %v1460, %v1460
  %v1561 = vpack.c.b16 %v1461, %v1461
  %v1562 = vpack.c.b16 %v1462, %v1462
  %v1563 = vpack.c.b16 %v1463, %v1463
  %v1564 = vpack.c.b16 %v1464, %v1464
  %v1565 = vpack.c.b16 %v1465, %v1465
  %v1566 = vpack.c.b16 %v1466, %v1466
  %v1567 = vpack.c.b16 %v1467, %v1467
  %v1568 = vpack.c.b16 %v1468, %v1468
  %v1569 = vpack.c.b16 %v1469, %v1469
  %v1570 = vpack.c.b16 %v1470, %v1470
  %v1571 = vpack.c.b16 %v1471, %v1471
  %v1572 = vpack.c.b16 %v1472, %v1472
  %v1573 = vpack.c.b16 %v1473, %v1473
  %v1574 = vpack.c.b16 %v1474, %v1474
  %v1575 = vpack.c.b16 %v1475, %v1475
  %v1576 = vpack.c.b16 %v1476, %v1476
  %v1577 = vpack.c.b16 %v1477, %v1477
  %v1578 = vpack.c.b16 %v1478, %v1478
  %v1579 = vpack.c.b16 %v1479, %v1479
  %v1580 = vpack.c.b16 %v1480, %v1480
  %v1581 = vpack.c.b16 %v1481, %v1481
  %v1582 = vpack.c.b16 %v1482, %v1482
  %vm1683 = vcmask 257024
  %1684 = vst.msk [vmem:[%s3] sm:$0xf] %vm1683, %v1483
  %1685 = vst.msk [vmem:[%s3 + $0x4] sm:$0xf] %vm1683, %v1484
  %1686 = vst.msk [vmem:[%s3 + $0x8] sm:$0xf] %vm1683, %v1485
  %1687 = vst.msk [vmem:[%s3 + $0xc] sm:$0xf] %vm1683, %v1486
  %1688 = vst.msk [vmem:[%s3 + $0x10] sm:$0xf] %vm1683, %v1487
  %1689 = vst.msk [vmem:[%s3 + $0x14] sm:$0xf] %vm1683, %v1488
  %1690 = vst.msk [vmem:[%s3 + $0x18] sm:$0xf] %vm1683, %v1489
  %1691 = vst.msk [vmem:[%s3 + $0x1c] sm:$0xf] %vm1683, %v1490
  %1692 = vst.msk [vmem:[%s3 + $0x20] sm:$0xf] %vm1683, %v1491
  %1693 = vst.msk [vmem:[%s3 + $0x24] sm:$0xf] %vm1683, %v1492
  %1694 = vst.msk [vmem:[%s3 + $0x28] sm:$0xf] %vm1683, %v1493
  %1695 = vst.msk [vmem:[%s3 + $0x2c] sm:$0xf] %vm1683, %v1494
  %1696 = vst.msk [vmem:[%s3 + $0x30] sm:$0xf] %vm1683, %v1495
  %1697 = vst.msk [vmem:[%s3 + $0x34] sm:$0xf] %vm1683, %v1496
  %1698 = vst.msk [vmem:[%s3 + $0x38] sm:$0xf] %vm1683, %v1497
  %1699 = vst.msk [vmem:[%s3 + $0x3c] sm:$0xf] %vm1683, %v1498
  %1700 = vst.msk [vmem:[%s3 + $0x40] sm:$0xf] %vm1683, %v1499
  %1701 = vst.msk [vmem:[%s3 + $0x44] sm:$0xf] %vm1683, %v1500
  %1702 = vst.msk [vmem:[%s3 + $0x48] sm:$0xf] %vm1683, %v1501
  %1703 = vst.msk [vmem:[%s3 + $0x4c] sm:$0xf] %vm1683, %v1502
  %1704 = vst.msk [vmem:[%s3 + $0x50] sm:$0xf] %vm1683, %v1503
  %1705 = vst.msk [vmem:[%s3 + $0x54] sm:$0xf] %vm1683, %v1504
  %1706 = vst.msk [vmem:[%s3 + $0x58] sm:$0xf] %vm1683, %v1505
  %1707 = vst.msk [vmem:[%s3 + $0x5c] sm:$0xf] %vm1683, %v1506
  %1708 = vst.msk [vmem:[%s3 + $0x60] sm:$0xf] %vm1683, %v1507
  %1709 = vst.msk [vmem:[%s3 + $0x64] sm:$0xf] %vm1683, %v1508
  %1710 = vst.msk [vmem:[%s3 + $0x68] sm:$0xf] %vm1683, %v1509
  %1711 = vst.msk [vmem:[%s3 + $0x6c] sm:$0xf] %vm1683, %v1510
  %1712 = vst.msk [vmem:[%s3 + $0x70] sm:$0xf] %vm1683, %v1511
  %1713 = vst.msk [vmem:[%s3 + $0x74] sm:$0xf] %vm1683, %v1512
  %1714 = vst.msk [vmem:[%s3 + $0x78] sm:$0xf] %vm1683, %v1513
  %1715 = vst.msk [vmem:[%s3 + $0x7c] sm:$0xf] %vm1683, %v1514
  %1716 = vst.msk [vmem:[%s3 + $0x80] sm:$0xf] %vm1683, %v1515
  %1717 = vst.msk [vmem:[%s3 + $0x84] sm:$0xf] %vm1683, %v1516
  %1718 = vst.msk [vmem:[%s3 + $0x88] sm:$0xf] %vm1683, %v1517
  %1719 = vst.msk [vmem:[%s3 + $0x8c] sm:$0xf] %vm1683, %v1518
  %1720 = vst.msk [vmem:[%s3 + $0x90] sm:$0xf] %vm1683, %v1519
  %1721 = vst.msk [vmem:[%s3 + $0x94] sm:$0xf] %vm1683, %v1520
  %1722 = vst.msk [vmem:[%s3 + $0x98] sm:$0xf] %vm1683, %v1521
  %1723 = vst.msk [vmem:[%s3 + $0x9c] sm:$0xf] %vm1683, %v1522
  %1724 = vst.msk [vmem:[%s3 + $0xa0] sm:$0xf] %vm1683, %v1523
  %1725 = vst.msk [vmem:[%s3 + $0xa4] sm:$0xf] %vm1683, %v1524
  %1726 = vst.msk [vmem:[%s3 + $0xa8] sm:$0xf] %vm1683, %v1525
  %1727 = vst.msk [vmem:[%s3 + $0xac] sm:$0xf] %vm1683, %v1526
  %1728 = vst.msk [vmem:[%s3 + $0xb0] sm:$0xf] %vm1683, %v1527
  %1729 = vst.msk [vmem:[%s3 + $0xb4] sm:$0xf] %vm1683, %v1528
  %1730 = vst.msk [vmem:[%s3 + $0xb8] sm:$0xf] %vm1683, %v1529
  %1731 = vst.msk [vmem:[%s3 + $0xbc] sm:$0xf] %vm1683, %v1530
  %1732 = vst.msk [vmem:[%s3 + $0xc0] sm:$0xf] %vm1683, %v1531
  %1733 = vst.msk [vmem:[%s3 + $0xc4] sm:$0xf] %vm1683, %v1532
  %1734 = vst.msk [vmem:[%s3 + $0xc8] sm:$0xf] %vm1683, %v1533
  %1735 = vst.msk [vmem:[%s3 + $0xcc] sm:$0xf] %vm1683, %v1534
  %1736 = vst.msk [vmem:[%s3 + $0xd0] sm:$0xf] %vm1683, %v1535
  %1737 = vst.msk [vmem:[%s3 + $0xd4] sm:$0xf] %vm1683, %v1536
  %1738 = vst.msk [vmem:[%s3 + $0xd8] sm:$0xf] %vm1683, %v1537
  %1739 = vst.msk [vmem:[%s3 + $0xdc] sm:$0xf] %vm1683, %v1538
  %1740 = vst.msk [vmem:[%s3 + $0xe0] sm:$0xf] %vm1683, %v1539
  %1741 = vst.msk [vmem:[%s3 + $0xe4] sm:$0xf] %vm1683, %v1540
  %1742 = vst.msk [vmem:[%s3 + $0xe8] sm:$0xf] %vm1683, %v1541
  %1743 = vst.msk [vmem:[%s3 + $0xec] sm:$0xf] %vm1683, %v1542
  %1744 = vst.msk [vmem:[%s3 + $0xf0] sm:$0xf] %vm1683, %v1543
  %1745 = vst.msk [vmem:[%s3 + $0xf4] sm:$0xf] %vm1683, %v1544
  %1746 = vst.msk [vmem:[%s3 + $0xf8] sm:$0xf] %vm1683, %v1545
  %1747 = vst.msk [vmem:[%s3 + $0xfc] sm:$0xf] %vm1683, %v1546
  %1748 = vst.msk [vmem:[%s3 + $0x100] sm:$0xf] %vm1683, %v1547
  %1749 = vst.msk [vmem:[%s3 + $0x104] sm:$0xf] %vm1683, %v1548
  %1750 = vst.msk [vmem:[%s3 + $0x108] sm:$0xf] %vm1683, %v1549
  %1751 = vst.msk [vmem:[%s3 + $0x10c] sm:$0xf] %vm1683, %v1550
  %1752 = vst.msk [vmem:[%s3 + $0x110] sm:$0xf] %vm1683, %v1551
  %1753 = vst.msk [vmem:[%s3 + $0x114] sm:$0xf] %vm1683, %v1552
  %1754 = vst.msk [vmem:[%s3 + $0x118] sm:$0xf] %vm1683, %v1553
  %1755 = vst.msk [vmem:[%s3 + $0x11c] sm:$0xf] %vm1683, %v1554
  %1756 = vst.msk [vmem:[%s3 + $0x120] sm:$0xf] %vm1683, %v1555
  %1757 = vst.msk [vmem:[%s3 + $0x124] sm:$0xf] %vm1683, %v1556
  %1758 = vst.msk [vmem:[%s3 + $0x128] sm:$0xf] %vm1683, %v1557
  %1759 = vst.msk [vmem:[%s3 + $0x12c] sm:$0xf] %vm1683, %v1558
  %1760 = vst.msk [vmem:[%s3 + $0x130] sm:$0xf] %vm1683, %v1559
  %1761 = vst.msk [vmem:[%s3 + $0x134] sm:$0xf] %vm1683, %v1560
  %1762 = vst.msk [vmem:[%s3 + $0x138] sm:$0xf] %vm1683, %v1561
  %1763 = vst.msk [vmem:[%s3 + $0x13c] sm:$0xf] %vm1683, %v1562
  %1764 = vst.msk [vmem:[%s3 + $0x140] sm:$0xf] %vm1683, %v1563
  %1765 = vst.msk [vmem:[%s3 + $0x144] sm:$0xf] %vm1683, %v1564
  %1766 = vst.msk [vmem:[%s3 + $0x148] sm:$0xf] %vm1683, %v1565
  %1767 = vst.msk [vmem:[%s3 + $0x14c] sm:$0xf] %vm1683, %v1566
  %1768 = vst.msk [vmem:[%s3 + $0x150] sm:$0xf] %vm1683, %v1567
  %1769 = vst.msk [vmem:[%s3 + $0x154] sm:$0xf] %vm1683, %v1568
  %1770 = vst.msk [vmem:[%s3 + $0x158] sm:$0xf] %vm1683, %v1569
  %1771 = vst.msk [vmem:[%s3 + $0x15c] sm:$0xf] %vm1683, %v1570
  %1772 = vst.msk [vmem:[%s3 + $0x160] sm:$0xf] %vm1683, %v1571
  %1773 = vst.msk [vmem:[%s3 + $0x164] sm:$0xf] %vm1683, %v1572
  %1774 = vst.msk [vmem:[%s3 + $0x168] sm:$0xf] %vm1683, %v1573
  %1775 = vst.msk [vmem:[%s3 + $0x16c] sm:$0xf] %vm1683, %v1574
  %1776 = vst.msk [vmem:[%s3 + $0x170] sm:$0xf] %vm1683, %v1575
  %1777 = vst.msk [vmem:[%s3 + $0x174] sm:$0xf] %vm1683, %v1576
  %1778 = vst.msk [vmem:[%s3 + $0x178] sm:$0xf] %vm1683, %v1577
  %1779 = vst.msk [vmem:[%s3 + $0x17c] sm:$0xf] %vm1683, %v1578
  %1780 = vst.msk [vmem:[%s3 + $0x180] sm:$0xf] %vm1683, %v1579
  %1781 = vst.msk [vmem:[%s3 + $0x184] sm:$0xf] %vm1683, %v1580
  %1782 = vst.msk [vmem:[%s3 + $0x188] sm:$0xf] %vm1683, %v1581
  %1783 = vst.msk [vmem:[%s3 + $0x18c] sm:$0xf] %vm1683, %v1582
  // Predicated region
  $region14: #{dqn_forward.4} parent=0 // pred_check
    _
  $region15: #{dqn_forward.4} parent=0 // pred_check_branch
    %1785 = sbr.rel (0) target = $region17
  $region16: #{dqn_forward.4} parent=0 // pred_region
    _
  $region17: #{dqn_forward.4} parent=0 // pred_fallthru
    _
  // Predicated region
  $region18: #{dqn_forward.4} parent=0 // pred_check
    _
  $region19: #{dqn_forward.4} parent=0 // pred_check_branch
    %1787 = sbr.rel (0) target = $region21
  $region20: #{dqn_forward.4} parent=0 // pred_region
    _
  $region21: #{dqn_forward.4} parent=0 // pred_fallthru
    _

// kernel: dqn_forward.5
$region0: #{dqn_forward.5}
  #allocation0 [shape = 'u32[]', space=smem, size = 0x4, offset = 0x4, fixed_abs, tag = 'smem constant byte address 0x4 - core index']
  #allocation1 [shape = 'u32[144,128]{1,0:T(1,128)}', space=vmem, size = 0x12000, scoped, tag = 'internal scratch']
  %s0 = inlined_call_operand.vmem [shape: bf16[162,512], index: 0, kind: input, shape index: {}]
  %s1 = inlined_call_operand.vmem [shape: bf16[512,64], index: 1, kind: input, shape index: {}]
  %s2 = inlined_call_operand.vmem [shape: f32[1,64], index: 2, kind: input, shape index: {}]
  %s3 = inlined_call_operand.vmem [shape: bf16[162,64], index: 3, kind: output, shape index: {}]
  %s4 = sld [smem:[#allocation0]]
  $region22: #{dqn_forward.5} parent=0
    _
  %s6 = ssub.s32 1, %s4
  %s7 = scalar_select 0, %s6, %s4
  // Predicated region
  $region2: #{dqn_forward.5} parent=0 // pred_check
    _
  $region3: #{dqn_forward.5} parent=0 // pred_check_branch
    %9 = sbr.rel (0) target = $region5
  $region4: #{dqn_forward.5} parent=0 // pred_region
    _
  $region5: #{dqn_forward.5} parent=0 // pred_fallthru
    _
  // Predicated region
  $region6: #{dqn_forward.5} parent=0 // pred_check
    _
  $region7: #{dqn_forward.5} parent=0 // pred_check_branch
    %11 = sbr.rel (0) target = $region9
  $region8: #{dqn_forward.5} parent=0 // pred_region
    _
  $region9: #{dqn_forward.5} parent=0 // pred_fallthru
    _
  // Predicated region
  $region10: #{dqn_forward.5} parent=0 // pred_check
    _
  $region11: #{dqn_forward.5} parent=0 // pred_check_branch
    %13 = sbr.rel (0) target = $region13
  $region12: #{dqn_forward.5} parent=0 // pred_region
    _
  $region13: #{dqn_forward.5} parent=0 // pred_fallthru
    _
  %v15 = vld [vmem:[%s0] sm:$0xff]
  %v16 = vld [vmem:[%s0 + $0x8] sm:$0xff]
  %v17 = vld [vmem:[%s0 + $0x10] sm:$0xff]
  %v18 = vld [vmem:[%s0 + $0x18] sm:$0xff]
  %v19 = vld [vmem:[%s0 + $0x20] sm:$0xff]
  %v20 = vld [vmem:[%s0 + $0x28] sm:$0xff]
  %v21 = vld [vmem:[%s0 + $0x30] sm:$0xff]
  %v22 = vld [vmem:[%s0 + $0x38] sm:$0xff]
  %v23 = vld [vmem:[%s0 + $0x40] sm:$0xff]
  %v24 = vld [vmem:[%s0 + $0x48] sm:$0xff]
  %v25 = vld [vmem:[%s0 + $0x50] sm:$0xff]
  %v26 = vld [vmem:[%s0 + $0x58] sm:$0xff]
  %v27 = vld [vmem:[%s0 + $0x60] sm:$0xff]
  %v28 = vld [vmem:[%s0 + $0x68] sm:$0xff]
  %v29 = vld [vmem:[%s0 + $0x70] sm:$0xff]
  %v30 = vld [vmem:[%s0 + $0x78] sm:$0xff]
  %v31 = vld [vmem:[%s0 + $0x80] sm:$0xff]
  %v32 = vld [vmem:[%s0 + $0x88] sm:$0xff]
  %v33 = vld [vmem:[%s0 + $0x90] sm:$0xff]
  %v34 = vld [vmem:[%s0 + $0x98] sm:$0xff]
  %v35 = vld [vmem:[%s0 + $0xa0] sm:$0xff]
  %v36 = vld [vmem:[%s0 + $0xa8] sm:$0xff]
  %v37 = vld [vmem:[%s0 + $0xb0] sm:$0xff]
  %v38 = vld [vmem:[%s0 + $0xb8] sm:$0xff]
  %v39 = vld [vmem:[%s0 + $0xc0] sm:$0xff]
  %v40 = vld [vmem:[%s0 + $0xc8] sm:$0xff]
  %v41 = vld [vmem:[%s0 + $0xd0] sm:$0xff]
  %v42 = vld [vmem:[%s0 + $0xd8] sm:$0xff]
  %v43 = vld [vmem:[%s0 + $0xe0] sm:$0xff]
  %v44 = vld [vmem:[%s0 + $0xe8] sm:$0xff]
  %v45 = vld [vmem:[%s0 + $0xf0] sm:$0xff]
  %v46 = vld [vmem:[%s0 + $0xf8] sm:$0xff]
  %v47 = vld [vmem:[%s0 + $0x100] sm:$0xff]
  %v48 = vld [vmem:[%s0 + $0x108] sm:$0xff]
  %v49 = vld [vmem:[%s0 + $0x110] sm:$0xff]
  %v50 = vld [vmem:[%s0 + $0x118] sm:$0xff]
  %v51 = vld [vmem:[%s0 + $0x120] sm:$0xff]
  %v52 = vld [vmem:[%s0 + $0x128] sm:$0xff]
  %v53 = vld [vmem:[%s0 + $0x130] sm:$0xff]
  %v54 = vld [vmem:[%s0 + $0x138] sm:$0xff]
  %v55 = vld [vmem:[%s0 + $0x140] sm:$0x11]
  %v56 = vld [vmem:[%s0 + $0x148] sm:$0x11]
  %v57 = vld [vmem:[%s1] sm:$0xf]
  %v58 = vld [vmem:[%s1 + $0x4] sm:$0xf]
  %v59 = vld [vmem:[%s1 + $0x8] sm:$0xf]
  %v60 = vld [vmem:[%s1 + $0xc] sm:$0xf]
  %v61 = vld [vmem:[%s1 + $0x10] sm:$0xf]
  %v62 = vld [vmem:[%s1 + $0x14] sm:$0xf]
  %v63 = vld [vmem:[%s1 + $0x18] sm:$0xf]
  %v64 = vld [vmem:[%s1 + $0x1c] sm:$0xf]
  %v65 = vld [vmem:[%s1 + $0x20] sm:$0xf]
  %v66 = vld [vmem:[%s1 + $0x24] sm:$0xf]
  %v67 = vld [vmem:[%s1 + $0x28] sm:$0xf]
  %v68 = vld [vmem:[%s1 + $0x2c] sm:$0xf]
  %v69 = vld [vmem:[%s1 + $0x30] sm:$0xf]
  %v70 = vld [vmem:[%s1 + $0x34] sm:$0xf]
  %v71 = vld [vmem:[%s1 + $0x38] sm:$0xf]
  %v72 = vld [vmem:[%s1 + $0x3c] sm:$0xf]
  %v73 = vld [vmem:[%s1 + $0x40] sm:$0xf]
  %v74 = vld [vmem:[%s1 + $0x44] sm:$0xf]
  %v75 = vld [vmem:[%s1 + $0x48] sm:$0xf]
  %v76 = vld [vmem:[%s1 + $0x4c] sm:$0xf]
  %v77 = vld [vmem:[%s1 + $0x50] sm:$0xf]
  %v78 = vld [vmem:[%s1 + $0x54] sm:$0xf]
  %v79 = vld [vmem:[%s1 + $0x58] sm:$0xf]
  %v80 = vld [vmem:[%s1 + $0x5c] sm:$0xf]
  %v81 = vld [vmem:[%s1 + $0x60] sm:$0xf]
  %v82 = vld [vmem:[%s1 + $0x64] sm:$0xf]
  %v83 = vld [vmem:[%s1 + $0x68] sm:$0xf]
  %v84 = vld [vmem:[%s1 + $0x6c] sm:$0xf]
  %v85 = vld [vmem:[%s1 + $0x70] sm:$0xf]
  %v86 = vld [vmem:[%s1 + $0x74] sm:$0xf]
  %v87 = vld [vmem:[%s1 + $0x78] sm:$0xf]
  %v88 = vld [vmem:[%s1 + $0x7c] sm:$0xf]
  %v89 = vld [vmem:[%s1 + $0x80] sm:$0xf]
  %v90 = vld [vmem:[%s1 + $0x84] sm:$0xf]
  %v91 = vld [vmem:[%s1 + $0x88] sm:$0xf]
  %v92 = vld [vmem:[%s1 + $0x8c] sm:$0xf]
  %v93 = vld [vmem:[%s1 + $0x90] sm:$0xf]
  %v94 = vld [vmem:[%s1 + $0x94] sm:$0xf]
  %v95 = vld [vmem:[%s1 + $0x98] sm:$0xf]
  %v96 = vld [vmem:[%s1 + $0x9c] sm:$0xf]
  %v97 = vld [vmem:[%s1 + $0xa0] sm:$0xf]
  %v98 = vld [vmem:[%s1 + $0xa4] sm:$0xf]
  %v99 = vld [vmem:[%s1 + $0xa8] sm:$0xf]
  %v100 = vld [vmem:[%s1 + $0xac] sm:$0xf]
  %v101 = vld [vmem:[%s1 + $0xb0] sm:$0xf]
  %v102 = vld [vmem:[%s1 + $0xb4] sm:$0xf]
  %v103 = vld [vmem:[%s1 + $0xb8] sm:$0xf]
  %v104 = vld [vmem:[%s1 + $0xbc] sm:$0xf]
  %v105 = vld [vmem:[%s1 + $0xc0] sm:$0xf]
  %v106 = vld [vmem:[%s1 + $0xc4] sm:$0xf]
  %v107 = vld [vmem:[%s1 + $0xc8] sm:$0xf]
  %v108 = vld [vmem:[%s1 + $0xcc] sm:$0xf]
  %v109 = vld [vmem:[%s1 + $0xd0] sm:$0xf]
  %v110 = vld [vmem:[%s1 + $0xd4] sm:$0xf]
  %v111 = vld [vmem:[%s1 + $0xd8] sm:$0xf]
  %v112 = vld [vmem:[%s1 + $0xdc] sm:$0xf]
  %v113 = vld [vmem:[%s1 + $0xe0] sm:$0xf]
  %v114 = vld [vmem:[%s1 + $0xe4] sm:$0xf]
  %v115 = vld [vmem:[%s1 + $0xe8] sm:$0xf]
  %v116 = vld [vmem:[%s1 + $0xec] sm:$0xf]
  %v117 = vld [vmem:[%s1 + $0xf0] sm:$0xf]
  %v118 = vld [vmem:[%s1 + $0xf4] sm:$0xf]
  %v119 = vld [vmem:[%s1 + $0xf8] sm:$0xf]
  %v120 = vld [vmem:[%s1 + $0xfc] sm:$0xf]
  %v121 = vld [vmem:[%s2] sm:$0x1]
  %v123 = vlaneseq
  %v124 = vshrl.u32 %v123, 7
  %v125 = vsub.s32 0, %v124
  %v126 = vrot.slane %v121, %v125
  %v170 = vunpack.c.l.b16 %v15
  %v171 = vunpack.c.h.b16 %v15
  %v172 = vunpack.c.l.b16 %v16
  %v173 = vunpack.c.h.b16 %v16
  %v174 = vunpack.c.l.b16 %v17
  %v175 = vunpack.c.h.b16 %v17
  %v176 = vunpack.c.l.b16 %v18
  %v177 = vunpack.c.h.b16 %v18
  %v178 = vunpack.c.l.b16 %v19
  %v179 = vunpack.c.h.b16 %v19
  %v180 = vunpack.c.l.b16 %v20
  %v181 = vunpack.c.h.b16 %v20
  %v182 = vunpack.c.l.b16 %v21
  %v183 = vunpack.c.h.b16 %v21
  %v184 = vunpack.c.l.b16 %v22
  %v185 = vunpack.c.h.b16 %v22
  %v186 = vunpack.c.l.b16 %v23
  %v187 = vunpack.c.h.b16 %v23
  %v188 = vunpack.c.l.b16 %v24
  %v189 = vunpack.c.h.b16 %v24
  %v190 = vunpack.c.l.b16 %v25
  %v191 = vunpack.c.h.b16 %v25
  %v192 = vunpack.c.l.b16 %v26
  %v193 = vunpack.c.h.b16 %v26
  %v194 = vunpack.c.l.b16 %v27
  %v195 = vunpack.c.h.b16 %v27
  %v196 = vunpack.c.l.b16 %v28
  %v197 = vunpack.c.h.b16 %v28
  %v198 = vunpack.c.l.b16 %v29
  %v199 = vunpack.c.h.b16 %v29
  %v200 = vunpack.c.l.b16 %v30
  %v201 = vunpack.c.h.b16 %v30
  %v202 = vunpack.c.l.b16 %v31
  %v203 = vunpack.c.h.b16 %v31
  %v204 = vunpack.c.l.b16 %v32
  %v205 = vunpack.c.h.b16 %v32
  %v206 = vunpack.c.l.b16 %v33
  %v207 = vunpack.c.h.b16 %v33
  %v208 = vunpack.c.l.b16 %v34
  %v209 = vunpack.c.h.b16 %v34
  %v210 = vunpack.c.l.b16 %v35
  %v211 = vunpack.c.h.b16 %v35
  %v212 = vunpack.c.l.b16 %v36
  %v213 = vunpack.c.h.b16 %v36
  %v214 = vunpack.c.l.b16 %v37
  %v215 = vunpack.c.h.b16 %v37
  %v216 = vunpack.c.l.b16 %v38
  %v217 = vunpack.c.h.b16 %v38
  %v218 = vunpack.c.l.b16 %v39
  %v219 = vunpack.c.h.b16 %v39
  %v220 = vunpack.c.l.b16 %v40
  %v221 = vunpack.c.h.b16 %v40
  %v222 = vunpack.c.l.b16 %v41
  %v223 = vunpack.c.h.b16 %v41
  %v224 = vunpack.c.l.b16 %v42
  %v225 = vunpack.c.h.b16 %v42
  %v226 = vunpack.c.l.b16 %v43
  %v227 = vunpack.c.h.b16 %v43
  %v228 = vunpack.c.l.b16 %v44
  %v229 = vunpack.c.h.b16 %v44
  %v230 = vunpack.c.l.b16 %v45
  %v231 = vunpack.c.h.b16 %v45
  %v232 = vunpack.c.l.b16 %v46
  %v233 = vunpack.c.h.b16 %v46
  %v234 = vunpack.c.l.b16 %v47
  %v235 = vunpack.c.h.b16 %v47
  %v236 = vunpack.c.l.b16 %v48
  %v237 = vunpack.c.h.b16 %v48
  %v238 = vunpack.c.l.b16 %v49
  %v239 = vunpack.c.h.b16 %v49
  %v240 = vunpack.c.l.b16 %v50
  %v241 = vunpack.c.h.b16 %v50
  %v242 = vunpack.c.l.b16 %v51
  %v243 = vunpack.c.h.b16 %v51
  %v244 = vunpack.c.l.b16 %v52
  %v245 = vunpack.c.h.b16 %v52
  %v246 = vunpack.c.l.b16 %v53
  %v247 = vunpack.c.h.b16 %v53
  %v248 = vunpack.c.l.b16 %v54
  %v249 = vunpack.c.h.b16 %v54
  %v250 = vunpack.c.l.b16 %v55
  %v251 = vunpack.c.h.b16 %v55
  %v252 = vunpack.c.l.b16 %v56
  %v253 = vunpack.c.h.b16 %v56
  %v254 = vpack.c.b16 %v174, %v170
  %v255 = vpack.c.b16 %v175, %v171
  %v256 = vpack.c.b16 %v176, %v172
  %v257 = vpack.c.b16 %v177, %v173
  %v258 = vpack.c.b16 %v182, %v178
  %v259 = vpack.c.b16 %v183, %v179
  %v260 = vpack.c.b16 %v184, %v180
  %v261 = vpack.c.b16 %v185, %v181
  %v262 = vpack.c.b16 %v190, %v186
  %v263 = vpack.c.b16 %v191, %v187
  %v264 = vpack.c.b16 %v192, %v188
  %v265 = vpack.c.b16 %v193, %v189
  %v266 = vpack.c.b16 %v198, %v194
  %v267 = vpack.c.b16 %v199, %v195
  %v268 = vpack.c.b16 %v200, %v196
  %v269 = vpack.c.b16 %v201, %v197
  %v270 = vpack.c.b16 %v206, %v202
  %v271 = vpack.c.b16 %v207, %v203
  %v272 = vpack.c.b16 %v208, %v204
  %v273 = vpack.c.b16 %v209, %v205
  %v274 = vpack.c.b16 %v214, %v210
  %v275 = vpack.c.b16 %v215, %v211
  %v276 = vpack.c.b16 %v216, %v212
  %v277 = vpack.c.b16 %v217, %v213
  %v278 = vpack.c.b16 %v222, %v218
  %v279 = vpack.c.b16 %v223, %v219
  %v280 = vpack.c.b16 %v224, %v220
  %v281 = vpack.c.b16 %v225, %v221
  %v282 = vpack.c.b16 %v230, %v226
  %v283 = vpack.c.b16 %v231, %v227
  %v284 = vpack.c.b16 %v232, %v228
  %v285 = vpack.c.b16 %v233, %v229
  %v286 = vpack.c.b16 %v238, %v234
  %v287 = vpack.c.b16 %v239, %v235
  %v288 = vpack.c.b16 %v240, %v236
  %v289 = vpack.c.b16 %v241, %v237
  %v290 = vpack.c.b16 %v246, %v242
  %v291 = vpack.c.b16 %v247, %v243
  %v292 = vpack.c.b16 %v248, %v244
  %v293 = vpack.c.b16 %v249, %v245
  %v294 = vpack.c.b16 %v250, %v250
  %v295 = vpack.c.b16 %v251, %v251
  %v296 = vpack.c.b16 %v252, %v252
  %v297 = vpack.c.b16 %v253, %v253
  %v406 = vunpack.c.l.b16 %v57
  %v407 = vunpack.c.l.b16 %v58
  %v408 = vunpack.c.l.b16 %v59
  %v409 = vunpack.c.l.b16 %v60
  %v410 = vunpack.c.l.b16 %v61
  %v411 = vunpack.c.l.b16 %v62
  %v412 = vunpack.c.l.b16 %v63
  %v413 = vunpack.c.l.b16 %v64
  %v414 = vunpack.c.l.b16 %v65
  %v415 = vunpack.c.l.b16 %v66
  %v416 = vunpack.c.l.b16 %v67
  %v417 = vunpack.c.l.b16 %v68
  %v418 = vunpack.c.l.b16 %v69
  %v419 = vunpack.c.l.b16 %v70
  %v420 = vunpack.c.l.b16 %v71
  %v421 = vunpack.c.l.b16 %v72
  %v422 = vunpack.c.l.b16 %v73
  %v423 = vunpack.c.l.b16 %v74
  %v424 = vunpack.c.l.b16 %v75
  %v425 = vunpack.c.l.b16 %v76
  %v426 = vunpack.c.l.b16 %v77
  %v427 = vunpack.c.l.b16 %v78
  %v428 = vunpack.c.l.b16 %v79
  %v429 = vunpack.c.l.b16 %v80
  %v430 = vunpack.c.l.b16 %v81
  %v431 = vunpack.c.l.b16 %v82
  %v432 = vunpack.c.l.b16 %v83
  %v433 = vunpack.c.l.b16 %v84
  %v434 = vunpack.c.l.b16 %v85
  %v435 = vunpack.c.l.b16 %v86
  %v436 = vunpack.c.l.b16 %v87
  %v437 = vunpack.c.l.b16 %v88
  %v438 = vunpack.c.l.b16 %v89
  %v439 = vunpack.c.l.b16 %v90
  %v440 = vunpack.c.l.b16 %v91
  %v441 = vunpack.c.l.b16 %v92
  %v442 = vunpack.c.l.b16 %v93
  %v443 = vunpack.c.l.b16 %v94
  %v444 = vunpack.c.l.b16 %v95
  %v445 = vunpack.c.l.b16 %v96
  %v446 = vunpack.c.l.b16 %v97
  %v447 = vunpack.c.l.b16 %v98
  %v448 = vunpack.c.l.b16 %v99
  %v449 = vunpack.c.l.b16 %v100
  %v450 = vunpack.c.l.b16 %v101
  %v451 = vunpack.c.l.b16 %v102
  %v452 = vunpack.c.l.b16 %v103
  %v453 = vunpack.c.l.b16 %v104
  %v454 = vunpack.c.l.b16 %v105
  %v455 = vunpack.c.l.b16 %v106
  %v456 = vunpack.c.l.b16 %v107
  %v457 = vunpack.c.l.b16 %v108
  %v458 = vunpack.c.l.b16 %v109
  %v459 = vunpack.c.l.b16 %v110
  %v460 = vunpack.c.l.b16 %v111
  %v461 = vunpack.c.l.b16 %v112
  %v462 = vunpack.c.l.b16 %v113
  %v463 = vunpack.c.l.b16 %v114
  %v464 = vunpack.c.l.b16 %v115
  %v465 = vunpack.c.l.b16 %v116
  %v466 = vunpack.c.l.b16 %v117
  %v467 = vunpack.c.l.b16 %v118
  %v468 = vunpack.c.l.b16 %v119
  %v469 = vunpack.c.l.b16 %v120
  %v470 = vpack.c.b16 %v407, %v406
  %v471 = vpack.c.b16 %v409, %v408
  %v472 = vpack.c.b16 %v411, %v410
  %v473 = vpack.c.b16 %v413, %v412
  %v474 = vpack.c.b16 %v415, %v414
  %v475 = vpack.c.b16 %v417, %v416
  %v476 = vpack.c.b16 %v419, %v418
  %v477 = vpack.c.b16 %v421, %v420
  %v478 = vpack.c.b16 %v423, %v422
  %v479 = vpack.c.b16 %v425, %v424
  %v480 = vpack.c.b16 %v427, %v426
  %v481 = vpack.c.b16 %v429, %v428
  %v482 = vpack.c.b16 %v431, %v430
  %v483 = vpack.c.b16 %v433, %v432
  %v484 = vpack.c.b16 %v435, %v434
  %v485 = vpack.c.b16 %v437, %v436
  %v486 = vpack.c.b16 %v439, %v438
  %v487 = vpack.c.b16 %v441, %v440
  %v488 = vpack.c.b16 %v443, %v442
  %v489 = vpack.c.b16 %v445, %v444
  %v490 = vpack.c.b16 %v447, %v446
  %v491 = vpack.c.b16 %v449, %v448
  %v492 = vpack.c.b16 %v451, %v450
  %v493 = vpack.c.b16 %v453, %v452
  %v494 = vpack.c.b16 %v455, %v454
  %v495 = vpack.c.b16 %v457, %v456
  %v496 = vpack.c.b16 %v459, %v458
  %v497 = vpack.c.b16 %v461, %v460
  %v498 = vpack.c.b16 %v463, %v462
  %v499 = vpack.c.b16 %v465, %v464
  %v500 = vpack.c.b16 %v467, %v466
  %v501 = vpack.c.b16 %v469, %v468
  %534 = vmatprep.subr.bf16.mxu0 0
  %535 = vmatpush1.bf16.msra.mxu0 %v470
  %536 = vmatprep.subr.bf16.mxu0 0
  %537 = vmatpush1.bf16.msra.mxu0 %v471
  %538 = vmatprep.subr.bf16.mxu0 0
  %539 = vmatpush1.bf16.msra.mxu0 %v472
  %540 = vmatprep.subr.bf16.mxu0 0
  %541 = vmatpush1.bf16.msra.mxu0 %v473
  %542 = vmatprep.subr.bf16.mxu0 0
  %543 = vmatpush1.bf16.msra.mxu0 %v474
  %544 = vmatprep.subr.bf16.mxu0 0
  %545 = vmatpush1.bf16.msra.mxu0 %v475
  %546 = vmatprep.subr.bf16.mxu0 0
  %547 = vmatpush1.bf16.msra.mxu0 %v476
  %548 = vmatprep.subr.bf16.mxu0 0
  %549 = vmatpush1.bf16.msra.mxu0 %v477
  %550 = vmatprep.subr.bf16.mxu0 0
  %551 = vmatpush1.bf16.msra.mxu0 %v478
  %552 = vmatprep.subr.bf16.mxu0 0
  %553 = vmatpush1.bf16.msra.mxu0 %v479
  %554 = vmatprep.subr.bf16.mxu0 0
  %555 = vmatpush1.bf16.msra.mxu0 %v480
  %556 = vmatprep.subr.bf16.mxu0 0
  %557 = vmatpush1.bf16.msra.mxu0 %v481
  %558 = vmatprep.subr.bf16.mxu0 0
  %559 = vmatpush1.bf16.msra.mxu0 %v482
  %560 = vmatprep.subr.bf16.mxu0 0
  %561 = vmatpush1.bf16.msra.mxu0 %v483
  %562 = vmatprep.subr.bf16.mxu0 0
  %563 = vmatpush1.bf16.msra.mxu0 %v484
  %564 = vmatprep.subr.bf16.mxu0 0
  %565 = vmatpush1.bf16.msra.mxu0 %v485
  %566 = vmatprep.mubr.bf16.mxu0 %v255
  %567 = vmatmul.mubr.bf16.gmra.mrb[0].mxu0 %v254
  %v568 = vpop.f32.mrb[0].mxu0
  %v569 = vadd.f32 %v126, %v568
  %v570 = vpop.f32.mrb[0].mxu0
  %v571 = vpop.f32.mrb[0].mxu0
  %v572 = vadd.f32 %v126, %v571
  %v573 = vpop.f32.mrb[0].mxu0
  %574 = vmatprep.mubr.bf16.mxu0 %v259
  %575 = vmatmul.mubr.bf16.gmra.mrb[0].mxu0 %v258
  %v576 = vpop.f32.mrb[0].mxu0
  %v577 = vadd.f32 %v126, %v576
  %v578 = vpop.f32.mrb[0].mxu0
  %v579 = vpop.f32.mrb[0].mxu0
  %v580 = vadd.f32 %v126, %v579
  %v581 = vpop.f32.mrb[0].mxu0
  %582 = vmatprep.mubr.bf16.mxu0 %v263
  %583 = vmatmul.mubr.bf16.gmra.mrb[0].mxu0 %v262
  %v584 = vpop.f32.mrb[0].mxu0
  %v585 = vadd.f32 %v126, %v584
  %v586 = vpop.f32.mrb[0].mxu0
  %v587 = vpop.f32.mrb[0].mxu0
  %v588 = vadd.f32 %v126, %v587
  %v589 = vpop.f32.mrb[0].mxu0
  %590 = vmatprep.mubr.bf16.mxu0 %v267
  %591 = vmatmul.mubr.bf16.gmra.mrb[0].mxu0 %v266
  %v592 = vpop.f32.mrb[0].mxu0
  %v593 = vadd.f32 %v126, %v592
  %v594 = vpop.f32.mrb[0].mxu0
  %v595 = vpop.f32.mrb[0].mxu0
  %v596 = vadd.f32 %v126, %v595
  %v597 = vpop.f32.mrb[0].mxu0
  %598 = vmatprep.mubr.bf16.mxu0 %v271
  %599 = vmatmul.mubr.bf16.gmra.mrb[0].mxu0 %v270
  %v600 = vpop.f32.mrb[0].mxu0
  %v601 = vadd.f32 %v126, %v600
  %v602 = vpop.f32.mrb[0].mxu0
  %v603 = vpop.f32.mrb[0].mxu0
  %v604 = vadd.f32 %v126, %v603
  %v605 = vpop.f32.mrb[0].mxu0
  %606 = vmatprep.mubr.bf16.mxu0 %v275
  %607 = vmatmul.mubr.bf16.gmra.mrb[0].mxu0 %v274
  %v608 = vpop.f32.mrb[0].mxu0
  %v609 = vadd.f32 %v126, %v608
  %v610 = vpop.f32.mrb[0].mxu0
  %v611 = vpop.f32.mrb[0].mxu0
  %v612 = vadd.f32 %v126, %v611
  %v613 = vpop.f32.mrb[0].mxu0
  %614 = vmatprep.mubr.bf16.mxu0 %v279
  %615 = vmatmul.mubr.bf16.gmra.mrb[0].mxu0 %v278
  %v616 = vpop.f32.mrb[0].mxu0
  %v617 = vadd.f32 %v126, %v616
  %v618 = vpop.f32.mrb[0].mxu0
  %v619 = vpop.f32.mrb[0].mxu0
  %v620 = vadd.f32 %v126, %v619
  %v621 = vpop.f32.mrb[0].mxu0
  %622 = vmatprep.mubr.bf16.mxu0 %v283
  %623 = vmatmul.mubr.bf16.gmra.mrb[0].mxu0 %v282
  %v624 = vpop.f32.mrb[0].mxu0
  %v625 = vadd.f32 %v126, %v624
  %v626 = vpop.f32.mrb[0].mxu0
  %v627 = vpop.f32.mrb[0].mxu0
  %v628 = vadd.f32 %v126, %v627
  %v629 = vpop.f32.mrb[0].mxu0
  %630 = vmatprep.mubr.bf16.mxu0 %v287
  %631 = vmatmul.mubr.bf16.gmra.mrb[0].mxu0 %v286
  %v632 = vpop.f32.mrb[0].mxu0
  %v633 = vadd.f32 %v126, %v632
  %v634 = vpop.f32.mrb[0].mxu0
  %v635 = vpop.f32.mrb[0].mxu0
  %v636 = vadd.f32 %v126, %v635
  %v637 = vpop.f32.mrb[0].mxu0
  %638 = vmatprep.mubr.bf16.mxu0 %v291
  %639 = vmatmul.mubr.bf16.gmra.mrb[0].mxu0 %v290
  %v640 = vpop.f32.mrb[0].mxu0
  %v641 = vadd.f32 %v126, %v640
  %v642 = vpop.f32.mrb[0].mxu0
  %v643 = vpop.f32.mrb[0].mxu0
  %v644 = vadd.f32 %v126, %v643
  %v645 = vpop.f32.mrb[0].mxu0
  %646 = vmatprep.mubr.bf16.mxu0 %v295
  %647 = vmatmul.mubr.bf16.gmra.mrb[0].mxu0 %v294
  %v648 = vpop.f32.mrb[0].mxu0
  %v649 = vadd.f32 %v126, %v648
  %v650 = vpop.f32.mrb[0].mxu0
  %v651 = vpop.f32.mrb[0].mxu0
  %v652 = vpop.f32.mrb[0].mxu0
  %653 = vdwg.mxu0
  %654 = vmatprep.subr.bf16.mxu0 0
  %655 = vmatpush1.bf16.msra.mxu0 %v486
  %656 = vmatprep.subr.bf16.mxu0 0
  %657 = vmatpush1.bf16.msra.mxu0 %v487
  %658 = vmatprep.subr.bf16.mxu0 0
  %659 = vmatpush1.bf16.msra.mxu0 %v488
  %660 = vmatprep.subr.bf16.mxu0 0
  %661 = vmatpush1.bf16.msra.mxu0 %v489
  %662 = vmatprep.subr.bf16.mxu0 0
  %663 = vmatpush1.bf16.msra.mxu0 %v490
  %664 = vmatprep.subr.bf16.mxu0 0
  %665 = vmatpush1.bf16.msra.mxu0 %v491
  %666 = vmatprep.subr.bf16.mxu0 0
  %667 = vmatpush1.bf16.msra.mxu0 %v492
  %668 = vmatprep.subr.bf16.mxu0 0
  %669 = vmatpush1.bf16.msra.mxu0 %v493
  %670 = vmatprep.subr.bf16.mxu0 0
  %671 = vmatpush1.bf16.msra.mxu0 %v494
  %672 = vmatprep.subr.bf16.mxu0 0
  %673 = vmatpush1.bf16.msra.mxu0 %v495
  %674 = vmatprep.subr.bf16.mxu0 0
  %675 = vmatpush1.bf16.msra.mxu0 %v496
  %676 = vmatprep.subr.bf16.mxu0 0
  %677 = vmatpush1.bf16.msra.mxu0 %v497
  %678 = vmatprep.subr.bf16.mxu0 0
  %679 = vmatpush1.bf16.msra.mxu0 %v498
  %680 = vmatprep.subr.bf16.mxu0 0
  %681 = vmatpush1.bf16.msra.mxu0 %v499
  %682 = vmatprep.subr.bf16.mxu0 0
  %683 = vmatpush1.bf16.msra.mxu0 %v500
  %684 = vmatprep.subr.bf16.mxu0 0
  %685 = vmatpush1.bf16.msra.mxu0 %v501
  %686 = vmatprep.mubr.bf16.mxu0 %v257
  %687 = vmatmul.mubr.bf16.gmra.mrb[0].mxu0 %v256
  %v688 = vpop.f32.mrb[0].mxu0
  %v689 = vadd.f32 %v569, %v688
  %v690 = vpop.f32.mrb[0].mxu0
  %v691 = vpop.f32.mrb[0].mxu0
  %v692 = vadd.f32 %v572, %v691
  %v693 = vpop.f32.mrb[0].mxu0
  %694 = vmatprep.mubr.bf16.mxu0 %v261
  %695 = vmatmul.mubr.bf16.gmra.mrb[0].mxu0 %v260
  %v696 = vpop.f32.mrb[0].mxu0
  %v697 = vadd.f32 %v577, %v696
  %v698 = vpop.f32.mrb[0].mxu0
  %v699 = vpop.f32.mrb[0].mxu0
  %v700 = vadd.f32 %v580, %v699
  %v701 = vpop.f32.mrb[0].mxu0
  %702 = vmatprep.mubr.bf16.mxu0 %v265
  %703 = vmatmul.mubr.bf16.gmra.mrb[0].mxu0 %v264
  %v704 = vpop.f32.mrb[0].mxu0
  %v705 = vadd.f32 %v585, %v704
  %v706 = vpop.f32.mrb[0].mxu0
  %v707 = vpop.f32.mrb[0].mxu0
  %v708 = vadd.f32 %v588, %v707
  %v709 = vpop.f32.mrb[0].mxu0
  %710 = vmatprep.mubr.bf16.mxu0 %v269
  %711 = vmatmul.mubr.bf16.gmra.mrb[0].mxu0 %v268
  %v712 = vpop.f32.mrb[0].mxu0
  %v713 = vadd.f32 %v593, %v712
  %v714 = vpop.f32.mrb[0].mxu0
  %v715 = vpop.f32.mrb[0].mxu0
  %v716 = vadd.f32 %v596, %v715
  %v717 = vpop.f32.mrb[0].mxu0
  %718 = vmatprep.mubr.bf16.mxu0 %v273
  %719 = vmatmul.mubr.bf16.gmra.mrb[0].mxu0 %v272
  %v720 = vpop.f32.mrb[0].mxu0
  %v721 = vadd.f32 %v601, %v720
  %v722 = vpop.f32.mrb[0].mxu0
  %v723 = vpop.f32.mrb[0].mxu0
  %v724 = vadd.f32 %v604, %v723
  %v725 = vpop.f32.mrb[0].mxu0
  %726 = vmatprep.mubr.bf16.mxu0 %v277
  %727 = vmatmul.mubr.bf16.gmra.mrb[0].mxu0 %v276
  %v728 = vpop.f32.mrb[0].mxu0
  %v729 = vadd.f32 %v609, %v728
  %v730 = vpop.f32.mrb[0].mxu0
  %v731 = vpop.f32.mrb[0].mxu0
  %v732 = vadd.f32 %v612, %v731
  %v733 = vpop.f32.mrb[0].mxu0
  %734 = vmatprep.mubr.bf16.mxu0 %v281
  %735 = vmatmul.mubr.bf16.gmra.mrb[0].mxu0 %v280
  %v736 = vpop.f32.mrb[0].mxu0
  %v737 = vadd.f32 %v617, %v736
  %v738 = vpop.f32.mrb[0].mxu0
  %v739 = vpop.f32.mrb[0].mxu0
  %v740 = vadd.f32 %v620, %v739
  %v741 = vpop.f32.mrb[0].mxu0
  %742 = vmatprep.mubr.bf16.mxu0 %v285
  %743 = vmatmul.mubr.bf16.gmra.mrb[0].mxu0 %v284
  %v744 = vpop.f32.mrb[0].mxu0
  %v745 = vadd.f32 %v625, %v744
  %v746 = vpop.f32.mrb[0].mxu0
  %v747 = vpop.f32.mrb[0].mxu0
  %v748 = vadd.f32 %v628, %v747
  %v749 = vpop.f32.mrb[0].mxu0
  %750 = vmatprep.mubr.bf16.mxu0 %v289
  %751 = vmatmul.mubr.bf16.gmra.mrb[0].mxu0 %v288
  %v752 = vpop.f32.mrb[0].mxu0
  %v753 = vadd.f32 %v633, %v752
  %v754 = vpop.f32.mrb[0].mxu0
  %v755 = vpop.f32.mrb[0].mxu0
  %v756 = vadd.f32 %v636, %v755
  %v757 = vpop.f32.mrb[0].mxu0
  %758 = vmatprep.mubr.bf16.mxu0 %v293
  %759 = vmatmul.mubr.bf16.gmra.mrb[0].mxu0 %v292
  %v760 = vpop.f32.mrb[0].mxu0
  %v761 = vadd.f32 %v641, %v760
  %v762 = vpop.f32.mrb[0].mxu0
  %v763 = vpop.f32.mrb[0].mxu0
  %v764 = vadd.f32 %v644, %v763
  %v765 = vpop.f32.mrb[0].mxu0
  %766 = vmatprep.mubr.bf16.mxu0 %v297
  %767 = vmatmul.mubr.bf16.gmra.mrb[0].mxu0 %v296
  %v768 = vpop.f32.mrb[0].mxu0
  %v769 = vadd.f32 %v649, %v768
  %v770 = vpop.f32.mrb[0].mxu0
  %v771 = vpop.f32.mrb[0].mxu0
  %v772 = vpop.f32.mrb[0].mxu0
  %773 = vdwg.mxu0
  %v774 = vmax.f32 %v689, 0.0
  %v775 = vmax.f32 %v692, 0.0
  %v776 = vmax.f32 %v697, 0.0
  %v777 = vmax.f32 %v700, 0.0
  %v778 = vmax.f32 %v705, 0.0
  %v779 = vmax.f32 %v708, 0.0
  %v780 = vmax.f32 %v713, 0.0
  %v781 = vmax.f32 %v716, 0.0
  %v782 = vmax.f32 %v721, 0.0
  %v783 = vmax.f32 %v724, 0.0
  %v784 = vmax.f32 %v729, 0.0
  %v785 = vmax.f32 %v732, 0.0
  %v786 = vmax.f32 %v737, 0.0
  %v787 = vmax.f32 %v740, 0.0
  %v788 = vmax.f32 %v745, 0.0
  %v789 = vmax.f32 %v748, 0.0
  %v790 = vmax.f32 %v753, 0.0
  %v791 = vmax.f32 %v756, 0.0
  %v792 = vmax.f32 %v761, 0.0
  %v793 = vmax.f32 %v764, 0.0
  %v794 = vmax.f32 %v769, 0.0
  %v795 = vpack.c.bf16 %v775, %v774
  %v796 = vpack.c.bf16 %v777, %v776
  %v797 = vpack.c.bf16 %v779, %v778
  %v798 = vpack.c.bf16 %v781, %v780
  %v799 = vpack.c.bf16 %v783, %v782
  %v800 = vpack.c.bf16 %v785, %v784
  %v801 = vpack.c.bf16 %v787, %v786
  %v802 = vpack.c.bf16 %v789, %v788
  %v803 = vpack.c.bf16 %v791, %v790
  %v804 = vpack.c.bf16 %v793, %v792
  %v805 = vpack.c.bf16 %v794, %v794
  %v817 = vunpack.c.l.b16 %v795
  %v818 = vunpack.c.h.b16 %v795
  %v819 = vunpack.c.l.b16 %v796
  %v820 = vunpack.c.h.b16 %v796
  %v821 = vunpack.c.l.b16 %v797
  %v822 = vunpack.c.h.b16 %v797
  %v823 = vunpack.c.l.b16 %v798
  %v824 = vunpack.c.h.b16 %v798
  %v825 = vunpack.c.l.b16 %v799
  %v826 = vunpack.c.h.b16 %v799
  %v827 = vunpack.c.l.b16 %v800
  %v828 = vunpack.c.h.b16 %v800
  %v829 = vunpack.c.l.b16 %v801
  %v830 = vunpack.c.h.b16 %v801
  %v831 = vunpack.c.l.b16 %v802
  %v832 = vunpack.c.h.b16 %v802
  %v833 = vunpack.c.l.b16 %v803
  %v834 = vunpack.c.h.b16 %v803
  %v835 = vunpack.c.l.b16 %v804
  %v836 = vunpack.c.h.b16 %v804
  %v837 = vunpack.c.l.b16 %v805
  %v838 = vpack.c.b16 %v817, %v817
  %v839 = vpack.c.b16 %v818, %v818
  %v840 = vpack.c.b16 %v819, %v819
  %v841 = vpack.c.b16 %v820, %v820
  %v842 = vpack.c.b16 %v821, %v821
  %v843 = vpack.c.b16 %v822, %v822
  %v844 = vpack.c.b16 %v823, %v823
  %v845 = vpack.c.b16 %v824, %v824
  %v846 = vpack.c.b16 %v825, %v825
  %v847 = vpack.c.b16 %v826, %v826
  %v848 = vpack.c.b16 %v827, %v827
  %v849 = vpack.c.b16 %v828, %v828
  %v850 = vpack.c.b16 %v829, %v829
  %v851 = vpack.c.b16 %v830, %v830
  %v852 = vpack.c.b16 %v831, %v831
  %v853 = vpack.c.b16 %v832, %v832
  %v854 = vpack.c.b16 %v833, %v833
  %v855 = vpack.c.b16 %v834, %v834
  %v856 = vpack.c.b16 %v835, %v835
  %v857 = vpack.c.b16 %v836, %v836
  %v858 = vpack.c.b16 %v837, %v837
  %vm880 = vcmask 519168
  %881 = vst.msk [vmem:[%s3] sm:$0xf] %vm880, %v838
  %882 = vst.msk [vmem:[%s3 + $0x4] sm:$0xf] %vm880, %v839
  %883 = vst.msk [vmem:[%s3 + $0x8] sm:$0xf] %vm880, %v840
  %884 = vst.msk [vmem:[%s3 + $0xc] sm:$0xf] %vm880, %v841
  %885 = vst.msk [vmem:[%s3 + $0x10] sm:$0xf] %vm880, %v842
  %886 = vst.msk [vmem:[%s3 + $0x14] sm:$0xf] %vm880, %v843
  %887 = vst.msk [vmem:[%s3 + $0x18] sm:$0xf] %vm880, %v844
  %888 = vst.msk [vmem:[%s3 + $0x1c] sm:$0xf] %vm880, %v845
  %889 = vst.msk [vmem:[%s3 + $0x20] sm:$0xf] %vm880, %v846
  %890 = vst.msk [vmem:[%s3 + $0x24] sm:$0xf] %vm880, %v847
  %891 = vst.msk [vmem:[%s3 + $0x28] sm:$0xf] %vm880, %v848
  %892 = vst.msk [vmem:[%s3 + $0x2c] sm:$0xf] %vm880, %v849
  %893 = vst.msk [vmem:[%s3 + $0x30] sm:$0xf] %vm880, %v850
  %894 = vst.msk [vmem:[%s3 + $0x34] sm:$0xf] %vm880, %v851
  %895 = vst.msk [vmem:[%s3 + $0x38] sm:$0xf] %vm880, %v852
  %896 = vst.msk [vmem:[%s3 + $0x3c] sm:$0xf] %vm880, %v853
  %897 = vst.msk [vmem:[%s3 + $0x40] sm:$0xf] %vm880, %v854
  %898 = vst.msk [vmem:[%s3 + $0x44] sm:$0xf] %vm880, %v855
  %899 = vst.msk [vmem:[%s3 + $0x48] sm:$0xf] %vm880, %v856
  %900 = vst.msk [vmem:[%s3 + $0x4c] sm:$0xf] %vm880, %v857
  %vm901 = vcmask 516096
  %902 = vst.msk [vmem:[%s3 + $0x50] sm:$0x1] %vm901, %v858
  // Predicated region
  $region14: #{dqn_forward.5} parent=0 // pred_check
    _
  $region15: #{dqn_forward.5} parent=0 // pred_check_branch
    %904 = sbr.rel (0) target = $region17
  $region16: #{dqn_forward.5} parent=0 // pred_region
    _
  $region17: #{dqn_forward.5} parent=0 // pred_fallthru
    _
  // Predicated region
  $region18: #{dqn_forward.5} parent=0 // pred_check
    _
  $region19: #{dqn_forward.5} parent=0 // pred_check_branch
    %906 = sbr.rel (0) target = $region21
  $region20: #{dqn_forward.5} parent=0 // pred_region
    _
  $region21: #{dqn_forward.5} parent=0 // pred_fallthru
    _

// kernel: dqn_forward.6
$region0: #{dqn_forward.6}
  #allocation0 [shape = 'u32[]', space=smem, size = 0x4, offset = 0x4, fixed_abs, tag = 'smem constant byte address 0x4 - core index']
  #allocation1 [shape = 'u32[144,128]{1,0:T(1,128)}', space=vmem, size = 0x12000, scoped, tag = 'internal scratch']
  %s0 = inlined_call_operand.vmem [shape: bf16[98,576], index: 0, kind: input, shape index: {}]
  %s1 = inlined_call_operand.vmem [shape: bf16[576,64], index: 1, kind: input, shape index: {}]
  %s2 = inlined_call_operand.vmem [shape: f32[1,64], index: 2, kind: input, shape index: {}]
  %s3 = inlined_call_operand.vmem [shape: bf16[98,64], index: 3, kind: output, shape index: {}]
  %s4 = sld [smem:[#allocation0]]
  $region22: #{dqn_forward.6} parent=0
    _
  %s6 = ssub.s32 1, %s4
  %s7 = scalar_select 0, %s6, %s4
  // Predicated region
  $region2: #{dqn_forward.6} parent=0 // pred_check
    _
  $region3: #{dqn_forward.6} parent=0 // pred_check_branch
    %9 = sbr.rel (0) target = $region5
  $region4: #{dqn_forward.6} parent=0 // pred_region
    _
  $region5: #{dqn_forward.6} parent=0 // pred_fallthru
    _
  // Predicated region
  $region6: #{dqn_forward.6} parent=0 // pred_check
    _
  $region7: #{dqn_forward.6} parent=0 // pred_check_branch
    %11 = sbr.rel (0) target = $region9
  $region8: #{dqn_forward.6} parent=0 // pred_region
    _
  $region9: #{dqn_forward.6} parent=0 // pred_fallthru
    _
  // Predicated region
  $region10: #{dqn_forward.6} parent=0 // pred_check
    _
  $region11: #{dqn_forward.6} parent=0 // pred_check_branch
    %13 = sbr.rel (0) target = $region13
  $region12: #{dqn_forward.6} parent=0 // pred_region
    _
  $region13: #{dqn_forward.6} parent=0 // pred_fallthru
    _
  %v15 = vld [vmem:[%s0] sm:$0xff]
  %v16 = vld [vmem:[%s0 + $0x8] sm:$0xff]
  %v17 = vld [vmem:[%s0 + $0x10] sm:$0xf]
  %v18 = vld [vmem:[%s0 + $0x14] sm:$0xff]
  %v19 = vld [vmem:[%s0 + $0x1c] sm:$0xff]
  %v20 = vld [vmem:[%s0 + $0x24] sm:$0xf]
  %v21 = vld [vmem:[%s0 + $0x28] sm:$0xff]
  %v22 = vld [vmem:[%s0 + $0x30] sm:$0xff]
  %v23 = vld [vmem:[%s0 + $0x38] sm:$0xf]
  %v24 = vld [vmem:[%s0 + $0x3c] sm:$0xff]
  %v25 = vld [vmem:[%s0 + $0x44] sm:$0xff]
  %v26 = vld [vmem:[%s0 + $0x4c] sm:$0xf]
  %v27 = vld [vmem:[%s0 + $0x50] sm:$0xff]
  %v28 = vld [vmem:[%s0 + $0x58] sm:$0xff]
  %v29 = vld [vmem:[%s0 + $0x60] sm:$0xf]
  %v30 = vld [vmem:[%s0 + $0x64] sm:$0xff]
  %v31 = vld [vmem:[%s0 + $0x6c] sm:$0xff]
  %v32 = vld [vmem:[%s0 + $0x74] sm:$0xf]
  %v33 = vld [vmem:[%s0 + $0x78] sm:$0xff]
  %v34 = vld [vmem:[%s0 + $0x80] sm:$0xff]
  %v35 = vld [vmem:[%s0 + $0x88] sm:$0xf]
  %v36 = vld [vmem:[%s0 + $0x8c] sm:$0xff]
  %v37 = vld [vmem:[%s0 + $0x94] sm:$0xff]
  %v38 = vld [vmem:[%s0 + $0x9c] sm:$0xf]
  %v39 = vld [vmem:[%s0 + $0xa0] sm:$0xff]
  %v40 = vld [vmem:[%s0 + $0xa8] sm:$0xff]
  %v41 = vld [vmem:[%s0 + $0xb0] sm:$0xf]
  %v42 = vld [vmem:[%s0 + $0xb4] sm:$0xff]
  %v43 = vld [vmem:[%s0 + $0xbc] sm:$0xff]
  %v44 = vld [vmem:[%s0 + $0xc4] sm:$0xf]
  %v45 = vld [vmem:[%s0 + $0xc8] sm:$0xff]
  %v46 = vld [vmem:[%s0 + $0xd0] sm:$0xff]
  %v47 = vld [vmem:[%s0 + $0xd8] sm:$0xf]
  %v48 = vld [vmem:[%s0 + $0xdc] sm:$0xff]
  %v49 = vld [vmem:[%s0 + $0xe4] sm:$0xff]
  %v50 = vld [vmem:[%s0 + $0xec] sm:$0xf]
  %v51 = vld [vmem:[%s0 + $0xf0] sm:$0x11]
  %v52 = vld [vmem:[%s0 + $0xf8] sm:$0x11]
  %v53 = vld [vmem:[%s0 + $0x100] sm:$0x1]
  %v54 = vld [vmem:[%s1] sm:$0xf]
  %v55 = vld [vmem:[%s1 + $0x4] sm:$0xf]
  %v56 = vld [vmem:[%s1 + $0x8] sm:$0xf]
  %v57 = vld [vmem:[%s1 + $0xc] sm:$0xf]
  %v58 = vld [vmem:[%s1 + $0x10] sm:$0xf]
  %v59 = vld [vmem:[%s1 + $0x14] sm:$0xf]
  %v60 = vld [vmem:[%s1 + $0x18] sm:$0xf]
  %v61 = vld [vmem:[%s1 + $0x1c] sm:$0xf]
  %v62 = vld [vmem:[%s1 + $0x20] sm:$0xf]
  %v63 = vld [vmem:[%s1 + $0x24] sm:$0xf]
  %v64 = vld [vmem:[%s1 + $0x28] sm:$0xf]
  %v65 = vld [vmem:[%s1 + $0x2c] sm:$0xf]
  %v66 = vld [vmem:[%s1 + $0x30] sm:$0xf]
  %v67 = vld [vmem:[%s1 + $0x34] sm:$0xf]
  %v68 = vld [vmem:[%s1 + $0x38] sm:$0xf]
  %v69 = vld [vmem:[%s1 + $0x3c] sm:$0xf]
  %v70 = vld [vmem:[%s1 + $0x40] sm:$0xf]
  %v71 = vld [vmem:[%s1 + $0x44] sm:$0xf]
  %v72 = vld [vmem:[%s1 + $0x48] sm:$0xf]
  %v73 = vld [vmem:[%s1 + $0x4c] sm:$0xf]
  %v74 = vld [vmem:[%s1 + $0x50] sm:$0xf]
  %v75 = vld [vmem:[%s1 + $0x54] sm:$0xf]
  %v76 = vld [vmem:[%s1 + $0x58] sm:$0xf]
  %v77 = vld [vmem:[%s1 + $0x5c] sm:$0xf]
  %v78 = vld [vmem:[%s1 + $0x60] sm:$0xf]
  %v79 = vld [vmem:[%s1 + $0x64] sm:$0xf]
  %v80 = vld [vmem:[%s1 + $0x68] sm:$0xf]
  %v81 = vld [vmem:[%s1 + $0x6c] sm:$0xf]
  %v82 = vld [vmem:[%s1 + $0x70] sm:$0xf]
  %v83 = vld [vmem:[%s1 + $0x74] sm:$0xf]
  %v84 = vld [vmem:[%s1 + $0x78] sm:$0xf]
  %v85 = vld [vmem:[%s1 + $0x7c] sm:$0xf]
  %v86 = vld [vmem:[%s1 + $0x80] sm:$0xf]
  %v87 = vld [vmem:[%s1 + $0x84] sm:$0xf]
  %v88 = vld [vmem:[%s1 + $0x88] sm:$0xf]
  %v89 = vld [vmem:[%s1 + $0x8c] sm:$0xf]
  %v90 = vld [vmem:[%s1 + $0x90] sm:$0xf]
  %v91 = vld [vmem:[%s1 + $0x94] sm:$0xf]
  %v92 = vld [vmem:[%s1 + $0x98] sm:$0xf]
  %v93 = vld [vmem:[%s1 + $0x9c] sm:$0xf]
  %v94 = vld [vmem:[%s1 + $0xa0] sm:$0xf]
  %v95 = vld [vmem:[%s1 + $0xa4] sm:$0xf]
  %v96 = vld [vmem:[%s1 + $0xa8] sm:$0xf]
  %v97 = vld [vmem:[%s1 + $0xac] sm:$0xf]
  %v98 = vld [vmem:[%s1 + $0xb0] sm:$0xf]
  %v99 = vld [vmem:[%s1 + $0xb4] sm:$0xf]
  %v100 = vld [vmem:[%s1 + $0xb8] sm:$0xf]
  %v101 = vld [vmem:[%s1 + $0xbc] sm:$0xf]
  %v102 = vld [vmem:[%s1 + $0xc0] sm:$0xf]
  %v103 = vld [vmem:[%s1 + $0xc4] sm:$0xf]
  %v104 = vld [vmem:[%s1 + $0xc8] sm:$0xf]
  %v105 = vld [vmem:[%s1 + $0xcc] sm:$0xf]
  %v106 = vld [vmem:[%s1 + $0xd0] sm:$0xf]
  %v107 = vld [vmem:[%s1 + $0xd4] sm:$0xf]
  %v108 = vld [vmem:[%s1 + $0xd8] sm:$0xf]
  %v109 = vld [vmem:[%s1 + $0xdc] sm:$0xf]
  %v110 = vld [vmem:[%s1 + $0xe0] sm:$0xf]
  %v111 = vld [vmem:[%s1 + $0xe4] sm:$0xf]
  %v112 = vld [vmem:[%s1 + $0xe8] sm:$0xf]
  %v113 = vld [vmem:[%s1 + $0xec] sm:$0xf]
  %v114 = vld [vmem:[%s1 + $0xf0] sm:$0xf]
  %v115 = vld [vmem:[%s1 + $0xf4] sm:$0xf]
  %v116 = vld [vmem:[%s1 + $0xf8] sm:$0xf]
  %v117 = vld [vmem:[%s1 + $0xfc] sm:$0xf]
  %v118 = vld [vmem:[%s1 + $0x100] sm:$0xf]
  %v119 = vld [vmem:[%s1 + $0x104] sm:$0xf]
  %v120 = vld [vmem:[%s1 + $0x108] sm:$0xf]
  %v121 = vld [vmem:[%s1 + $0x10c] sm:$0xf]
  %v122 = vld [vmem:[%s1 + $0x110] sm:$0xf]
  %v123 = vld [vmem:[%s1 + $0x114] sm:$0xf]
  %v124 = vld [vmem:[%s1 + $0x118] sm:$0xf]
  %v125 = vld [vmem:[%s1 + $0x11c] sm:$0xf]
  %v126 = vld [vmem:[%s2] sm:$0x1]
  %v128 = vlaneseq
  %v129 = vshrl.u32 %v128, 7
  %v130 = vsub.s32 0, %v129
  %v131 = vrot.slane %v126, %v130
  %v172 = vunpack.c.l.b16 %v15
  %v173 = vunpack.c.h.b16 %v15
  %v174 = vunpack.c.l.b16 %v16
  %v175 = vunpack.c.h.b16 %v16
  %v176 = vunpack.c.l.b16 %v17
  %v177 = vunpack.c.l.b16 %v18
  %v178 = vunpack.c.h.b16 %v18
  %v179 = vunpack.c.l.b16 %v19
  %v180 = vunpack.c.h.b16 %v19
  %v181 = vunpack.c.l.b16 %v20
  %v182 = vunpack.c.l.b16 %v21
  %v183 = vunpack.c.h.b16 %v21
  %v184 = vunpack.c.l.b16 %v22
  %v185 = vunpack.c.h.b16 %v22
  %v186 = vunpack.c.l.b16 %v23
  %v187 = vunpack.c.l.b16 %v24
  %v188 = vunpack.c.h.b16 %v24
  %v189 = vunpack.c.l.b16 %v25
  %v190 = vunpack.c.h.b16 %v25
  %v191 = vunpack.c.l.b16 %v26
  %v192 = vunpack.c.l.b16 %v27
  %v193 = vunpack.c.h.b16 %v27
  %v194 = vunpack.c.l.b16 %v28
  %v195 = vunpack.c.h.b16 %v28
  %v196 = vunpack.c.l.b16 %v29
  %v197 = vunpack.c.l.b16 %v30
  %v198 = vunpack.c.h.b16 %v30
  %v199 = vunpack.c.l.b16 %v31
  %v200 = vunpack.c.h.b16 %v31
  %v201 = vunpack.c.l.b16 %v32
  %v202 = vunpack.c.l.b16 %v33
  %v203 = vunpack.c.h.b16 %v33
  %v204 = vunpack.c.l.b16 %v34
  %v205 = vunpack.c.h.b16 %v34
  %v206 = vunpack.c.l.b16 %v35
  %v207 = vunpack.c.l.b16 %v36
  %v208 = vunpack.c.h.b16 %v36
  %v209 = vunpack.c.l.b16 %v37
  %v210 = vunpack.c.h.b16 %v37
  %v211 = vunpack.c.l.b16 %v38
  %v212 = vunpack.c.l.b16 %v39
  %v213 = vunpack.c.h.b16 %v39
  %v214 = vunpack.c.l.b16 %v40
  %v215 = vunpack.c.h.b16 %v40
  %v216 = vunpack.c.l.b16 %v41
  %v217 = vunpack.c.l.b16 %v42
  %v218 = vunpack.c.h.b16 %v42
  %v219 = vunpack.c.l.b16 %v43
  %v220 = vunpack.c.h.b16 %v43
  %v221 = vunpack.c.l.b16 %v44
  %v222 = vunpack.c.l.b16 %v45
  %v223 = vunpack.c.h.b16 %v45
  %v224 = vunpack.c.l.b16 %v46
  %v225 = vunpack.c.h.b16 %v46
  %v226 = vunpack.c.l.b16 %v47
  %v227 = vunpack.c.l.b16 %v48
  %v228 = vunpack.c.h.b16 %v48
  %v229 = vunpack.c.l.b16 %v49
  %v230 = vunpack.c.h.b16 %v49
  %v231 = vunpack.c.l.b16 %v50
  %v232 = vunpack.c.l.b16 %v51
  %v233 = vunpack.c.h.b16 %v51
  %v234 = vunpack.c.l.b16 %v52
  %v235 = vunpack.c.h.b16 %v52
  %v236 = vunpack.c.l.b16 %v53
  %v237 = vpack.c.b16 %v177, %v172
  %v238 = vpack.c.b16 %v178, %v173
  %v239 = vpack.c.b16 %v179, %v174
  %v240 = vpack.c.b16 %v180, %v175
  %v241 = vpack.c.b16 %v181, %v176
  %v242 = vpack.c.b16 %v187, %v182
  %v243 = vpack.c.b16 %v188, %v183
  %v244 = vpack.c.b16 %v189, %v184
  %v245 = vpack.c.b16 %v190, %v185
  %v246 = vpack.c.b16 %v191, %v186
  %v247 = vpack.c.b16 %v197, %v192
  %v248 = vpack.c.b16 %v198, %v193
  %v249 = vpack.c.b16 %v199, %v194
  %v250 = vpack.c.b16 %v200, %v195
  %v251 = vpack.c.b16 %v201, %v196
  %v252 = vpack.c.b16 %v207, %v202
  %v253 = vpack.c.b16 %v208, %v203
  %v254 = vpack.c.b16 %v209, %v204
  %v255 = vpack.c.b16 %v210, %v205
  %v256 = vpack.c.b16 %v211, %v206
  %v257 = vpack.c.b16 %v217, %v212
  %v258 = vpack.c.b16 %v218, %v213
  %v259 = vpack.c.b16 %v219, %v214
  %v260 = vpack.c.b16 %v220, %v215
  %v261 = vpack.c.b16 %v221, %v216
  %v262 = vpack.c.b16 %v227, %v222
  %v263 = vpack.c.b16 %v228, %v223
  %v264 = vpack.c.b16 %v229, %v224
  %v265 = vpack.c.b16 %v230, %v225
  %v266 = vpack.c.b16 %v231, %v226
  %v267 = vpack.c.b16 %v232, %v232
  %v268 = vpack.c.b16 %v233, %v233
  %v269 = vpack.c.b16 %v234, %v234
  %v270 = vpack.c.b16 %v235, %v235
  %v271 = vpack.c.b16 %v236, %v236
  %v372 = vunpack.c.l.b16 %v54
  %v373 = vunpack.c.l.b16 %v55
  %v374 = vunpack.c.l.b16 %v56
  %v375 = vunpack.c.l.b16 %v57
  %v376 = vunpack.c.l.b16 %v58
  %v377 = vunpack.c.l.b16 %v59
  %v378 = vunpack.c.l.b16 %v60
  %v379 = vunpack.c.l.b16 %v61
  %v380 = vunpack.c.l.b16 %v62
  %v381 = vunpack.c.l.b16 %v63
  %v382 = vunpack.c.l.b16 %v64
  %v383 = vunpack.c.l.b16 %v65
  %v384 = vunpack.c.l.b16 %v66
  %v385 = vunpack.c.l.b16 %v67
  %v386 = vunpack.c.l.b16 %v68
  %v387 = vunpack.c.l.b16 %v69
  %v388 = vunpack.c.l.b16 %v70
  %v389 = vunpack.c.l.b16 %v71
  %v390 = vunpack.c.l.b16 %v72
  %v391 = vunpack.c.l.b16 %v73
  %v392 = vunpack.c.l.b16 %v74
  %v393 = vunpack.c.l.b16 %v75
  %v394 = vunpack.c.l.b16 %v76
  %v395 = vunpack.c.l.b16 %v77
  %v396 = vunpack.c.l.b16 %v78
  %v397 = vunpack.c.l.b16 %v79
  %v398 = vunpack.c.l.b16 %v80
  %v399 = vunpack.c.l.b16 %v81
  %v400 = vunpack.c.l.b16 %v82
  %v401 = vunpack.c.l.b16 %v83
  %v402 = vunpack.c.l.b16 %v84
  %v403 = vunpack.c.l.b16 %v85
  %v404 = vunpack.c.l.b16 %v86
  %v405 = vunpack.c.l.b16 %v87
  %v406 = vunpack.c.l.b16 %v88
  %v407 = vunpack.c.l.b16 %v89
  %v408 = vunpack.c.l.b16 %v90
  %v409 = vunpack.c.l.b16 %v91
  %v410 = vunpack.c.l.b16 %v92
  %v411 = vunpack.c.l.b16 %v93
  %v412 = vunpack.c.l.b16 %v94
  %v413 = vunpack.c.l.b16 %v95
  %v414 = vunpack.c.l.b16 %v96
  %v415 = vunpack.c.l.b16 %v97
  %v416 = vunpack.c.l.b16 %v98
  %v417 = vunpack.c.l.b16 %v99
  %v418 = vunpack.c.l.b16 %v100
  %v419 = vunpack.c.l.b16 %v101
  %v420 = vunpack.c.l.b16 %v102
  %v421 = vunpack.c.l.b16 %v103
  %v422 = vunpack.c.l.b16 %v104
  %v423 = vunpack.c.l.b16 %v105
  %v424 = vunpack.c.l.b16 %v106
  %v425 = vunpack.c.l.b16 %v107
  %v426 = vunpack.c.l.b16 %v108
  %v427 = vunpack.c.l.b16 %v109
  %v428 = vunpack.c.l.b16 %v110
  %v429 = vunpack.c.l.b16 %v111
  %v430 = vunpack.c.l.b16 %v112
  %v431 = vunpack.c.l.b16 %v113
  %v432 = vunpack.c.l.b16 %v114
  %v433 = vunpack.c.l.b16 %v115
  %v434 = vunpack.c.l.b16 %v116
  %v435 = vunpack.c.l.b16 %v117
  %v436 = vunpack.c.l.b16 %v118
  %v437 = vunpack.c.l.b16 %v119
  %v438 = vunpack.c.l.b16 %v120
  %v439 = vunpack.c.l.b16 %v121
  %v440 = vunpack.c.l.b16 %v122
  %v441 = vunpack.c.l.b16 %v123
  %v442 = vunpack.c.l.b16 %v124
  %v443 = vunpack.c.l.b16 %v125
  %v444 = vpack.c.b16 %v373, %v372
  %v445 = vpack.c.b16 %v375, %v374
  %v446 = vpack.c.b16 %v377, %v376
  %v447 = vpack.c.b16 %v379, %v378
  %v448 = vpack.c.b16 %v381, %v380
  %v449 = vpack.c.b16 %v383, %v382
  %v450 = vpack.c.b16 %v385, %v384
  %v451 = vpack.c.b16 %v387, %v386
  %v452 = vpack.c.b16 %v389, %v388
  %v453 = vpack.c.b16 %v391, %v390
  %v454 = vpack.c.b16 %v393, %v392
  %v455 = vpack.c.b16 %v395, %v394
  %v456 = vpack.c.b16 %v397, %v396
  %v457 = vpack.c.b16 %v399, %v398
  %v458 = vpack.c.b16 %v401, %v400
  %v459 = vpack.c.b16 %v403, %v402
  %v460 = vpack.c.b16 %v405, %v404
  %v461 = vpack.c.b16 %v407, %v406
  %v462 = vpack.c.b16 %v409, %v408
  %v463 = vpack.c.b16 %v411, %v410
  %v464 = vpack.c.b16 %v413, %v412
  %v465 = vpack.c.b16 %v415, %v414
  %v466 = vpack.c.b16 %v417, %v416
  %v467 = vpack.c.b16 %v419, %v418
  %v468 = vpack.c.b16 %v421, %v420
  %v469 = vpack.c.b16 %v423, %v422
  %v470 = vpack.c.b16 %v425, %v424
  %v471 = vpack.c.b16 %v427, %v426
  %v472 = vpack.c.b16 %v429, %v428
  %v473 = vpack.c.b16 %v431, %v430
  %v474 = vpack.c.b16 %v433, %v432
  %v475 = vpack.c.b16 %v435, %v434
  %v476 = vpack.c.b16 %v437, %v436
  %v477 = vpack.c.b16 %v439, %v438
  %v478 = vpack.c.b16 %v441, %v440
  %v479 = vpack.c.b16 %v443, %v442
  %vm516 = vcmask 523264
  %v518 = vsel %vm516, %v241, 0
  %v521 = vsel %vm516, %v246, 0
  %v524 = vsel %vm516, %v251, 0
  %v527 = vsel %vm516, %v256, 0
  %v530 = vsel %vm516, %v261, 0
  %v533 = vsel %vm516, %v266, 0
  %v536 = vsel %vm516, %v271, 0
  %538 = vmatprep.subr.bf16.mxu0 0
  %539 = vmatpush1.bf16.msra.mxu0 %v444
  %540 = vmatprep.subr.bf16.mxu0 0
  %541 = vmatpush1.bf16.msra.mxu0 %v445
  %542 = vmatprep.subr.bf16.mxu0 0
  %543 = vmatpush1.bf16.msra.mxu0 %v446
  %544 = vmatprep.subr.bf16.mxu0 0
  %545 = vmatpush1.bf16.msra.mxu0 %v447
  %546 = vmatprep.subr.bf16.mxu0 0
  %547 = vmatpush1.bf16.msra.mxu0 %v448
  %548 = vmatprep.subr.bf16.mxu0 0
  %549 = vmatpush1.bf16.msra.mxu0 %v449
  %550 = vmatprep.subr.bf16.mxu0 0
  %551 = vmatpush1.bf16.msra.mxu0 %v450
  %552 = vmatprep.subr.bf16.mxu0 0
  %553 = vmatpush1.bf16.msra.mxu0 %v451
  %554 = vmatprep.subr.bf16.mxu0 0
  %555 = vmatpush1.bf16.msra.mxu0 %v452
  %556 = vmatprep.subr.bf16.mxu0 0
  %557 = vmatpush1.bf16.msra.mxu0 %v453
  %558 = vmatprep.subr.bf16.mxu0 0
  %559 = vmatpush1.bf16.msra.mxu0 %v454
  %560 = vmatprep.subr.bf16.mxu0 0
  %561 = vmatpush1.bf16.msra.mxu0 %v455
  %562 = vmatprep.subr.bf16.mxu0 0
  %563 = vmatpush1.bf16.msra.mxu0 %v456
  %564 = vmatprep.subr.bf16.mxu0 0
  %565 = vmatpush1.bf16.msra.mxu0 %v457
  %566 = vmatprep.subr.bf16.mxu0 0
  %567 = vmatpush1.bf16.msra.mxu0 %v458
  %568 = vmatprep.subr.bf16.mxu0 0
  %569 = vmatpush1.bf16.msra.mxu0 %v459
  %570 = vmatprep.mubr.bf16.mxu0 %v238
  %571 = vmatmul.mubr.bf16.gmra.mrb[0].mxu0 %v237
  %v572 = vpop.f32.mrb[0].mxu0
  %v573 = vadd.f32 %v131, %v572
  %v574 = vpop.f32.mrb[0].mxu0
  %v575 = vpop.f32.mrb[0].mxu0
  %v576 = vadd.f32 %v131, %v575
  %v577 = vpop.f32.mrb[0].mxu0
  %578 = vmatprep.mubr.bf16.mxu0 %v243
  %579 = vmatmul.mubr.bf16.gmra.mrb[0].mxu0 %v242
  %v580 = vpop.f32.mrb[0].mxu0
  %v581 = vadd.f32 %v131, %v580
  %v582 = vpop.f32.mrb[0].mxu0
  %v583 = vpop.f32.mrb[0].mxu0
  %v584 = vadd.f32 %v131, %v583
  %v585 = vpop.f32.mrb[0].mxu0
  %586 = vmatprep.mubr.bf16.mxu0 %v248
  %587 = vmatmul.mubr.bf16.gmra.mrb[0].mxu0 %v247
  %v588 = vpop.f32.mrb[0].mxu0
  %v589 = vadd.f32 %v131, %v588
  %v590 = vpop.f32.mrb[0].mxu0
  %v591 = vpop.f32.mrb[0].mxu0
  %v592 = vadd.f32 %v131, %v591
  %v593 = vpop.f32.mrb[0].mxu0
  %594 = vmatprep.mubr.bf16.mxu0 %v253
  %595 = vmatmul.mubr.bf16.gmra.mrb[0].mxu0 %v252
  %v596 = vpop.f32.mrb[0].mxu0
  %v597 = vadd.f32 %v131, %v596
  %v598 = vpop.f32.mrb[0].mxu0
  %v599 = vpop.f32.mrb[0].mxu0
  %v600 = vadd.f32 %v131, %v599
  %v601 = vpop.f32.mrb[0].mxu0
  %602 = vmatprep.mubr.bf16.mxu0 %v258
  %603 = vmatmul.mubr.bf16.gmra.mrb[0].mxu0 %v257
  %v604 = vpop.f32.mrb[0].mxu0
  %v605 = vadd.f32 %v131, %v604
  %v606 = vpop.f32.mrb[0].mxu0
  %v607 = vpop.f32.mrb[0].mxu0
  %v608 = vadd.f32 %v131, %v607
  %v609 = vpop.f32.mrb[0].mxu0
  %610 = vmatprep.mubr.bf16.mxu0 %v263
  %611 = vmatmul.mubr.bf16.gmra.mrb[0].mxu0 %v262
  %v612 = vpop.f32.mrb[0].mxu0
  %v613 = vadd.f32 %v131, %v612
  %v614 = vpop.f32.mrb[0].mxu0
  %v615 = vpop.f32.mrb[0].mxu0
  %v616 = vadd.f32 %v131, %v615
  %v617 = vpop.f32.mrb[0].mxu0
  %618 = vmatprep.mubr.bf16.mxu0 %v268
  %619 = vmatmul.mubr.bf16.gmra.mrb[0].mxu0 %v267
  %v620 = vpop.f32.mrb[0].mxu0
  %v621 = vadd.f32 %v131, %v620
  %v622 = vpop.f32.mrb[0].mxu0
  %v623 = vpop.f32.mrb[0].mxu0
  %v624 = vpop.f32.mrb[0].mxu0
  %625 = vdwg.mxu0
  %626 = vmatprep.subr.bf16.mxu0 0
  %627 = vmatpush1.bf16.msra.mxu0 %v460
  %628 = vmatprep.subr.bf16.mxu0 0
  %629 = vmatpush1.bf16.msra.mxu0 %v461
  %630 = vmatprep.subr.bf16.mxu0 0
  %631 = vmatpush1.bf16.msra.mxu0 %v462
  %632 = vmatprep.subr.bf16.mxu0 0
  %633 = vmatpush1.bf16.msra.mxu0 %v463
  %634 = vmatprep.subr.bf16.mxu0 0
  %635 = vmatpush1.bf16.msra.mxu0 %v464
  %636 = vmatprep.subr.bf16.mxu0 0
  %637 = vmatpush1.bf16.msra.mxu0 %v465
  %638 = vmatprep.subr.bf16.mxu0 0
  %639 = vmatpush1.bf16.msra.mxu0 %v466
  %640 = vmatprep.subr.bf16.mxu0 0
  %641 = vmatpush1.bf16.msra.mxu0 %v467
  %642 = vmatprep.subr.bf16.mxu0 0
  %643 = vmatpush1.bf16.msra.mxu0 %v468
  %644 = vmatprep.subr.bf16.mxu0 0
  %645 = vmatpush1.bf16.msra.mxu0 %v469
  %646 = vmatprep.subr.bf16.mxu0 0
  %647 = vmatpush1.bf16.msra.mxu0 %v470
  %648 = vmatprep.subr.bf16.mxu0 0
  %649 = vmatpush1.bf16.msra.mxu0 %v471
  %650 = vmatprep.subr.bf16.mxu0 0
  %651 = vmatpush1.bf16.msra.mxu0 %v472
  %652 = vmatprep.subr.bf16.mxu0 0
  %653 = vmatpush1.bf16.msra.mxu0 %v473
  %654 = vmatprep.subr.bf16.mxu0 0
  %655 = vmatpush1.bf16.msra.mxu0 %v474
  %656 = vmatprep.subr.bf16.mxu0 0
  %657 = vmatpush1.bf16.msra.mxu0 %v475
  %658 = vmatprep.mubr.bf16.mxu0 %v240
  %659 = vmatmul.mubr.bf16.gmra.mrb[0].mxu0 %v239
  %v660 = vpop.f32.mrb[0].mxu0
  %v661 = vadd.f32 %v573, %v660
  %v662 = vpop.f32.mrb[0].mxu0
  %v663 = vpop.f32.mrb[0].mxu0
  %v664 = vadd.f32 %v576, %v663
  %v665 = vpop.f32.mrb[0].mxu0
  %666 = vmatprep.mubr.bf16.mxu0 %v245
  %667 = vmatmul.mubr.bf16.gmra.mrb[0].mxu0 %v244
  %v668 = vpop.f32.mrb[0].mxu0
  %v669 = vadd.f32 %v581, %v668
  %v670 = vpop.f32.mrb[0].mxu0
  %v671 = vpop.f32.mrb[0].mxu0
  %v672 = vadd.f32 %v584, %v671
  %v673 = vpop.f32.mrb[0].mxu0
  %674 = vmatprep.mubr.bf16.mxu0 %v250
  %675 = vmatmul.mubr.bf16.gmra.mrb[0].mxu0 %v249
  %v676 = vpop.f32.mrb[0].mxu0
  %v677 = vadd.f32 %v589, %v676
  %v678 = vpop.f32.mrb[0].mxu0
  %v679 = vpop.f32.mrb[0].mxu0
  %v680 = vadd.f32 %v592, %v679
  %v681 = vpop.f32.mrb[0].mxu0
  %682 = vmatprep.mubr.bf16.mxu0 %v255
  %683 = vmatmul.mubr.bf16.gmra.mrb[0].mxu0 %v254
  %v684 = vpop.f32.mrb[0].mxu0
  %v685 = vadd.f32 %v597, %v684
  %v686 = vpop.f32.mrb[0].mxu0
  %v687 = vpop.f32.mrb[0].mxu0
  %v688 = vadd.f32 %v600, %v687
  %v689 = vpop.f32.mrb[0].mxu0
  %690 = vmatprep.mubr.bf16.mxu0 %v260
  %691 = vmatmul.mubr.bf16.gmra.mrb[0].mxu0 %v259
  %v692 = vpop.f32.mrb[0].mxu0
  %v693 = vadd.f32 %v605, %v692
  %v694 = vpop.f32.mrb[0].mxu0
  %v695 = vpop.f32.mrb[0].mxu0
  %v696 = vadd.f32 %v608, %v695
  %v697 = vpop.f32.mrb[0].mxu0
  %698 = vmatprep.mubr.bf16.mxu0 %v265
  %699 = vmatmul.mubr.bf16.gmra.mrb[0].mxu0 %v264
  %v700 = vpop.f32.mrb[0].mxu0
  %v701 = vadd.f32 %v613, %v700
  %v702 = vpop.f32.mrb[0].mxu0
  %v703 = vpop.f32.mrb[0].mxu0
  %v704 = vadd.f32 %v616, %v703
  %v705 = vpop.f32.mrb[0].mxu0
  %706 = vmatprep.mubr.bf16.mxu0 %v270
  %707 = vmatmul.mubr.bf16.gmra.mrb[0].mxu0 %v269
  %v708 = vpop.f32.mrb[0].mxu0
  %v709 = vadd.f32 %v621, %v708
  %v710 = vpop.f32.mrb[0].mxu0
  %v711 = vpop.f32.mrb[0].mxu0
  %v712 = vpop.f32.mrb[0].mxu0
  %713 = vdwg.mxu0
  %714 = vmatprep.subr.bf16.mxu0 0
  %715 = vmatpush1.bf16.msra.mxu0 %v476
  %716 = vmatprep.subr.bf16.mxu0 0
  %717 = vmatpush1.bf16.msra.mxu0 %v477
  %718 = vmatprep.subr.bf16.mxu0 0
  %719 = vmatpush1.bf16.msra.mxu0 %v478
  %720 = vmatprep.subr.bf16.mxu0 0
  %721 = vmatpush1.bf16.msra.mxu0 %v479
  %722 = vmatprep.subr.bf16.mxu0 0
  %723 = vmatpush1.bf16.msra.mxu0 0
  %724 = vmatprep.subr.bf16.mxu0 0
  %725 = vmatpush1.bf16.msra.mxu0 0
  %726 = vmatprep.subr.bf16.mxu0 0
  %727 = vmatpush1.bf16.msra.mxu0 0
  %728 = vmatprep.subr.bf16.mxu0 0
  %729 = vmatpush1.bf16.msra.mxu0 0
  %730 = vmatprep.subr.bf16.mxu0 0
  %731 = vmatpush1.bf16.msra.mxu0 0
  %732 = vmatprep.subr.bf16.mxu0 0
  %733 = vmatpush1.bf16.msra.mxu0 0
  %734 = vmatprep.subr.bf16.mxu0 0
  %735 = vmatpush1.bf16.msra.mxu0 0
  %736 = vmatprep.subr.bf16.mxu0 0
  %737 = vmatpush1.bf16.msra.mxu0 0
  %738 = vmatprep.subr.bf16.mxu0 0
  %739 = vmatpush1.bf16.msra.mxu0 0
  %740 = vmatprep.subr.bf16.mxu0 0
  %741 = vmatpush1.bf16.msra.mxu0 0
  %742 = vmatprep.subr.bf16.mxu0 0
  %743 = vmatpush1.bf16.msra.mxu0 0
  %744 = vmatprep.subr.bf16.mxu0 0
  %745 = vmatpush1.bf16.msra.mxu0 0
  %746 = vmatprep.mubr.bf16.mxu0 0
  %747 = vmatmul.mubr.bf16.gmra.mrb[0].mxu0 %v518
  %v748 = vpop.f32.mrb[0].mxu0
  %v749 = vadd.f32 %v661, %v748
  %v750 = vpop.f32.mrb[0].mxu0
  %v751 = vpop.f32.mrb[0].mxu0
  %v752 = vadd.f32 %v664, %v751
  %v753 = vpop.f32.mrb[0].mxu0
  %754 = vmatprep.mubr.bf16.mxu0 0
  %755 = vmatmul.mubr.bf16.gmra.mrb[0].mxu0 %v521
  %v756 = vpop.f32.mrb[0].mxu0
  %v757 = vadd.f32 %v669, %v756
  %v758 = vpop.f32.mrb[0].mxu0
  %v759 = vpop.f32.mrb[0].mxu0
  %v760 = vadd.f32 %v672, %v759
  %v761 = vpop.f32.mrb[0].mxu0
  %762 = vmatprep.mubr.bf16.mxu0 0
  %763 = vmatmul.mubr.bf16.gmra.mrb[0].mxu0 %v524
  %v764 = vpop.f32.mrb[0].mxu0
  %v765 = vadd.f32 %v677, %v764
  %v766 = vpop.f32.mrb[0].mxu0
  %v767 = vpop.f32.mrb[0].mxu0
  %v768 = vadd.f32 %v680, %v767
  %v769 = vpop.f32.mrb[0].mxu0
  %770 = vmatprep.mubr.bf16.mxu0 0
  %771 = vmatmul.mubr.bf16.gmra.mrb[0].mxu0 %v527
  %v772 = vpop.f32.mrb[0].mxu0
  %v773 = vadd.f32 %v685, %v772
  %v774 = vpop.f32.mrb[0].mxu0
  %v775 = vpop.f32.mrb[0].mxu0
  %v776 = vadd.f32 %v688, %v775
  %v777 = vpop.f32.mrb[0].mxu0
  %778 = vmatprep.mubr.bf16.mxu0 0
  %779 = vmatmul.mubr.bf16.gmra.mrb[0].mxu0 %v530
  %v780 = vpop.f32.mrb[0].mxu0
  %v781 = vadd.f32 %v693, %v780
  %v782 = vpop.f32.mrb[0].mxu0
  %v783 = vpop.f32.mrb[0].mxu0
  %v784 = vadd.f32 %v696, %v783
  %v785 = vpop.f32.mrb[0].mxu0
  %786 = vmatprep.mubr.bf16.mxu0 0
  %787 = vmatmul.mubr.bf16.gmra.mrb[0].mxu0 %v533
  %v788 = vpop.f32.mrb[0].mxu0
  %v789 = vadd.f32 %v701, %v788
  %v790 = vpop.f32.mrb[0].mxu0
  %v791 = vpop.f32.mrb[0].mxu0
  %v792 = vadd.f32 %v704, %v791
  %v793 = vpop.f32.mrb[0].mxu0
  %794 = vmatprep.mubr.bf16.mxu0 0
  %795 = vmatmul.mubr.bf16.gmra.mrb[0].mxu0 %v536
  %v796 = vpop.f32.mrb[0].mxu0
  %v797 = vadd.f32 %v709, %v796
  %v798 = vpop.f32.mrb[0].mxu0
  %v799 = vpop.f32.mrb[0].mxu0
  %v800 = vpop.f32.mrb[0].mxu0
  %801 = vdwg.mxu0
  %v802 = vmax.f32 %v749, 0.0
  %v803 = vmax.f32 %v752, 0.0
  %v804 = vmax.f32 %v757, 0.0
  %v805 = vmax.f32 %v760, 0.0
  %v806 = vmax.f32 %v765, 0.0
  %v807 = vmax.f32 %v768, 0.0
  %v808 = vmax.f32 %v773, 0.0
  %v809 = vmax.f32 %v776, 0.0
  %v810 = vmax.f32 %v781, 0.0
  %v811 = vmax.f32 %v784, 0.0
  %v812 = vmax.f32 %v789, 0.0
  %v813 = vmax.f32 %v792, 0.0
  %v814 = vmax.f32 %v797, 0.0
  %v815 = vpack.c.bf16 %v803, %v802
  %v816 = vpack.c.bf16 %v805, %v804
  %v817 = vpack.c.bf16 %v807, %v806
  %v818 = vpack.c.bf16 %v809, %v808
  %v819 = vpack.c.bf16 %v811, %v810
  %v820 = vpack.c.bf16 %v813, %v812
  %v821 = vpack.c.bf16 %v814, %v814
  %v829 = vunpack.c.l.b16 %v815
  %v830 = vunpack.c.h.b16 %v815
  %v831 = vunpack.c.l.b16 %v816
  %v832 = vunpack.c.h.b16 %v816
  %v833 = vunpack.c.l.b16 %v817
  %v834 = vunpack.c.h.b16 %v817
  %v835 = vunpack.c.l.b16 %v818
  %v836 = vunpack.c.h.b16 %v818
  %v837 = vunpack.c.l.b16 %v819
  %v838 = vunpack.c.h.b16 %v819
  %v839 = vunpack.c.l.b16 %v820
  %v840 = vunpack.c.h.b16 %v820
  %v841 = vunpack.c.l.b16 %v821
  %v842 = vpack.c.b16 %v829, %v829
  %v843 = vpack.c.b16 %v830, %v830
  %v844 = vpack.c.b16 %v831, %v831
  %v845 = vpack.c.b16 %v832, %v832
  %v846 = vpack.c.b16 %v833, %v833
  %v847 = vpack.c.b16 %v834, %v834
  %v848 = vpack.c.b16 %v835, %v835
  %v849 = vpack.c.b16 %v836, %v836
  %v850 = vpack.c.b16 %v837, %v837
  %v851 = vpack.c.b16 %v838, %v838
  %v852 = vpack.c.b16 %v839, %v839
  %v853 = vpack.c.b16 %v840, %v840
  %v854 = vpack.c.b16 %v841, %v841
  %vm868 = vcmask 519168
  %869 = vst.msk [vmem:[%s3] sm:$0xf] %vm868, %v842
  %870 = vst.msk [vmem:[%s3 + $0x4] sm:$0xf] %vm868, %v843
  %871 = vst.msk [vmem:[%s3 + $0x8] sm:$0xf] %vm868, %v844
  %872 = vst.msk [vmem:[%s3 + $0xc] sm:$0xf] %vm868, %v845
  %873 = vst.msk [vmem:[%s3 + $0x10] sm:$0xf] %vm868, %v846
  %874 = vst.msk [vmem:[%s3 + $0x14] sm:$0xf] %vm868, %v847
  %875 = vst.msk [vmem:[%s3 + $0x18] sm:$0xf] %vm868, %v848
  %876 = vst.msk [vmem:[%s3 + $0x1c] sm:$0xf] %vm868, %v849
  %877 = vst.msk [vmem:[%s3 + $0x20] sm:$0xf] %vm868, %v850
  %878 = vst.msk [vmem:[%s3 + $0x24] sm:$0xf] %vm868, %v851
  %879 = vst.msk [vmem:[%s3 + $0x28] sm:$0xf] %vm868, %v852
  %880 = vst.msk [vmem:[%s3 + $0x2c] sm:$0xf] %vm868, %v853
  %vm881 = vcmask 516096
  %882 = vst.msk [vmem:[%s3 + $0x30] sm:$0x1] %vm881, %v854
  // Predicated region
  $region14: #{dqn_forward.6} parent=0 // pred_check
    _
  $region15: #{dqn_forward.6} parent=0 // pred_check_branch
    %884 = sbr.rel (0) target = $region17
  $region16: #{dqn_forward.6} parent=0 // pred_region
    _
  $region17: #{dqn_forward.6} parent=0 // pred_fallthru
    _
  // Predicated region
  $region18: #{dqn_forward.6} parent=0 // pred_check
    _
  $region19: #{dqn_forward.6} parent=0 // pred_check_branch
    %886 = sbr.rel (0) target = $region21
  $region20: #{dqn_forward.6} parent=0 // pred_region
    _
  $region21: #{dqn_forward.6} parent=0 // pred_fallthru
    _

// kernel: dqn_forward.7
$region0: #{dqn_forward.7}
  #allocation0 [shape = 'u32[]', space=smem, size = 0x4, offset = 0x4, fixed_abs, tag = 'smem constant byte address 0x4 - core index']
  #allocation1 [shape = 'u32[144,128]{1,0:T(1,128)}', space=vmem, size = 0x12000, scoped, tag = 'internal scratch']
  %s0 = inlined_call_operand.vmem [shape: bf16[2,3136], index: 0, kind: input, shape index: {}]
  %s1 = inlined_call_operand.vmem [shape: bf16[3136,784], index: 1, kind: input, shape index: {}]
  %s2 = inlined_call_operand.vmem [shape: f32[1,784], index: 2, kind: input, shape index: {}]
  %s3 = inlined_call_operand.vmem [shape: bf16[784,98], index: 3, kind: input, shape index: {}]
  %s4 = inlined_call_operand.vmem [shape: f32[1,98], index: 4, kind: input, shape index: {}]
  %s5 = inlined_call_operand.vmem [shape: bf16[98,2], index: 5, kind: input, shape index: {}]
  %s6 = inlined_call_operand.vmem [shape: f32[1,2], index: 6, kind: input, shape index: {}]
  %s7 = inlined_call_operand.hbm [shape: f32[2,2], index: 7, kind: output, shape index: {}]
  %s8 = sld [smem:[#allocation0]]
  $region38: #{dqn_forward.7} parent=0
    _
  %s10 = ssub.s32 1, %s8
  %s11 = scalar_select 0, %s10, %s8
  $region1: #{dqn_forward.7} parent=0
    #allocation2 [shape = 'u8[1024]{0}', space=vmem, size = 0x400, scoped, tag = 'output window, operand 0, single buffered']
    #allocation3 [shape = 's32[1]{0}', space=sflag, size = 0x4, scoped, tag = 'scoped memory for dqn_forward.7']
    %12 = vsyncpa [#allocation3], 0
    // Predicated region
    $region2: #{dqn_forward.7} parent=1 // pred_check
      _
    $region3: #{dqn_forward.7} parent=1 // pred_check_branch
      %14 = sbr.rel (0) target = $region5
    $region4: #{dqn_forward.7} parent=1 // pred_region
      _
    $region5: #{dqn_forward.7} parent=1 // pred_fallthru
      _
    // Predicated region
    $region6: #{dqn_forward.7} parent=1 // pred_check
      _
    $region7: #{dqn_forward.7} parent=1 // pred_check_branch
      %16 = sbr.rel (0) target = $region9
    $region8: #{dqn_forward.7} parent=1 // pred_region
      _
    $region9: #{dqn_forward.7} parent=1 // pred_fallthru
      _
    // Predicated region
    $region10: #{dqn_forward.7} parent=1 // pred_check
      _
    $region11: #{dqn_forward.7} parent=1 // pred_check_branch
      %18 = sbr.rel (0) target = $region13
    $region12: #{dqn_forward.7} parent=1 // pred_region
      _
    $region13: #{dqn_forward.7} parent=1 // pred_fallthru
      _
    // Predicated region
    $region14: #{dqn_forward.7} parent=1 // pred_check
      _
    $region15: #{dqn_forward.7} parent=1 // pred_check_branch
      %20 = sbr.rel (0) target = $region17
    $region16: #{dqn_forward.7} parent=1 // pred_region
      _
    $region17: #{dqn_forward.7} parent=1 // pred_fallthru
      _
    // Predicated region
    $region18: #{dqn_forward.7} parent=1 // pred_check
      _
    $region19: #{dqn_forward.7} parent=1 // pred_check_branch
      %22 = sbr.rel (0) target = $region21
    $region20: #{dqn_forward.7} parent=1 // pred_region
      _
    $region21: #{dqn_forward.7} parent=1 // pred_fallthru
      _
    // Predicated region
    $region22: #{dqn_forward.7} parent=1 // pred_check
      _
    $region23: #{dqn_forward.7} parent=1 // pred_check_branch
      %24 = sbr.rel (0) target = $region25
    $region24: #{dqn_forward.7} parent=1 // pred_region
      _
    $region25: #{dqn_forward.7} parent=1 // pred_fallthru
      _
    // Predicated region
    $region26: #{dqn_forward.7} parent=1 // pred_check
      _
    $region27: #{dqn_forward.7} parent=1 // pred_check_branch
      %26 = sbr.rel (0) target = $region29
    $region28: #{dqn_forward.7} parent=1 // pred_region
      _
    $region29: #{dqn_forward.7} parent=1 // pred_fallthru
      _
    %v28 = vld [vmem:[%s0] sm:$0xff]
    %v29 = vld [vmem:[%s0 + $0x8] sm:$0xff]
    %v30 = vld [vmem:[%s0 + $0x10] sm:$0xff]
    %v31 = vld [vmem:[%s0 + $0x18] sm:$0x1]
    %v32 = vld [vmem:[%s1] sm:$0xff]
    %v33 = vld [vmem:[%s1 + $0x8] sm:$0xff]
    %v34 = vld [vmem:[%s1 + $0x10] sm:$0xff]
    %v35 = vld [vmem:[%s1 + $0x18] sm:$0xf]
    %v36 = vld [vmem:[%s1 + $0x1c] sm:$0xff]
    %v37 = vld [vmem:[%s1 + $0x24] sm:$0xff]
    %v38 = vld [vmem:[%s1 + $0x2c] sm:$0xff]
    %v39 = vld [vmem:[%s1 + $0x34] sm:$0xf]
    %v40 = vld [vmem:[%s1 + $0x38] sm:$0xff]
    %v41 = vld [vmem:[%s1 + $0x40] sm:$0xff]
    %v42 = vld [vmem:[%s1 + $0x48] sm:$0xff]
    %v43 = vld [vmem:[%s1 + $0x50] sm:$0xf]
    %v44 = vld [vmem:[%s1 + $0x54] sm:$0xff]
    %v45 = vld [vmem:[%s1 + $0x5c] sm:$0xff]
    %v46 = vld [vmem:[%s1 + $0x64] sm:$0xff]
    %v47 = vld [vmem:[%s1 + $0x6c] sm:$0xf]
    %v48 = vld [vmem:[%s1 + $0x70] sm:$0xff]
    %v49 = vld [vmem:[%s1 + $0x78] sm:$0xff]
    %v50 = vld [vmem:[%s1 + $0x80] sm:$0xff]
    %v51 = vld [vmem:[%s1 + $0x88] sm:$0xf]
    %v52 = vld [vmem:[%s1 + $0x8c] sm:$0xff]
    %v53 = vld [vmem:[%s1 + $0x94] sm:$0xff]
    %v54 = vld [vmem:[%s1 + $0x9c] sm:$0xff]
    %v55 = vld [vmem:[%s1 + $0xa4] sm:$0xf]
    %v56 = vld [vmem:[%s1 + $0xa8] sm:$0xff]
    %v57 = vld [vmem:[%s1 + $0xb0] sm:$0xff]
    %v58 = vld [vmem:[%s1 + $0xb8] sm:$0xff]
    %v59 = vld [vmem:[%s1 + $0xc0] sm:$0xf]
    %v60 = vld [vmem:[%s1 + $0xc4] sm:$0xff]
    %v61 = vld [vmem:[%s1 + $0xcc] sm:$0xff]
    %v62 = vld [vmem:[%s1 + $0xd4] sm:$0xff]
    %v63 = vld [vmem:[%s1 + $0xdc] sm:$0xf]
    %v64 = vld [vmem:[%s1 + $0xe0] sm:$0xff]
    %v65 = vld [vmem:[%s1 + $0xe8] sm:$0xff]
    %v66 = vld [vmem:[%s1 + $0xf0] sm:$0xff]
    %v67 = vld [vmem:[%s1 + $0xf8] sm:$0xf]
    %v68 = vld [vmem:[%s1 + $0xfc] sm:$0xff]
    %v69 = vld [vmem:[%s1 + $0x104] sm:$0xff]
    %v70 = vld [vmem:[%s1 + $0x10c] sm:$0xff]
    %v71 = vld [vmem:[%s1 + $0x114] sm:$0xf]
    %v72 = vld [vmem:[%s1 + $0x118] sm:$0xff]
    %v73 = vld [vmem:[%s1 + $0x120] sm:$0xff]
    %v74 = vld [vmem:[%s1 + $0x128] sm:$0xff]
    %v75 = vld [vmem:[%s1 + $0x130] sm:$0xf]
    %v76 = vld [vmem:[%s1 + $0x134] sm:$0xff]
    %v77 = vld [vmem:[%s1 + $0x13c] sm:$0xff]
    %v78 = vld [vmem:[%s1 + $0x144] sm:$0xff]
    %v79 = vld [vmem:[%s1 + $0x14c] sm:$0xf]
    %v80 = vld [vmem:[%s1 + $0x150] sm:$0xff]
    %v81 = vld [vmem:[%s1 + $0x158] sm:$0xff]
    %v82 = vld [vmem:[%s1 + $0x160] sm:$0xff]
    %v83 = vld [vmem:[%s1 + $0x168] sm:$0xf]
    %v84 = vld [vmem:[%s1 + $0x16c] sm:$0xff]
    %v85 = vld [vmem:[%s1 + $0x174] sm:$0xff]
    %v86 = vld [vmem:[%s1 + $0x17c] sm:$0xff]
    %v87 = vld [vmem:[%s1 + $0x184] sm:$0xf]
    %v88 = vld [vmem:[%s1 + $0x188] sm:$0xff]
    %v89 = vld [vmem:[%s1 + $0x190] sm:$0xff]
    %v90 = vld [vmem:[%s1 + $0x198] sm:$0xff]
    %v91 = vld [vmem:[%s1 + $0x1a0] sm:$0xf]
    %v92 = vld [vmem:[%s1 + $0x1a4] sm:$0xff]
    %v93 = vld [vmem:[%s1 + $0x1ac] sm:$0xff]
    %v94 = vld [vmem:[%s1 + $0x1b4] sm:$0xff]
    %v95 = vld [vmem:[%s1 + $0x1bc] sm:$0xf]
    %v96 = vld [vmem:[%s1 + $0x1c0] sm:$0xff]
    %v97 = vld [vmem:[%s1 + $0x1c8] sm:$0xff]
    %v98 = vld [vmem:[%s1 + $0x1d0] sm:$0xff]
    %v99 = vld [vmem:[%s1 + $0x1d8] sm:$0xf]
    %v100 = vld [vmem:[%s1 + $0x1dc] sm:$0xff]
    %v101 = vld [vmem:[%s1 + $0x1e4] sm:$0xff]
    %v102 = vld [vmem:[%s1 + $0x1ec] sm:$0xff]
    %v103 = vld [vmem:[%s1 + $0x1f4] sm:$0xf]
    %v104 = vld [vmem:[%s1 + $0x1f8] sm:$0xff]
    %v105 = vld [vmem:[%s1 + $0x200] sm:$0xff]
    %v106 = vld [vmem:[%s1 + $0x208] sm:$0xff]
    %v107 = vld [vmem:[%s1 + $0x210] sm:$0xf]
    %v108 = vld [vmem:[%s1 + $0x214] sm:$0xff]
    %v109 = vld [vmem:[%s1 + $0x21c] sm:$0xff]
    %v110 = vld [vmem:[%s1 + $0x224] sm:$0xff]
    %v111 = vld [vmem:[%s1 + $0x22c] sm:$0xf]
    %v112 = vld [vmem:[%s1 + $0x230] sm:$0xff]
    %v113 = vld [vmem:[%s1 + $0x238] sm:$0xff]
    %v114 = vld [vmem:[%s1 + $0x240] sm:$0xff]
    %v115 = vld [vmem:[%s1 + $0x248] sm:$0xf]
    %v116 = vld [vmem:[%s1 + $0x24c] sm:$0xff]
    %v117 = vld [vmem:[%s1 + $0x254] sm:$0xff]
    %v118 = vld [vmem:[%s1 + $0x25c] sm:$0xff]
    %v119 = vld [vmem:[%s1 + $0x264] sm:$0xf]
    %v120 = vld [vmem:[%s1 + $0x268] sm:$0xff]
    %v121 = vld [vmem:[%s1 + $0x270] sm:$0xff]
    %v122 = vld [vmem:[%s1 + $0x278] sm:$0xff]
    %v123 = vld [vmem:[%s1 + $0x280] sm:$0xf]
    %v124 = vld [vmem:[%s1 + $0x284] sm:$0xff]
    %v125 = vld [vmem:[%s1 + $0x28c] sm:$0xff]
    %v126 = vld [vmem:[%s1 + $0x294] sm:$0xff]
    %v127 = vld [vmem:[%s1 + $0x29c] sm:$0xf]
    %v128 = vld [vmem:[%s1 + $0x2a0] sm:$0xff]
    %v129 = vld [vmem:[%s1 + $0x2a8] sm:$0xff]
    %v130 = vld [vmem:[%s1 + $0x2b0] sm:$0xff]
    %v131 = vld [vmem:[%s1 + $0x2b8] sm:$0xf]
    %v132 = vld [vmem:[%s1 + $0x2bc] sm:$0xff]
    %v133 = vld [vmem:[%s1 + $0x2c4] sm:$0xff]
    %v134 = vld [vmem:[%s1 + $0x2cc] sm:$0xff]
    %v135 = vld [vmem:[%s1 + $0x2d4] sm:$0xf]
    %v136 = vld [vmem:[%s1 + $0x2d8] sm:$0xff]
    %v137 = vld [vmem:[%s1 + $0x2e0] sm:$0xff]
    %v138 = vld [vmem:[%s1 + $0x2e8] sm:$0xff]
    %v139 = vld [vmem:[%s1 + $0x2f0] sm:$0xf]
    %v140 = vld [vmem:[%s1 + $0x2f4] sm:$0xff]
    %v141 = vld [vmem:[%s1 + $0x2fc] sm:$0xff]
    %v142 = vld [vmem:[%s1 + $0x304] sm:$0xff]
    %v143 = vld [vmem:[%s1 + $0x30c] sm:$0xf]
    %v144 = vld [vmem:[%s1 + $0x310] sm:$0xff]
    %v145 = vld [vmem:[%s1 + $0x318] sm:$0xff]
    %v146 = vld [vmem:[%s1 + $0x320] sm:$0xff]
    %v147 = vld [vmem:[%s1 + $0x328] sm:$0xf]
    %v148 = vld [vmem:[%s1 + $0x32c] sm:$0xff]
    %v149 = vld [vmem:[%s1 + $0x334] sm:$0xff]
    %v150 = vld [vmem:[%s1 + $0x33c] sm:$0xff]
    %v151 = vld [vmem:[%s1 + $0x344] sm:$0xf]
    %v152 = vld [vmem:[%s1 + $0x348] sm:$0xff]
    %v153 = vld [vmem:[%s1 + $0x350] sm:$0xff]
    %v154 = vld [vmem:[%s1 + $0x358] sm:$0xff]
    %v155 = vld [vmem:[%s1 + $0x360] sm:$0xf]
    %v156 = vld [vmem:[%s1 + $0x364] sm:$0xff]
    %v157 = vld [vmem:[%s1 + $0x36c] sm:$0xff]
    %v158 = vld [vmem:[%s1 + $0x374] sm:$0xff]
    %v159 = vld [vmem:[%s1 + $0x37c] sm:$0xf]
    %v160 = vld [vmem:[%s1 + $0x380] sm:$0xff]
    %v161 = vld [vmem:[%s1 + $0x388] sm:$0xff]
    %v162 = vld [vmem:[%s1 + $0x390] sm:$0xff]
    %v163 = vld [vmem:[%s1 + $0x398] sm:$0xf]
    %v164 = vld [vmem:[%s1 + $0x39c] sm:$0xff]
    %v165 = vld [vmem:[%s1 + $0x3a4] sm:$0xff]
    %v166 = vld [vmem:[%s1 + $0x3ac] sm:$0xff]
    %v167 = vld [vmem:[%s1 + $0x3b4] sm:$0xf]
    %v168 = vld [vmem:[%s1 + $0x3b8] sm:$0xff]
    %v169 = vld [vmem:[%s1 + $0x3c0] sm:$0xff]
    %v170 = vld [vmem:[%s1 + $0x3c8] sm:$0xff]
    %v171 = vld [vmem:[%s1 + $0x3d0] sm:$0xf]
    %v172 = vld [vmem:[%s1 + $0x3d4] sm:$0xff]
    %v173 = vld [vmem:[%s1 + $0x3dc] sm:$0xff]
    %v174 = vld [vmem:[%s1 + $0x3e4] sm:$0xff]
    %v175 = vld [vmem:[%s1 + $0x3ec] sm:$0xf]
    %v176 = vld [vmem:[%s1 + $0x3f0] sm:$0xff]
    %v177 = vld [vmem:[%s1 + $0x3f8] sm:$0xff]
    %v178 = vld [vmem:[%s1 + $0x400] sm:$0xff]
    %v179 = vld [vmem:[%s1 + $0x408] sm:$0xf]
    %v180 = vld [vmem:[%s1 + $0x40c] sm:$0xff]
    %v181 = vld [vmem:[%s1 + $0x414] sm:$0xff]
    %v182 = vld [vmem:[%s1 + $0x41c] sm:$0xff]
    %v183 = vld [vmem:[%s1 + $0x424] sm:$0xf]
    %v184 = vld [vmem:[%s1 + $0x428] sm:$0xff]
    %v185 = vld [vmem:[%s1 + $0x430] sm:$0xff]
    %v186 = vld [vmem:[%s1 + $0x438] sm:$0xff]
    %v187 = vld [vmem:[%s1 + $0x440] sm:$0xf]
    %v188 = vld [vmem:[%s1 + $0x444] sm:$0xff]
    %v189 = vld [vmem:[%s1 + $0x44c] sm:$0xff]
    %v190 = vld [vmem:[%s1 + $0x454] sm:$0xff]
    %v191 = vld [vmem:[%s1 + $0x45c] sm:$0xf]
    %v192 = vld [vmem:[%s1 + $0x460] sm:$0xff]
    %v193 = vld [vmem:[%s1 + $0x468] sm:$0xff]
    %v194 = vld [vmem:[%s1 + $0x470] sm:$0xff]
    %v195 = vld [vmem:[%s1 + $0x478] sm:$0xf]
    %v196 = vld [vmem:[%s1 + $0x47c] sm:$0xff]
    %v197 = vld [vmem:[%s1 + $0x484] sm:$0xff]
    %v198 = vld [vmem:[%s1 + $0x48c] sm:$0xff]
    %v199 = vld [vmem:[%s1 + $0x494] sm:$0xf]
    %v200 = vld [vmem:[%s1 + $0x498] sm:$0xff]
    %v201 = vld [vmem:[%s1 + $0x4a0] sm:$0xff]
    %v202 = vld [vmem:[%s1 + $0x4a8] sm:$0xff]
    %v203 = vld [vmem:[%s1 + $0x4b0] sm:$0xf]
    %v204 = vld [vmem:[%s1 + $0x4b4] sm:$0xff]
    %v205 = vld [vmem:[%s1 + $0x4bc] sm:$0xff]
    %v206 = vld [vmem:[%s1 + $0x4c4] sm:$0xff]
    %v207 = vld [vmem:[%s1 + $0x4cc] sm:$0xf]
    %v208 = vld [vmem:[%s1 + $0x4d0] sm:$0xff]
    %v209 = vld [vmem:[%s1 + $0x4d8] sm:$0xff]
    %v210 = vld [vmem:[%s1 + $0x4e0] sm:$0xff]
    %v211 = vld [vmem:[%s1 + $0x4e8] sm:$0xf]
    %v212 = vld [vmem:[%s1 + $0x4ec] sm:$0xff]
    %v213 = vld [vmem:[%s1 + $0x4f4] sm:$0xff]
    %v214 = vld [vmem:[%s1 + $0x4fc] sm:$0xff]
    %v215 = vld [vmem:[%s1 + $0x504] sm:$0xf]
    %v216 = vld [vmem:[%s1 + $0x508] sm:$0xff]
    %v217 = vld [vmem:[%s1 + $0x510] sm:$0xff]
    %v218 = vld [vmem:[%s1 + $0x518] sm:$0xff]
    %v219 = vld [vmem:[%s1 + $0x520] sm:$0xf]
    %v220 = vld [vmem:[%s1 + $0x524] sm:$0xff]
    %v221 = vld [vmem:[%s1 + $0x52c] sm:$0xff]
    %v222 = vld [vmem:[%s1 + $0x534] sm:$0xff]
    %v223 = vld [vmem:[%s1 + $0x53c] sm:$0xf]
    %v224 = vld [vmem:[%s1 + $0x540] sm:$0xff]
    %v225 = vld [vmem:[%s1 + $0x548] sm:$0xff]
    %v226 = vld [vmem:[%s1 + $0x550] sm:$0xff]
    %v227 = vld [vmem:[%s1 + $0x558] sm:$0xf]
    %v228 = vld [vmem:[%s1 + $0x55c] sm:$0xff]
    %v229 = vld [vmem:[%s1 + $0x564] sm:$0xff]
    %v230 = vld [vmem:[%s1 + $0x56c] sm:$0xff]
    %v231 = vld [vmem:[%s1 + $0x574] sm:$0xf]
    %v232 = vld [vmem:[%s1 + $0x578] sm:$0xff]
    %v233 = vld [vmem:[%s1 + $0x580] sm:$0xff]
    %v234 = vld [vmem:[%s1 + $0x588] sm:$0xff]
    %v235 = vld [vmem:[%s1 + $0x590] sm:$0xf]
    %v236 = vld [vmem:[%s1 + $0x594] sm:$0xff]
    %v237 = vld [vmem:[%s1 + $0x59c] sm:$0xff]
    %v238 = vld [vmem:[%s1 + $0x5a4] sm:$0xff]
    %v239 = vld [vmem:[%s1 + $0x5ac] sm:$0xf]
    %v240 = vld [vmem:[%s1 + $0x5b0] sm:$0xff]
    %v241 = vld [vmem:[%s1 + $0x5b8] sm:$0xff]
    %v242 = vld [vmem:[%s1 + $0x5c0] sm:$0xff]
    %v243 = vld [vmem:[%s1 + $0x5c8] sm:$0xf]
    %v244 = vld [vmem:[%s1 + $0x5cc] sm:$0xff]
    %v245 = vld [vmem:[%s1 + $0x5d4] sm:$0xff]
    %v246 = vld [vmem:[%s1 + $0x5dc] sm:$0xff]
    %v247 = vld [vmem:[%s1 + $0x5e4] sm:$0xf]
    %v248 = vld [vmem:[%s1 + $0x5e8] sm:$0xff]
    %v249 = vld [vmem:[%s1 + $0x5f0] sm:$0xff]
    %v250 = vld [vmem:[%s1 + $0x5f8] sm:$0xff]
    %v251 = vld [vmem:[%s1 + $0x600] sm:$0xf]
    %v252 = vld [vmem:[%s1 + $0x604] sm:$0xff]
    %v253 = vld [vmem:[%s1 + $0x60c] sm:$0xff]
    %v254 = vld [vmem:[%s1 + $0x614] sm:$0xff]
    %v255 = vld [vmem:[%s1 + $0x61c] sm:$0xf]
    %v256 = vld [vmem:[%s1 + $0x620] sm:$0xff]
    %v257 = vld [vmem:[%s1 + $0x628] sm:$0xff]
    %v258 = vld [vmem:[%s1 + $0x630] sm:$0xff]
    %v259 = vld [vmem:[%s1 + $0x638] sm:$0xf]
    %v260 = vld [vmem:[%s1 + $0x63c] sm:$0xff]
    %v261 = vld [vmem:[%s1 + $0x644] sm:$0xff]
    %v262 = vld [vmem:[%s1 + $0x64c] sm:$0xff]
    %v263 = vld [vmem:[%s1 + $0x654] sm:$0xf]
    %v264 = vld [vmem:[%s1 + $0x658] sm:$0xff]
    %v265 = vld [vmem:[%s1 + $0x660] sm:$0xff]
    %v266 = vld [vmem:[%s1 + $0x668] sm:$0xff]
    %v267 = vld [vmem:[%s1 + $0x670] sm:$0xf]
    %v268 = vld [vmem:[%s1 + $0x674] sm:$0xff]
    %v269 = vld [vmem:[%s1 + $0x67c] sm:$0xff]
    %v270 = vld [vmem:[%s1 + $0x684] sm:$0xff]
    %v271 = vld [vmem:[%s1 + $0x68c] sm:$0xf]
    %v272 = vld [vmem:[%s1 + $0x690] sm:$0xff]
    %v273 = vld [vmem:[%s1 + $0x698] sm:$0xff]
    %v274 = vld [vmem:[%s1 + $0x6a0] sm:$0xff]
    %v275 = vld [vmem:[%s1 + $0x6a8] sm:$0xf]
    %v276 = vld [vmem:[%s1 + $0x6ac] sm:$0xff]
    %v277 = vld [vmem:[%s1 + $0x6b4] sm:$0xff]
    %v278 = vld [vmem:[%s1 + $0x6bc] sm:$0xff]
    %v279 = vld [vmem:[%s1 + $0x6c4] sm:$0xf]
    %v280 = vld [vmem:[%s1 + $0x6c8] sm:$0xff]
    %v281 = vld [vmem:[%s1 + $0x6d0] sm:$0xff]
    %v282 = vld [vmem:[%s1 + $0x6d8] sm:$0xff]
    %v283 = vld [vmem:[%s1 + $0x6e0] sm:$0xf]
    %v284 = vld [vmem:[%s1 + $0x6e4] sm:$0xff]
    %v285 = vld [vmem:[%s1 + $0x6ec] sm:$0xff]
    %v286 = vld [vmem:[%s1 + $0x6f4] sm:$0xff]
    %v287 = vld [vmem:[%s1 + $0x6fc] sm:$0xf]
    %v288 = vld [vmem:[%s1 + $0x700] sm:$0xff]
    %v289 = vld [vmem:[%s1 + $0x708] sm:$0xff]
    %v290 = vld [vmem:[%s1 + $0x710] sm:$0xff]
    %v291 = vld [vmem:[%s1 + $0x718] sm:$0xf]
    %v292 = vld [vmem:[%s1 + $0x71c] sm:$0xff]
    %v293 = vld [vmem:[%s1 + $0x724] sm:$0xff]
    %v294 = vld [vmem:[%s1 + $0x72c] sm:$0xff]
    %v295 = vld [vmem:[%s1 + $0x734] sm:$0xf]
    %v296 = vld [vmem:[%s1 + $0x738] sm:$0xff]
    %v297 = vld [vmem:[%s1 + $0x740] sm:$0xff]
    %v298 = vld [vmem:[%s1 + $0x748] sm:$0xff]
    %v299 = vld [vmem:[%s1 + $0x750] sm:$0xf]
    %v300 = vld [vmem:[%s1 + $0x754] sm:$0xff]
    %v301 = vld [vmem:[%s1 + $0x75c] sm:$0xff]
    %v302 = vld [vmem:[%s1 + $0x764] sm:$0xff]
    %v303 = vld [vmem:[%s1 + $0x76c] sm:$0xf]
    %v304 = vld [vmem:[%s1 + $0x770] sm:$0xff]
    %v305 = vld [vmem:[%s1 + $0x778] sm:$0xff]
    %v306 = vld [vmem:[%s1 + $0x780] sm:$0xff]
    %v307 = vld [vmem:[%s1 + $0x788] sm:$0xf]
    %v308 = vld [vmem:[%s1 + $0x78c] sm:$0xff]
    %v309 = vld [vmem:[%s1 + $0x794] sm:$0xff]
    %v310 = vld [vmem:[%s1 + $0x79c] sm:$0xff]
    %v311 = vld [vmem:[%s1 + $0x7a4] sm:$0xf]
    %v312 = vld [vmem:[%s1 + $0x7a8] sm:$0xff]
    %v313 = vld [vmem:[%s1 + $0x7b0] sm:$0xff]
    %v314 = vld [vmem:[%s1 + $0x7b8] sm:$0xff]
    %v315 = vld [vmem:[%s1 + $0x7c0] sm:$0xf]
    %v316 = vld [vmem:[%s1 + $0x7c4] sm:$0xff]
    %v317 = vld [vmem:[%s1 + $0x7cc] sm:$0xff]
    %v318 = vld [vmem:[%s1 + $0x7d4] sm:$0xff]
    %v319 = vld [vmem:[%s1 + $0x7dc] sm:$0xf]
    %v320 = vld [vmem:[%s1 + $0x7e0] sm:$0xff]
    %v321 = vld [vmem:[%s1 + $0x7e8] sm:$0xff]
    %v322 = vld [vmem:[%s1 + $0x7f0] sm:$0xff]
    %v323 = vld [vmem:[%s1 + $0x7f8] sm:$0xf]
    %v324 = vld [vmem:[%s1 + $0x7fc] sm:$0xff]
    %v325 = vld [vmem:[%s1 + $0x804] sm:$0xff]
    %v326 = vld [vmem:[%s1 + $0x80c] sm:$0xff]
    %v327 = vld [vmem:[%s1 + $0x814] sm:$0xf]
    %v328 = vld [vmem:[%s1 + $0x818] sm:$0xff]
    %v329 = vld [vmem:[%s1 + $0x820] sm:$0xff]
    %v330 = vld [vmem:[%s1 + $0x828] sm:$0xff]
    %v331 = vld [vmem:[%s1 + $0x830] sm:$0xf]
    %v332 = vld [vmem:[%s1 + $0x834] sm:$0xff]
    %v333 = vld [vmem:[%s1 + $0x83c] sm:$0xff]
    %v334 = vld [vmem:[%s1 + $0x844] sm:$0xff]
    %v335 = vld [vmem:[%s1 + $0x84c] sm:$0xf]
    %v336 = vld [vmem:[%s1 + $0x850] sm:$0xff]
    %v337 = vld [vmem:[%s1 + $0x858] sm:$0xff]
    %v338 = vld [vmem:[%s1 + $0x860] sm:$0xff]
    %v339 = vld [vmem:[%s1 + $0x868] sm:$0xf]
    %v340 = vld [vmem:[%s1 + $0x86c] sm:$0xff]
    %v341 = vld [vmem:[%s1 + $0x874] sm:$0xff]
    %v342 = vld [vmem:[%s1 + $0x87c] sm:$0xff]
    %v343 = vld [vmem:[%s1 + $0x884] sm:$0xf]
    %v344 = vld [vmem:[%s1 + $0x888] sm:$0xff]
    %v345 = vld [vmem:[%s1 + $0x890] sm:$0xff]
    %v346 = vld [vmem:[%s1 + $0x898] sm:$0xff]
    %v347 = vld [vmem:[%s1 + $0x8a0] sm:$0xf]
    %v348 = vld [vmem:[%s1 + $0x8a4] sm:$0xff]
    %v349 = vld [vmem:[%s1 + $0x8ac] sm:$0xff]
    %v350 = vld [vmem:[%s1 + $0x8b4] sm:$0xff]
    %v351 = vld [vmem:[%s1 + $0x8bc] sm:$0xf]
    %v352 = vld [vmem:[%s1 + $0x8c0] sm:$0xff]
    %v353 = vld [vmem:[%s1 + $0x8c8] sm:$0xff]
    %v354 = vld [vmem:[%s1 + $0x8d0] sm:$0xff]
    %v355 = vld [vmem:[%s1 + $0x8d8] sm:$0xf]
    %v356 = vld [vmem:[%s1 + $0x8dc] sm:$0xff]
    %v357 = vld [vmem:[%s1 + $0x8e4] sm:$0xff]
    %v358 = vld [vmem:[%s1 + $0x8ec] sm:$0xff]
    %v359 = vld [vmem:[%s1 + $0x8f4] sm:$0xf]
    %v360 = vld [vmem:[%s1 + $0x8f8] sm:$0xff]
    %v361 = vld [vmem:[%s1 + $0x900] sm:$0xff]
    %v362 = vld [vmem:[%s1 + $0x908] sm:$0xff]
    %v363 = vld [vmem:[%s1 + $0x910] sm:$0xf]
    %v364 = vld [vmem:[%s1 + $0x914] sm:$0xff]
    %v365 = vld [vmem:[%s1 + $0x91c] sm:$0xff]
    %v366 = vld [vmem:[%s1 + $0x924] sm:$0xff]
    %v367 = vld [vmem:[%s1 + $0x92c] sm:$0xf]
    %v368 = vld [vmem:[%s1 + $0x930] sm:$0xff]
    %v369 = vld [vmem:[%s1 + $0x938] sm:$0xff]
    %v370 = vld [vmem:[%s1 + $0x940] sm:$0xff]
    %v371 = vld [vmem:[%s1 + $0x948] sm:$0xf]
    %v372 = vld [vmem:[%s1 + $0x94c] sm:$0xff]
    %v373 = vld [vmem:[%s1 + $0x954] sm:$0xff]
    %v374 = vld [vmem:[%s1 + $0x95c] sm:$0xff]
    %v375 = vld [vmem:[%s1 + $0x964] sm:$0xf]
    %v376 = vld [vmem:[%s1 + $0x968] sm:$0xff]
    %v377 = vld [vmem:[%s1 + $0x970] sm:$0xff]
    %v378 = vld [vmem:[%s1 + $0x978] sm:$0xff]
    %v379 = vld [vmem:[%s1 + $0x980] sm:$0xf]
    %v380 = vld [vmem:[%s1 + $0x984] sm:$0xff]
    %v381 = vld [vmem:[%s1 + $0x98c] sm:$0xff]
    %v382 = vld [vmem:[%s1 + $0x994] sm:$0xff]
    %v383 = vld [vmem:[%s1 + $0x99c] sm:$0xf]
    %v384 = vld [vmem:[%s1 + $0x9a0] sm:$0xff]
    %v385 = vld [vmem:[%s1 + $0x9a8] sm:$0xff]
    %v386 = vld [vmem:[%s1 + $0x9b0] sm:$0xff]
    %v387 = vld [vmem:[%s1 + $0x9b8] sm:$0xf]
    %v388 = vld [vmem:[%s1 + $0x9bc] sm:$0xff]
    %v389 = vld [vmem:[%s1 + $0x9c4] sm:$0xff]
    %v390 = vld [vmem:[%s1 + $0x9cc] sm:$0xff]
    %v391 = vld [vmem:[%s1 + $0x9d4] sm:$0xf]
    %v392 = vld [vmem:[%s1 + $0x9d8] sm:$0xff]
    %v393 = vld [vmem:[%s1 + $0x9e0] sm:$0xff]
    %v394 = vld [vmem:[%s1 + $0x9e8] sm:$0xff]
    %v395 = vld [vmem:[%s1 + $0x9f0] sm:$0xf]
    %v396 = vld [vmem:[%s1 + $0x9f4] sm:$0xff]
    %v397 = vld [vmem:[%s1 + $0x9fc] sm:$0xff]
    %v398 = vld [vmem:[%s1 + $0xa04] sm:$0xff]
    %v399 = vld [vmem:[%s1 + $0xa0c] sm:$0xf]
    %v400 = vld [vmem:[%s1 + $0xa10] sm:$0xff]
    %v401 = vld [vmem:[%s1 + $0xa18] sm:$0xff]
    %v402 = vld [vmem:[%s1 + $0xa20] sm:$0xff]
    %v403 = vld [vmem:[%s1 + $0xa28] sm:$0xf]
    %v404 = vld [vmem:[%s1 + $0xa2c] sm:$0xff]
    %v405 = vld [vmem:[%s1 + $0xa34] sm:$0xff]
    %v406 = vld [vmem:[%s1 + $0xa3c] sm:$0xff]
    %v407 = vld [vmem:[%s1 + $0xa44] sm:$0xf]
    %v408 = vld [vmem:[%s1 + $0xa48] sm:$0xff]
    %v409 = vld [vmem:[%s1 + $0xa50] sm:$0xff]
    %v410 = vld [vmem:[%s1 + $0xa58] sm:$0xff]
    %v411 = vld [vmem:[%s1 + $0xa60] sm:$0xf]
    %v412 = vld [vmem:[%s1 + $0xa64] sm:$0xff]
    %v413 = vld [vmem:[%s1 + $0xa6c] sm:$0xff]
    %v414 = vld [vmem:[%s1 + $0xa74] sm:$0xff]
    %v415 = vld [vmem:[%s1 + $0xa7c] sm:$0xf]
    %v416 = vld [vmem:[%s1 + $0xa80] sm:$0xff]
    %v417 = vld [vmem:[%s1 + $0xa88] sm:$0xff]
    %v418 = vld [vmem:[%s1 + $0xa90] sm:$0xff]
    %v419 = vld [vmem:[%s1 + $0xa98] sm:$0xf]
    %v420 = vld [vmem:[%s1 + $0xa9c] sm:$0xff]
    %v421 = vld [vmem:[%s1 + $0xaa4] sm:$0xff]
    %v422 = vld [vmem:[%s1 + $0xaac] sm:$0xff]
    %v423 = vld [vmem:[%s1 + $0xab4] sm:$0xf]
    %v424 = vld [vmem:[%s1 + $0xab8] sm:$0xff]
    %v425 = vld [vmem:[%s1 + $0xac0] sm:$0xff]
    %v426 = vld [vmem:[%s1 + $0xac8] sm:$0xff]
    %v427 = vld [vmem:[%s1 + $0xad0] sm:$0xf]
    %v428 = vld [vmem:[%s1 + $0xad4] sm:$0xff]
    %v429 = vld [vmem:[%s1 + $0xadc] sm:$0xff]
    %v430 = vld [vmem:[%s1 + $0xae4] sm:$0xff]
    %v431 = vld [vmem:[%s1 + $0xaec] sm:$0xf]
    %v432 = vld [vmem:[%s1 + $0xaf0] sm:$0xff]
    %v433 = vld [vmem:[%s1 + $0xaf8] sm:$0xff]
    %v434 = vld [vmem:[%s1 + $0xb00] sm:$0xff]
    %v435 = vld [vmem:[%s1 + $0xb08] sm:$0xf]
    %v436 = vld [vmem:[%s1 + $0xb0c] sm:$0xff]
    %v437 = vld [vmem:[%s1 + $0xb14] sm:$0xff]
    %v438 = vld [vmem:[%s1 + $0xb1c] sm:$0xff]
    %v439 = vld [vmem:[%s1 + $0xb24] sm:$0xf]
    %v440 = vld [vmem:[%s1 + $0xb28] sm:$0xff]
    %v441 = vld [vmem:[%s1 + $0xb30] sm:$0xff]
    %v442 = vld [vmem:[%s1 + $0xb38] sm:$0xff]
    %v443 = vld [vmem:[%s1 + $0xb40] sm:$0xf]
    %v444 = vld [vmem:[%s1 + $0xb44] sm:$0xff]
    %v445 = vld [vmem:[%s1 + $0xb4c] sm:$0xff]
    %v446 = vld [vmem:[%s1 + $0xb54] sm:$0xff]
    %v447 = vld [vmem:[%s1 + $0xb5c] sm:$0xf]
    %v448 = vld [vmem:[%s1 + $0xb60] sm:$0xff]
    %v449 = vld [vmem:[%s1 + $0xb68] sm:$0xff]
    %v450 = vld [vmem:[%s1 + $0xb70] sm:$0xff]
    %v451 = vld [vmem:[%s1 + $0xb78] sm:$0xf]
    %v452 = vld [vmem:[%s1 + $0xb7c] sm:$0xff]
    %v453 = vld [vmem:[%s1 + $0xb84] sm:$0xff]
    %v454 = vld [vmem:[%s1 + $0xb8c] sm:$0xff]
    %v455 = vld [vmem:[%s1 + $0xb94] sm:$0xf]
    %v456 = vld [vmem:[%s1 + $0xb98] sm:$0xff]
    %v457 = vld [vmem:[%s1 + $0xba0] sm:$0xff]
    %v458 = vld [vmem:[%s1 + $0xba8] sm:$0xff]
    %v459 = vld [vmem:[%s1 + $0xbb0] sm:$0xf]
    %v460 = vld [vmem:[%s1 + $0xbb4] sm:$0xff]
    %v461 = vld [vmem:[%s1 + $0xbbc] sm:$0xff]
    %v462 = vld [vmem:[%s1 + $0xbc4] sm:$0xff]
    %v463 = vld [vmem:[%s1 + $0xbcc] sm:$0xf]
    %v464 = vld [vmem:[%s1 + $0xbd0] sm:$0xff]
    %v465 = vld [vmem:[%s1 + $0xbd8] sm:$0xff]
    %v466 = vld [vmem:[%s1 + $0xbe0] sm:$0xff]
    %v467 = vld [vmem:[%s1 + $0xbe8] sm:$0xf]
    %v468 = vld [vmem:[%s1 + $0xbec] sm:$0xff]
    %v469 = vld [vmem:[%s1 + $0xbf4] sm:$0xff]
    %v470 = vld [vmem:[%s1 + $0xbfc] sm:$0xff]
    %v471 = vld [vmem:[%s1 + $0xc04] sm:$0xf]
    %v472 = vld [vmem:[%s1 + $0xc08] sm:$0xff]
    %v473 = vld [vmem:[%s1 + $0xc10] sm:$0xff]
    %v474 = vld [vmem:[%s1 + $0xc18] sm:$0xff]
    %v475 = vld [vmem:[%s1 + $0xc20] sm:$0xf]
    %v476 = vld [vmem:[%s1 + $0xc24] sm:$0xff]
    %v477 = vld [vmem:[%s1 + $0xc2c] sm:$0xff]
    %v478 = vld [vmem:[%s1 + $0xc34] sm:$0xff]
    %v479 = vld [vmem:[%s1 + $0xc3c] sm:$0xf]
    %v480 = vld [vmem:[%s1 + $0xc40] sm:$0xff]
    %v481 = vld [vmem:[%s1 + $0xc48] sm:$0xff]
    %v482 = vld [vmem:[%s1 + $0xc50] sm:$0xff]
    %v483 = vld [vmem:[%s1 + $0xc58] sm:$0xf]
    %v484 = vld [vmem:[%s1 + $0xc5c] sm:$0xff]
    %v485 = vld [vmem:[%s1 + $0xc64] sm:$0xff]
    %v486 = vld [vmem:[%s1 + $0xc6c] sm:$0xff]
    %v487 = vld [vmem:[%s1 + $0xc74] sm:$0xf]
    %v488 = vld [vmem:[%s1 + $0xc78] sm:$0xff]
    %v489 = vld [vmem:[%s1 + $0xc80] sm:$0xff]
    %v490 = vld [vmem:[%s1 + $0xc88] sm:$0xff]
    %v491 = vld [vmem:[%s1 + $0xc90] sm:$0xf]
    %v492 = vld [vmem:[%s1 + $0xc94] sm:$0xff]
    %v493 = vld [vmem:[%s1 + $0xc9c] sm:$0xff]
    %v494 = vld [vmem:[%s1 + $0xca4] sm:$0xff]
    %v495 = vld [vmem:[%s1 + $0xcac] sm:$0xf]
    %v496 = vld [vmem:[%s1 + $0xcb0] sm:$0xff]
    %v497 = vld [vmem:[%s1 + $0xcb8] sm:$0xff]
    %v498 = vld [vmem:[%s1 + $0xcc0] sm:$0xff]
    %v499 = vld [vmem:[%s1 + $0xcc8] sm:$0xf]
    %v500 = vld [vmem:[%s1 + $0xccc] sm:$0xff]
    %v501 = vld [vmem:[%s1 + $0xcd4] sm:$0xff]
    %v502 = vld [vmem:[%s1 + $0xcdc] sm:$0xff]
    %v503 = vld [vmem:[%s1 + $0xce4] sm:$0xf]
    %v504 = vld [vmem:[%s1 + $0xce8] sm:$0xff]
    %v505 = vld [vmem:[%s1 + $0xcf0] sm:$0xff]
    %v506 = vld [vmem:[%s1 + $0xcf8] sm:$0xff]
    %v507 = vld [vmem:[%s1 + $0xd00] sm:$0xf]
    %v508 = vld [vmem:[%s1 + $0xd04] sm:$0xff]
    %v509 = vld [vmem:[%s1 + $0xd0c] sm:$0xff]
    %v510 = vld [vmem:[%s1 + $0xd14] sm:$0xff]
    %v511 = vld [vmem:[%s1 + $0xd1c] sm:$0xf]
    %v512 = vld [vmem:[%s1 + $0xd20] sm:$0xff]
    %v513 = vld [vmem:[%s1 + $0xd28] sm:$0xff]
    %v514 = vld [vmem:[%s1 + $0xd30] sm:$0xff]
    %v515 = vld [vmem:[%s1 + $0xd38] sm:$0xf]
    %v516 = vld [vmem:[%s1 + $0xd3c] sm:$0xff]
    %v517 = vld [vmem:[%s1 + $0xd44] sm:$0xff]
    %v518 = vld [vmem:[%s1 + $0xd4c] sm:$0xff]
    %v519 = vld [vmem:[%s1 + $0xd54] sm:$0xf]
    %v520 = vld [vmem:[%s1 + $0xd58] sm:$0xff]
    %v521 = vld [vmem:[%s1 + $0xd60] sm:$0xff]
    %v522 = vld [vmem:[%s1 + $0xd68] sm:$0xff]
    %v523 = vld [vmem:[%s1 + $0xd70] sm:$0xf]
    %v524 = vld [vmem:[%s1 + $0xd74] sm:$0xff]
    %v525 = vld [vmem:[%s1 + $0xd7c] sm:$0xff]
    %v526 = vld [vmem:[%s1 + $0xd84] sm:$0xff]
    %v527 = vld [vmem:[%s1 + $0xd8c] sm:$0xf]
    %v528 = vld [vmem:[%s1 + $0xd90] sm:$0xff]
    %v529 = vld [vmem:[%s1 + $0xd98] sm:$0xff]
    %v530 = vld [vmem:[%s1 + $0xda0] sm:$0xff]
    %v531 = vld [vmem:[%s1 + $0xda8] sm:$0xf]
    %v532 = vld [vmem:[%s1 + $0xdac] sm:$0xff]
    %v533 = vld [vmem:[%s1 + $0xdb4] sm:$0xff]
    %v534 = vld [vmem:[%s1 + $0xdbc] sm:$0xff]
    %v535 = vld [vmem:[%s1 + $0xdc4] sm:$0xf]
    %v536 = vld [vmem:[%s1 + $0xdc8] sm:$0xff]
    %v537 = vld [vmem:[%s1 + $0xdd0] sm:$0xff]
    %v538 = vld [vmem:[%s1 + $0xdd8] sm:$0xff]
    %v539 = vld [vmem:[%s1 + $0xde0] sm:$0xf]
    %v540 = vld [vmem:[%s1 + $0xde4] sm:$0xff]
    %v541 = vld [vmem:[%s1 + $0xdec] sm:$0xff]
    %v542 = vld [vmem:[%s1 + $0xdf4] sm:$0xff]
    %v543 = vld [vmem:[%s1 + $0xdfc] sm:$0xf]
    %v544 = vld [vmem:[%s1 + $0xe00] sm:$0xff]
    %v545 = vld [vmem:[%s1 + $0xe08] sm:$0xff]
    %v546 = vld [vmem:[%s1 + $0xe10] sm:$0xff]
    %v547 = vld [vmem:[%s1 + $0xe18] sm:$0xf]
    %v548 = vld [vmem:[%s1 + $0xe1c] sm:$0xff]
    %v549 = vld [vmem:[%s1 + $0xe24] sm:$0xff]
    %v550 = vld [vmem:[%s1 + $0xe2c] sm:$0xff]
    %v551 = vld [vmem:[%s1 + $0xe34] sm:$0xf]
    %v552 = vld [vmem:[%s1 + $0xe38] sm:$0xff]
    %v553 = vld [vmem:[%s1 + $0xe40] sm:$0xff]
    %v554 = vld [vmem:[%s1 + $0xe48] sm:$0xff]
    %v555 = vld [vmem:[%s1 + $0xe50] sm:$0xf]
    %v556 = vld [vmem:[%s1 + $0xe54] sm:$0xff]
    %v557 = vld [vmem:[%s1 + $0xe5c] sm:$0xff]
    %v558 = vld [vmem:[%s1 + $0xe64] sm:$0xff]
    %v559 = vld [vmem:[%s1 + $0xe6c] sm:$0xf]
    %v560 = vld [vmem:[%s1 + $0xe70] sm:$0xff]
    %v561 = vld [vmem:[%s1 + $0xe78] sm:$0xff]
    %v562 = vld [vmem:[%s1 + $0xe80] sm:$0xff]
    %v563 = vld [vmem:[%s1 + $0xe88] sm:$0xf]
    %v564 = vld [vmem:[%s1 + $0xe8c] sm:$0xff]
    %v565 = vld [vmem:[%s1 + $0xe94] sm:$0xff]
    %v566 = vld [vmem:[%s1 + $0xe9c] sm:$0xff]
    %v567 = vld [vmem:[%s1 + $0xea4] sm:$0xf]
    %v568 = vld [vmem:[%s1 + $0xea8] sm:$0xff]
    %v569 = vld [vmem:[%s1 + $0xeb0] sm:$0xff]
    %v570 = vld [vmem:[%s1 + $0xeb8] sm:$0xff]
    %v571 = vld [vmem:[%s1 + $0xec0] sm:$0xf]
    %v572 = vld [vmem:[%s1 + $0xec4] sm:$0xff]
    %v573 = vld [vmem:[%s1 + $0xecc] sm:$0xff]
    %v574 = vld [vmem:[%s1 + $0xed4] sm:$0xff]
    %v575 = vld [vmem:[%s1 + $0xedc] sm:$0xf]
    %v576 = vld [vmem:[%s1 + $0xee0] sm:$0xff]
    %v577 = vld [vmem:[%s1 + $0xee8] sm:$0xff]
    %v578 = vld [vmem:[%s1 + $0xef0] sm:$0xff]
    %v579 = vld [vmem:[%s1 + $0xef8] sm:$0xf]
    %v580 = vld [vmem:[%s1 + $0xefc] sm:$0xff]
    %v581 = vld [vmem:[%s1 + $0xf04] sm:$0xff]
    %v582 = vld [vmem:[%s1 + $0xf0c] sm:$0xff]
    %v583 = vld [vmem:[%s1 + $0xf14] sm:$0xf]
    %v584 = vld [vmem:[%s1 + $0xf18] sm:$0xff]
    %v585 = vld [vmem:[%s1 + $0xf20] sm:$0xff]
    %v586 = vld [vmem:[%s1 + $0xf28] sm:$0xff]
    %v587 = vld [vmem:[%s1 + $0xf30] sm:$0xf]
    %v588 = vld [vmem:[%s1 + $0xf34] sm:$0xff]
    %v589 = vld [vmem:[%s1 + $0xf3c] sm:$0xff]
    %v590 = vld [vmem:[%s1 + $0xf44] sm:$0xff]
    %v591 = vld [vmem:[%s1 + $0xf4c] sm:$0xf]
    %v592 = vld [vmem:[%s1 + $0xf50] sm:$0xff]
    %v593 = vld [vmem:[%s1 + $0xf58] sm:$0xff]
    %v594 = vld [vmem:[%s1 + $0xf60] sm:$0xff]
    %v595 = vld [vmem:[%s1 + $0xf68] sm:$0xf]
    %v596 = vld [vmem:[%s1 + $0xf6c] sm:$0xff]
    %v597 = vld [vmem:[%s1 + $0xf74] sm:$0xff]
    %v598 = vld [vmem:[%s1 + $0xf7c] sm:$0xff]
    %v599 = vld [vmem:[%s1 + $0xf84] sm:$0xf]
    %v600 = vld [vmem:[%s1 + $0xf88] sm:$0xff]
    %v601 = vld [vmem:[%s1 + $0xf90] sm:$0xff]
    %v602 = vld [vmem:[%s1 + $0xf98] sm:$0xff]
    %v603 = vld [vmem:[%s1 + $0xfa0] sm:$0xf]
    %v604 = vld [vmem:[%s1 + $0xfa4] sm:$0xff]
    %v605 = vld [vmem:[%s1 + $0xfac] sm:$0xff]
    %v606 = vld [vmem:[%s1 + $0xfb4] sm:$0xff]
    %v607 = vld [vmem:[%s1 + $0xfbc] sm:$0xf]
    %v608 = vld [vmem:[%s1 + $0xfc0] sm:$0xff]
    %v609 = vld [vmem:[%s1 + $0xfc8] sm:$0xff]
    %v610 = vld [vmem:[%s1 + $0xfd0] sm:$0xff]
    %v611 = vld [vmem:[%s1 + $0xfd8] sm:$0xf]
    %v612 = vld [vmem:[%s1 + $0xfdc] sm:$0xff]
    %v613 = vld [vmem:[%s1 + $0xfe4] sm:$0xff]
    %v614 = vld [vmem:[%s1 + $0xfec] sm:$0xff]
    %v615 = vld [vmem:[%s1 + $0xff4] sm:$0xf]
    %v616 = vld [vmem:[%s1 + $0xff8] sm:$0xff]
    %v617 = vld [vmem:[%s1 + $0x1000] sm:$0xff]
    %v618 = vld [vmem:[%s1 + $0x1008] sm:$0xff]
    %v619 = vld [vmem:[%s1 + $0x1010] sm:$0xf]
    %v620 = vld [vmem:[%s1 + $0x1014] sm:$0xff]
    %v621 = vld [vmem:[%s1 + $0x101c] sm:$0xff]
    %v622 = vld [vmem:[%s1 + $0x1024] sm:$0xff]
    %v623 = vld [vmem:[%s1 + $0x102c] sm:$0xf]
    %v624 = vld [vmem:[%s1 + $0x1030] sm:$0xff]
    %v625 = vld [vmem:[%s1 + $0x1038] sm:$0xff]
    %v626 = vld [vmem:[%s1 + $0x1040] sm:$0xff]
    %v627 = vld [vmem:[%s1 + $0x1048] sm:$0xf]
    %v628 = vld [vmem:[%s1 + $0x104c] sm:$0xff]
    %v629 = vld [vmem:[%s1 + $0x1054] sm:$0xff]
    %v630 = vld [vmem:[%s1 + $0x105c] sm:$0xff]
    %v631 = vld [vmem:[%s1 + $0x1064] sm:$0xf]
    %v632 = vld [vmem:[%s1 + $0x1068] sm:$0xff]
    %v633 = vld [vmem:[%s1 + $0x1070] sm:$0xff]
    %v634 = vld [vmem:[%s1 + $0x1078] sm:$0xff]
    %v635 = vld [vmem:[%s1 + $0x1080] sm:$0xf]
    %v636 = vld [vmem:[%s1 + $0x1084] sm:$0xff]
    %v637 = vld [vmem:[%s1 + $0x108c] sm:$0xff]
    %v638 = vld [vmem:[%s1 + $0x1094] sm:$0xff]
    %v639 = vld [vmem:[%s1 + $0x109c] sm:$0xf]
    %v640 = vld [vmem:[%s1 + $0x10a0] sm:$0xff]
    %v641 = vld [vmem:[%s1 + $0x10a8] sm:$0xff]
    %v642 = vld [vmem:[%s1 + $0x10b0] sm:$0xff]
    %v643 = vld [vmem:[%s1 + $0x10b8] sm:$0xf]
    %v644 = vld [vmem:[%s1 + $0x10bc] sm:$0xff]
    %v645 = vld [vmem:[%s1 + $0x10c4] sm:$0xff]
    %v646 = vld [vmem:[%s1 + $0x10cc] sm:$0xff]
    %v647 = vld [vmem:[%s1 + $0x10d4] sm:$0xf]
    %v648 = vld [vmem:[%s1 + $0x10d8] sm:$0xff]
    %v649 = vld [vmem:[%s1 + $0x10e0] sm:$0xff]
    %v650 = vld [vmem:[%s1 + $0x10e8] sm:$0xff]
    %v651 = vld [vmem:[%s1 + $0x10f0] sm:$0xf]
    %v652 = vld [vmem:[%s1 + $0x10f4] sm:$0xff]
    %v653 = vld [vmem:[%s1 + $0x10fc] sm:$0xff]
    %v654 = vld [vmem:[%s1 + $0x1104] sm:$0xff]
    %v655 = vld [vmem:[%s1 + $0x110c] sm:$0xf]
    %v656 = vld [vmem:[%s1 + $0x1110] sm:$0xff]
    %v657 = vld [vmem:[%s1 + $0x1118] sm:$0xff]
    %v658 = vld [vmem:[%s1 + $0x1120] sm:$0xff]
    %v659 = vld [vmem:[%s1 + $0x1128] sm:$0xf]
    %v660 = vld [vmem:[%s1 + $0x112c] sm:$0xff]
    %v661 = vld [vmem:[%s1 + $0x1134] sm:$0xff]
    %v662 = vld [vmem:[%s1 + $0x113c] sm:$0xff]
    %v663 = vld [vmem:[%s1 + $0x1144] sm:$0xf]
    %v664 = vld [vmem:[%s1 + $0x1148] sm:$0xff]
    %v665 = vld [vmem:[%s1 + $0x1150] sm:$0xff]
    %v666 = vld [vmem:[%s1 + $0x1158] sm:$0xff]
    %v667 = vld [vmem:[%s1 + $0x1160] sm:$0xf]
    %v668 = vld [vmem:[%s1 + $0x1164] sm:$0xff]
    %v669 = vld [vmem:[%s1 + $0x116c] sm:$0xff]
    %v670 = vld [vmem:[%s1 + $0x1174] sm:$0xff]
    %v671 = vld [vmem:[%s1 + $0x117c] sm:$0xf]
    %v672 = vld [vmem:[%s1 + $0x1180] sm:$0xff]
    %v673 = vld [vmem:[%s1 + $0x1188] sm:$0xff]
    %v674 = vld [vmem:[%s1 + $0x1190] sm:$0xff]
    %v675 = vld [vmem:[%s1 + $0x1198] sm:$0xf]
    %v676 = vld [vmem:[%s1 + $0x119c] sm:$0xff]
    %v677 = vld [vmem:[%s1 + $0x11a4] sm:$0xff]
    %v678 = vld [vmem:[%s1 + $0x11ac] sm:$0xff]
    %v679 = vld [vmem:[%s1 + $0x11b4] sm:$0xf]
    %v680 = vld [vmem:[%s1 + $0x11b8] sm:$0xff]
    %v681 = vld [vmem:[%s1 + $0x11c0] sm:$0xff]
    %v682 = vld [vmem:[%s1 + $0x11c8] sm:$0xff]
    %v683 = vld [vmem:[%s1 + $0x11d0] sm:$0xf]
    %v684 = vld [vmem:[%s1 + $0x11d4] sm:$0xff]
    %v685 = vld [vmem:[%s1 + $0x11dc] sm:$0xff]
    %v686 = vld [vmem:[%s1 + $0x11e4] sm:$0xff]
    %v687 = vld [vmem:[%s1 + $0x11ec] sm:$0xf]
    %v688 = vld [vmem:[%s1 + $0x11f0] sm:$0xff]
    %v689 = vld [vmem:[%s1 + $0x11f8] sm:$0xff]
    %v690 = vld [vmem:[%s1 + $0x1200] sm:$0xff]
    %v691 = vld [vmem:[%s1 + $0x1208] sm:$0xf]
    %v692 = vld [vmem:[%s1 + $0x120c] sm:$0xff]
    %v693 = vld [vmem:[%s1 + $0x1214] sm:$0xff]
    %v694 = vld [vmem:[%s1 + $0x121c] sm:$0xff]
    %v695 = vld [vmem:[%s1 + $0x1224] sm:$0xf]
    %v696 = vld [vmem:[%s1 + $0x1228] sm:$0xff]
    %v697 = vld [vmem:[%s1 + $0x1230] sm:$0xff]
    %v698 = vld [vmem:[%s1 + $0x1238] sm:$0xff]
    %v699 = vld [vmem:[%s1 + $0x1240] sm:$0xf]
    %v700 = vld [vmem:[%s1 + $0x1244] sm:$0xff]
    %v701 = vld [vmem:[%s1 + $0x124c] sm:$0xff]
    %v702 = vld [vmem:[%s1 + $0x1254] sm:$0xff]
    %v703 = vld [vmem:[%s1 + $0x125c] sm:$0xf]
    %v704 = vld [vmem:[%s1 + $0x1260] sm:$0xff]
    %v705 = vld [vmem:[%s1 + $0x1268] sm:$0xff]
    %v706 = vld [vmem:[%s1 + $0x1270] sm:$0xff]
    %v707 = vld [vmem:[%s1 + $0x1278] sm:$0xf]
    %v708 = vld [vmem:[%s1 + $0x127c] sm:$0xff]
    %v709 = vld [vmem:[%s1 + $0x1284] sm:$0xff]
    %v710 = vld [vmem:[%s1 + $0x128c] sm:$0xff]
    %v711 = vld [vmem:[%s1 + $0x1294] sm:$0xf]
    %v712 = vld [vmem:[%s1 + $0x1298] sm:$0xff]
    %v713 = vld [vmem:[%s1 + $0x12a0] sm:$0xff]
    %v714 = vld [vmem:[%s1 + $0x12a8] sm:$0xff]
    %v715 = vld [vmem:[%s1 + $0x12b0] sm:$0xf]
    %v716 = vld [vmem:[%s1 + $0x12b4] sm:$0xff]
    %v717 = vld [vmem:[%s1 + $0x12bc] sm:$0xff]
    %v718 = vld [vmem:[%s1 + $0x12c4] sm:$0xff]
    %v719 = vld [vmem:[%s1 + $0x12cc] sm:$0xf]
    %v720 = vld [vmem:[%s1 + $0x12d0] sm:$0xff]
    %v721 = vld [vmem:[%s1 + $0x12d8] sm:$0xff]
    %v722 = vld [vmem:[%s1 + $0x12e0] sm:$0xff]
    %v723 = vld [vmem:[%s1 + $0x12e8] sm:$0xf]
    %v724 = vld [vmem:[%s1 + $0x12ec] sm:$0xff]
    %v725 = vld [vmem:[%s1 + $0x12f4] sm:$0xff]
    %v726 = vld [vmem:[%s1 + $0x12fc] sm:$0xff]
    %v727 = vld [vmem:[%s1 + $0x1304] sm:$0xf]
    %v728 = vld [vmem:[%s1 + $0x1308] sm:$0xff]
    %v729 = vld [vmem:[%s1 + $0x1310] sm:$0xff]
    %v730 = vld [vmem:[%s1 + $0x1318] sm:$0xff]
    %v731 = vld [vmem:[%s1 + $0x1320] sm:$0xf]
    %v732 = vld [vmem:[%s1 + $0x1324] sm:$0xff]
    %v733 = vld [vmem:[%s1 + $0x132c] sm:$0xff]
    %v734 = vld [vmem:[%s1 + $0x1334] sm:$0xff]
    %v735 = vld [vmem:[%s1 + $0x133c] sm:$0xf]
    %v736 = vld [vmem:[%s1 + $0x1340] sm:$0xff]
    %v737 = vld [vmem:[%s1 + $0x1348] sm:$0xff]
    %v738 = vld [vmem:[%s1 + $0x1350] sm:$0xff]
    %v739 = vld [vmem:[%s1 + $0x1358] sm:$0xf]
    %v740 = vld [vmem:[%s1 + $0x135c] sm:$0xff]
    %v741 = vld [vmem:[%s1 + $0x1364] sm:$0xff]
    %v742 = vld [vmem:[%s1 + $0x136c] sm:$0xff]
    %v743 = vld [vmem:[%s1 + $0x1374] sm:$0xf]
    %v744 = vld [vmem:[%s1 + $0x1378] sm:$0xff]
    %v745 = vld [vmem:[%s1 + $0x1380] sm:$0xff]
    %v746 = vld [vmem:[%s1 + $0x1388] sm:$0xff]
    %v747 = vld [vmem:[%s1 + $0x1390] sm:$0xf]
    %v748 = vld [vmem:[%s1 + $0x1394] sm:$0xff]
    %v749 = vld [vmem:[%s1 + $0x139c] sm:$0xff]
    %v750 = vld [vmem:[%s1 + $0x13a4] sm:$0xff]
    %v751 = vld [vmem:[%s1 + $0x13ac] sm:$0xf]
    %v752 = vld [vmem:[%s1 + $0x13b0] sm:$0xff]
    %v753 = vld [vmem:[%s1 + $0x13b8] sm:$0xff]
    %v754 = vld [vmem:[%s1 + $0x13c0] sm:$0xff]
    %v755 = vld [vmem:[%s1 + $0x13c8] sm:$0xf]
    %v756 = vld [vmem:[%s1 + $0x13cc] sm:$0xff]
    %v757 = vld [vmem:[%s1 + $0x13d4] sm:$0xff]
    %v758 = vld [vmem:[%s1 + $0x13dc] sm:$0xff]
    %v759 = vld [vmem:[%s1 + $0x13e4] sm:$0xf]
    %v760 = vld [vmem:[%s1 + $0x13e8] sm:$0xff]
    %v761 = vld [vmem:[%s1 + $0x13f0] sm:$0xff]
    %v762 = vld [vmem:[%s1 + $0x13f8] sm:$0xff]
    %v763 = vld [vmem:[%s1 + $0x1400] sm:$0xf]
    %v764 = vld [vmem:[%s1 + $0x1404] sm:$0xff]
    %v765 = vld [vmem:[%s1 + $0x140c] sm:$0xff]
    %v766 = vld [vmem:[%s1 + $0x1414] sm:$0xff]
    %v767 = vld [vmem:[%s1 + $0x141c] sm:$0xf]
    %v768 = vld [vmem:[%s1 + $0x1420] sm:$0xff]
    %v769 = vld [vmem:[%s1 + $0x1428] sm:$0xff]
    %v770 = vld [vmem:[%s1 + $0x1430] sm:$0xff]
    %v771 = vld [vmem:[%s1 + $0x1438] sm:$0xf]
    %v772 = vld [vmem:[%s1 + $0x143c] sm:$0xff]
    %v773 = vld [vmem:[%s1 + $0x1444] sm:$0xff]
    %v774 = vld [vmem:[%s1 + $0x144c] sm:$0xff]
    %v775 = vld [vmem:[%s1 + $0x1454] sm:$0xf]
    %v776 = vld [vmem:[%s1 + $0x1458] sm:$0xff]
    %v777 = vld [vmem:[%s1 + $0x1460] sm:$0xff]
    %v778 = vld [vmem:[%s1 + $0x1468] sm:$0xff]
    %v779 = vld [vmem:[%s1 + $0x1470] sm:$0xf]
    %v780 = vld [vmem:[%s1 + $0x1474] sm:$0xff]
    %v781 = vld [vmem:[%s1 + $0x147c] sm:$0xff]
    %v782 = vld [vmem:[%s1 + $0x1484] sm:$0xff]
    %v783 = vld [vmem:[%s1 + $0x148c] sm:$0xf]
    %v784 = vld [vmem:[%s1 + $0x1490] sm:$0xff]
    %v785 = vld [vmem:[%s1 + $0x1498] sm:$0xff]
    %v786 = vld [vmem:[%s1 + $0x14a0] sm:$0xff]
    %v787 = vld [vmem:[%s1 + $0x14a8] sm:$0xf]
    %v788 = vld [vmem:[%s1 + $0x14ac] sm:$0xff]
    %v789 = vld [vmem:[%s1 + $0x14b4] sm:$0xff]
    %v790 = vld [vmem:[%s1 + $0x14bc] sm:$0xff]
    %v791 = vld [vmem:[%s1 + $0x14c4] sm:$0xf]
    %v792 = vld [vmem:[%s1 + $0x14c8] sm:$0xff]
    %v793 = vld [vmem:[%s1 + $0x14d0] sm:$0xff]
    %v794 = vld [vmem:[%s1 + $0x14d8] sm:$0xff]
    %v795 = vld [vmem:[%s1 + $0x14e0] sm:$0xf]
    %v796 = vld [vmem:[%s1 + $0x14e4] sm:$0xff]
    %v797 = vld [vmem:[%s1 + $0x14ec] sm:$0xff]
    %v798 = vld [vmem:[%s1 + $0x14f4] sm:$0xff]
    %v799 = vld [vmem:[%s1 + $0x14fc] sm:$0xf]
    %v800 = vld [vmem:[%s1 + $0x1500] sm:$0xff]
    %v801 = vld [vmem:[%s1 + $0x1508] sm:$0xff]
    %v802 = vld [vmem:[%s1 + $0x1510] sm:$0xff]
    %v803 = vld [vmem:[%s1 + $0x1518] sm:$0xf]
    %v804 = vld [vmem:[%s1 + $0x151c] sm:$0xff]
    %v805 = vld [vmem:[%s1 + $0x1524] sm:$0xff]
    %v806 = vld [vmem:[%s1 + $0x152c] sm:$0xff]
    %v807 = vld [vmem:[%s1 + $0x1534] sm:$0xf]
    %v808 = vld [vmem:[%s1 + $0x1538] sm:$0xff]
    %v809 = vld [vmem:[%s1 + $0x1540] sm:$0xff]
    %v810 = vld [vmem:[%s1 + $0x1548] sm:$0xff]
    %v811 = vld [vmem:[%s1 + $0x1550] sm:$0xf]
    %v812 = vld [vmem:[%s1 + $0x1554] sm:$0xff]
    %v813 = vld [vmem:[%s1 + $0x155c] sm:$0xff]
    %v814 = vld [vmem:[%s1 + $0x1564] sm:$0xff]
    %v815 = vld [vmem:[%s1 + $0x156c] sm:$0xf]
    %v816 = vld [vmem:[%s1 + $0x1570] sm:$0xff]
    %v817 = vld [vmem:[%s1 + $0x1578] sm:$0xff]
    %v818 = vld [vmem:[%s1 + $0x1580] sm:$0xff]
    %v819 = vld [vmem:[%s1 + $0x1588] sm:$0xf]
    %v820 = vld [vmem:[%s1 + $0x158c] sm:$0xff]
    %v821 = vld [vmem:[%s1 + $0x1594] sm:$0xff]
    %v822 = vld [vmem:[%s1 + $0x159c] sm:$0xff]
    %v823 = vld [vmem:[%s1 + $0x15a4] sm:$0xf]
    %v824 = vld [vmem:[%s1 + $0x15a8] sm:$0xff]
    %v825 = vld [vmem:[%s1 + $0x15b0] sm:$0xff]
    %v826 = vld [vmem:[%s1 + $0x15b8] sm:$0xff]
    %v827 = vld [vmem:[%s1 + $0x15c0] sm:$0xf]
    %v828 = vld [vmem:[%s1 + $0x15c4] sm:$0xff]
    %v829 = vld [vmem:[%s1 + $0x15cc] sm:$0xff]
    %v830 = vld [vmem:[%s1 + $0x15d4] sm:$0xff]
    %v831 = vld [vmem:[%s1 + $0x15dc] sm:$0xf]
    %v832 = vld [vmem:[%s1 + $0x15e0] sm:$0xff]
    %v833 = vld [vmem:[%s1 + $0x15e8] sm:$0xff]
    %v834 = vld [vmem:[%s1 + $0x15f0] sm:$0xff]
    %v835 = vld [vmem:[%s1 + $0x15f8] sm:$0xf]
    %v836 = vld [vmem:[%s1 + $0x15fc] sm:$0xff]
    %v837 = vld [vmem:[%s1 + $0x1604] sm:$0xff]
    %v838 = vld [vmem:[%s1 + $0x160c] sm:$0xff]
    %v839 = vld [vmem:[%s1 + $0x1614] sm:$0xf]
    %v840 = vld [vmem:[%s1 + $0x1618] sm:$0xff]
    %v841 = vld [vmem:[%s1 + $0x1620] sm:$0xff]
    %v842 = vld [vmem:[%s1 + $0x1628] sm:$0xff]
    %v843 = vld [vmem:[%s1 + $0x1630] sm:$0xf]
    %v844 = vld [vmem:[%s1 + $0x1634] sm:$0xff]
    %v845 = vld [vmem:[%s1 + $0x163c] sm:$0xff]
    %v846 = vld [vmem:[%s1 + $0x1644] sm:$0xff]
    %v847 = vld [vmem:[%s1 + $0x164c] sm:$0xf]
    %v848 = vld [vmem:[%s1 + $0x1650] sm:$0xff]
    %v849 = vld [vmem:[%s1 + $0x1658] sm:$0xff]
    %v850 = vld [vmem:[%s1 + $0x1660] sm:$0xff]
    %v851 = vld [vmem:[%s1 + $0x1668] sm:$0xf]
    %v852 = vld [vmem:[%s1 + $0x166c] sm:$0xff]
    %v853 = vld [vmem:[%s1 + $0x1674] sm:$0xff]
    %v854 = vld [vmem:[%s1 + $0x167c] sm:$0xff]
    %v855 = vld [vmem:[%s1 + $0x1684] sm:$0xf]
    %v856 = vld [vmem:[%s1 + $0x1688] sm:$0xff]
    %v857 = vld [vmem:[%s1 + $0x1690] sm:$0xff]
    %v858 = vld [vmem:[%s1 + $0x1698] sm:$0xff]
    %v859 = vld [vmem:[%s1 + $0x16a0] sm:$0xf]
    %v860 = vld [vmem:[%s1 + $0x16a4] sm:$0xff]
    %v861 = vld [vmem:[%s1 + $0x16ac] sm:$0xff]
    %v862 = vld [vmem:[%s1 + $0x16b4] sm:$0xff]
    %v863 = vld [vmem:[%s1 + $0x16bc] sm:$0xf]
    %v864 = vld [vmem:[%s1 + $0x16c0] sm:$0xff]
    %v865 = vld [vmem:[%s1 + $0x16c8] sm:$0xff]
    %v866 = vld [vmem:[%s1 + $0x16d0] sm:$0xff]
    %v867 = vld [vmem:[%s1 + $0x16d8] sm:$0xf]
    %v868 = vld [vmem:[%s1 + $0x16dc] sm:$0xff]
    %v869 = vld [vmem:[%s1 + $0x16e4] sm:$0xff]
    %v870 = vld [vmem:[%s1 + $0x16ec] sm:$0xff]
    %v871 = vld [vmem:[%s1 + $0x16f4] sm:$0xf]
    %v872 = vld [vmem:[%s1 + $0x16f8] sm:$0xff]
    %v873 = vld [vmem:[%s1 + $0x1700] sm:$0xff]
    %v874 = vld [vmem:[%s1 + $0x1708] sm:$0xff]
    %v875 = vld [vmem:[%s1 + $0x1710] sm:$0xf]
    %v876 = vld [vmem:[%s1 + $0x1714] sm:$0xff]
    %v877 = vld [vmem:[%s1 + $0x171c] sm:$0xff]
    %v878 = vld [vmem:[%s1 + $0x1724] sm:$0xff]
    %v879 = vld [vmem:[%s1 + $0x172c] sm:$0xf]
    %v880 = vld [vmem:[%s1 + $0x1730] sm:$0xff]
    %v881 = vld [vmem:[%s1 + $0x1738] sm:$0xff]
    %v882 = vld [vmem:[%s1 + $0x1740] sm:$0xff]
    %v883 = vld [vmem:[%s1 + $0x1748] sm:$0xf]
    %v884 = vld [vmem:[%s1 + $0x174c] sm:$0xff]
    %v885 = vld [vmem:[%s1 + $0x1754] sm:$0xff]
    %v886 = vld [vmem:[%s1 + $0x175c] sm:$0xff]
    %v887 = vld [vmem:[%s1 + $0x1764] sm:$0xf]
    %v888 = vld [vmem:[%s1 + $0x1768] sm:$0xff]
    %v889 = vld [vmem:[%s1 + $0x1770] sm:$0xff]
    %v890 = vld [vmem:[%s1 + $0x1778] sm:$0xff]
    %v891 = vld [vmem:[%s1 + $0x1780] sm:$0xf]
    %v892 = vld [vmem:[%s1 + $0x1784] sm:$0xff]
    %v893 = vld [vmem:[%s1 + $0x178c] sm:$0xff]
    %v894 = vld [vmem:[%s1 + $0x1794] sm:$0xff]
    %v895 = vld [vmem:[%s1 + $0x179c] sm:$0xf]
    %v896 = vld [vmem:[%s1 + $0x17a0] sm:$0xff]
    %v897 = vld [vmem:[%s1 + $0x17a8] sm:$0xff]
    %v898 = vld [vmem:[%s1 + $0x17b0] sm:$0xff]
    %v899 = vld [vmem:[%s1 + $0x17b8] sm:$0xf]
    %v900 = vld [vmem:[%s1 + $0x17bc] sm:$0xff]
    %v901 = vld [vmem:[%s1 + $0x17c4] sm:$0xff]
    %v902 = vld [vmem:[%s1 + $0x17cc] sm:$0xff]
    %v903 = vld [vmem:[%s1 + $0x17d4] sm:$0xf]
    %v904 = vld [vmem:[%s1 + $0x17d8] sm:$0xff]
    %v905 = vld [vmem:[%s1 + $0x17e0] sm:$0xff]
    %v906 = vld [vmem:[%s1 + $0x17e8] sm:$0xff]
    %v907 = vld [vmem:[%s1 + $0x17f0] sm:$0xf]
    %v908 = vld [vmem:[%s1 + $0x17f4] sm:$0xff]
    %v909 = vld [vmem:[%s1 + $0x17fc] sm:$0xff]
    %v910 = vld [vmem:[%s1 + $0x1804] sm:$0xff]
    %v911 = vld [vmem:[%s1 + $0x180c] sm:$0xf]
    %v912 = vld [vmem:[%s1 + $0x1810] sm:$0xff]
    %v913 = vld [vmem:[%s1 + $0x1818] sm:$0xff]
    %v914 = vld [vmem:[%s1 + $0x1820] sm:$0xff]
    %v915 = vld [vmem:[%s1 + $0x1828] sm:$0xf]
    %v916 = vld [vmem:[%s1 + $0x182c] sm:$0xff]
    %v917 = vld [vmem:[%s1 + $0x1834] sm:$0xff]
    %v918 = vld [vmem:[%s1 + $0x183c] sm:$0xff]
    %v919 = vld [vmem:[%s1 + $0x1844] sm:$0xf]
    %v920 = vld [vmem:[%s1 + $0x1848] sm:$0xff]
    %v921 = vld [vmem:[%s1 + $0x1850] sm:$0xff]
    %v922 = vld [vmem:[%s1 + $0x1858] sm:$0xff]
    %v923 = vld [vmem:[%s1 + $0x1860] sm:$0xf]
    %v924 = vld [vmem:[%s1 + $0x1864] sm:$0xff]
    %v925 = vld [vmem:[%s1 + $0x186c] sm:$0xff]
    %v926 = vld [vmem:[%s1 + $0x1874] sm:$0xff]
    %v927 = vld [vmem:[%s1 + $0x187c] sm:$0xf]
    %v928 = vld [vmem:[%s1 + $0x1880] sm:$0xff]
    %v929 = vld [vmem:[%s1 + $0x1888] sm:$0xff]
    %v930 = vld [vmem:[%s1 + $0x1890] sm:$0xff]
    %v931 = vld [vmem:[%s1 + $0x1898] sm:$0xf]
    %v932 = vld [vmem:[%s1 + $0x189c] sm:$0xff]
    %v933 = vld [vmem:[%s1 + $0x18a4] sm:$0xff]
    %v934 = vld [vmem:[%s1 + $0x18ac] sm:$0xff]
    %v935 = vld [vmem:[%s1 + $0x18b4] sm:$0xf]
    %v936 = vld [vmem:[%s1 + $0x18b8] sm:$0xff]
    %v937 = vld [vmem:[%s1 + $0x18c0] sm:$0xff]
    %v938 = vld [vmem:[%s1 + $0x18c8] sm:$0xff]
    %v939 = vld [vmem:[%s1 + $0x18d0] sm:$0xf]
    %v940 = vld [vmem:[%s1 + $0x18d4] sm:$0xff]
    %v941 = vld [vmem:[%s1 + $0x18dc] sm:$0xff]
    %v942 = vld [vmem:[%s1 + $0x18e4] sm:$0xff]
    %v943 = vld [vmem:[%s1 + $0x18ec] sm:$0xf]
    %v944 = vld [vmem:[%s1 + $0x18f0] sm:$0xff]
    %v945 = vld [vmem:[%s1 + $0x18f8] sm:$0xff]
    %v946 = vld [vmem:[%s1 + $0x1900] sm:$0xff]
    %v947 = vld [vmem:[%s1 + $0x1908] sm:$0xf]
    %v948 = vld [vmem:[%s1 + $0x190c] sm:$0xff]
    %v949 = vld [vmem:[%s1 + $0x1914] sm:$0xff]
    %v950 = vld [vmem:[%s1 + $0x191c] sm:$0xff]
    %v951 = vld [vmem:[%s1 + $0x1924] sm:$0xf]
    %v952 = vld [vmem:[%s1 + $0x1928] sm:$0xff]
    %v953 = vld [vmem:[%s1 + $0x1930] sm:$0xff]
    %v954 = vld [vmem:[%s1 + $0x1938] sm:$0xff]
    %v955 = vld [vmem:[%s1 + $0x1940] sm:$0xf]
    %v956 = vld [vmem:[%s1 + $0x1944] sm:$0xff]
    %v957 = vld [vmem:[%s1 + $0x194c] sm:$0xff]
    %v958 = vld [vmem:[%s1 + $0x1954] sm:$0xff]
    %v959 = vld [vmem:[%s1 + $0x195c] sm:$0xf]
    %v960 = vld [vmem:[%s1 + $0x1960] sm:$0xff]
    %v961 = vld [vmem:[%s1 + $0x1968] sm:$0xff]
    %v962 = vld [vmem:[%s1 + $0x1970] sm:$0xff]
    %v963 = vld [vmem:[%s1 + $0x1978] sm:$0xf]
    %v964 = vld [vmem:[%s1 + $0x197c] sm:$0xff]
    %v965 = vld [vmem:[%s1 + $0x1984] sm:$0xff]
    %v966 = vld [vmem:[%s1 + $0x198c] sm:$0xff]
    %v967 = vld [vmem:[%s1 + $0x1994] sm:$0xf]
    %v968 = vld [vmem:[%s1 + $0x1998] sm:$0xff]
    %v969 = vld [vmem:[%s1 + $0x19a0] sm:$0xff]
    %v970 = vld [vmem:[%s1 + $0x19a8] sm:$0xff]
    %v971 = vld [vmem:[%s1 + $0x19b0] sm:$0xf]
    %v972 = vld [vmem:[%s1 + $0x19b4] sm:$0xff]
    %v973 = vld [vmem:[%s1 + $0x19bc] sm:$0xff]
    %v974 = vld [vmem:[%s1 + $0x19c4] sm:$0xff]
    %v975 = vld [vmem:[%s1 + $0x19cc] sm:$0xf]
    %v976 = vld [vmem:[%s1 + $0x19d0] sm:$0xff]
    %v977 = vld [vmem:[%s1 + $0x19d8] sm:$0xff]
    %v978 = vld [vmem:[%s1 + $0x19e0] sm:$0xff]
    %v979 = vld [vmem:[%s1 + $0x19e8] sm:$0xf]
    %v980 = vld [vmem:[%s1 + $0x19ec] sm:$0xff]
    %v981 = vld [vmem:[%s1 + $0x19f4] sm:$0xff]
    %v982 = vld [vmem:[%s1 + $0x19fc] sm:$0xff]
    %v983 = vld [vmem:[%s1 + $0x1a04] sm:$0xf]
    %v984 = vld [vmem:[%s1 + $0x1a08] sm:$0xff]
    %v985 = vld [vmem:[%s1 + $0x1a10] sm:$0xff]
    %v986 = vld [vmem:[%s1 + $0x1a18] sm:$0xff]
    %v987 = vld [vmem:[%s1 + $0x1a20] sm:$0xf]
    %v988 = vld [vmem:[%s1 + $0x1a24] sm:$0xff]
    %v989 = vld [vmem:[%s1 + $0x1a2c] sm:$0xff]
    %v990 = vld [vmem:[%s1 + $0x1a34] sm:$0xff]
    %v991 = vld [vmem:[%s1 + $0x1a3c] sm:$0xf]
    %v992 = vld [vmem:[%s1 + $0x1a40] sm:$0xff]
    %v993 = vld [vmem:[%s1 + $0x1a48] sm:$0xff]
    %v994 = vld [vmem:[%s1 + $0x1a50] sm:$0xff]
    %v995 = vld [vmem:[%s1 + $0x1a58] sm:$0xf]
    %v996 = vld [vmem:[%s1 + $0x1a5c] sm:$0xff]
    %v997 = vld [vmem:[%s1 + $0x1a64] sm:$0xff]
    %v998 = vld [vmem:[%s1 + $0x1a6c] sm:$0xff]
    %v999 = vld [vmem:[%s1 + $0x1a74] sm:$0xf]
    %v1000 = vld [vmem:[%s1 + $0x1a78] sm:$0xff]
    %v1001 = vld [vmem:[%s1 + $0x1a80] sm:$0xff]
    %v1002 = vld [vmem:[%s1 + $0x1a88] sm:$0xff]
    %v1003 = vld [vmem:[%s1 + $0x1a90] sm:$0xf]
    %v1004 = vld [vmem:[%s1 + $0x1a94] sm:$0xff]
    %v1005 = vld [vmem:[%s1 + $0x1a9c] sm:$0xff]
    %v1006 = vld [vmem:[%s1 + $0x1aa4] sm:$0xff]
    %v1007 = vld [vmem:[%s1 + $0x1aac] sm:$0xf]
    %v1008 = vld [vmem:[%s1 + $0x1ab0] sm:$0xff]
    %v1009 = vld [vmem:[%s1 + $0x1ab8] sm:$0xff]
    %v1010 = vld [vmem:[%s1 + $0x1ac0] sm:$0xff]
    %v1011 = vld [vmem:[%s1 + $0x1ac8] sm:$0xf]
    %v1012 = vld [vmem:[%s1 + $0x1acc] sm:$0xff]
    %v1013 = vld [vmem:[%s1 + $0x1ad4] sm:$0xff]
    %v1014 = vld [vmem:[%s1 + $0x1adc] sm:$0xff]
    %v1015 = vld [vmem:[%s1 + $0x1ae4] sm:$0xf]
    %v1016 = vld [vmem:[%s1 + $0x1ae8] sm:$0xff]
    %v1017 = vld [vmem:[%s1 + $0x1af0] sm:$0xff]
    %v1018 = vld [vmem:[%s1 + $0x1af8] sm:$0xff]
    %v1019 = vld [vmem:[%s1 + $0x1b00] sm:$0xf]
    %v1020 = vld [vmem:[%s1 + $0x1b04] sm:$0xff]
    %v1021 = vld [vmem:[%s1 + $0x1b0c] sm:$0xff]
    %v1022 = vld [vmem:[%s1 + $0x1b14] sm:$0xff]
    %v1023 = vld [vmem:[%s1 + $0x1b1c] sm:$0xf]
    %v1024 = vld [vmem:[%s1 + $0x1b20] sm:$0xff]
    %v1025 = vld [vmem:[%s1 + $0x1b28] sm:$0xff]
    %v1026 = vld [vmem:[%s1 + $0x1b30] sm:$0xff]
    %v1027 = vld [vmem:[%s1 + $0x1b38] sm:$0xf]
    %v1028 = vld [vmem:[%s1 + $0x1b3c] sm:$0xff]
    %v1029 = vld [vmem:[%s1 + $0x1b44] sm:$0xff]
    %v1030 = vld [vmem:[%s1 + $0x1b4c] sm:$0xff]
    %v1031 = vld [vmem:[%s1 + $0x1b54] sm:$0xf]
    %v1032 = vld [vmem:[%s1 + $0x1b58] sm:$0xff]
    %v1033 = vld [vmem:[%s1 + $0x1b60] sm:$0xff]
    %v1034 = vld [vmem:[%s1 + $0x1b68] sm:$0xff]
    %v1035 = vld [vmem:[%s1 + $0x1b70] sm:$0xf]
    %v1036 = vld [vmem:[%s1 + $0x1b74] sm:$0xff]
    %v1037 = vld [vmem:[%s1 + $0x1b7c] sm:$0xff]
    %v1038 = vld [vmem:[%s1 + $0x1b84] sm:$0xff]
    %v1039 = vld [vmem:[%s1 + $0x1b8c] sm:$0xf]
    %v1040 = vld [vmem:[%s1 + $0x1b90] sm:$0xff]
    %v1041 = vld [vmem:[%s1 + $0x1b98] sm:$0xff]
    %v1042 = vld [vmem:[%s1 + $0x1ba0] sm:$0xff]
    %v1043 = vld [vmem:[%s1 + $0x1ba8] sm:$0xf]
    %v1044 = vld [vmem:[%s1 + $0x1bac] sm:$0xff]
    %v1045 = vld [vmem:[%s1 + $0x1bb4] sm:$0xff]
    %v1046 = vld [vmem:[%s1 + $0x1bbc] sm:$0xff]
    %v1047 = vld [vmem:[%s1 + $0x1bc4] sm:$0xf]
    %v1048 = vld [vmem:[%s1 + $0x1bc8] sm:$0xff]
    %v1049 = vld [vmem:[%s1 + $0x1bd0] sm:$0xff]
    %v1050 = vld [vmem:[%s1 + $0x1bd8] sm:$0xff]
    %v1051 = vld [vmem:[%s1 + $0x1be0] sm:$0xf]
    %v1052 = vld [vmem:[%s1 + $0x1be4] sm:$0xff]
    %v1053 = vld [vmem:[%s1 + $0x1bec] sm:$0xff]
    %v1054 = vld [vmem:[%s1 + $0x1bf4] sm:$0xff]
    %v1055 = vld [vmem:[%s1 + $0x1bfc] sm:$0xf]
    %v1056 = vld [vmem:[%s1 + $0x1c00] sm:$0xff]
    %v1057 = vld [vmem:[%s1 + $0x1c08] sm:$0xff]
    %v1058 = vld [vmem:[%s1 + $0x1c10] sm:$0xff]
    %v1059 = vld [vmem:[%s1 + $0x1c18] sm:$0xf]
    %v1060 = vld [vmem:[%s1 + $0x1c1c] sm:$0xff]
    %v1061 = vld [vmem:[%s1 + $0x1c24] sm:$0xff]
    %v1062 = vld [vmem:[%s1 + $0x1c2c] sm:$0xff]
    %v1063 = vld [vmem:[%s1 + $0x1c34] sm:$0xf]
    %v1064 = vld [vmem:[%s1 + $0x1c38] sm:$0xff]
    %v1065 = vld [vmem:[%s1 + $0x1c40] sm:$0xff]
    %v1066 = vld [vmem:[%s1 + $0x1c48] sm:$0xff]
    %v1067 = vld [vmem:[%s1 + $0x1c50] sm:$0xf]
    %v1068 = vld [vmem:[%s1 + $0x1c54] sm:$0xff]
    %v1069 = vld [vmem:[%s1 + $0x1c5c] sm:$0xff]
    %v1070 = vld [vmem:[%s1 + $0x1c64] sm:$0xff]
    %v1071 = vld [vmem:[%s1 + $0x1c6c] sm:$0xf]
    %v1072 = vld [vmem:[%s1 + $0x1c70] sm:$0xff]
    %v1073 = vld [vmem:[%s1 + $0x1c78] sm:$0xff]
    %v1074 = vld [vmem:[%s1 + $0x1c80] sm:$0xff]
    %v1075 = vld [vmem:[%s1 + $0x1c88] sm:$0xf]
    %v1076 = vld [vmem:[%s1 + $0x1c8c] sm:$0xff]
    %v1077 = vld [vmem:[%s1 + $0x1c94] sm:$0xff]
    %v1078 = vld [vmem:[%s1 + $0x1c9c] sm:$0xff]
    %v1079 = vld [vmem:[%s1 + $0x1ca4] sm:$0xf]
    %v1080 = vld [vmem:[%s1 + $0x1ca8] sm:$0xff]
    %v1081 = vld [vmem:[%s1 + $0x1cb0] sm:$0xff]
    %v1082 = vld [vmem:[%s1 + $0x1cb8] sm:$0xff]
    %v1083 = vld [vmem:[%s1 + $0x1cc0] sm:$0xf]
    %v1084 = vld [vmem:[%s1 + $0x1cc4] sm:$0xff]
    %v1085 = vld [vmem:[%s1 + $0x1ccc] sm:$0xff]
    %v1086 = vld [vmem:[%s1 + $0x1cd4] sm:$0xff]
    %v1087 = vld [vmem:[%s1 + $0x1cdc] sm:$0xf]
    %v1088 = vld [vmem:[%s1 + $0x1ce0] sm:$0xff]
    %v1089 = vld [vmem:[%s1 + $0x1ce8] sm:$0xff]
    %v1090 = vld [vmem:[%s1 + $0x1cf0] sm:$0xff]
    %v1091 = vld [vmem:[%s1 + $0x1cf8] sm:$0xf]
    %v1092 = vld [vmem:[%s1 + $0x1cfc] sm:$0xff]
    %v1093 = vld [vmem:[%s1 + $0x1d04] sm:$0xff]
    %v1094 = vld [vmem:[%s1 + $0x1d0c] sm:$0xff]
    %v1095 = vld [vmem:[%s1 + $0x1d14] sm:$0xf]
    %v1096 = vld [vmem:[%s1 + $0x1d18] sm:$0xff]
    %v1097 = vld [vmem:[%s1 + $0x1d20] sm:$0xff]
    %v1098 = vld [vmem:[%s1 + $0x1d28] sm:$0xff]
    %v1099 = vld [vmem:[%s1 + $0x1d30] sm:$0xf]
    %v1100 = vld [vmem:[%s1 + $0x1d34] sm:$0xff]
    %v1101 = vld [vmem:[%s1 + $0x1d3c] sm:$0xff]
    %v1102 = vld [vmem:[%s1 + $0x1d44] sm:$0xff]
    %v1103 = vld [vmem:[%s1 + $0x1d4c] sm:$0xf]
    %v1104 = vld [vmem:[%s1 + $0x1d50] sm:$0xff]
    %v1105 = vld [vmem:[%s1 + $0x1d58] sm:$0xff]
    %v1106 = vld [vmem:[%s1 + $0x1d60] sm:$0xff]
    %v1107 = vld [vmem:[%s1 + $0x1d68] sm:$0xf]
    %v1108 = vld [vmem:[%s1 + $0x1d6c] sm:$0xff]
    %v1109 = vld [vmem:[%s1 + $0x1d74] sm:$0xff]
    %v1110 = vld [vmem:[%s1 + $0x1d7c] sm:$0xff]
    %v1111 = vld [vmem:[%s1 + $0x1d84] sm:$0xf]
    %v1112 = vld [vmem:[%s1 + $0x1d88] sm:$0xff]
    %v1113 = vld [vmem:[%s1 + $0x1d90] sm:$0xff]
    %v1114 = vld [vmem:[%s1 + $0x1d98] sm:$0xff]
    %v1115 = vld [vmem:[%s1 + $0x1da0] sm:$0xf]
    %v1116 = vld [vmem:[%s1 + $0x1da4] sm:$0xff]
    %v1117 = vld [vmem:[%s1 + $0x1dac] sm:$0xff]
    %v1118 = vld [vmem:[%s1 + $0x1db4] sm:$0xff]
    %v1119 = vld [vmem:[%s1 + $0x1dbc] sm:$0xf]
    %v1120 = vld [vmem:[%s1 + $0x1dc0] sm:$0xff]
    %v1121 = vld [vmem:[%s1 + $0x1dc8] sm:$0xff]
    %v1122 = vld [vmem:[%s1 + $0x1dd0] sm:$0xff]
    %v1123 = vld [vmem:[%s1 + $0x1dd8] sm:$0xf]
    %v1124 = vld [vmem:[%s1 + $0x1ddc] sm:$0xff]
    %v1125 = vld [vmem:[%s1 + $0x1de4] sm:$0xff]
    %v1126 = vld [vmem:[%s1 + $0x1dec] sm:$0xff]
    %v1127 = vld [vmem:[%s1 + $0x1df4] sm:$0xf]
    %v1128 = vld [vmem:[%s1 + $0x1df8] sm:$0xff]
    %v1129 = vld [vmem:[%s1 + $0x1e00] sm:$0xff]
    %v1130 = vld [vmem:[%s1 + $0x1e08] sm:$0xff]
    %v1131 = vld [vmem:[%s1 + $0x1e10] sm:$0xf]
    %v1132 = vld [vmem:[%s1 + $0x1e14] sm:$0xff]
    %v1133 = vld [vmem:[%s1 + $0x1e1c] sm:$0xff]
    %v1134 = vld [vmem:[%s1 + $0x1e24] sm:$0xff]
    %v1135 = vld [vmem:[%s1 + $0x1e2c] sm:$0xf]
    %v1136 = vld [vmem:[%s1 + $0x1e30] sm:$0xff]
    %v1137 = vld [vmem:[%s1 + $0x1e38] sm:$0xff]
    %v1138 = vld [vmem:[%s1 + $0x1e40] sm:$0xff]
    %v1139 = vld [vmem:[%s1 + $0x1e48] sm:$0xf]
    %v1140 = vld [vmem:[%s1 + $0x1e4c] sm:$0xff]
    %v1141 = vld [vmem:[%s1 + $0x1e54] sm:$0xff]
    %v1142 = vld [vmem:[%s1 + $0x1e5c] sm:$0xff]
    %v1143 = vld [vmem:[%s1 + $0x1e64] sm:$0xf]
    %v1144 = vld [vmem:[%s1 + $0x1e68] sm:$0xff]
    %v1145 = vld [vmem:[%s1 + $0x1e70] sm:$0xff]
    %v1146 = vld [vmem:[%s1 + $0x1e78] sm:$0xff]
    %v1147 = vld [vmem:[%s1 + $0x1e80] sm:$0xf]
    %v1148 = vld [vmem:[%s1 + $0x1e84] sm:$0xff]
    %v1149 = vld [vmem:[%s1 + $0x1e8c] sm:$0xff]
    %v1150 = vld [vmem:[%s1 + $0x1e94] sm:$0xff]
    %v1151 = vld [vmem:[%s1 + $0x1e9c] sm:$0xf]
    %v1152 = vld [vmem:[%s1 + $0x1ea0] sm:$0xff]
    %v1153 = vld [vmem:[%s1 + $0x1ea8] sm:$0xff]
    %v1154 = vld [vmem:[%s1 + $0x1eb0] sm:$0xff]
    %v1155 = vld [vmem:[%s1 + $0x1eb8] sm:$0xf]
    %v1156 = vld [vmem:[%s1 + $0x1ebc] sm:$0xff]
    %v1157 = vld [vmem:[%s1 + $0x1ec4] sm:$0xff]
    %v1158 = vld [vmem:[%s1 + $0x1ecc] sm:$0xff]
    %v1159 = vld [vmem:[%s1 + $0x1ed4] sm:$0xf]
    %v1160 = vld [vmem:[%s1 + $0x1ed8] sm:$0xff]
    %v1161 = vld [vmem:[%s1 + $0x1ee0] sm:$0xff]
    %v1162 = vld [vmem:[%s1 + $0x1ee8] sm:$0xff]
    %v1163 = vld [vmem:[%s1 + $0x1ef0] sm:$0xf]
    %v1164 = vld [vmem:[%s1 + $0x1ef4] sm:$0xff]
    %v1165 = vld [vmem:[%s1 + $0x1efc] sm:$0xff]
    %v1166 = vld [vmem:[%s1 + $0x1f04] sm:$0xff]
    %v1167 = vld [vmem:[%s1 + $0x1f0c] sm:$0xf]
    %v1168 = vld [vmem:[%s1 + $0x1f10] sm:$0xff]
    %v1169 = vld [vmem:[%s1 + $0x1f18] sm:$0xff]
    %v1170 = vld [vmem:[%s1 + $0x1f20] sm:$0xff]
    %v1171 = vld [vmem:[%s1 + $0x1f28] sm:$0xf]
    %v1172 = vld [vmem:[%s1 + $0x1f2c] sm:$0xff]
    %v1173 = vld [vmem:[%s1 + $0x1f34] sm:$0xff]
    %v1174 = vld [vmem:[%s1 + $0x1f3c] sm:$0xff]
    %v1175 = vld [vmem:[%s1 + $0x1f44] sm:$0xf]
    %v1176 = vld [vmem:[%s1 + $0x1f48] sm:$0xff]
    %v1177 = vld [vmem:[%s1 + $0x1f50] sm:$0xff]
    %v1178 = vld [vmem:[%s1 + $0x1f58] sm:$0xff]
    %v1179 = vld [vmem:[%s1 + $0x1f60] sm:$0xf]
    %v1180 = vld [vmem:[%s1 + $0x1f64] sm:$0xff]
    %v1181 = vld [vmem:[%s1 + $0x1f6c] sm:$0xff]
    %v1182 = vld [vmem:[%s1 + $0x1f74] sm:$0xff]
    %v1183 = vld [vmem:[%s1 + $0x1f7c] sm:$0xf]
    %v1184 = vld [vmem:[%s1 + $0x1f80] sm:$0xff]
    %v1185 = vld [vmem:[%s1 + $0x1f88] sm:$0xff]
    %v1186 = vld [vmem:[%s1 + $0x1f90] sm:$0xff]
    %v1187 = vld [vmem:[%s1 + $0x1f98] sm:$0xf]
    %v1188 = vld [vmem:[%s1 + $0x1f9c] sm:$0xff]
    %v1189 = vld [vmem:[%s1 + $0x1fa4] sm:$0xff]
    %v1190 = vld [vmem:[%s1 + $0x1fac] sm:$0xff]
    %v1191 = vld [vmem:[%s1 + $0x1fb4] sm:$0xf]
    %v1192 = vld [vmem:[%s1 + $0x1fb8] sm:$0xff]
    %v1193 = vld [vmem:[%s1 + $0x1fc0] sm:$0xff]
    %v1194 = vld [vmem:[%s1 + $0x1fc8] sm:$0xff]
    %v1195 = vld [vmem:[%s1 + $0x1fd0] sm:$0xf]
    %v1196 = vld [vmem:[%s1 + $0x1fd4] sm:$0xff]
    %v1197 = vld [vmem:[%s1 + $0x1fdc] sm:$0xff]
    %v1198 = vld [vmem:[%s1 + $0x1fe4] sm:$0xff]
    %v1199 = vld [vmem:[%s1 + $0x1fec] sm:$0xf]
    %v1200 = vld [vmem:[%s1 + $0x1ff0] sm:$0xff]
    %v1201 = vld [vmem:[%s1 + $0x1ff8] sm:$0xff]
    %v1202 = vld [vmem:[%s1 + $0x2000] sm:$0xff]
    %v1203 = vld [vmem:[%s1 + $0x2008] sm:$0xf]
    %v1204 = vld [vmem:[%s1 + $0x200c] sm:$0xff]
    %v1205 = vld [vmem:[%s1 + $0x2014] sm:$0xff]
    %v1206 = vld [vmem:[%s1 + $0x201c] sm:$0xff]
    %v1207 = vld [vmem:[%s1 + $0x2024] sm:$0xf]
    %v1208 = vld [vmem:[%s1 + $0x2028] sm:$0xff]
    %v1209 = vld [vmem:[%s1 + $0x2030] sm:$0xff]
    %v1210 = vld [vmem:[%s1 + $0x2038] sm:$0xff]
    %v1211 = vld [vmem:[%s1 + $0x2040] sm:$0xf]
    %v1212 = vld [vmem:[%s1 + $0x2044] sm:$0xff]
    %v1213 = vld [vmem:[%s1 + $0x204c] sm:$0xff]
    %v1214 = vld [vmem:[%s1 + $0x2054] sm:$0xff]
    %v1215 = vld [vmem:[%s1 + $0x205c] sm:$0xf]
    %v1216 = vld [vmem:[%s1 + $0x2060] sm:$0xff]
    %v1217 = vld [vmem:[%s1 + $0x2068] sm:$0xff]
    %v1218 = vld [vmem:[%s1 + $0x2070] sm:$0xff]
    %v1219 = vld [vmem:[%s1 + $0x2078] sm:$0xf]
    %v1220 = vld [vmem:[%s1 + $0x207c] sm:$0xff]
    %v1221 = vld [vmem:[%s1 + $0x2084] sm:$0xff]
    %v1222 = vld [vmem:[%s1 + $0x208c] sm:$0xff]
    %v1223 = vld [vmem:[%s1 + $0x2094] sm:$0xf]
    %v1224 = vld [vmem:[%s1 + $0x2098] sm:$0xff]
    %v1225 = vld [vmem:[%s1 + $0x20a0] sm:$0xff]
    %v1226 = vld [vmem:[%s1 + $0x20a8] sm:$0xff]
    %v1227 = vld [vmem:[%s1 + $0x20b0] sm:$0xf]
    %v1228 = vld [vmem:[%s1 + $0x20b4] sm:$0xff]
    %v1229 = vld [vmem:[%s1 + $0x20bc] sm:$0xff]
    %v1230 = vld [vmem:[%s1 + $0x20c4] sm:$0xff]
    %v1231 = vld [vmem:[%s1 + $0x20cc] sm:$0xf]
    %v1232 = vld [vmem:[%s1 + $0x20d0] sm:$0xff]
    %v1233 = vld [vmem:[%s1 + $0x20d8] sm:$0xff]
    %v1234 = vld [vmem:[%s1 + $0x20e0] sm:$0xff]
    %v1235 = vld [vmem:[%s1 + $0x20e8] sm:$0xf]
    %v1236 = vld [vmem:[%s1 + $0x20ec] sm:$0xff]
    %v1237 = vld [vmem:[%s1 + $0x20f4] sm:$0xff]
    %v1238 = vld [vmem:[%s1 + $0x20fc] sm:$0xff]
    %v1239 = vld [vmem:[%s1 + $0x2104] sm:$0xf]
    %v1240 = vld [vmem:[%s1 + $0x2108] sm:$0xff]
    %v1241 = vld [vmem:[%s1 + $0x2110] sm:$0xff]
    %v1242 = vld [vmem:[%s1 + $0x2118] sm:$0xff]
    %v1243 = vld [vmem:[%s1 + $0x2120] sm:$0xf]
    %v1244 = vld [vmem:[%s1 + $0x2124] sm:$0xff]
    %v1245 = vld [vmem:[%s1 + $0x212c] sm:$0xff]
    %v1246 = vld [vmem:[%s1 + $0x2134] sm:$0xff]
    %v1247 = vld [vmem:[%s1 + $0x213c] sm:$0xf]
    %v1248 = vld [vmem:[%s1 + $0x2140] sm:$0xff]
    %v1249 = vld [vmem:[%s1 + $0x2148] sm:$0xff]
    %v1250 = vld [vmem:[%s1 + $0x2150] sm:$0xff]
    %v1251 = vld [vmem:[%s1 + $0x2158] sm:$0xf]
    %v1252 = vld [vmem:[%s1 + $0x215c] sm:$0xff]
    %v1253 = vld [vmem:[%s1 + $0x2164] sm:$0xff]
    %v1254 = vld [vmem:[%s1 + $0x216c] sm:$0xff]
    %v1255 = vld [vmem:[%s1 + $0x2174] sm:$0xf]
    %v1256 = vld [vmem:[%s1 + $0x2178] sm:$0xff]
    %v1257 = vld [vmem:[%s1 + $0x2180] sm:$0xff]
    %v1258 = vld [vmem:[%s1 + $0x2188] sm:$0xff]
    %v1259 = vld [vmem:[%s1 + $0x2190] sm:$0xf]
    %v1260 = vld [vmem:[%s1 + $0x2194] sm:$0xff]
    %v1261 = vld [vmem:[%s1 + $0x219c] sm:$0xff]
    %v1262 = vld [vmem:[%s1 + $0x21a4] sm:$0xff]
    %v1263 = vld [vmem:[%s1 + $0x21ac] sm:$0xf]
    %v1264 = vld [vmem:[%s1 + $0x21b0] sm:$0xff]
    %v1265 = vld [vmem:[%s1 + $0x21b8] sm:$0xff]
    %v1266 = vld [vmem:[%s1 + $0x21c0] sm:$0xff]
    %v1267 = vld [vmem:[%s1 + $0x21c8] sm:$0xf]
    %v1268 = vld [vmem:[%s1 + $0x21cc] sm:$0xff]
    %v1269 = vld [vmem:[%s1 + $0x21d4] sm:$0xff]
    %v1270 = vld [vmem:[%s1 + $0x21dc] sm:$0xff]
    %v1271 = vld [vmem:[%s1 + $0x21e4] sm:$0xf]
    %v1272 = vld [vmem:[%s1 + $0x21e8] sm:$0xff]
    %v1273 = vld [vmem:[%s1 + $0x21f0] sm:$0xff]
    %v1274 = vld [vmem:[%s1 + $0x21f8] sm:$0xff]
    %v1275 = vld [vmem:[%s1 + $0x2200] sm:$0xf]
    %v1276 = vld [vmem:[%s1 + $0x2204] sm:$0xff]
    %v1277 = vld [vmem:[%s1 + $0x220c] sm:$0xff]
    %v1278 = vld [vmem:[%s1 + $0x2214] sm:$0xff]
    %v1279 = vld [vmem:[%s1 + $0x221c] sm:$0xf]
    %v1280 = vld [vmem:[%s1 + $0x2220] sm:$0xff]
    %v1281 = vld [vmem:[%s1 + $0x2228] sm:$0xff]
    %v1282 = vld [vmem:[%s1 + $0x2230] sm:$0xff]
    %v1283 = vld [vmem:[%s1 + $0x2238] sm:$0xf]
    %v1284 = vld [vmem:[%s1 + $0x223c] sm:$0xff]
    %v1285 = vld [vmem:[%s1 + $0x2244] sm:$0xff]
    %v1286 = vld [vmem:[%s1 + $0x224c] sm:$0xff]
    %v1287 = vld [vmem:[%s1 + $0x2254] sm:$0xf]
    %v1288 = vld [vmem:[%s1 + $0x2258] sm:$0xff]
    %v1289 = vld [vmem:[%s1 + $0x2260] sm:$0xff]
    %v1290 = vld [vmem:[%s1 + $0x2268] sm:$0xff]
    %v1291 = vld [vmem:[%s1 + $0x2270] sm:$0xf]
    %v1292 = vld [vmem:[%s1 + $0x2274] sm:$0xff]
    %v1293 = vld [vmem:[%s1 + $0x227c] sm:$0xff]
    %v1294 = vld [vmem:[%s1 + $0x2284] sm:$0xff]
    %v1295 = vld [vmem:[%s1 + $0x228c] sm:$0xf]
    %v1296 = vld [vmem:[%s1 + $0x2290] sm:$0xff]
    %v1297 = vld [vmem:[%s1 + $0x2298] sm:$0xff]
    %v1298 = vld [vmem:[%s1 + $0x22a0] sm:$0xff]
    %v1299 = vld [vmem:[%s1 + $0x22a8] sm:$0xf]
    %v1300 = vld [vmem:[%s1 + $0x22ac] sm:$0xff]
    %v1301 = vld [vmem:[%s1 + $0x22b4] sm:$0xff]
    %v1302 = vld [vmem:[%s1 + $0x22bc] sm:$0xff]
    %v1303 = vld [vmem:[%s1 + $0x22c4] sm:$0xf]
    %v1304 = vld [vmem:[%s1 + $0x22c8] sm:$0xff]
    %v1305 = vld [vmem:[%s1 + $0x22d0] sm:$0xff]
    %v1306 = vld [vmem:[%s1 + $0x22d8] sm:$0xff]
    %v1307 = vld [vmem:[%s1 + $0x22e0] sm:$0xf]
    %v1308 = vld [vmem:[%s1 + $0x22e4] sm:$0xff]
    %v1309 = vld [vmem:[%s1 + $0x22ec] sm:$0xff]
    %v1310 = vld [vmem:[%s1 + $0x22f4] sm:$0xff]
    %v1311 = vld [vmem:[%s1 + $0x22fc] sm:$0xf]
    %v1312 = vld [vmem:[%s1 + $0x2300] sm:$0xff]
    %v1313 = vld [vmem:[%s1 + $0x2308] sm:$0xff]
    %v1314 = vld [vmem:[%s1 + $0x2310] sm:$0xff]
    %v1315 = vld [vmem:[%s1 + $0x2318] sm:$0xf]
    %v1316 = vld [vmem:[%s1 + $0x231c] sm:$0xff]
    %v1317 = vld [vmem:[%s1 + $0x2324] sm:$0xff]
    %v1318 = vld [vmem:[%s1 + $0x232c] sm:$0xff]
    %v1319 = vld [vmem:[%s1 + $0x2334] sm:$0xf]
    %v1320 = vld [vmem:[%s1 + $0x2338] sm:$0xff]
    %v1321 = vld [vmem:[%s1 + $0x2340] sm:$0xff]
    %v1322 = vld [vmem:[%s1 + $0x2348] sm:$0xff]
    %v1323 = vld [vmem:[%s1 + $0x2350] sm:$0xf]
    %v1324 = vld [vmem:[%s1 + $0x2354] sm:$0xff]
    %v1325 = vld [vmem:[%s1 + $0x235c] sm:$0xff]
    %v1326 = vld [vmem:[%s1 + $0x2364] sm:$0xff]
    %v1327 = vld [vmem:[%s1 + $0x236c] sm:$0xf]
    %v1328 = vld [vmem:[%s1 + $0x2370] sm:$0xff]
    %v1329 = vld [vmem:[%s1 + $0x2378] sm:$0xff]
    %v1330 = vld [vmem:[%s1 + $0x2380] sm:$0xff]
    %v1331 = vld [vmem:[%s1 + $0x2388] sm:$0xf]
    %v1332 = vld [vmem:[%s1 + $0x238c] sm:$0xff]
    %v1333 = vld [vmem:[%s1 + $0x2394] sm:$0xff]
    %v1334 = vld [vmem:[%s1 + $0x239c] sm:$0xff]
    %v1335 = vld [vmem:[%s1 + $0x23a4] sm:$0xf]
    %v1336 = vld [vmem:[%s1 + $0x23a8] sm:$0xff]
    %v1337 = vld [vmem:[%s1 + $0x23b0] sm:$0xff]
    %v1338 = vld [vmem:[%s1 + $0x23b8] sm:$0xff]
    %v1339 = vld [vmem:[%s1 + $0x23c0] sm:$0xf]
    %v1340 = vld [vmem:[%s1 + $0x23c4] sm:$0xff]
    %v1341 = vld [vmem:[%s1 + $0x23cc] sm:$0xff]
    %v1342 = vld [vmem:[%s1 + $0x23d4] sm:$0xff]
    %v1343 = vld [vmem:[%s1 + $0x23dc] sm:$0xf]
    %v1344 = vld [vmem:[%s1 + $0x23e0] sm:$0xff]
    %v1345 = vld [vmem:[%s1 + $0x23e8] sm:$0xff]
    %v1346 = vld [vmem:[%s1 + $0x23f0] sm:$0xff]
    %v1347 = vld [vmem:[%s1 + $0x23f8] sm:$0xf]
    %v1348 = vld [vmem:[%s1 + $0x23fc] sm:$0xff]
    %v1349 = vld [vmem:[%s1 + $0x2404] sm:$0xff]
    %v1350 = vld [vmem:[%s1 + $0x240c] sm:$0xff]
    %v1351 = vld [vmem:[%s1 + $0x2414] sm:$0xf]
    %v1352 = vld [vmem:[%s1 + $0x2418] sm:$0xff]
    %v1353 = vld [vmem:[%s1 + $0x2420] sm:$0xff]
    %v1354 = vld [vmem:[%s1 + $0x2428] sm:$0xff]
    %v1355 = vld [vmem:[%s1 + $0x2430] sm:$0xf]
    %v1356 = vld [vmem:[%s1 + $0x2434] sm:$0xff]
    %v1357 = vld [vmem:[%s1 + $0x243c] sm:$0xff]
    %v1358 = vld [vmem:[%s1 + $0x2444] sm:$0xff]
    %v1359 = vld [vmem:[%s1 + $0x244c] sm:$0xf]
    %v1360 = vld [vmem:[%s1 + $0x2450] sm:$0xff]
    %v1361 = vld [vmem:[%s1 + $0x2458] sm:$0xff]
    %v1362 = vld [vmem:[%s1 + $0x2460] sm:$0xff]
    %v1363 = vld [vmem:[%s1 + $0x2468] sm:$0xf]
    %v1364 = vld [vmem:[%s1 + $0x246c] sm:$0xff]
    %v1365 = vld [vmem:[%s1 + $0x2474] sm:$0xff]
    %v1366 = vld [vmem:[%s1 + $0x247c] sm:$0xff]
    %v1367 = vld [vmem:[%s1 + $0x2484] sm:$0xf]
    %v1368 = vld [vmem:[%s1 + $0x2488] sm:$0xff]
    %v1369 = vld [vmem:[%s1 + $0x2490] sm:$0xff]
    %v1370 = vld [vmem:[%s1 + $0x2498] sm:$0xff]
    %v1371 = vld [vmem:[%s1 + $0x24a0] sm:$0xf]
    %v1372 = vld [vmem:[%s1 + $0x24a4] sm:$0xff]
    %v1373 = vld [vmem:[%s1 + $0x24ac] sm:$0xff]
    %v1374 = vld [vmem:[%s1 + $0x24b4] sm:$0xff]
    %v1375 = vld [vmem:[%s1 + $0x24bc] sm:$0xf]
    %v1376 = vld [vmem:[%s1 + $0x24c0] sm:$0xff]
    %v1377 = vld [vmem:[%s1 + $0x24c8] sm:$0xff]
    %v1378 = vld [vmem:[%s1 + $0x24d0] sm:$0xff]
    %v1379 = vld [vmem:[%s1 + $0x24d8] sm:$0xf]
    %v1380 = vld [vmem:[%s1 + $0x24dc] sm:$0xff]
    %v1381 = vld [vmem:[%s1 + $0x24e4] sm:$0xff]
    %v1382 = vld [vmem:[%s1 + $0x24ec] sm:$0xff]
    %v1383 = vld [vmem:[%s1 + $0x24f4] sm:$0xf]
    %v1384 = vld [vmem:[%s1 + $0x24f8] sm:$0xff]
    %v1385 = vld [vmem:[%s1 + $0x2500] sm:$0xff]
    %v1386 = vld [vmem:[%s1 + $0x2508] sm:$0xff]
    %v1387 = vld [vmem:[%s1 + $0x2510] sm:$0xf]
    %v1388 = vld [vmem:[%s1 + $0x2514] sm:$0xff]
    %v1389 = vld [vmem:[%s1 + $0x251c] sm:$0xff]
    %v1390 = vld [vmem:[%s1 + $0x2524] sm:$0xff]
    %v1391 = vld [vmem:[%s1 + $0x252c] sm:$0xf]
    %v1392 = vld [vmem:[%s1 + $0x2530] sm:$0xff]
    %v1393 = vld [vmem:[%s1 + $0x2538] sm:$0xff]
    %v1394 = vld [vmem:[%s1 + $0x2540] sm:$0xff]
    %v1395 = vld [vmem:[%s1 + $0x2548] sm:$0xf]
    %v1396 = vld [vmem:[%s1 + $0x254c] sm:$0xff]
    %v1397 = vld [vmem:[%s1 + $0x2554] sm:$0xff]
    %v1398 = vld [vmem:[%s1 + $0x255c] sm:$0xff]
    %v1399 = vld [vmem:[%s1 + $0x2564] sm:$0xf]
    %v1400 = vld [vmem:[%s1 + $0x2568] sm:$0xff]
    %v1401 = vld [vmem:[%s1 + $0x2570] sm:$0xff]
    %v1402 = vld [vmem:[%s1 + $0x2578] sm:$0xff]
    %v1403 = vld [vmem:[%s1 + $0x2580] sm:$0xf]
    %v1404 = vld [vmem:[%s1 + $0x2584] sm:$0xff]
    %v1405 = vld [vmem:[%s1 + $0x258c] sm:$0xff]
    %v1406 = vld [vmem:[%s1 + $0x2594] sm:$0xff]
    %v1407 = vld [vmem:[%s1 + $0x259c] sm:$0xf]
    %v1408 = vld [vmem:[%s1 + $0x25a0] sm:$0xff]
    %v1409 = vld [vmem:[%s1 + $0x25a8] sm:$0xff]
    %v1410 = vld [vmem:[%s1 + $0x25b0] sm:$0xff]
    %v1411 = vld [vmem:[%s1 + $0x25b8] sm:$0xf]
    %v1412 = vld [vmem:[%s1 + $0x25bc] sm:$0xff]
    %v1413 = vld [vmem:[%s1 + $0x25c4] sm:$0xff]
    %v1414 = vld [vmem:[%s1 + $0x25cc] sm:$0xff]
    %v1415 = vld [vmem:[%s1 + $0x25d4] sm:$0xf]
    %v1416 = vld [vmem:[%s1 + $0x25d8] sm:$0xff]
    %v1417 = vld [vmem:[%s1 + $0x25e0] sm:$0xff]
    %v1418 = vld [vmem:[%s1 + $0x25e8] sm:$0xff]
    %v1419 = vld [vmem:[%s1 + $0x25f0] sm:$0xf]
    %v1420 = vld [vmem:[%s1 + $0x25f4] sm:$0xff]
    %v1421 = vld [vmem:[%s1 + $0x25fc] sm:$0xff]
    %v1422 = vld [vmem:[%s1 + $0x2604] sm:$0xff]
    %v1423 = vld [vmem:[%s1 + $0x260c] sm:$0xf]
    %v1424 = vld [vmem:[%s1 + $0x2610] sm:$0xff]
    %v1425 = vld [vmem:[%s1 + $0x2618] sm:$0xff]
    %v1426 = vld [vmem:[%s1 + $0x2620] sm:$0xff]
    %v1427 = vld [vmem:[%s1 + $0x2628] sm:$0xf]
    %v1428 = vld [vmem:[%s1 + $0x262c] sm:$0xff]
    %v1429 = vld [vmem:[%s1 + $0x2634] sm:$0xff]
    %v1430 = vld [vmem:[%s1 + $0x263c] sm:$0xff]
    %v1431 = vld [vmem:[%s1 + $0x2644] sm:$0xf]
    %v1432 = vld [vmem:[%s1 + $0x2648] sm:$0xff]
    %v1433 = vld [vmem:[%s1 + $0x2650] sm:$0xff]
    %v1434 = vld [vmem:[%s1 + $0x2658] sm:$0xff]
    %v1435 = vld [vmem:[%s1 + $0x2660] sm:$0xf]
    %v1436 = vld [vmem:[%s1 + $0x2664] sm:$0xff]
    %v1437 = vld [vmem:[%s1 + $0x266c] sm:$0xff]
    %v1438 = vld [vmem:[%s1 + $0x2674] sm:$0xff]
    %v1439 = vld [vmem:[%s1 + $0x267c] sm:$0xf]
    %v1440 = vld [vmem:[%s1 + $0x2680] sm:$0xff]
    %v1441 = vld [vmem:[%s1 + $0x2688] sm:$0xff]
    %v1442 = vld [vmem:[%s1 + $0x2690] sm:$0xff]
    %v1443 = vld [vmem:[%s1 + $0x2698] sm:$0xf]
    %v1444 = vld [vmem:[%s1 + $0x269c] sm:$0xff]
    %v1445 = vld [vmem:[%s1 + $0x26a4] sm:$0xff]
    %v1446 = vld [vmem:[%s1 + $0x26ac] sm:$0xff]
    %v1447 = vld [vmem:[%s1 + $0x26b4] sm:$0xf]
    %v1448 = vld [vmem:[%s1 + $0x26b8] sm:$0xff]
    %v1449 = vld [vmem:[%s1 + $0x26c0] sm:$0xff]
    %v1450 = vld [vmem:[%s1 + $0x26c8] sm:$0xff]
    %v1451 = vld [vmem:[%s1 + $0x26d0] sm:$0xf]
    %v1452 = vld [vmem:[%s1 + $0x26d4] sm:$0xff]
    %v1453 = vld [vmem:[%s1 + $0x26dc] sm:$0xff]
    %v1454 = vld [vmem:[%s1 + $0x26e4] sm:$0xff]
    %v1455 = vld [vmem:[%s1 + $0x26ec] sm:$0xf]
    %v1456 = vld [vmem:[%s1 + $0x26f0] sm:$0xff]
    %v1457 = vld [vmem:[%s1 + $0x26f8] sm:$0xff]
    %v1458 = vld [vmem:[%s1 + $0x2700] sm:$0xff]
    %v1459 = vld [vmem:[%s1 + $0x2708] sm:$0xf]
    %v1460 = vld [vmem:[%s1 + $0x270c] sm:$0xff]
    %v1461 = vld [vmem:[%s1 + $0x2714] sm:$0xff]
    %v1462 = vld [vmem:[%s1 + $0x271c] sm:$0xff]
    %v1463 = vld [vmem:[%s1 + $0x2724] sm:$0xf]
    %v1464 = vld [vmem:[%s1 + $0x2728] sm:$0xff]
    %v1465 = vld [vmem:[%s1 + $0x2730] sm:$0xff]
    %v1466 = vld [vmem:[%s1 + $0x2738] sm:$0xff]
    %v1467 = vld [vmem:[%s1 + $0x2740] sm:$0xf]
    %v1468 = vld [vmem:[%s1 + $0x2744] sm:$0xff]
    %v1469 = vld [vmem:[%s1 + $0x274c] sm:$0xff]
    %v1470 = vld [vmem:[%s1 + $0x2754] sm:$0xff]
    %v1471 = vld [vmem:[%s1 + $0x275c] sm:$0xf]
    %v1472 = vld [vmem:[%s1 + $0x2760] sm:$0xff]
    %v1473 = vld [vmem:[%s1 + $0x2768] sm:$0xff]
    %v1474 = vld [vmem:[%s1 + $0x2770] sm:$0xff]
    %v1475 = vld [vmem:[%s1 + $0x2778] sm:$0xf]
    %v1476 = vld [vmem:[%s1 + $0x277c] sm:$0xff]
    %v1477 = vld [vmem:[%s1 + $0x2784] sm:$0xff]
    %v1478 = vld [vmem:[%s1 + $0x278c] sm:$0xff]
    %v1479 = vld [vmem:[%s1 + $0x2794] sm:$0xf]
    %v1480 = vld [vmem:[%s1 + $0x2798] sm:$0xff]
    %v1481 = vld [vmem:[%s1 + $0x27a0] sm:$0xff]
    %v1482 = vld [vmem:[%s1 + $0x27a8] sm:$0xff]
    %v1483 = vld [vmem:[%s1 + $0x27b0] sm:$0xf]
    %v1484 = vld [vmem:[%s1 + $0x27b4] sm:$0xff]
    %v1485 = vld [vmem:[%s1 + $0x27bc] sm:$0xff]
    %v1486 = vld [vmem:[%s1 + $0x27c4] sm:$0xff]
    %v1487 = vld [vmem:[%s1 + $0x27cc] sm:$0xf]
    %v1488 = vld [vmem:[%s1 + $0x27d0] sm:$0xff]
    %v1489 = vld [vmem:[%s1 + $0x27d8] sm:$0xff]
    %v1490 = vld [vmem:[%s1 + $0x27e0] sm:$0xff]
    %v1491 = vld [vmem:[%s1 + $0x27e8] sm:$0xf]
    %v1492 = vld [vmem:[%s1 + $0x27ec] sm:$0xff]
    %v1493 = vld [vmem:[%s1 + $0x27f4] sm:$0xff]
    %v1494 = vld [vmem:[%s1 + $0x27fc] sm:$0xff]
    %v1495 = vld [vmem:[%s1 + $0x2804] sm:$0xf]
    %v1496 = vld [vmem:[%s1 + $0x2808] sm:$0xff]
    %v1497 = vld [vmem:[%s1 + $0x2810] sm:$0xff]
    %v1498 = vld [vmem:[%s1 + $0x2818] sm:$0xff]
    %v1499 = vld [vmem:[%s1 + $0x2820] sm:$0xf]
    %v1500 = vld [vmem:[%s1 + $0x2824] sm:$0xff]
    %v1501 = vld [vmem:[%s1 + $0x282c] sm:$0xff]
    %v1502 = vld [vmem:[%s1 + $0x2834] sm:$0xff]
    %v1503 = vld [vmem:[%s1 + $0x283c] sm:$0xf]
    %v1504 = vld [vmem:[%s1 + $0x2840] sm:$0xff]
    %v1505 = vld [vmem:[%s1 + $0x2848] sm:$0xff]
    %v1506 = vld [vmem:[%s1 + $0x2850] sm:$0xff]
    %v1507 = vld [vmem:[%s1 + $0x2858] sm:$0xf]
    %v1508 = vld [vmem:[%s1 + $0x285c] sm:$0xff]
    %v1509 = vld [vmem:[%s1 + $0x2864] sm:$0xff]
    %v1510 = vld [vmem:[%s1 + $0x286c] sm:$0xff]
    %v1511 = vld [vmem:[%s1 + $0x2874] sm:$0xf]
    %v1512 = vld [vmem:[%s1 + $0x2878] sm:$0xff]
    %v1513 = vld [vmem:[%s1 + $0x2880] sm:$0xff]
    %v1514 = vld [vmem:[%s1 + $0x2888] sm:$0xff]
    %v1515 = vld [vmem:[%s1 + $0x2890] sm:$0xf]
    %v1516 = vld [vmem:[%s1 + $0x2894] sm:$0xff]
    %v1517 = vld [vmem:[%s1 + $0x289c] sm:$0xff]
    %v1518 = vld [vmem:[%s1 + $0x28a4] sm:$0xff]
    %v1519 = vld [vmem:[%s1 + $0x28ac] sm:$0xf]
    %v1520 = vld [vmem:[%s1 + $0x28b0] sm:$0xff]
    %v1521 = vld [vmem:[%s1 + $0x28b8] sm:$0xff]
    %v1522 = vld [vmem:[%s1 + $0x28c0] sm:$0xff]
    %v1523 = vld [vmem:[%s1 + $0x28c8] sm:$0xf]
    %v1524 = vld [vmem:[%s1 + $0x28cc] sm:$0xff]
    %v1525 = vld [vmem:[%s1 + $0x28d4] sm:$0xff]
    %v1526 = vld [vmem:[%s1 + $0x28dc] sm:$0xff]
    %v1527 = vld [vmem:[%s1 + $0x28e4] sm:$0xf]
    %v1528 = vld [vmem:[%s1 + $0x28e8] sm:$0xff]
    %v1529 = vld [vmem:[%s1 + $0x28f0] sm:$0xff]
    %v1530 = vld [vmem:[%s1 + $0x28f8] sm:$0xff]
    %v1531 = vld [vmem:[%s1 + $0x2900] sm:$0xf]
    %v1532 = vld [vmem:[%s1 + $0x2904] sm:$0xff]
    %v1533 = vld [vmem:[%s1 + $0x290c] sm:$0xff]
    %v1534 = vld [vmem:[%s1 + $0x2914] sm:$0xff]
    %v1535 = vld [vmem:[%s1 + $0x291c] sm:$0xf]
    %v1536 = vld [vmem:[%s1 + $0x2920] sm:$0xff]
    %v1537 = vld [vmem:[%s1 + $0x2928] sm:$0xff]
    %v1538 = vld [vmem:[%s1 + $0x2930] sm:$0xff]
    %v1539 = vld [vmem:[%s1 + $0x2938] sm:$0xf]
    %v1540 = vld [vmem:[%s1 + $0x293c] sm:$0xff]
    %v1541 = vld [vmem:[%s1 + $0x2944] sm:$0xff]
    %v1542 = vld [vmem:[%s1 + $0x294c] sm:$0xff]
    %v1543 = vld [vmem:[%s1 + $0x2954] sm:$0xf]
    %v1544 = vld [vmem:[%s1 + $0x2958] sm:$0xff]
    %v1545 = vld [vmem:[%s1 + $0x2960] sm:$0xff]
    %v1546 = vld [vmem:[%s1 + $0x2968] sm:$0xff]
    %v1547 = vld [vmem:[%s1 + $0x2970] sm:$0xf]
    %v1548 = vld [vmem:[%s1 + $0x2974] sm:$0xff]
    %v1549 = vld [vmem:[%s1 + $0x297c] sm:$0xff]
    %v1550 = vld [vmem:[%s1 + $0x2984] sm:$0xff]
    %v1551 = vld [vmem:[%s1 + $0x298c] sm:$0xf]
    %v1552 = vld [vmem:[%s1 + $0x2990] sm:$0xff]
    %v1553 = vld [vmem:[%s1 + $0x2998] sm:$0xff]
    %v1554 = vld [vmem:[%s1 + $0x29a0] sm:$0xff]
    %v1555 = vld [vmem:[%s1 + $0x29a8] sm:$0xf]
    %v1556 = vld [vmem:[%s1 + $0x29ac] sm:$0xff]
    %v1557 = vld [vmem:[%s1 + $0x29b4] sm:$0xff]
    %v1558 = vld [vmem:[%s1 + $0x29bc] sm:$0xff]
    %v1559 = vld [vmem:[%s1 + $0x29c4] sm:$0xf]
    %v1560 = vld [vmem:[%s1 + $0x29c8] sm:$0xff]
    %v1561 = vld [vmem:[%s1 + $0x29d0] sm:$0xff]
    %v1562 = vld [vmem:[%s1 + $0x29d8] sm:$0xff]
    %v1563 = vld [vmem:[%s1 + $0x29e0] sm:$0xf]
    %v1564 = vld [vmem:[%s1 + $0x29e4] sm:$0xff]
    %v1565 = vld [vmem:[%s1 + $0x29ec] sm:$0xff]
    %v1566 = vld [vmem:[%s1 + $0x29f4] sm:$0xff]
    %v1567 = vld [vmem:[%s1 + $0x29fc] sm:$0xf]
    %v1568 = vld [vmem:[%s1 + $0x2a00] sm:$0xff]
    %v1569 = vld [vmem:[%s1 + $0x2a08] sm:$0xff]
    %v1570 = vld [vmem:[%s1 + $0x2a10] sm:$0xff]
    %v1571 = vld [vmem:[%s1 + $0x2a18] sm:$0xf]
    %v1572 = vld [vmem:[%s1 + $0x2a1c] sm:$0xff]
    %v1573 = vld [vmem:[%s1 + $0x2a24] sm:$0xff]
    %v1574 = vld [vmem:[%s1 + $0x2a2c] sm:$0xff]
    %v1575 = vld [vmem:[%s1 + $0x2a34] sm:$0xf]
    %v1576 = vld [vmem:[%s1 + $0x2a38] sm:$0xff]
    %v1577 = vld [vmem:[%s1 + $0x2a40] sm:$0xff]
    %v1578 = vld [vmem:[%s1 + $0x2a48] sm:$0xff]
    %v1579 = vld [vmem:[%s1 + $0x2a50] sm:$0xf]
    %v1580 = vld [vmem:[%s1 + $0x2a54] sm:$0xff]
    %v1581 = vld [vmem:[%s1 + $0x2a5c] sm:$0xff]
    %v1582 = vld [vmem:[%s1 + $0x2a64] sm:$0xff]
    %v1583 = vld [vmem:[%s1 + $0x2a6c] sm:$0xf]
    %v1584 = vld [vmem:[%s1 + $0x2a70] sm:$0xff]
    %v1585 = vld [vmem:[%s1 + $0x2a78] sm:$0xff]
    %v1586 = vld [vmem:[%s1 + $0x2a80] sm:$0xff]
    %v1587 = vld [vmem:[%s1 + $0x2a88] sm:$0xf]
    %v1588 = vld [vmem:[%s1 + $0x2a8c] sm:$0xff]
    %v1589 = vld [vmem:[%s1 + $0x2a94] sm:$0xff]
    %v1590 = vld [vmem:[%s1 + $0x2a9c] sm:$0xff]
    %v1591 = vld [vmem:[%s1 + $0x2aa4] sm:$0xf]
    %v1592 = vld [vmem:[%s1 + $0x2aa8] sm:$0xff]
    %v1593 = vld [vmem:[%s1 + $0x2ab0] sm:$0xff]
    %v1594 = vld [vmem:[%s1 + $0x2ab8] sm:$0xff]
    %v1595 = vld [vmem:[%s1 + $0x2ac0] sm:$0xf]
    %v1596 = vld [vmem:[%s1 + $0x2ac4] sm:$0xff]
    %v1597 = vld [vmem:[%s1 + $0x2acc] sm:$0xff]
    %v1598 = vld [vmem:[%s1 + $0x2ad4] sm:$0xff]
    %v1599 = vld [vmem:[%s1 + $0x2adc] sm:$0xf]
    %v1600 = vld [vmem:[%s2] sm:$0x7f]
    %v1602 = vlaneseq
    %v1603 = vshrl.u32 %v1602, 7
    %v1604 = vsub.s32 0, %v1603
    %v1605 = vrot.slane %v1600, %v1604
    %v1606 = vlaneseq
    %v1607 = vshrl.u32 %v1606, 7
    %v1608 = vsub.s32 1, %v1607
    %v1609 = vrot.slane %v1600, %v1608
    %v1610 = vlaneseq
    %v1611 = vshrl.u32 %v1610, 7
    %v1612 = vsub.s32 2, %v1611
    %v1613 = vrot.slane %v1600, %v1612
    %v1614 = vlaneseq
    %v1615 = vshrl.u32 %v1614, 7
    %v1616 = vsub.s32 3, %v1615
    %v1617 = vrot.slane %v1600, %v1616
    %v1618 = vlaneseq
    %v1619 = vshrl.u32 %v1618, 7
    %v1620 = vsub.s32 4, %v1619
    %v1621 = vrot.slane %v1600, %v1620
    %v1622 = vlaneseq
    %v1623 = vshrl.u32 %v1622, 7
    %v1624 = vsub.s32 5, %v1623
    %v1625 = vrot.slane %v1600, %v1624
    %v1626 = vlaneseq
    %v1627 = vshrl.u32 %v1626, 7
    %v1628 = vsub.s32 6, %v1627
    %v1629 = vrot.slane %v1600, %v1628
    %v1641 = vcombine.high %v28, %v28
    %v1643 = vunpack.c.l.s4 1966171168
    %v1644 = vunpack.c.0.s8 %v1643
    %v1645 = vlaneseq
    %v1646 = vshrl.u32 %v1645, 7
    %v1647 = vsub.s32 %v1644, %v1646
    %v1648 = vrot.slane %v28, %v1647
    %v1650 = vunpack.c.l.s4 1966171168
    %v1651 = vunpack.c.0.s8 %v1650
    %v1652 = vlaneseq
    %v1653 = vshrl.u32 %v1652, 7
    %v1654 = vsub.s32 %v1651, %v1653
    %v1655 = vrot.slane %v1641, %v1654
    %v1656 = vcombine.high %v1648, %v1648
    %v1657 = vcombine.high %v1655, %v1655
    %v1659 = vunpack.c.l.s4 1966171168
    %v1660 = vunpack.c.0.s8 %v1659
    %v1661 = vlaneseq
    %v1662 = vshrl.u32 %v1661, 7
    %v1663 = vsub.s32 %v1660, %v1662
    %v1664 = vrot.slane %v1648, %v1663
    %v1666 = vunpack.c.l.s4 1966171168
    %v1667 = vunpack.c.0.s8 %v1666
    %v1668 = vlaneseq
    %v1669 = vshrl.u32 %v1668, 7
    %v1670 = vsub.s32 %v1667, %v1669
    %v1671 = vrot.slane %v1655, %v1670
    %v1673 = vunpack.c.l.s4 1966171168
    %v1674 = vunpack.c.0.s8 %v1673
    %v1675 = vlaneseq
    %v1676 = vshrl.u32 %v1675, 7
    %v1677 = vsub.s32 %v1674, %v1676
    %v1678 = vrot.slane %v1656, %v1677
    %v1680 = vunpack.c.l.s4 1966171168
    %v1681 = vunpack.c.0.s8 %v1680
    %v1682 = vlaneseq
    %v1683 = vshrl.u32 %v1682, 7
    %v1684 = vsub.s32 %v1681, %v1683
    %v1685 = vrot.slane %v1657, %v1684
    %v1686 = vcombine.high %v1664, %v1664
    %v1687 = vcombine.high %v1671, %v1671
    %v1688 = vcombine.high %v1678, %v1678
    %v1689 = vcombine.high %v1685, %v1685
    %v1690 = vcombine.high %v29, %v29
    %v1692 = vunpack.c.l.s4 1966171168
    %v1693 = vunpack.c.0.s8 %v1692
    %v1694 = vlaneseq
    %v1695 = vshrl.u32 %v1694, 7
    %v1696 = vsub.s32 %v1693, %v1695
    %v1697 = vrot.slane %v29, %v1696
    %v1699 = vunpack.c.l.s4 1966171168
    %v1700 = vunpack.c.0.s8 %v1699
    %v1701 = vlaneseq
    %v1702 = vshrl.u32 %v1701, 7
    %v1703 = vsub.s32 %v1700, %v1702
    %v1704 = vrot.slane %v1690, %v1703
    %v1705 = vcombine.high %v1697, %v1697
    %v1706 = vcombine.high %v1704, %v1704
    %v1708 = vunpack.c.l.s4 1966171168
    %v1709 = vunpack.c.0.s8 %v1708
    %v1710 = vlaneseq
    %v1711 = vshrl.u32 %v1710, 7
    %v1712 = vsub.s32 %v1709, %v1711
    %v1713 = vrot.slane %v1697, %v1712
    %v1715 = vunpack.c.l.s4 1966171168
    %v1716 = vunpack.c.0.s8 %v1715
    %v1717 = vlaneseq
    %v1718 = vshrl.u32 %v1717, 7
    %v1719 = vsub.s32 %v1716, %v1718
    %v1720 = vrot.slane %v1704, %v1719
    %v1722 = vunpack.c.l.s4 1966171168
    %v1723 = vunpack.c.0.s8 %v1722
    %v1724 = vlaneseq
    %v1725 = vshrl.u32 %v1724, 7
    %v1726 = vsub.s32 %v1723, %v1725
    %v1727 = vrot.slane %v1705, %v1726
    %v1729 = vunpack.c.l.s4 1966171168
    %v1730 = vunpack.c.0.s8 %v1729
    %v1731 = vlaneseq
    %v1732 = vshrl.u32 %v1731, 7
    %v1733 = vsub.s32 %v1730, %v1732
    %v1734 = vrot.slane %v1706, %v1733
    %v1735 = vcombine.high %v1713, %v1713
    %v1736 = vcombine.high %v1720, %v1720
    %v1737 = vcombine.high %v1727, %v1727
    %v1738 = vcombine.high %v1734, %v1734
    %v1739 = vcombine.high %v30, %v30
    %v1741 = vunpack.c.l.s4 1966171168
    %v1742 = vunpack.c.0.s8 %v1741
    %v1743 = vlaneseq
    %v1744 = vshrl.u32 %v1743, 7
    %v1745 = vsub.s32 %v1742, %v1744
    %v1746 = vrot.slane %v30, %v1745
    %v1748 = vunpack.c.l.s4 1966171168
    %v1749 = vunpack.c.0.s8 %v1748
    %v1750 = vlaneseq
    %v1751 = vshrl.u32 %v1750, 7
    %v1752 = vsub.s32 %v1749, %v1751
    %v1753 = vrot.slane %v1739, %v1752
    %v1754 = vcombine.high %v1746, %v1746
    %v1755 = vcombine.high %v1753, %v1753
    %v1757 = vunpack.c.l.s4 1966171168
    %v1758 = vunpack.c.0.s8 %v1757
    %v1759 = vlaneseq
    %v1760 = vshrl.u32 %v1759, 7
    %v1761 = vsub.s32 %v1758, %v1760
    %v1762 = vrot.slane %v1746, %v1761
    %v1764 = vunpack.c.l.s4 1966171168
    %v1765 = vunpack.c.0.s8 %v1764
    %v1766 = vlaneseq
    %v1767 = vshrl.u32 %v1766, 7
    %v1768 = vsub.s32 %v1765, %v1767
    %v1769 = vrot.slane %v1753, %v1768
    %v1771 = vunpack.c.l.s4 1966171168
    %v1772 = vunpack.c.0.s8 %v1771
    %v1773 = vlaneseq
    %v1774 = vshrl.u32 %v1773, 7
    %v1775 = vsub.s32 %v1772, %v1774
    %v1776 = vrot.slane %v1754, %v1775
    %v1778 = vunpack.c.l.s4 1966171168
    %v1779 = vunpack.c.0.s8 %v1778
    %v1780 = vlaneseq
    %v1781 = vshrl.u32 %v1780, 7
    %v1782 = vsub.s32 %v1779, %v1781
    %v1783 = vrot.slane %v1755, %v1782
    %v1784 = vcombine.high %v1762, %v1762
    %v1785 = vcombine.high %v1769, %v1769
    %v1786 = vcombine.high %v1776, %v1776
    %v1787 = vcombine.high %v1783, %v1783
    %v1789 = vunpack.c.l.s4 1966171168
    %v1790 = vunpack.c.0.s8 %v1789
    %v1791 = vlaneseq
    %v1792 = vshrl.u32 %v1791, 7
    %v1793 = vsub.s32 %v1790, %v1792
    %v1794 = vrot.slane %v31, %v1793
    %v1796 = vunpack.c.l.s4 1966171168
    %v1797 = vunpack.c.0.s8 %v1796
    %v1798 = vlaneseq
    %v1799 = vshrl.u32 %v1798, 7
    %v1800 = vsub.s32 %v1797, %v1799
    %v1801 = vrot.slane %v1794, %v1800
    %v3394 = vunpack.c.l.b16 %v32
    %v3395 = vunpack.c.h.b16 %v32
    %v3396 = vunpack.c.l.b16 %v33
    %v3397 = vunpack.c.h.b16 %v33
    %v3398 = vunpack.c.l.b16 %v34
    %v3399 = vunpack.c.h.b16 %v34
    %v3400 = vunpack.c.l.b16 %v35
    %v3401 = vunpack.c.l.b16 %v36
    %v3402 = vunpack.c.h.b16 %v36
    %v3403 = vunpack.c.l.b16 %v37
    %v3404 = vunpack.c.h.b16 %v37
    %v3405 = vunpack.c.l.b16 %v38
    %v3406 = vunpack.c.h.b16 %v38
    %v3407 = vunpack.c.l.b16 %v39
    %v3408 = vunpack.c.l.b16 %v40
    %v3409 = vunpack.c.h.b16 %v40
    %v3410 = vunpack.c.l.b16 %v41
    %v3411 = vunpack.c.h.b16 %v41
    %v3412 = vunpack.c.l.b16 %v42
    %v3413 = vunpack.c.h.b16 %v42
    %v3414 = vunpack.c.l.b16 %v43
    %v3415 = vunpack.c.l.b16 %v44
    %v3416 = vunpack.c.h.b16 %v44
    %v3417 = vunpack.c.l.b16 %v45
    %v3418 = vunpack.c.h.b16 %v45
    %v3419 = vunpack.c.l.b16 %v46
    %v3420 = vunpack.c.h.b16 %v46
    %v3421 = vunpack.c.l.b16 %v47
    %v3422 = vunpack.c.l.b16 %v48
    %v3423 = vunpack.c.h.b16 %v48
    %v3424 = vunpack.c.l.b16 %v49
    %v3425 = vunpack.c.h.b16 %v49
    %v3426 = vunpack.c.l.b16 %v50
    %v3427 = vunpack.c.h.b16 %v50
    %v3428 = vunpack.c.l.b16 %v51
    %v3429 = vunpack.c.l.b16 %v52
    %v3430 = vunpack.c.h.b16 %v52
    %v3431 = vunpack.c.l.b16 %v53
    %v3432 = vunpack.c.h.b16 %v53
    %v3433 = vunpack.c.l.b16 %v54
    %v3434 = vunpack.c.h.b16 %v54
    %v3435 = vunpack.c.l.b16 %v55
    %v3436 = vunpack.c.l.b16 %v56
    %v3437 = vunpack.c.h.b16 %v56
    %v3438 = vunpack.c.l.b16 %v57
    %v3439 = vunpack.c.h.b16 %v57
    %v3440 = vunpack.c.l.b16 %v58
    %v3441 = vunpack.c.h.b16 %v58
    %v3442 = vunpack.c.l.b16 %v59
    %v3443 = vunpack.c.l.b16 %v60
    %v3444 = vunpack.c.h.b16 %v60
    %v3445 = vunpack.c.l.b16 %v61
    %v3446 = vunpack.c.h.b16 %v61
    %v3447 = vunpack.c.l.b16 %v62
    %v3448 = vunpack.c.h.b16 %v62
    %v3449 = vunpack.c.l.b16 %v63
    %v3450 = vunpack.c.l.b16 %v64
    %v3451 = vunpack.c.h.b16 %v64
    %v3452 = vunpack.c.l.b16 %v65
    %v3453 = vunpack.c.h.b16 %v65
    %v3454 = vunpack.c.l.b16 %v66
    %v3455 = vunpack.c.h.b16 %v66
    %v3456 = vunpack.c.l.b16 %v67
    %v3457 = vunpack.c.l.b16 %v68
    %v3458 = vunpack.c.h.b16 %v68
    %v3459 = vunpack.c.l.b16 %v69
    %v3460 = vunpack.c.h.b16 %v69
    %v3461 = vunpack.c.l.b16 %v70
    %v3462 = vunpack.c.h.b16 %v70
    %v3463 = vunpack.c.l.b16 %v71
    %v3464 = vunpack.c.l.b16 %v72
    %v3465 = vunpack.c.h.b16 %v72
    %v3466 = vunpack.c.l.b16 %v73
    %v3467 = vunpack.c.h.b16 %v73
    %v3468 = vunpack.c.l.b16 %v74
    %v3469 = vunpack.c.h.b16 %v74
    %v3470 = vunpack.c.l.b16 %v75
    %v3471 = vunpack.c.l.b16 %v76
    %v3472 = vunpack.c.h.b16 %v76
    %v3473 = vunpack.c.l.b16 %v77
    %v3474 = vunpack.c.h.b16 %v77
    %v3475 = vunpack.c.l.b16 %v78
    %v3476 = vunpack.c.h.b16 %v78
    %v3477 = vunpack.c.l.b16 %v79
    %v3478 = vunpack.c.l.b16 %v80
    %v3479 = vunpack.c.h.b16 %v80
    %v3480 = vunpack.c.l.b16 %v81
    %v3481 = vunpack.c.h.b16 %v81
    %v3482 = vunpack.c.l.b16 %v82
    %v3483 = vunpack.c.h.b16 %v82
    %v3484 = vunpack.c.l.b16 %v83
    %v3485 = vunpack.c.l.b16 %v84
    %v3486 = vunpack.c.h.b16 %v84
    %v3487 = vunpack.c.l.b16 %v85
    %v3488 = vunpack.c.h.b16 %v85
    %v3489 = vunpack.c.l.b16 %v86
    %v3490 = vunpack.c.h.b16 %v86
    %v3491 = vunpack.c.l.b16 %v87
    %v3492 = vunpack.c.l.b16 %v88
    %v3493 = vunpack.c.h.b16 %v88
    %v3494 = vunpack.c.l.b16 %v89
    %v3495 = vunpack.c.h.b16 %v89
    %v3496 = vunpack.c.l.b16 %v90
    %v3497 = vunpack.c.h.b16 %v90
    %v3498 = vunpack.c.l.b16 %v91
    %v3499 = vunpack.c.l.b16 %v92
    %v3500 = vunpack.c.h.b16 %v92
    %v3501 = vunpack.c.l.b16 %v93
    %v3502 = vunpack.c.h.b16 %v93
    %v3503 = vunpack.c.l.b16 %v94
    %v3504 = vunpack.c.h.b16 %v94
    %v3505 = vunpack.c.l.b16 %v95
    %v3506 = vunpack.c.l.b16 %v96
    %v3507 = vunpack.c.h.b16 %v96
    %v3508 = vunpack.c.l.b16 %v97
    %v3509 = vunpack.c.h.b16 %v97
    %v3510 = vunpack.c.l.b16 %v98
    %v3511 = vunpack.c.h.b16 %v98
    %v3512 = vunpack.c.l.b16 %v99
    %v3513 = vunpack.c.l.b16 %v100
    %v3514 = vunpack.c.h.b16 %v100
    %v3515 = vunpack.c.l.b16 %v101
    %v3516 = vunpack.c.h.b16 %v101
    %v3517 = vunpack.c.l.b16 %v102
    %v3518 = vunpack.c.h.b16 %v102
    %v3519 = vunpack.c.l.b16 %v103
    %v3520 = vunpack.c.l.b16 %v104
    %v3521 = vunpack.c.h.b16 %v104
    %v3522 = vunpack.c.l.b16 %v105
    %v3523 = vunpack.c.h.b16 %v105
    %v3524 = vunpack.c.l.b16 %v106
    %v3525 = vunpack.c.h.b16 %v106
    %v3526 = vunpack.c.l.b16 %v107
    %v3527 = vunpack.c.l.b16 %v108
    %v3528 = vunpack.c.h.b16 %v108
    %v3529 = vunpack.c.l.b16 %v109
    %v3530 = vunpack.c.h.b16 %v109
    %v3531 = vunpack.c.l.b16 %v110
    %v3532 = vunpack.c.h.b16 %v110
    %v3533 = vunpack.c.l.b16 %v111
    %v3534 = vunpack.c.l.b16 %v112
    %v3535 = vunpack.c.h.b16 %v112
    %v3536 = vunpack.c.l.b16 %v113
    %v3537 = vunpack.c.h.b16 %v113
    %v3538 = vunpack.c.l.b16 %v114
    %v3539 = vunpack.c.h.b16 %v114
    %v3540 = vunpack.c.l.b16 %v115
    %v3541 = vunpack.c.l.b16 %v116
    %v3542 = vunpack.c.h.b16 %v116
    %v3543 = vunpack.c.l.b16 %v117
    %v3544 = vunpack.c.h.b16 %v117
    %v3545 = vunpack.c.l.b16 %v118
    %v3546 = vunpack.c.h.b16 %v118
    %v3547 = vunpack.c.l.b16 %v119
    %v3548 = vunpack.c.l.b16 %v120
    %v3549 = vunpack.c.h.b16 %v120
    %v3550 = vunpack.c.l.b16 %v121
    %v3551 = vunpack.c.h.b16 %v121
    %v3552 = vunpack.c.l.b16 %v122
    %v3553 = vunpack.c.h.b16 %v122
    %v3554 = vunpack.c.l.b16 %v123
    %v3555 = vunpack.c.l.b16 %v124
    %v3556 = vunpack.c.h.b16 %v124
    %v3557 = vunpack.c.l.b16 %v125
    %v3558 = vunpack.c.h.b16 %v125
    %v3559 = vunpack.c.l.b16 %v126
    %v3560 = vunpack.c.h.b16 %v126
    %v3561 = vunpack.c.l.b16 %v127
    %v3562 = vunpack.c.l.b16 %v128
    %v3563 = vunpack.c.h.b16 %v128
    %v3564 = vunpack.c.l.b16 %v129
    %v3565 = vunpack.c.h.b16 %v129
    %v3566 = vunpack.c.l.b16 %v130
    %v3567 = vunpack.c.h.b16 %v130
    %v3568 = vunpack.c.l.b16 %v131
    %v3569 = vunpack.c.l.b16 %v132
    %v3570 = vunpack.c.h.b16 %v132
    %v3571 = vunpack.c.l.b16 %v133
    %v3572 = vunpack.c.h.b16 %v133
    %v3573 = vunpack.c.l.b16 %v134
    %v3574 = vunpack.c.h.b16 %v134
    %v3575 = vunpack.c.l.b16 %v135
    %v3576 = vunpack.c.l.b16 %v136
    %v3577 = vunpack.c.h.b16 %v136
    %v3578 = vunpack.c.l.b16 %v137
    %v3579 = vunpack.c.h.b16 %v137
    %v3580 = vunpack.c.l.b16 %v138
    %v3581 = vunpack.c.h.b16 %v138
    %v3582 = vunpack.c.l.b16 %v139
    %v3583 = vunpack.c.l.b16 %v140
    %v3584 = vunpack.c.h.b16 %v140
    %v3585 = vunpack.c.l.b16 %v141
    %v3586 = vunpack.c.h.b16 %v141
    %v3587 = vunpack.c.l.b16 %v142
    %v3588 = vunpack.c.h.b16 %v142
    %v3589 = vunpack.c.l.b16 %v143
    %v3590 = vunpack.c.l.b16 %v144
    %v3591 = vunpack.c.h.b16 %v144
    %v3592 = vunpack.c.l.b16 %v145
    %v3593 = vunpack.c.h.b16 %v145
    %v3594 = vunpack.c.l.b16 %v146
    %v3595 = vunpack.c.h.b16 %v146
    %v3596 = vunpack.c.l.b16 %v147
    %v3597 = vunpack.c.l.b16 %v148
    %v3598 = vunpack.c.h.b16 %v148
    %v3599 = vunpack.c.l.b16 %v149
    %v3600 = vunpack.c.h.b16 %v149
    %v3601 = vunpack.c.l.b16 %v150
    %v3602 = vunpack.c.h.b16 %v150
    %v3603 = vunpack.c.l.b16 %v151
    %v3604 = vunpack.c.l.b16 %v152
    %v3605 = vunpack.c.h.b16 %v152
    %v3606 = vunpack.c.l.b16 %v153
    %v3607 = vunpack.c.h.b16 %v153
    %v3608 = vunpack.c.l.b16 %v154
    %v3609 = vunpack.c.h.b16 %v154
    %v3610 = vunpack.c.l.b16 %v155
    %v3611 = vunpack.c.l.b16 %v156
    %v3612 = vunpack.c.h.b16 %v156
    %v3613 = vunpack.c.l.b16 %v157
    %v3614 = vunpack.c.h.b16 %v157
    %v3615 = vunpack.c.l.b16 %v158
    %v3616 = vunpack.c.h.b16 %v158
    %v3617 = vunpack.c.l.b16 %v159
    %v3618 = vunpack.c.l.b16 %v160
    %v3619 = vunpack.c.h.b16 %v160
    %v3620 = vunpack.c.l.b16 %v161
    %v3621 = vunpack.c.h.b16 %v161
    %v3622 = vunpack.c.l.b16 %v162
    %v3623 = vunpack.c.h.b16 %v162
    %v3624 = vunpack.c.l.b16 %v163
    %v3625 = vunpack.c.l.b16 %v164
    %v3626 = vunpack.c.h.b16 %v164
    %v3627 = vunpack.c.l.b16 %v165
    %v3628 = vunpack.c.h.b16 %v165
    %v3629 = vunpack.c.l.b16 %v166
    %v3630 = vunpack.c.h.b16 %v166
    %v3631 = vunpack.c.l.b16 %v167
    %v3632 = vunpack.c.l.b16 %v168
    %v3633 = vunpack.c.h.b16 %v168
    %v3634 = vunpack.c.l.b16 %v169
    %v3635 = vunpack.c.h.b16 %v169
    %v3636 = vunpack.c.l.b16 %v170
    %v3637 = vunpack.c.h.b16 %v170
    %v3638 = vunpack.c.l.b16 %v171
    %v3639 = vunpack.c.l.b16 %v172
    %v3640 = vunpack.c.h.b16 %v172
    %v3641 = vunpack.c.l.b16 %v173
    %v3642 = vunpack.c.h.b16 %v173
    %v3643 = vunpack.c.l.b16 %v174
    %v3644 = vunpack.c.h.b16 %v174
    %v3645 = vunpack.c.l.b16 %v175
    %v3646 = vunpack.c.l.b16 %v176
    %v3647 = vunpack.c.h.b16 %v176
    %v3648 = vunpack.c.l.b16 %v177
    %v3649 = vunpack.c.h.b16 %v177
    %v3650 = vunpack.c.l.b16 %v178
    %v3651 = vunpack.c.h.b16 %v178
    %v3652 = vunpack.c.l.b16 %v179
    %v3653 = vunpack.c.l.b16 %v180
    %v3654 = vunpack.c.h.b16 %v180
    %v3655 = vunpack.c.l.b16 %v181
    %v3656 = vunpack.c.h.b16 %v181
    %v3657 = vunpack.c.l.b16 %v182
    %v3658 = vunpack.c.h.b16 %v182
    %v3659 = vunpack.c.l.b16 %v183
    %v3660 = vunpack.c.l.b16 %v184
    %v3661 = vunpack.c.h.b16 %v184
    %v3662 = vunpack.c.l.b16 %v185
    %v3663 = vunpack.c.h.b16 %v185
    %v3664 = vunpack.c.l.b16 %v186
    %v3665 = vunpack.c.h.b16 %v186
    %v3666 = vunpack.c.l.b16 %v187
    %v3667 = vunpack.c.l.b16 %v188
    %v3668 = vunpack.c.h.b16 %v188
    %v3669 = vunpack.c.l.b16 %v189
    %v3670 = vunpack.c.h.b16 %v189
    %v3671 = vunpack.c.l.b16 %v190
    %v3672 = vunpack.c.h.b16 %v190
    %v3673 = vunpack.c.l.b16 %v191
    %v3674 = vunpack.c.l.b16 %v192
    %v3675 = vunpack.c.h.b16 %v192
    %v3676 = vunpack.c.l.b16 %v193
    %v3677 = vunpack.c.h.b16 %v193
    %v3678 = vunpack.c.l.b16 %v194
    %v3679 = vunpack.c.h.b16 %v194
    %v3680 = vunpack.c.l.b16 %v195
    %v3681 = vunpack.c.l.b16 %v196
    %v3682 = vunpack.c.h.b16 %v196
    %v3683 = vunpack.c.l.b16 %v197
    %v3684 = vunpack.c.h.b16 %v197
    %v3685 = vunpack.c.l.b16 %v198
    %v3686 = vunpack.c.h.b16 %v198
    %v3687 = vunpack.c.l.b16 %v199
    %v3688 = vunpack.c.l.b16 %v200
    %v3689 = vunpack.c.h.b16 %v200
    %v3690 = vunpack.c.l.b16 %v201
    %v3691 = vunpack.c.h.b16 %v201
    %v3692 = vunpack.c.l.b16 %v202
    %v3693 = vunpack.c.h.b16 %v202
    %v3694 = vunpack.c.l.b16 %v203
    %v3695 = vunpack.c.l.b16 %v204
    %v3696 = vunpack.c.h.b16 %v204
    %v3697 = vunpack.c.l.b16 %v205
    %v3698 = vunpack.c.h.b16 %v205
    %v3699 = vunpack.c.l.b16 %v206
    %v3700 = vunpack.c.h.b16 %v206
    %v3701 = vunpack.c.l.b16 %v207
    %v3702 = vunpack.c.l.b16 %v208
    %v3703 = vunpack.c.h.b16 %v208
    %v3704 = vunpack.c.l.b16 %v209
    %v3705 = vunpack.c.h.b16 %v209
    %v3706 = vunpack.c.l.b16 %v210
    %v3707 = vunpack.c.h.b16 %v210
    %v3708 = vunpack.c.l.b16 %v211
    %v3709 = vunpack.c.l.b16 %v212
    %v3710 = vunpack.c.h.b16 %v212
    %v3711 = vunpack.c.l.b16 %v213
    %v3712 = vunpack.c.h.b16 %v213
    %v3713 = vunpack.c.l.b16 %v214
    %v3714 = vunpack.c.h.b16 %v214
    %v3715 = vunpack.c.l.b16 %v215
    %v3716 = vunpack.c.l.b16 %v216
    %v3717 = vunpack.c.h.b16 %v216
    %v3718 = vunpack.c.l.b16 %v217
    %v3719 = vunpack.c.h.b16 %v217
    %v3720 = vunpack.c.l.b16 %v218
    %v3721 = vunpack.c.h.b16 %v218
    %v3722 = vunpack.c.l.b16 %v219
    %v3723 = vunpack.c.l.b16 %v220
    %v3724 = vunpack.c.h.b16 %v220
    %v3725 = vunpack.c.l.b16 %v221
    %v3726 = vunpack.c.h.b16 %v221
    %v3727 = vunpack.c.l.b16 %v222
    %v3728 = vunpack.c.h.b16 %v222
    %v3729 = vunpack.c.l.b16 %v223
    %v3730 = vunpack.c.l.b16 %v224
    %v3731 = vunpack.c.h.b16 %v224
    %v3732 = vunpack.c.l.b16 %v225
    %v3733 = vunpack.c.h.b16 %v225
    %v3734 = vunpack.c.l.b16 %v226
    %v3735 = vunpack.c.h.b16 %v226
    %v3736 = vunpack.c.l.b16 %v227
    %v3737 = vunpack.c.l.b16 %v228
    %v3738 = vunpack.c.h.b16 %v228
    %v3739 = vunpack.c.l.b16 %v229
    %v3740 = vunpack.c.h.b16 %v229
    %v3741 = vunpack.c.l.b16 %v230
    %v3742 = vunpack.c.h.b16 %v230
    %v3743 = vunpack.c.l.b16 %v231
    %v3744 = vunpack.c.l.b16 %v232
    %v3745 = vunpack.c.h.b16 %v232
    %v3746 = vunpack.c.l.b16 %v233
    %v3747 = vunpack.c.h.b16 %v233
    %v3748 = vunpack.c.l.b16 %v234
    %v3749 = vunpack.c.h.b16 %v234
    %v3750 = vunpack.c.l.b16 %v235
    %v3751 = vunpack.c.l.b16 %v236
    %v3752 = vunpack.c.h.b16 %v236
    %v3753 = vunpack.c.l.b16 %v237
    %v3754 = vunpack.c.h.b16 %v237
    %v3755 = vunpack.c.l.b16 %v238
    %v3756 = vunpack.c.h.b16 %v238
    %v3757 = vunpack.c.l.b16 %v239
    %v3758 = vunpack.c.l.b16 %v240
    %v3759 = vunpack.c.h.b16 %v240
    %v3760 = vunpack.c.l.b16 %v241
    %v3761 = vunpack.c.h.b16 %v241
    %v3762 = vunpack.c.l.b16 %v242
    %v3763 = vunpack.c.h.b16 %v242
    %v3764 = vunpack.c.l.b16 %v243
    %v3765 = vunpack.c.l.b16 %v244
    %v3766 = vunpack.c.h.b16 %v244
    %v3767 = vunpack.c.l.b16 %v245
    %v3768 = vunpack.c.h.b16 %v245
    %v3769 = vunpack.c.l.b16 %v246
    %v3770 = vunpack.c.h.b16 %v246
    %v3771 = vunpack.c.l.b16 %v247
    %v3772 = vunpack.c.l.b16 %v248
    %v3773 = vunpack.c.h.b16 %v248
    %v3774 = vunpack.c.l.b16 %v249
    %v3775 = vunpack.c.h.b16 %v249
    %v3776 = vunpack.c.l.b16 %v250
    %v3777 = vunpack.c.h.b16 %v250
    %v3778 = vunpack.c.l.b16 %v251
    %v3779 = vunpack.c.l.b16 %v252
    %v3780 = vunpack.c.h.b16 %v252
    %v3781 = vunpack.c.l.b16 %v253
    %v3782 = vunpack.c.h.b16 %v253
    %v3783 = vunpack.c.l.b16 %v254
    %v3784 = vunpack.c.h.b16 %v254
    %v3785 = vunpack.c.l.b16 %v255
    %v3786 = vunpack.c.l.b16 %v256
    %v3787 = vunpack.c.h.b16 %v256
    %v3788 = vunpack.c.l.b16 %v257
    %v3789 = vunpack.c.h.b16 %v257
    %v3790 = vunpack.c.l.b16 %v258
    %v3791 = vunpack.c.h.b16 %v258
    %v3792 = vunpack.c.l.b16 %v259
    %v3793 = vunpack.c.l.b16 %v260
    %v3794 = vunpack.c.h.b16 %v260
    %v3795 = vunpack.c.l.b16 %v261
    %v3796 = vunpack.c.h.b16 %v261
    %v3797 = vunpack.c.l.b16 %v262
    %v3798 = vunpack.c.h.b16 %v262
    %v3799 = vunpack.c.l.b16 %v263
    %v3800 = vunpack.c.l.b16 %v264
    %v3801 = vunpack.c.h.b16 %v264
    %v3802 = vunpack.c.l.b16 %v265
    %v3803 = vunpack.c.h.b16 %v265
    %v3804 = vunpack.c.l.b16 %v266
    %v3805 = vunpack.c.h.b16 %v266
    %v3806 = vunpack.c.l.b16 %v267
    %v3807 = vunpack.c.l.b16 %v268
    %v3808 = vunpack.c.h.b16 %v268
    %v3809 = vunpack.c.l.b16 %v269
    %v3810 = vunpack.c.h.b16 %v269
    %v3811 = vunpack.c.l.b16 %v270
    %v3812 = vunpack.c.h.b16 %v270
    %v3813 = vunpack.c.l.b16 %v271
    %v3814 = vunpack.c.l.b16 %v272
    %v3815 = vunpack.c.h.b16 %v272
    %v3816 = vunpack.c.l.b16 %v273
    %v3817 = vunpack.c.h.b16 %v273
    %v3818 = vunpack.c.l.b16 %v274
    %v3819 = vunpack.c.h.b16 %v274
    %v3820 = vunpack.c.l.b16 %v275
    %v3821 = vunpack.c.l.b16 %v276
    %v3822 = vunpack.c.h.b16 %v276
    %v3823 = vunpack.c.l.b16 %v277
    %v3824 = vunpack.c.h.b16 %v277
    %v3825 = vunpack.c.l.b16 %v278
    %v3826 = vunpack.c.h.b16 %v278
    %v3827 = vunpack.c.l.b16 %v279
    %v3828 = vunpack.c.l.b16 %v280
    %v3829 = vunpack.c.h.b16 %v280
    %v3830 = vunpack.c.l.b16 %v281
    %v3831 = vunpack.c.h.b16 %v281
    %v3832 = vunpack.c.l.b16 %v282
    %v3833 = vunpack.c.h.b16 %v282
    %v3834 = vunpack.c.l.b16 %v283
    %v3835 = vunpack.c.l.b16 %v284
    %v3836 = vunpack.c.h.b16 %v284
    %v3837 = vunpack.c.l.b16 %v285
    %v3838 = vunpack.c.h.b16 %v285
    %v3839 = vunpack.c.l.b16 %v286
    %v3840 = vunpack.c.h.b16 %v286
    %v3841 = vunpack.c.l.b16 %v287
    %v3842 = vunpack.c.l.b16 %v288
    %v3843 = vunpack.c.h.b16 %v288
    %v3844 = vunpack.c.l.b16 %v289
    %v3845 = vunpack.c.h.b16 %v289
    %v3846 = vunpack.c.l.b16 %v290
    %v3847 = vunpack.c.h.b16 %v290
    %v3848 = vunpack.c.l.b16 %v291
    %v3849 = vunpack.c.l.b16 %v292
    %v3850 = vunpack.c.h.b16 %v292
    %v3851 = vunpack.c.l.b16 %v293
    %v3852 = vunpack.c.h.b16 %v293
    %v3853 = vunpack.c.l.b16 %v294
    %v3854 = vunpack.c.h.b16 %v294
    %v3855 = vunpack.c.l.b16 %v295
    %v3856 = vunpack.c.l.b16 %v296
    %v3857 = vunpack.c.h.b16 %v296
    %v3858 = vunpack.c.l.b16 %v297
    %v3859 = vunpack.c.h.b16 %v297
    %v3860 = vunpack.c.l.b16 %v298
    %v3861 = vunpack.c.h.b16 %v298
    %v3862 = vunpack.c.l.b16 %v299
    %v3863 = vunpack.c.l.b16 %v300
    %v3864 = vunpack.c.h.b16 %v300
    %v3865 = vunpack.c.l.b16 %v301
    %v3866 = vunpack.c.h.b16 %v301
    %v3867 = vunpack.c.l.b16 %v302
    %v3868 = vunpack.c.h.b16 %v302
    %v3869 = vunpack.c.l.b16 %v303
    %v3870 = vunpack.c.l.b16 %v304
    %v3871 = vunpack.c.h.b16 %v304
    %v3872 = vunpack.c.l.b16 %v305
    %v3873 = vunpack.c.h.b16 %v305
    %v3874 = vunpack.c.l.b16 %v306
    %v3875 = vunpack.c.h.b16 %v306
    %v3876 = vunpack.c.l.b16 %v307
    %v3877 = vunpack.c.l.b16 %v308
    %v3878 = vunpack.c.h.b16 %v308
    %v3879 = vunpack.c.l.b16 %v309
    %v3880 = vunpack.c.h.b16 %v309
    %v3881 = vunpack.c.l.b16 %v310
    %v3882 = vunpack.c.h.b16 %v310
    %v3883 = vunpack.c.l.b16 %v311
    %v3884 = vunpack.c.l.b16 %v312
    %v3885 = vunpack.c.h.b16 %v312
    %v3886 = vunpack.c.l.b16 %v313
    %v3887 = vunpack.c.h.b16 %v313
    %v3888 = vunpack.c.l.b16 %v314
    %v3889 = vunpack.c.h.b16 %v314
    %v3890 = vunpack.c.l.b16 %v315
    %v3891 = vunpack.c.l.b16 %v316
    %v3892 = vunpack.c.h.b16 %v316
    %v3893 = vunpack.c.l.b16 %v317
    %v3894 = vunpack.c.h.b16 %v317
    %v3895 = vunpack.c.l.b16 %v318
    %v3896 = vunpack.c.h.b16 %v318
    %v3897 = vunpack.c.l.b16 %v319
    %v3898 = vunpack.c.l.b16 %v320
    %v3899 = vunpack.c.h.b16 %v320
    %v3900 = vunpack.c.l.b16 %v321
    %v3901 = vunpack.c.h.b16 %v321
    %v3902 = vunpack.c.l.b16 %v322
    %v3903 = vunpack.c.h.b16 %v322
    %v3904 = vunpack.c.l.b16 %v323
    %v3905 = vunpack.c.l.b16 %v324
    %v3906 = vunpack.c.h.b16 %v324
    %v3907 = vunpack.c.l.b16 %v325
    %v3908 = vunpack.c.h.b16 %v325
    %v3909 = vunpack.c.l.b16 %v326
    %v3910 = vunpack.c.h.b16 %v326
    %v3911 = vunpack.c.l.b16 %v327
    %v3912 = vunpack.c.l.b16 %v328
    %v3913 = vunpack.c.h.b16 %v328
    %v3914 = vunpack.c.l.b16 %v329
    %v3915 = vunpack.c.h.b16 %v329
    %v3916 = vunpack.c.l.b16 %v330
    %v3917 = vunpack.c.h.b16 %v330
    %v3918 = vunpack.c.l.b16 %v331
    %v3919 = vunpack.c.l.b16 %v332
    %v3920 = vunpack.c.h.b16 %v332
    %v3921 = vunpack.c.l.b16 %v333
    %v3922 = vunpack.c.h.b16 %v333
    %v3923 = vunpack.c.l.b16 %v334
    %v3924 = vunpack.c.h.b16 %v334
    %v3925 = vunpack.c.l.b16 %v335
    %v3926 = vunpack.c.l.b16 %v336
    %v3927 = vunpack.c.h.b16 %v336
    %v3928 = vunpack.c.l.b16 %v337
    %v3929 = vunpack.c.h.b16 %v337
    %v3930 = vunpack.c.l.b16 %v338
    %v3931 = vunpack.c.h.b16 %v338
    %v3932 = vunpack.c.l.b16 %v339
    %v3933 = vunpack.c.l.b16 %v340
    %v3934 = vunpack.c.h.b16 %v340
    %v3935 = vunpack.c.l.b16 %v341
    %v3936 = vunpack.c.h.b16 %v341
    %v3937 = vunpack.c.l.b16 %v342
    %v3938 = vunpack.c.h.b16 %v342
    %v3939 = vunpack.c.l.b16 %v343
    %v3940 = vunpack.c.l.b16 %v344
    %v3941 = vunpack.c.h.b16 %v344
    %v3942 = vunpack.c.l.b16 %v345
    %v3943 = vunpack.c.h.b16 %v345
    %v3944 = vunpack.c.l.b16 %v346
    %v3945 = vunpack.c.h.b16 %v346
    %v3946 = vunpack.c.l.b16 %v347
    %v3947 = vunpack.c.l.b16 %v348
    %v3948 = vunpack.c.h.b16 %v348
    %v3949 = vunpack.c.l.b16 %v349
    %v3950 = vunpack.c.h.b16 %v349
    %v3951 = vunpack.c.l.b16 %v350
    %v3952 = vunpack.c.h.b16 %v350
    %v3953 = vunpack.c.l.b16 %v351
    %v3954 = vunpack.c.l.b16 %v352
    %v3955 = vunpack.c.h.b16 %v352
    %v3956 = vunpack.c.l.b16 %v353
    %v3957 = vunpack.c.h.b16 %v353
    %v3958 = vunpack.c.l.b16 %v354
    %v3959 = vunpack.c.h.b16 %v354
    %v3960 = vunpack.c.l.b16 %v355
    %v3961 = vunpack.c.l.b16 %v356
    %v3962 = vunpack.c.h.b16 %v356
    %v3963 = vunpack.c.l.b16 %v357
    %v3964 = vunpack.c.h.b16 %v357
    %v3965 = vunpack.c.l.b16 %v358
    %v3966 = vunpack.c.h.b16 %v358
    %v3967 = vunpack.c.l.b16 %v359
    %v3968 = vunpack.c.l.b16 %v360
    %v3969 = vunpack.c.h.b16 %v360
    %v3970 = vunpack.c.l.b16 %v361
    %v3971 = vunpack.c.h.b16 %v361
    %v3972 = vunpack.c.l.b16 %v362
    %v3973 = vunpack.c.h.b16 %v362
    %v3974 = vunpack.c.l.b16 %v363
    %v3975 = vunpack.c.l.b16 %v364
    %v3976 = vunpack.c.h.b16 %v364
    %v3977 = vunpack.c.l.b16 %v365
    %v3978 = vunpack.c.h.b16 %v365
    %v3979 = vunpack.c.l.b16 %v366
    %v3980 = vunpack.c.h.b16 %v366
    %v3981 = vunpack.c.l.b16 %v367
    %v3982 = vunpack.c.l.b16 %v368
    %v3983 = vunpack.c.h.b16 %v368
    %v3984 = vunpack.c.l.b16 %v369
    %v3985 = vunpack.c.h.b16 %v369
    %v3986 = vunpack.c.l.b16 %v370
    %v3987 = vunpack.c.h.b16 %v370
    %v3988 = vunpack.c.l.b16 %v371
    %v3989 = vunpack.c.l.b16 %v372
    %v3990 = vunpack.c.h.b16 %v372
    %v3991 = vunpack.c.l.b16 %v373
    %v3992 = vunpack.c.h.b16 %v373
    %v3993 = vunpack.c.l.b16 %v374
    %v3994 = vunpack.c.h.b16 %v374
    %v3995 = vunpack.c.l.b16 %v375
    %v3996 = vunpack.c.l.b16 %v376
    %v3997 = vunpack.c.h.b16 %v376
    %v3998 = vunpack.c.l.b16 %v377
    %v3999 = vunpack.c.h.b16 %v377
    %v4000 = vunpack.c.l.b16 %v378
    %v4001 = vunpack.c.h.b16 %v378
    %v4002 = vunpack.c.l.b16 %v379
    %v4003 = vunpack.c.l.b16 %v380
    %v4004 = vunpack.c.h.b16 %v380
    %v4005 = vunpack.c.l.b16 %v381
    %v4006 = vunpack.c.h.b16 %v381
    %v4007 = vunpack.c.l.b16 %v382
    %v4008 = vunpack.c.h.b16 %v382
    %v4009 = vunpack.c.l.b16 %v383
    %v4010 = vunpack.c.l.b16 %v384
    %v4011 = vunpack.c.h.b16 %v384
    %v4012 = vunpack.c.l.b16 %v385
    %v4013 = vunpack.c.h.b16 %v385
    %v4014 = vunpack.c.l.b16 %v386
    %v4015 = vunpack.c.h.b16 %v386
    %v4016 = vunpack.c.l.b16 %v387
    %v4017 = vunpack.c.l.b16 %v388
    %v4018 = vunpack.c.h.b16 %v388
    %v4019 = vunpack.c.l.b16 %v389
    %v4020 = vunpack.c.h.b16 %v389
    %v4021 = vunpack.c.l.b16 %v390
    %v4022 = vunpack.c.h.b16 %v390
    %v4023 = vunpack.c.l.b16 %v391
    %v4024 = vunpack.c.l.b16 %v392
    %v4025 = vunpack.c.h.b16 %v392
    %v4026 = vunpack.c.l.b16 %v393
    %v4027 = vunpack.c.h.b16 %v393
    %v4028 = vunpack.c.l.b16 %v394
    %v4029 = vunpack.c.h.b16 %v394
    %v4030 = vunpack.c.l.b16 %v395
    %v4031 = vunpack.c.l.b16 %v396
    %v4032 = vunpack.c.h.b16 %v396
    %v4033 = vunpack.c.l.b16 %v397
    %v4034 = vunpack.c.h.b16 %v397
    %v4035 = vunpack.c.l.b16 %v398
    %v4036 = vunpack.c.h.b16 %v398
    %v4037 = vunpack.c.l.b16 %v399
    %v4038 = vunpack.c.l.b16 %v400
    %v4039 = vunpack.c.h.b16 %v400
    %v4040 = vunpack.c.l.b16 %v401
    %v4041 = vunpack.c.h.b16 %v401
    %v4042 = vunpack.c.l.b16 %v402
    %v4043 = vunpack.c.h.b16 %v402
    %v4044 = vunpack.c.l.b16 %v403
    %v4045 = vunpack.c.l.b16 %v404
    %v4046 = vunpack.c.h.b16 %v404
    %v4047 = vunpack.c.l.b16 %v405
    %v4048 = vunpack.c.h.b16 %v405
    %v4049 = vunpack.c.l.b16 %v406
    %v4050 = vunpack.c.h.b16 %v406
    %v4051 = vunpack.c.l.b16 %v407
    %v4052 = vunpack.c.l.b16 %v408
    %v4053 = vunpack.c.h.b16 %v408
    %v4054 = vunpack.c.l.b16 %v409
    %v4055 = vunpack.c.h.b16 %v409
    %v4056 = vunpack.c.l.b16 %v410
    %v4057 = vunpack.c.h.b16 %v410
    %v4058 = vunpack.c.l.b16 %v411
    %v4059 = vunpack.c.l.b16 %v412
    %v4060 = vunpack.c.h.b16 %v412
    %v4061 = vunpack.c.l.b16 %v413
    %v4062 = vunpack.c.h.b16 %v413
    %v4063 = vunpack.c.l.b16 %v414
    %v4064 = vunpack.c.h.b16 %v414
    %v4065 = vunpack.c.l.b16 %v415
    %v4066 = vunpack.c.l.b16 %v416
    %v4067 = vunpack.c.h.b16 %v416
    %v4068 = vunpack.c.l.b16 %v417
    %v4069 = vunpack.c.h.b16 %v417
    %v4070 = vunpack.c.l.b16 %v418
    %v4071 = vunpack.c.h.b16 %v418
    %v4072 = vunpack.c.l.b16 %v419
    %v4073 = vunpack.c.l.b16 %v420
    %v4074 = vunpack.c.h.b16 %v420
    %v4075 = vunpack.c.l.b16 %v421
    %v4076 = vunpack.c.h.b16 %v421
    %v4077 = vunpack.c.l.b16 %v422
    %v4078 = vunpack.c.h.b16 %v422
    %v4079 = vunpack.c.l.b16 %v423
    %v4080 = vunpack.c.l.b16 %v424
    %v4081 = vunpack.c.h.b16 %v424
    %v4082 = vunpack.c.l.b16 %v425
    %v4083 = vunpack.c.h.b16 %v425
    %v4084 = vunpack.c.l.b16 %v426
    %v4085 = vunpack.c.h.b16 %v426
    %v4086 = vunpack.c.l.b16 %v427
    %v4087 = vunpack.c.l.b16 %v428
    %v4088 = vunpack.c.h.b16 %v428
    %v4089 = vunpack.c.l.b16 %v429
    %v4090 = vunpack.c.h.b16 %v429
    %v4091 = vunpack.c.l.b16 %v430
    %v4092 = vunpack.c.h.b16 %v430
    %v4093 = vunpack.c.l.b16 %v431
    %v4094 = vunpack.c.l.b16 %v432
    %v4095 = vunpack.c.h.b16 %v432
    %v4096 = vunpack.c.l.b16 %v433
    %v4097 = vunpack.c.h.b16 %v433
    %v4098 = vunpack.c.l.b16 %v434
    %v4099 = vunpack.c.h.b16 %v434
    %v4100 = vunpack.c.l.b16 %v435
    %v4101 = vunpack.c.l.b16 %v436
    %v4102 = vunpack.c.h.b16 %v436
    %v4103 = vunpack.c.l.b16 %v437
    %v4104 = vunpack.c.h.b16 %v437
    %v4105 = vunpack.c.l.b16 %v438
    %v4106 = vunpack.c.h.b16 %v438
    %v4107 = vunpack.c.l.b16 %v439
    %v4108 = vunpack.c.l.b16 %v440
    %v4109 = vunpack.c.h.b16 %v440
    %v4110 = vunpack.c.l.b16 %v441
    %v4111 = vunpack.c.h.b16 %v441
    %v4112 = vunpack.c.l.b16 %v442
    %v4113 = vunpack.c.h.b16 %v442
    %v4114 = vunpack.c.l.b16 %v443
    %v4115 = vunpack.c.l.b16 %v444
    %v4116 = vunpack.c.h.b16 %v444
    %v4117 = vunpack.c.l.b16 %v445
    %v4118 = vunpack.c.h.b16 %v445
    %v4119 = vunpack.c.l.b16 %v446
    %v4120 = vunpack.c.h.b16 %v446
    %v4121 = vunpack.c.l.b16 %v447
    %v4122 = vunpack.c.l.b16 %v448
    %v4123 = vunpack.c.h.b16 %v448
    %v4124 = vunpack.c.l.b16 %v449
    %v4125 = vunpack.c.h.b16 %v449
    %v4126 = vunpack.c.l.b16 %v450
    %v4127 = vunpack.c.h.b16 %v450
    %v4128 = vunpack.c.l.b16 %v451
    %v4129 = vunpack.c.l.b16 %v452
    %v4130 = vunpack.c.h.b16 %v452
    %v4131 = vunpack.c.l.b16 %v453
    %v4132 = vunpack.c.h.b16 %v453
    %v4133 = vunpack.c.l.b16 %v454
    %v4134 = vunpack.c.h.b16 %v454
    %v4135 = vunpack.c.l.b16 %v455
    %v4136 = vunpack.c.l.b16 %v456
    %v4137 = vunpack.c.h.b16 %v456
    %v4138 = vunpack.c.l.b16 %v457
    %v4139 = vunpack.c.h.b16 %v457
    %v4140 = vunpack.c.l.b16 %v458
    %v4141 = vunpack.c.h.b16 %v458
    %v4142 = vunpack.c.l.b16 %v459
    %v4143 = vunpack.c.l.b16 %v460
    %v4144 = vunpack.c.h.b16 %v460
    %v4145 = vunpack.c.l.b16 %v461
    %v4146 = vunpack.c.h.b16 %v461
    %v4147 = vunpack.c.l.b16 %v462
    %v4148 = vunpack.c.h.b16 %v462
    %v4149 = vunpack.c.l.b16 %v463
    %v4150 = vunpack.c.l.b16 %v464
    %v4151 = vunpack.c.h.b16 %v464
    %v4152 = vunpack.c.l.b16 %v465
    %v4153 = vunpack.c.h.b16 %v465
    %v4154 = vunpack.c.l.b16 %v466
    %v4155 = vunpack.c.h.b16 %v466
    %v4156 = vunpack.c.l.b16 %v467
    %v4157 = vunpack.c.l.b16 %v468
    %v4158 = vunpack.c.h.b16 %v468
    %v4159 = vunpack.c.l.b16 %v469
    %v4160 = vunpack.c.h.b16 %v469
    %v4161 = vunpack.c.l.b16 %v470
    %v4162 = vunpack.c.h.b16 %v470
    %v4163 = vunpack.c.l.b16 %v471
    %v4164 = vunpack.c.l.b16 %v472
    %v4165 = vunpack.c.h.b16 %v472
    %v4166 = vunpack.c.l.b16 %v473
    %v4167 = vunpack.c.h.b16 %v473
    %v4168 = vunpack.c.l.b16 %v474
    %v4169 = vunpack.c.h.b16 %v474
    %v4170 = vunpack.c.l.b16 %v475
    %v4171 = vunpack.c.l.b16 %v476
    %v4172 = vunpack.c.h.b16 %v476
    %v4173 = vunpack.c.l.b16 %v477
    %v4174 = vunpack.c.h.b16 %v477
    %v4175 = vunpack.c.l.b16 %v478
    %v4176 = vunpack.c.h.b16 %v478
    %v4177 = vunpack.c.l.b16 %v479
    %v4178 = vunpack.c.l.b16 %v480
    %v4179 = vunpack.c.h.b16 %v480
    %v4180 = vunpack.c.l.b16 %v481
    %v4181 = vunpack.c.h.b16 %v481
    %v4182 = vunpack.c.l.b16 %v482
    %v4183 = vunpack.c.h.b16 %v482
    %v4184 = vunpack.c.l.b16 %v483
    %v4185 = vunpack.c.l.b16 %v484
    %v4186 = vunpack.c.h.b16 %v484
    %v4187 = vunpack.c.l.b16 %v485
    %v4188 = vunpack.c.h.b16 %v485
    %v4189 = vunpack.c.l.b16 %v486
    %v4190 = vunpack.c.h.b16 %v486
    %v4191 = vunpack.c.l.b16 %v487
    %v4192 = vunpack.c.l.b16 %v488
    %v4193 = vunpack.c.h.b16 %v488
    %v4194 = vunpack.c.l.b16 %v489
    %v4195 = vunpack.c.h.b16 %v489
    %v4196 = vunpack.c.l.b16 %v490
    %v4197 = vunpack.c.h.b16 %v490
    %v4198 = vunpack.c.l.b16 %v491
    %v4199 = vunpack.c.l.b16 %v492
    %v4200 = vunpack.c.h.b16 %v492
    %v4201 = vunpack.c.l.b16 %v493
    %v4202 = vunpack.c.h.b16 %v493
    %v4203 = vunpack.c.l.b16 %v494
    %v4204 = vunpack.c.h.b16 %v494
    %v4205 = vunpack.c.l.b16 %v495
    %v4206 = vunpack.c.l.b16 %v496
    %v4207 = vunpack.c.h.b16 %v496
    %v4208 = vunpack.c.l.b16 %v497
    %v4209 = vunpack.c.h.b16 %v497
    %v4210 = vunpack.c.l.b16 %v498
    %v4211 = vunpack.c.h.b16 %v498
    %v4212 = vunpack.c.l.b16 %v499
    %v4213 = vunpack.c.l.b16 %v500
    %v4214 = vunpack.c.h.b16 %v500
    %v4215 = vunpack.c.l.b16 %v501
    %v4216 = vunpack.c.h.b16 %v501
    %v4217 = vunpack.c.l.b16 %v502
    %v4218 = vunpack.c.h.b16 %v502
    %v4219 = vunpack.c.l.b16 %v503
    %v4220 = vunpack.c.l.b16 %v504
    %v4221 = vunpack.c.h.b16 %v504
    %v4222 = vunpack.c.l.b16 %v505
    %v4223 = vunpack.c.h.b16 %v505
    %v4224 = vunpack.c.l.b16 %v506
    %v4225 = vunpack.c.h.b16 %v506
    %v4226 = vunpack.c.l.b16 %v507
    %v4227 = vunpack.c.l.b16 %v508
    %v4228 = vunpack.c.h.b16 %v508
    %v4229 = vunpack.c.l.b16 %v509
    %v4230 = vunpack.c.h.b16 %v509
    %v4231 = vunpack.c.l.b16 %v510
    %v4232 = vunpack.c.h.b16 %v510
    %v4233 = vunpack.c.l.b16 %v511
    %v4234 = vunpack.c.l.b16 %v512
    %v4235 = vunpack.c.h.b16 %v512
    %v4236 = vunpack.c.l.b16 %v513
    %v4237 = vunpack.c.h.b16 %v513
    %v4238 = vunpack.c.l.b16 %v514
    %v4239 = vunpack.c.h.b16 %v514
    %v4240 = vunpack.c.l.b16 %v515
    %v4241 = vunpack.c.l.b16 %v516
    %v4242 = vunpack.c.h.b16 %v516
    %v4243 = vunpack.c.l.b16 %v517
    %v4244 = vunpack.c.h.b16 %v517
    %v4245 = vunpack.c.l.b16 %v518
    %v4246 = vunpack.c.h.b16 %v518
    %v4247 = vunpack.c.l.b16 %v519
    %v4248 = vunpack.c.l.b16 %v520
    %v4249 = vunpack.c.h.b16 %v520
    %v4250 = vunpack.c.l.b16 %v521
    %v4251 = vunpack.c.h.b16 %v521
    %v4252 = vunpack.c.l.b16 %v522
    %v4253 = vunpack.c.h.b16 %v522
    %v4254 = vunpack.c.l.b16 %v523
    %v4255 = vunpack.c.l.b16 %v524
    %v4256 = vunpack.c.h.b16 %v524
    %v4257 = vunpack.c.l.b16 %v525
    %v4258 = vunpack.c.h.b16 %v525
    %v4259 = vunpack.c.l.b16 %v526
    %v4260 = vunpack.c.h.b16 %v526
    %v4261 = vunpack.c.l.b16 %v527
    %v4262 = vunpack.c.l.b16 %v528
    %v4263 = vunpack.c.h.b16 %v528
    %v4264 = vunpack.c.l.b16 %v529
    %v4265 = vunpack.c.h.b16 %v529
    %v4266 = vunpack.c.l.b16 %v530
    %v4267 = vunpack.c.h.b16 %v530
    %v4268 = vunpack.c.l.b16 %v531
    %v4269 = vunpack.c.l.b16 %v532
    %v4270 = vunpack.c.h.b16 %v532
    %v4271 = vunpack.c.l.b16 %v533
    %v4272 = vunpack.c.h.b16 %v533
    %v4273 = vunpack.c.l.b16 %v534
    %v4274 = vunpack.c.h.b16 %v534
    %v4275 = vunpack.c.l.b16 %v535
    %v4276 = vunpack.c.l.b16 %v536
    %v4277 = vunpack.c.h.b16 %v536
    %v4278 = vunpack.c.l.b16 %v537
    %v4279 = vunpack.c.h.b16 %v537
    %v4280 = vunpack.c.l.b16 %v538
    %v4281 = vunpack.c.h.b16 %v538
    %v4282 = vunpack.c.l.b16 %v539
    %v4283 = vunpack.c.l.b16 %v540
    %v4284 = vunpack.c.h.b16 %v540
    %v4285 = vunpack.c.l.b16 %v541
    %v4286 = vunpack.c.h.b16 %v541
    %v4287 = vunpack.c.l.b16 %v542
    %v4288 = vunpack.c.h.b16 %v542
    %v4289 = vunpack.c.l.b16 %v543
    %v4290 = vunpack.c.l.b16 %v544
    %v4291 = vunpack.c.h.b16 %v544
    %v4292 = vunpack.c.l.b16 %v545
    %v4293 = vunpack.c.h.b16 %v545
    %v4294 = vunpack.c.l.b16 %v546
    %v4295 = vunpack.c.h.b16 %v546
    %v4296 = vunpack.c.l.b16 %v547
    %v4297 = vunpack.c.l.b16 %v548
    %v4298 = vunpack.c.h.b16 %v548
    %v4299 = vunpack.c.l.b16 %v549
    %v4300 = vunpack.c.h.b16 %v549
    %v4301 = vunpack.c.l.b16 %v550
    %v4302 = vunpack.c.h.b16 %v550
    %v4303 = vunpack.c.l.b16 %v551
    %v4304 = vunpack.c.l.b16 %v552
    %v4305 = vunpack.c.h.b16 %v552
    %v4306 = vunpack.c.l.b16 %v553
    %v4307 = vunpack.c.h.b16 %v553
    %v4308 = vunpack.c.l.b16 %v554
    %v4309 = vunpack.c.h.b16 %v554
    %v4310 = vunpack.c.l.b16 %v555
    %v4311 = vunpack.c.l.b16 %v556
    %v4312 = vunpack.c.h.b16 %v556
    %v4313 = vunpack.c.l.b16 %v557
    %v4314 = vunpack.c.h.b16 %v557
    %v4315 = vunpack.c.l.b16 %v558
    %v4316 = vunpack.c.h.b16 %v558
    %v4317 = vunpack.c.l.b16 %v559
    %v4318 = vunpack.c.l.b16 %v560
    %v4319 = vunpack.c.h.b16 %v560
    %v4320 = vunpack.c.l.b16 %v561
    %v4321 = vunpack.c.h.b16 %v561
    %v4322 = vunpack.c.l.b16 %v562
    %v4323 = vunpack.c.h.b16 %v562
    %v4324 = vunpack.c.l.b16 %v563
    %v4325 = vunpack.c.l.b16 %v564
    %v4326 = vunpack.c.h.b16 %v564
    %v4327 = vunpack.c.l.b16 %v565
    %v4328 = vunpack.c.h.b16 %v565
    %v4329 = vunpack.c.l.b16 %v566
    %v4330 = vunpack.c.h.b16 %v566
    %v4331 = vunpack.c.l.b16 %v567
    %v4332 = vunpack.c.l.b16 %v568
    %v4333 = vunpack.c.h.b16 %v568
    %v4334 = vunpack.c.l.b16 %v569
    %v4335 = vunpack.c.h.b16 %v569
    %v4336 = vunpack.c.l.b16 %v570
    %v4337 = vunpack.c.h.b16 %v570
    %v4338 = vunpack.c.l.b16 %v571
    %v4339 = vunpack.c.l.b16 %v572
    %v4340 = vunpack.c.h.b16 %v572
    %v4341 = vunpack.c.l.b16 %v573
    %v4342 = vunpack.c.h.b16 %v573
    %v4343 = vunpack.c.l.b16 %v574
    %v4344 = vunpack.c.h.b16 %v574
    %v4345 = vunpack.c.l.b16 %v575
    %v4346 = vunpack.c.l.b16 %v576
    %v4347 = vunpack.c.h.b16 %v576
    %v4348 = vunpack.c.l.b16 %v577
    %v4349 = vunpack.c.h.b16 %v577
    %v4350 = vunpack.c.l.b16 %v578
    %v4351 = vunpack.c.h.b16 %v578
    %v4352 = vunpack.c.l.b16 %v579
    %v4353 = vunpack.c.l.b16 %v580
    %v4354 = vunpack.c.h.b16 %v580
    %v4355 = vunpack.c.l.b16 %v581
    %v4356 = vunpack.c.h.b16 %v581
    %v4357 = vunpack.c.l.b16 %v582
    %v4358 = vunpack.c.h.b16 %v582
    %v4359 = vunpack.c.l.b16 %v583
    %v4360 = vunpack.c.l.b16 %v584
    %v4361 = vunpack.c.h.b16 %v584
    %v4362 = vunpack.c.l.b16 %v585
    %v4363 = vunpack.c.h.b16 %v585
    %v4364 = vunpack.c.l.b16 %v586
    %v4365 = vunpack.c.h.b16 %v586
    %v4366 = vunpack.c.l.b16 %v587
    %v4367 = vunpack.c.l.b16 %v588
    %v4368 = vunpack.c.h.b16 %v588
    %v4369 = vunpack.c.l.b16 %v589
    %v4370 = vunpack.c.h.b16 %v589
    %v4371 = vunpack.c.l.b16 %v590
    %v4372 = vunpack.c.h.b16 %v590
    %v4373 = vunpack.c.l.b16 %v591
    %v4374 = vunpack.c.l.b16 %v592
    %v4375 = vunpack.c.h.b16 %v592
    %v4376 = vunpack.c.l.b16 %v593
    %v4377 = vunpack.c.h.b16 %v593
    %v4378 = vunpack.c.l.b16 %v594
    %v4379 = vunpack.c.h.b16 %v594
    %v4380 = vunpack.c.l.b16 %v595
    %v4381 = vunpack.c.l.b16 %v596
    %v4382 = vunpack.c.h.b16 %v596
    %v4383 = vunpack.c.l.b16 %v597
    %v4384 = vunpack.c.h.b16 %v597
    %v4385 = vunpack.c.l.b16 %v598
    %v4386 = vunpack.c.h.b16 %v598
    %v4387 = vunpack.c.l.b16 %v599
    %v4388 = vunpack.c.l.b16 %v600
    %v4389 = vunpack.c.h.b16 %v600
    %v4390 = vunpack.c.l.b16 %v601
    %v4391 = vunpack.c.h.b16 %v601
    %v4392 = vunpack.c.l.b16 %v602
    %v4393 = vunpack.c.h.b16 %v602
    %v4394 = vunpack.c.l.b16 %v603
    %v4395 = vunpack.c.l.b16 %v604
    %v4396 = vunpack.c.h.b16 %v604
    %v4397 = vunpack.c.l.b16 %v605
    %v4398 = vunpack.c.h.b16 %v605
    %v4399 = vunpack.c.l.b16 %v606
    %v4400 = vunpack.c.h.b16 %v606
    %v4401 = vunpack.c.l.b16 %v607
    %v4402 = vunpack.c.l.b16 %v608
    %v4403 = vunpack.c.h.b16 %v608
    %v4404 = vunpack.c.l.b16 %v609
    %v4405 = vunpack.c.h.b16 %v609
    %v4406 = vunpack.c.l.b16 %v610
    %v4407 = vunpack.c.h.b16 %v610
    %v4408 = vunpack.c.l.b16 %v611
    %v4409 = vunpack.c.l.b16 %v612
    %v4410 = vunpack.c.h.b16 %v612
    %v4411 = vunpack.c.l.b16 %v613
    %v4412 = vunpack.c.h.b16 %v613
    %v4413 = vunpack.c.l.b16 %v614
    %v4414 = vunpack.c.h.b16 %v614
    %v4415 = vunpack.c.l.b16 %v615
    %v4416 = vunpack.c.l.b16 %v616
    %v4417 = vunpack.c.h.b16 %v616
    %v4418 = vunpack.c.l.b16 %v617
    %v4419 = vunpack.c.h.b16 %v617
    %v4420 = vunpack.c.l.b16 %v618
    %v4421 = vunpack.c.h.b16 %v618
    %v4422 = vunpack.c.l.b16 %v619
    %v4423 = vunpack.c.l.b16 %v620
    %v4424 = vunpack.c.h.b16 %v620
    %v4425 = vunpack.c.l.b16 %v621
    %v4426 = vunpack.c.h.b16 %v621
    %v4427 = vunpack.c.l.b16 %v622
    %v4428 = vunpack.c.h.b16 %v622
    %v4429 = vunpack.c.l.b16 %v623
    %v4430 = vunpack.c.l.b16 %v624
    %v4431 = vunpack.c.h.b16 %v624
    %v4432 = vunpack.c.l.b16 %v625
    %v4433 = vunpack.c.h.b16 %v625
    %v4434 = vunpack.c.l.b16 %v626
    %v4435 = vunpack.c.h.b16 %v626
    %v4436 = vunpack.c.l.b16 %v627
    %v4437 = vunpack.c.l.b16 %v628
    %v4438 = vunpack.c.h.b16 %v628
    %v4439 = vunpack.c.l.b16 %v629
    %v4440 = vunpack.c.h.b16 %v629
    %v4441 = vunpack.c.l.b16 %v630
    %v4442 = vunpack.c.h.b16 %v630
    %v4443 = vunpack.c.l.b16 %v631
    %v4444 = vunpack.c.l.b16 %v632
    %v4445 = vunpack.c.h.b16 %v632
    %v4446 = vunpack.c.l.b16 %v633
    %v4447 = vunpack.c.h.b16 %v633
    %v4448 = vunpack.c.l.b16 %v634
    %v4449 = vunpack.c.h.b16 %v634
    %v4450 = vunpack.c.l.b16 %v635
    %v4451 = vunpack.c.l.b16 %v636
    %v4452 = vunpack.c.h.b16 %v636
    %v4453 = vunpack.c.l.b16 %v637
    %v4454 = vunpack.c.h.b16 %v637
    %v4455 = vunpack.c.l.b16 %v638
    %v4456 = vunpack.c.h.b16 %v638
    %v4457 = vunpack.c.l.b16 %v639
    %v4458 = vunpack.c.l.b16 %v640
    %v4459 = vunpack.c.h.b16 %v640
    %v4460 = vunpack.c.l.b16 %v641
    %v4461 = vunpack.c.h.b16 %v641
    %v4462 = vunpack.c.l.b16 %v642
    %v4463 = vunpack.c.h.b16 %v642
    %v4464 = vunpack.c.l.b16 %v643
    %v4465 = vunpack.c.l.b16 %v644
    %v4466 = vunpack.c.h.b16 %v644
    %v4467 = vunpack.c.l.b16 %v645
    %v4468 = vunpack.c.h.b16 %v645
    %v4469 = vunpack.c.l.b16 %v646
    %v4470 = vunpack.c.h.b16 %v646
    %v4471 = vunpack.c.l.b16 %v647
    %v4472 = vunpack.c.l.b16 %v648
    %v4473 = vunpack.c.h.b16 %v648
    %v4474 = vunpack.c.l.b16 %v649
    %v4475 = vunpack.c.h.b16 %v649
    %v4476 = vunpack.c.l.b16 %v650
    %v4477 = vunpack.c.h.b16 %v650
    %v4478 = vunpack.c.l.b16 %v651
    %v4479 = vunpack.c.l.b16 %v652
    %v4480 = vunpack.c.h.b16 %v652
    %v4481 = vunpack.c.l.b16 %v653
    %v4482 = vunpack.c.h.b16 %v653
    %v4483 = vunpack.c.l.b16 %v654
    %v4484 = vunpack.c.h.b16 %v654
    %v4485 = vunpack.c.l.b16 %v655
    %v4486 = vunpack.c.l.b16 %v656
    %v4487 = vunpack.c.h.b16 %v656
    %v4488 = vunpack.c.l.b16 %v657
    %v4489 = vunpack.c.h.b16 %v657
    %v4490 = vunpack.c.l.b16 %v658
    %v4491 = vunpack.c.h.b16 %v658
    %v4492 = vunpack.c.l.b16 %v659
    %v4493 = vunpack.c.l.b16 %v660
    %v4494 = vunpack.c.h.b16 %v660
    %v4495 = vunpack.c.l.b16 %v661
    %v4496 = vunpack.c.h.b16 %v661
    %v4497 = vunpack.c.l.b16 %v662
    %v4498 = vunpack.c.h.b16 %v662
    %v4499 = vunpack.c.l.b16 %v663
    %v4500 = vunpack.c.l.b16 %v664
    %v4501 = vunpack.c.h.b16 %v664
    %v4502 = vunpack.c.l.b16 %v665
    %v4503 = vunpack.c.h.b16 %v665
    %v4504 = vunpack.c.l.b16 %v666
    %v4505 = vunpack.c.h.b16 %v666
    %v4506 = vunpack.c.l.b16 %v667
    %v4507 = vunpack.c.l.b16 %v668
    %v4508 = vunpack.c.h.b16 %v668
    %v4509 = vunpack.c.l.b16 %v669
    %v4510 = vunpack.c.h.b16 %v669
    %v4511 = vunpack.c.l.b16 %v670
    %v4512 = vunpack.c.h.b16 %v670
    %v4513 = vunpack.c.l.b16 %v671
    %v4514 = vunpack.c.l.b16 %v672
    %v4515 = vunpack.c.h.b16 %v672
    %v4516 = vunpack.c.l.b16 %v673
    %v4517 = vunpack.c.h.b16 %v673
    %v4518 = vunpack.c.l.b16 %v674
    %v4519 = vunpack.c.h.b16 %v674
    %v4520 = vunpack.c.l.b16 %v675
    %v4521 = vunpack.c.l.b16 %v676
    %v4522 = vunpack.c.h.b16 %v676
    %v4523 = vunpack.c.l.b16 %v677
    %v4524 = vunpack.c.h.b16 %v677
    %v4525 = vunpack.c.l.b16 %v678
    %v4526 = vunpack.c.h.b16 %v678
    %v4527 = vunpack.c.l.b16 %v679
    %v4528 = vunpack.c.l.b16 %v680
    %v4529 = vunpack.c.h.b16 %v680
    %v4530 = vunpack.c.l.b16 %v681
    %v4531 = vunpack.c.h.b16 %v681
    %v4532 = vunpack.c.l.b16 %v682
    %v4533 = vunpack.c.h.b16 %v682
    %v4534 = vunpack.c.l.b16 %v683
    %v4535 = vunpack.c.l.b16 %v684
    %v4536 = vunpack.c.h.b16 %v684
    %v4537 = vunpack.c.l.b16 %v685
    %v4538 = vunpack.c.h.b16 %v685
    %v4539 = vunpack.c.l.b16 %v686
    %v4540 = vunpack.c.h.b16 %v686
    %v4541 = vunpack.c.l.b16 %v687
    %v4542 = vunpack.c.l.b16 %v688
    %v4543 = vunpack.c.h.b16 %v688
    %v4544 = vunpack.c.l.b16 %v689
    %v4545 = vunpack.c.h.b16 %v689
    %v4546 = vunpack.c.l.b16 %v690
    %v4547 = vunpack.c.h.b16 %v690
    %v4548 = vunpack.c.l.b16 %v691
    %v4549 = vunpack.c.l.b16 %v692
    %v4550 = vunpack.c.h.b16 %v692
    %v4551 = vunpack.c.l.b16 %v693
    %v4552 = vunpack.c.h.b16 %v693
    %v4553 = vunpack.c.l.b16 %v694
    %v4554 = vunpack.c.h.b16 %v694
    %v4555 = vunpack.c.l.b16 %v695
    %v4556 = vunpack.c.l.b16 %v696
    %v4557 = vunpack.c.h.b16 %v696
    %v4558 = vunpack.c.l.b16 %v697
    %v4559 = vunpack.c.h.b16 %v697
    %v4560 = vunpack.c.l.b16 %v698
    %v4561 = vunpack.c.h.b16 %v698
    %v4562 = vunpack.c.l.b16 %v699
    %v4563 = vunpack.c.l.b16 %v700
    %v4564 = vunpack.c.h.b16 %v700
    %v4565 = vunpack.c.l.b16 %v701
    %v4566 = vunpack.c.h.b16 %v701
    %v4567 = vunpack.c.l.b16 %v702
    %v4568 = vunpack.c.h.b16 %v702
    %v4569 = vunpack.c.l.b16 %v703
    %v4570 = vunpack.c.l.b16 %v704
    %v4571 = vunpack.c.h.b16 %v704
    %v4572 = vunpack.c.l.b16 %v705
    %v4573 = vunpack.c.h.b16 %v705
    %v4574 = vunpack.c.l.b16 %v706
    %v4575 = vunpack.c.h.b16 %v706
    %v4576 = vunpack.c.l.b16 %v707
    %v4577 = vunpack.c.l.b16 %v708
    %v4578 = vunpack.c.h.b16 %v708
    %v4579 = vunpack.c.l.b16 %v709
    %v4580 = vunpack.c.h.b16 %v709
    %v4581 = vunpack.c.l.b16 %v710
    %v4582 = vunpack.c.h.b16 %v710
    %v4583 = vunpack.c.l.b16 %v711
    %v4584 = vunpack.c.l.b16 %v712
    %v4585 = vunpack.c.h.b16 %v712
    %v4586 = vunpack.c.l.b16 %v713
    %v4587 = vunpack.c.h.b16 %v713
    %v4588 = vunpack.c.l.b16 %v714
    %v4589 = vunpack.c.h.b16 %v714
    %v4590 = vunpack.c.l.b16 %v715
    %v4591 = vunpack.c.l.b16 %v716
    %v4592 = vunpack.c.h.b16 %v716
    %v4593 = vunpack.c.l.b16 %v717
    %v4594 = vunpack.c.h.b16 %v717
    %v4595 = vunpack.c.l.b16 %v718
    %v4596 = vunpack.c.h.b16 %v718
    %v4597 = vunpack.c.l.b16 %v719
    %v4598 = vunpack.c.l.b16 %v720
    %v4599 = vunpack.c.h.b16 %v720
    %v4600 = vunpack.c.l.b16 %v721
    %v4601 = vunpack.c.h.b16 %v721
    %v4602 = vunpack.c.l.b16 %v722
    %v4603 = vunpack.c.h.b16 %v722
    %v4604 = vunpack.c.l.b16 %v723
    %v4605 = vunpack.c.l.b16 %v724
    %v4606 = vunpack.c.h.b16 %v724
    %v4607 = vunpack.c.l.b16 %v725
    %v4608 = vunpack.c.h.b16 %v725
    %v4609 = vunpack.c.l.b16 %v726
    %v4610 = vunpack.c.h.b16 %v726
    %v4611 = vunpack.c.l.b16 %v727
    %v4612 = vunpack.c.l.b16 %v728
    %v4613 = vunpack.c.h.b16 %v728
    %v4614 = vunpack.c.l.b16 %v729
    %v4615 = vunpack.c.h.b16 %v729
    %v4616 = vunpack.c.l.b16 %v730
    %v4617 = vunpack.c.h.b16 %v730
    %v4618 = vunpack.c.l.b16 %v731
    %v4619 = vunpack.c.l.b16 %v732
    %v4620 = vunpack.c.h.b16 %v732
    %v4621 = vunpack.c.l.b16 %v733
    %v4622 = vunpack.c.h.b16 %v733
    %v4623 = vunpack.c.l.b16 %v734
    %v4624 = vunpack.c.h.b16 %v734
    %v4625 = vunpack.c.l.b16 %v735
    %v4626 = vunpack.c.l.b16 %v736
    %v4627 = vunpack.c.h.b16 %v736
    %v4628 = vunpack.c.l.b16 %v737
    %v4629 = vunpack.c.h.b16 %v737
    %v4630 = vunpack.c.l.b16 %v738
    %v4631 = vunpack.c.h.b16 %v738
    %v4632 = vunpack.c.l.b16 %v739
    %v4633 = vunpack.c.l.b16 %v740
    %v4634 = vunpack.c.h.b16 %v740
    %v4635 = vunpack.c.l.b16 %v741
    %v4636 = vunpack.c.h.b16 %v741
    %v4637 = vunpack.c.l.b16 %v742
    %v4638 = vunpack.c.h.b16 %v742
    %v4639 = vunpack.c.l.b16 %v743
    %v4640 = vunpack.c.l.b16 %v744
    %v4641 = vunpack.c.h.b16 %v744
    %v4642 = vunpack.c.l.b16 %v745
    %v4643 = vunpack.c.h.b16 %v745
    %v4644 = vunpack.c.l.b16 %v746
    %v4645 = vunpack.c.h.b16 %v746
    %v4646 = vunpack.c.l.b16 %v747
    %v4647 = vunpack.c.l.b16 %v748
    %v4648 = vunpack.c.h.b16 %v748
    %v4649 = vunpack.c.l.b16 %v749
    %v4650 = vunpack.c.h.b16 %v749
    %v4651 = vunpack.c.l.b16 %v750
    %v4652 = vunpack.c.h.b16 %v750
    %v4653 = vunpack.c.l.b16 %v751
    %v4654 = vunpack.c.l.b16 %v752
    %v4655 = vunpack.c.h.b16 %v752
    %v4656 = vunpack.c.l.b16 %v753
    %v4657 = vunpack.c.h.b16 %v753
    %v4658 = vunpack.c.l.b16 %v754
    %v4659 = vunpack.c.h.b16 %v754
    %v4660 = vunpack.c.l.b16 %v755
    %v4661 = vunpack.c.l.b16 %v756
    %v4662 = vunpack.c.h.b16 %v756
    %v4663 = vunpack.c.l.b16 %v757
    %v4664 = vunpack.c.h.b16 %v757
    %v4665 = vunpack.c.l.b16 %v758
    %v4666 = vunpack.c.h.b16 %v758
    %v4667 = vunpack.c.l.b16 %v759
    %v4668 = vunpack.c.l.b16 %v760
    %v4669 = vunpack.c.h.b16 %v760
    %v4670 = vunpack.c.l.b16 %v761
    %v4671 = vunpack.c.h.b16 %v761
    %v4672 = vunpack.c.l.b16 %v762
    %v4673 = vunpack.c.h.b16 %v762
    %v4674 = vunpack.c.l.b16 %v763
    %v4675 = vunpack.c.l.b16 %v764
    %v4676 = vunpack.c.h.b16 %v764
    %v4677 = vunpack.c.l.b16 %v765
    %v4678 = vunpack.c.h.b16 %v765
    %v4679 = vunpack.c.l.b16 %v766
    %v4680 = vunpack.c.h.b16 %v766
    %v4681 = vunpack.c.l.b16 %v767
    %v4682 = vunpack.c.l.b16 %v768
    %v4683 = vunpack.c.h.b16 %v768
    %v4684 = vunpack.c.l.b16 %v769
    %v4685 = vunpack.c.h.b16 %v769
    %v4686 = vunpack.c.l.b16 %v770
    %v4687 = vunpack.c.h.b16 %v770
    %v4688 = vunpack.c.l.b16 %v771
    %v4689 = vunpack.c.l.b16 %v772
    %v4690 = vunpack.c.h.b16 %v772
    %v4691 = vunpack.c.l.b16 %v773
    %v4692 = vunpack.c.h.b16 %v773
    %v4693 = vunpack.c.l.b16 %v774
    %v4694 = vunpack.c.h.b16 %v774
    %v4695 = vunpack.c.l.b16 %v775
    %v4696 = vunpack.c.l.b16 %v776
    %v4697 = vunpack.c.h.b16 %v776
    %v4698 = vunpack.c.l.b16 %v777
    %v4699 = vunpack.c.h.b16 %v777
    %v4700 = vunpack.c.l.b16 %v778
    %v4701 = vunpack.c.h.b16 %v778
    %v4702 = vunpack.c.l.b16 %v779
    %v4703 = vunpack.c.l.b16 %v780
    %v4704 = vunpack.c.h.b16 %v780
    %v4705 = vunpack.c.l.b16 %v781
    %v4706 = vunpack.c.h.b16 %v781
    %v4707 = vunpack.c.l.b16 %v782
    %v4708 = vunpack.c.h.b16 %v782
    %v4709 = vunpack.c.l.b16 %v783
    %v4710 = vunpack.c.l.b16 %v784
    %v4711 = vunpack.c.h.b16 %v784
    %v4712 = vunpack.c.l.b16 %v785
    %v4713 = vunpack.c.h.b16 %v785
    %v4714 = vunpack.c.l.b16 %v786
    %v4715 = vunpack.c.h.b16 %v786
    %v4716 = vunpack.c.l.b16 %v787
    %v4717 = vunpack.c.l.b16 %v788
    %v4718 = vunpack.c.h.b16 %v788
    %v4719 = vunpack.c.l.b16 %v789
    %v4720 = vunpack.c.h.b16 %v789
    %v4721 = vunpack.c.l.b16 %v790
    %v4722 = vunpack.c.h.b16 %v790
    %v4723 = vunpack.c.l.b16 %v791
    %v4724 = vunpack.c.l.b16 %v792
    %v4725 = vunpack.c.h.b16 %v792
    %v4726 = vunpack.c.l.b16 %v793
    %v4727 = vunpack.c.h.b16 %v793
    %v4728 = vunpack.c.l.b16 %v794
    %v4729 = vunpack.c.h.b16 %v794
    %v4730 = vunpack.c.l.b16 %v795
    %v4731 = vunpack.c.l.b16 %v796
    %v4732 = vunpack.c.h.b16 %v796
    %v4733 = vunpack.c.l.b16 %v797
    %v4734 = vunpack.c.h.b16 %v797
    %v4735 = vunpack.c.l.b16 %v798
    %v4736 = vunpack.c.h.b16 %v798
    %v4737 = vunpack.c.l.b16 %v799
    %v4738 = vunpack.c.l.b16 %v800
    %v4739 = vunpack.c.h.b16 %v800
    %v4740 = vunpack.c.l.b16 %v801
    %v4741 = vunpack.c.h.b16 %v801
    %v4742 = vunpack.c.l.b16 %v802
    %v4743 = vunpack.c.h.b16 %v802
    %v4744 = vunpack.c.l.b16 %v803
    %v4745 = vunpack.c.l.b16 %v804
    %v4746 = vunpack.c.h.b16 %v804
    %v4747 = vunpack.c.l.b16 %v805
    %v4748 = vunpack.c.h.b16 %v805
    %v4749 = vunpack.c.l.b16 %v806
    %v4750 = vunpack.c.h.b16 %v806
    %v4751 = vunpack.c.l.b16 %v807
    %v4752 = vunpack.c.l.b16 %v808
    %v4753 = vunpack.c.h.b16 %v808
    %v4754 = vunpack.c.l.b16 %v809
    %v4755 = vunpack.c.h.b16 %v809
    %v4756 = vunpack.c.l.b16 %v810
    %v4757 = vunpack.c.h.b16 %v810
    %v4758 = vunpack.c.l.b16 %v811
    %v4759 = vunpack.c.l.b16 %v812
    %v4760 = vunpack.c.h.b16 %v812
    %v4761 = vunpack.c.l.b16 %v813
    %v4762 = vunpack.c.h.b16 %v813
    %v4763 = vunpack.c.l.b16 %v814
    %v4764 = vunpack.c.h.b16 %v814
    %v4765 = vunpack.c.l.b16 %v815
    %v4766 = vunpack.c.l.b16 %v816
    %v4767 = vunpack.c.h.b16 %v816
    %v4768 = vunpack.c.l.b16 %v817
    %v4769 = vunpack.c.h.b16 %v817
    %v4770 = vunpack.c.l.b16 %v818
    %v4771 = vunpack.c.h.b16 %v818
    %v4772 = vunpack.c.l.b16 %v819
    %v4773 = vunpack.c.l.b16 %v820
    %v4774 = vunpack.c.h.b16 %v820
    %v4775 = vunpack.c.l.b16 %v821
    %v4776 = vunpack.c.h.b16 %v821
    %v4777 = vunpack.c.l.b16 %v822
    %v4778 = vunpack.c.h.b16 %v822
    %v4779 = vunpack.c.l.b16 %v823
    %v4780 = vunpack.c.l.b16 %v824
    %v4781 = vunpack.c.h.b16 %v824
    %v4782 = vunpack.c.l.b16 %v825
    %v4783 = vunpack.c.h.b16 %v825
    %v4784 = vunpack.c.l.b16 %v826
    %v4785 = vunpack.c.h.b16 %v826
    %v4786 = vunpack.c.l.b16 %v827
    %v4787 = vunpack.c.l.b16 %v828
    %v4788 = vunpack.c.h.b16 %v828
    %v4789 = vunpack.c.l.b16 %v829
    %v4790 = vunpack.c.h.b16 %v829
    %v4791 = vunpack.c.l.b16 %v830
    %v4792 = vunpack.c.h.b16 %v830
    %v4793 = vunpack.c.l.b16 %v831
    %v4794 = vunpack.c.l.b16 %v832
    %v4795 = vunpack.c.h.b16 %v832
    %v4796 = vunpack.c.l.b16 %v833
    %v4797 = vunpack.c.h.b16 %v833
    %v4798 = vunpack.c.l.b16 %v834
    %v4799 = vunpack.c.h.b16 %v834
    %v4800 = vunpack.c.l.b16 %v835
    %v4801 = vunpack.c.l.b16 %v836
    %v4802 = vunpack.c.h.b16 %v836
    %v4803 = vunpack.c.l.b16 %v837
    %v4804 = vunpack.c.h.b16 %v837
    %v4805 = vunpack.c.l.b16 %v838
    %v4806 = vunpack.c.h.b16 %v838
    %v4807 = vunpack.c.l.b16 %v839
    %v4808 = vunpack.c.l.b16 %v840
    %v4809 = vunpack.c.h.b16 %v840
    %v4810 = vunpack.c.l.b16 %v841
    %v4811 = vunpack.c.h.b16 %v841
    %v4812 = vunpack.c.l.b16 %v842
    %v4813 = vunpack.c.h.b16 %v842
    %v4814 = vunpack.c.l.b16 %v843
    %v4815 = vunpack.c.l.b16 %v844
    %v4816 = vunpack.c.h.b16 %v844
    %v4817 = vunpack.c.l.b16 %v845
    %v4818 = vunpack.c.h.b16 %v845
    %v4819 = vunpack.c.l.b16 %v846
    %v4820 = vunpack.c.h.b16 %v846
    %v4821 = vunpack.c.l.b16 %v847
    %v4822 = vunpack.c.l.b16 %v848
    %v4823 = vunpack.c.h.b16 %v848
    %v4824 = vunpack.c.l.b16 %v849
    %v4825 = vunpack.c.h.b16 %v849
    %v4826 = vunpack.c.l.b16 %v850
    %v4827 = vunpack.c.h.b16 %v850
    %v4828 = vunpack.c.l.b16 %v851
    %v4829 = vunpack.c.l.b16 %v852
    %v4830 = vunpack.c.h.b16 %v852
    %v4831 = vunpack.c.l.b16 %v853
    %v4832 = vunpack.c.h.b16 %v853
    %v4833 = vunpack.c.l.b16 %v854
    %v4834 = vunpack.c.h.b16 %v854
    %v4835 = vunpack.c.l.b16 %v855
    %v4836 = vunpack.c.l.b16 %v856
    %v4837 = vunpack.c.h.b16 %v856
    %v4838 = vunpack.c.l.b16 %v857
    %v4839 = vunpack.c.h.b16 %v857
    %v4840 = vunpack.c.l.b16 %v858
    %v4841 = vunpack.c.h.b16 %v858
    %v4842 = vunpack.c.l.b16 %v859
    %v4843 = vunpack.c.l.b16 %v860
    %v4844 = vunpack.c.h.b16 %v860
    %v4845 = vunpack.c.l.b16 %v861
    %v4846 = vunpack.c.h.b16 %v861
    %v4847 = vunpack.c.l.b16 %v862
    %v4848 = vunpack.c.h.b16 %v862
    %v4849 = vunpack.c.l.b16 %v863
    %v4850 = vunpack.c.l.b16 %v864
    %v4851 = vunpack.c.h.b16 %v864
    %v4852 = vunpack.c.l.b16 %v865
    %v4853 = vunpack.c.h.b16 %v865
    %v4854 = vunpack.c.l.b16 %v866
    %v4855 = vunpack.c.h.b16 %v866
    %v4856 = vunpack.c.l.b16 %v867
    %v4857 = vunpack.c.l.b16 %v868
    %v4858 = vunpack.c.h.b16 %v868
    %v4859 = vunpack.c.l.b16 %v869
    %v4860 = vunpack.c.h.b16 %v869
    %v4861 = vunpack.c.l.b16 %v870
    %v4862 = vunpack.c.h.b16 %v870
    %v4863 = vunpack.c.l.b16 %v871
    %v4864 = vunpack.c.l.b16 %v872
    %v4865 = vunpack.c.h.b16 %v872
    %v4866 = vunpack.c.l.b16 %v873
    %v4867 = vunpack.c.h.b16 %v873
    %v4868 = vunpack.c.l.b16 %v874
    %v4869 = vunpack.c.h.b16 %v874
    %v4870 = vunpack.c.l.b16 %v875
    %v4871 = vunpack.c.l.b16 %v876
    %v4872 = vunpack.c.h.b16 %v876
    %v4873 = vunpack.c.l.b16 %v877
    %v4874 = vunpack.c.h.b16 %v877
    %v4875 = vunpack.c.l.b16 %v878
    %v4876 = vunpack.c.h.b16 %v878
    %v4877 = vunpack.c.l.b16 %v879
    %v4878 = vunpack.c.l.b16 %v880
    %v4879 = vunpack.c.h.b16 %v880
    %v4880 = vunpack.c.l.b16 %v881
    %v4881 = vunpack.c.h.b16 %v881
    %v4882 = vunpack.c.l.b16 %v882
    %v4883 = vunpack.c.h.b16 %v882
    %v4884 = vunpack.c.l.b16 %v883
    %v4885 = vunpack.c.l.b16 %v884
    %v4886 = vunpack.c.h.b16 %v884
    %v4887 = vunpack.c.l.b16 %v885
    %v4888 = vunpack.c.h.b16 %v885
    %v4889 = vunpack.c.l.b16 %v886
    %v4890 = vunpack.c.h.b16 %v886
    %v4891 = vunpack.c.l.b16 %v887
    %v4892 = vunpack.c.l.b16 %v888
    %v4893 = vunpack.c.h.b16 %v888
    %v4894 = vunpack.c.l.b16 %v889
    %v4895 = vunpack.c.h.b16 %v889
    %v4896 = vunpack.c.l.b16 %v890
    %v4897 = vunpack.c.h.b16 %v890
    %v4898 = vunpack.c.l.b16 %v891
    %v4899 = vunpack.c.l.b16 %v892
    %v4900 = vunpack.c.h.b16 %v892
    %v4901 = vunpack.c.l.b16 %v893
    %v4902 = vunpack.c.h.b16 %v893
    %v4903 = vunpack.c.l.b16 %v894
    %v4904 = vunpack.c.h.b16 %v894
    %v4905 = vunpack.c.l.b16 %v895
    %v4906 = vunpack.c.l.b16 %v896
    %v4907 = vunpack.c.h.b16 %v896
    %v4908 = vunpack.c.l.b16 %v897
    %v4909 = vunpack.c.h.b16 %v897
    %v4910 = vunpack.c.l.b16 %v898
    %v4911 = vunpack.c.h.b16 %v898
    %v4912 = vunpack.c.l.b16 %v899
    %v4913 = vunpack.c.l.b16 %v900
    %v4914 = vunpack.c.h.b16 %v900
    %v4915 = vunpack.c.l.b16 %v901
    %v4916 = vunpack.c.h.b16 %v901
    %v4917 = vunpack.c.l.b16 %v902
    %v4918 = vunpack.c.h.b16 %v902
    %v4919 = vunpack.c.l.b16 %v903
    %v4920 = vunpack.c.l.b16 %v904
    %v4921 = vunpack.c.h.b16 %v904
    %v4922 = vunpack.c.l.b16 %v905
    %v4923 = vunpack.c.h.b16 %v905
    %v4924 = vunpack.c.l.b16 %v906
    %v4925 = vunpack.c.h.b16 %v906
    %v4926 = vunpack.c.l.b16 %v907
    %v4927 = vunpack.c.l.b16 %v908
    %v4928 = vunpack.c.h.b16 %v908
    %v4929 = vunpack.c.l.b16 %v909
    %v4930 = vunpack.c.h.b16 %v909
    %v4931 = vunpack.c.l.b16 %v910
    %v4932 = vunpack.c.h.b16 %v910
    %v4933 = vunpack.c.l.b16 %v911
    %v4934 = vunpack.c.l.b16 %v912
    %v4935 = vunpack.c.h.b16 %v912
    %v4936 = vunpack.c.l.b16 %v913
    %v4937 = vunpack.c.h.b16 %v913
    %v4938 = vunpack.c.l.b16 %v914
    %v4939 = vunpack.c.h.b16 %v914
    %v4940 = vunpack.c.l.b16 %v915
    %v4941 = vunpack.c.l.b16 %v916
    %v4942 = vunpack.c.h.b16 %v916
    %v4943 = vunpack.c.l.b16 %v917
    %v4944 = vunpack.c.h.b16 %v917
    %v4945 = vunpack.c.l.b16 %v918
    %v4946 = vunpack.c.h.b16 %v918
    %v4947 = vunpack.c.l.b16 %v919
    %v4948 = vunpack.c.l.b16 %v920
    %v4949 = vunpack.c.h.b16 %v920
    %v4950 = vunpack.c.l.b16 %v921
    %v4951 = vunpack.c.h.b16 %v921
    %v4952 = vunpack.c.l.b16 %v922
    %v4953 = vunpack.c.h.b16 %v922
    %v4954 = vunpack.c.l.b16 %v923
    %v4955 = vunpack.c.l.b16 %v924
    %v4956 = vunpack.c.h.b16 %v924
    %v4957 = vunpack.c.l.b16 %v925
    %v4958 = vunpack.c.h.b16 %v925
    %v4959 = vunpack.c.l.b16 %v926
    %v4960 = vunpack.c.h.b16 %v926
    %v4961 = vunpack.c.l.b16 %v927
    %v4962 = vunpack.c.l.b16 %v928
    %v4963 = vunpack.c.h.b16 %v928
    %v4964 = vunpack.c.l.b16 %v929
    %v4965 = vunpack.c.h.b16 %v929
    %v4966 = vunpack.c.l.b16 %v930
    %v4967 = vunpack.c.h.b16 %v930
    %v4968 = vunpack.c.l.b16 %v931
    %v4969 = vunpack.c.l.b16 %v932
    %v4970 = vunpack.c.h.b16 %v932
    %v4971 = vunpack.c.l.b16 %v933
    %v4972 = vunpack.c.h.b16 %v933
    %v4973 = vunpack.c.l.b16 %v934
    %v4974 = vunpack.c.h.b16 %v934
    %v4975 = vunpack.c.l.b16 %v935
    %v4976 = vunpack.c.l.b16 %v936
    %v4977 = vunpack.c.h.b16 %v936
    %v4978 = vunpack.c.l.b16 %v937
    %v4979 = vunpack.c.h.b16 %v937
    %v4980 = vunpack.c.l.b16 %v938
    %v4981 = vunpack.c.h.b16 %v938
    %v4982 = vunpack.c.l.b16 %v939
    %v4983 = vunpack.c.l.b16 %v940
    %v4984 = vunpack.c.h.b16 %v940
    %v4985 = vunpack.c.l.b16 %v941
    %v4986 = vunpack.c.h.b16 %v941
    %v4987 = vunpack.c.l.b16 %v942
    %v4988 = vunpack.c.h.b16 %v942
    %v4989 = vunpack.c.l.b16 %v943
    %v4990 = vunpack.c.l.b16 %v944
    %v4991 = vunpack.c.h.b16 %v944
    %v4992 = vunpack.c.l.b16 %v945
    %v4993 = vunpack.c.h.b16 %v945
    %v4994 = vunpack.c.l.b16 %v946
    %v4995 = vunpack.c.h.b16 %v946
    %v4996 = vunpack.c.l.b16 %v947
    %v4997 = vunpack.c.l.b16 %v948
    %v4998 = vunpack.c.h.b16 %v948
    %v4999 = vunpack.c.l.b16 %v949
    %v5000 = vunpack.c.h.b16 %v949
    %v5001 = vunpack.c.l.b16 %v950
    %v5002 = vunpack.c.h.b16 %v950
    %v5003 = vunpack.c.l.b16 %v951
    %v5004 = vunpack.c.l.b16 %v952
    %v5005 = vunpack.c.h.b16 %v952
    %v5006 = vunpack.c.l.b16 %v953
    %v5007 = vunpack.c.h.b16 %v953
    %v5008 = vunpack.c.l.b16 %v954
    %v5009 = vunpack.c.h.b16 %v954
    %v5010 = vunpack.c.l.b16 %v955
    %v5011 = vunpack.c.l.b16 %v956
    %v5012 = vunpack.c.h.b16 %v956
    %v5013 = vunpack.c.l.b16 %v957
    %v5014 = vunpack.c.h.b16 %v957
    %v5015 = vunpack.c.l.b16 %v958
    %v5016 = vunpack.c.h.b16 %v958
    %v5017 = vunpack.c.l.b16 %v959
    %v5018 = vunpack.c.l.b16 %v960
    %v5019 = vunpack.c.h.b16 %v960
    %v5020 = vunpack.c.l.b16 %v961
    %v5021 = vunpack.c.h.b16 %v961
    %v5022 = vunpack.c.l.b16 %v962
    %v5023 = vunpack.c.h.b16 %v962
    %v5024 = vunpack.c.l.b16 %v963
    %v5025 = vunpack.c.l.b16 %v964
    %v5026 = vunpack.c.h.b16 %v964
    %v5027 = vunpack.c.l.b16 %v965
    %v5028 = vunpack.c.h.b16 %v965
    %v5029 = vunpack.c.l.b16 %v966
    %v5030 = vunpack.c.h.b16 %v966
    %v5031 = vunpack.c.l.b16 %v967
    %v5032 = vunpack.c.l.b16 %v968
    %v5033 = vunpack.c.h.b16 %v968
    %v5034 = vunpack.c.l.b16 %v969
    %v5035 = vunpack.c.h.b16 %v969
    %v5036 = vunpack.c.l.b16 %v970
    %v5037 = vunpack.c.h.b16 %v970
    %v5038 = vunpack.c.l.b16 %v971
    %v5039 = vunpack.c.l.b16 %v972
    %v5040 = vunpack.c.h.b16 %v972
    %v5041 = vunpack.c.l.b16 %v973
    %v5042 = vunpack.c.h.b16 %v973
    %v5043 = vunpack.c.l.b16 %v974
    %v5044 = vunpack.c.h.b16 %v974
    %v5045 = vunpack.c.l.b16 %v975
    %v5046 = vunpack.c.l.b16 %v976
    %v5047 = vunpack.c.h.b16 %v976
    %v5048 = vunpack.c.l.b16 %v977
    %v5049 = vunpack.c.h.b16 %v977
    %v5050 = vunpack.c.l.b16 %v978
    %v5051 = vunpack.c.h.b16 %v978
    %v5052 = vunpack.c.l.b16 %v979
    %v5053 = vunpack.c.l.b16 %v980
    %v5054 = vunpack.c.h.b16 %v980
    %v5055 = vunpack.c.l.b16 %v981
    %v5056 = vunpack.c.h.b16 %v981
    %v5057 = vunpack.c.l.b16 %v982
    %v5058 = vunpack.c.h.b16 %v982
    %v5059 = vunpack.c.l.b16 %v983
    %v5060 = vunpack.c.l.b16 %v984
    %v5061 = vunpack.c.h.b16 %v984
    %v5062 = vunpack.c.l.b16 %v985
    %v5063 = vunpack.c.h.b16 %v985
    %v5064 = vunpack.c.l.b16 %v986
    %v5065 = vunpack.c.h.b16 %v986
    %v5066 = vunpack.c.l.b16 %v987
    %v5067 = vunpack.c.l.b16 %v988
    %v5068 = vunpack.c.h.b16 %v988
    %v5069 = vunpack.c.l.b16 %v989
    %v5070 = vunpack.c.h.b16 %v989
    %v5071 = vunpack.c.l.b16 %v990
    %v5072 = vunpack.c.h.b16 %v990
    %v5073 = vunpack.c.l.b16 %v991
    %v5074 = vunpack.c.l.b16 %v992
    %v5075 = vunpack.c.h.b16 %v992
    %v5076 = vunpack.c.l.b16 %v993
    %v5077 = vunpack.c.h.b16 %v993
    %v5078 = vunpack.c.l.b16 %v994
    %v5079 = vunpack.c.h.b16 %v994
    %v5080 = vunpack.c.l.b16 %v995
    %v5081 = vunpack.c.l.b16 %v996
    %v5082 = vunpack.c.h.b16 %v996
    %v5083 = vunpack.c.l.b16 %v997
    %v5084 = vunpack.c.h.b16 %v997
    %v5085 = vunpack.c.l.b16 %v998
    %v5086 = vunpack.c.h.b16 %v998
    %v5087 = vunpack.c.l.b16 %v999
    %v5088 = vunpack.c.l.b16 %v1000
    %v5089 = vunpack.c.h.b16 %v1000
    %v5090 = vunpack.c.l.b16 %v1001
    %v5091 = vunpack.c.h.b16 %v1001
    %v5092 = vunpack.c.l.b16 %v1002
    %v5093 = vunpack.c.h.b16 %v1002
    %v5094 = vunpack.c.l.b16 %v1003
    %v5095 = vunpack.c.l.b16 %v1004
    %v5096 = vunpack.c.h.b16 %v1004
    %v5097 = vunpack.c.l.b16 %v1005
    %v5098 = vunpack.c.h.b16 %v1005
    %v5099 = vunpack.c.l.b16 %v1006
    %v5100 = vunpack.c.h.b16 %v1006
    %v5101 = vunpack.c.l.b16 %v1007
    %v5102 = vunpack.c.l.b16 %v1008
    %v5103 = vunpack.c.h.b16 %v1008
    %v5104 = vunpack.c.l.b16 %v1009
    %v5105 = vunpack.c.h.b16 %v1009
    %v5106 = vunpack.c.l.b16 %v1010
    %v5107 = vunpack.c.h.b16 %v1010
    %v5108 = vunpack.c.l.b16 %v1011
    %v5109 = vunpack.c.l.b16 %v1012
    %v5110 = vunpack.c.h.b16 %v1012
    %v5111 = vunpack.c.l.b16 %v1013
    %v5112 = vunpack.c.h.b16 %v1013
    %v5113 = vunpack.c.l.b16 %v1014
    %v5114 = vunpack.c.h.b16 %v1014
    %v5115 = vunpack.c.l.b16 %v1015
    %v5116 = vunpack.c.l.b16 %v1016
    %v5117 = vunpack.c.h.b16 %v1016
    %v5118 = vunpack.c.l.b16 %v1017
    %v5119 = vunpack.c.h.b16 %v1017
    %v5120 = vunpack.c.l.b16 %v1018
    %v5121 = vunpack.c.h.b16 %v1018
    %v5122 = vunpack.c.l.b16 %v1019
    %v5123 = vunpack.c.l.b16 %v1020
    %v5124 = vunpack.c.h.b16 %v1020
    %v5125 = vunpack.c.l.b16 %v1021
    %v5126 = vunpack.c.h.b16 %v1021
    %v5127 = vunpack.c.l.b16 %v1022
    %v5128 = vunpack.c.h.b16 %v1022
    %v5129 = vunpack.c.l.b16 %v1023
    %v5130 = vunpack.c.l.b16 %v1024
    %v5131 = vunpack.c.h.b16 %v1024
    %v5132 = vunpack.c.l.b16 %v1025
    %v5133 = vunpack.c.h.b16 %v1025
    %v5134 = vunpack.c.l.b16 %v1026
    %v5135 = vunpack.c.h.b16 %v1026
    %v5136 = vunpack.c.l.b16 %v1027
    %v5137 = vunpack.c.l.b16 %v1028
    %v5138 = vunpack.c.h.b16 %v1028
    %v5139 = vunpack.c.l.b16 %v1029
    %v5140 = vunpack.c.h.b16 %v1029
    %v5141 = vunpack.c.l.b16 %v1030
    %v5142 = vunpack.c.h.b16 %v1030
    %v5143 = vunpack.c.l.b16 %v1031
    %v5144 = vunpack.c.l.b16 %v1032
    %v5145 = vunpack.c.h.b16 %v1032
    %v5146 = vunpack.c.l.b16 %v1033
    %v5147 = vunpack.c.h.b16 %v1033
    %v5148 = vunpack.c.l.b16 %v1034
    %v5149 = vunpack.c.h.b16 %v1034
    %v5150 = vunpack.c.l.b16 %v1035
    %v5151 = vunpack.c.l.b16 %v1036
    %v5152 = vunpack.c.h.b16 %v1036
    %v5153 = vunpack.c.l.b16 %v1037
    %v5154 = vunpack.c.h.b16 %v1037
    %v5155 = vunpack.c.l.b16 %v1038
    %v5156 = vunpack.c.h.b16 %v1038
    %v5157 = vunpack.c.l.b16 %v1039
    %v5158 = vunpack.c.l.b16 %v1040
    %v5159 = vunpack.c.h.b16 %v1040
    %v5160 = vunpack.c.l.b16 %v1041
    %v5161 = vunpack.c.h.b16 %v1041
    %v5162 = vunpack.c.l.b16 %v1042
    %v5163 = vunpack.c.h.b16 %v1042
    %v5164 = vunpack.c.l.b16 %v1043
    %v5165 = vunpack.c.l.b16 %v1044
    %v5166 = vunpack.c.h.b16 %v1044
    %v5167 = vunpack.c.l.b16 %v1045
    %v5168 = vunpack.c.h.b16 %v1045
    %v5169 = vunpack.c.l.b16 %v1046
    %v5170 = vunpack.c.h.b16 %v1046
    %v5171 = vunpack.c.l.b16 %v1047
    %v5172 = vunpack.c.l.b16 %v1048
    %v5173 = vunpack.c.h.b16 %v1048
    %v5174 = vunpack.c.l.b16 %v1049
    %v5175 = vunpack.c.h.b16 %v1049
    %v5176 = vunpack.c.l.b16 %v1050
    %v5177 = vunpack.c.h.b16 %v1050
    %v5178 = vunpack.c.l.b16 %v1051
    %v5179 = vunpack.c.l.b16 %v1052
    %v5180 = vunpack.c.h.b16 %v1052
    %v5181 = vunpack.c.l.b16 %v1053
    %v5182 = vunpack.c.h.b16 %v1053
    %v5183 = vunpack.c.l.b16 %v1054
    %v5184 = vunpack.c.h.b16 %v1054
    %v5185 = vunpack.c.l.b16 %v1055
    %v5186 = vunpack.c.l.b16 %v1056
    %v5187 = vunpack.c.h.b16 %v1056
    %v5188 = vunpack.c.l.b16 %v1057
    %v5189 = vunpack.c.h.b16 %v1057
    %v5190 = vunpack.c.l.b16 %v1058
    %v5191 = vunpack.c.h.b16 %v1058
    %v5192 = vunpack.c.l.b16 %v1059
    %v5193 = vunpack.c.l.b16 %v1060
    %v5194 = vunpack.c.h.b16 %v1060
    %v5195 = vunpack.c.l.b16 %v1061
    %v5196 = vunpack.c.h.b16 %v1061
    %v5197 = vunpack.c.l.b16 %v1062
    %v5198 = vunpack.c.h.b16 %v1062
    %v5199 = vunpack.c.l.b16 %v1063
    %v5200 = vunpack.c.l.b16 %v1064
    %v5201 = vunpack.c.h.b16 %v1064
    %v5202 = vunpack.c.l.b16 %v1065
    %v5203 = vunpack.c.h.b16 %v1065
    %v5204 = vunpack.c.l.b16 %v1066
    %v5205 = vunpack.c.h.b16 %v1066
    %v5206 = vunpack.c.l.b16 %v1067
    %v5207 = vunpack.c.l.b16 %v1068
    %v5208 = vunpack.c.h.b16 %v1068
    %v5209 = vunpack.c.l.b16 %v1069
    %v5210 = vunpack.c.h.b16 %v1069
    %v5211 = vunpack.c.l.b16 %v1070
    %v5212 = vunpack.c.h.b16 %v1070
    %v5213 = vunpack.c.l.b16 %v1071
    %v5214 = vunpack.c.l.b16 %v1072
    %v5215 = vunpack.c.h.b16 %v1072
    %v5216 = vunpack.c.l.b16 %v1073
    %v5217 = vunpack.c.h.b16 %v1073
    %v5218 = vunpack.c.l.b16 %v1074
    %v5219 = vunpack.c.h.b16 %v1074
    %v5220 = vunpack.c.l.b16 %v1075
    %v5221 = vunpack.c.l.b16 %v1076
    %v5222 = vunpack.c.h.b16 %v1076
    %v5223 = vunpack.c.l.b16 %v1077
    %v5224 = vunpack.c.h.b16 %v1077
    %v5225 = vunpack.c.l.b16 %v1078
    %v5226 = vunpack.c.h.b16 %v1078
    %v5227 = vunpack.c.l.b16 %v1079
    %v5228 = vunpack.c.l.b16 %v1080
    %v5229 = vunpack.c.h.b16 %v1080
    %v5230 = vunpack.c.l.b16 %v1081
    %v5231 = vunpack.c.h.b16 %v1081
    %v5232 = vunpack.c.l.b16 %v1082
    %v5233 = vunpack.c.h.b16 %v1082
    %v5234 = vunpack.c.l.b16 %v1083
    %v5235 = vunpack.c.l.b16 %v1084
    %v5236 = vunpack.c.h.b16 %v1084
    %v5237 = vunpack.c.l.b16 %v1085
    %v5238 = vunpack.c.h.b16 %v1085
    %v5239 = vunpack.c.l.b16 %v1086
    %v5240 = vunpack.c.h.b16 %v1086
    %v5241 = vunpack.c.l.b16 %v1087
    %v5242 = vunpack.c.l.b16 %v1088
    %v5243 = vunpack.c.h.b16 %v1088
    %v5244 = vunpack.c.l.b16 %v1089
    %v5245 = vunpack.c.h.b16 %v1089
    %v5246 = vunpack.c.l.b16 %v1090
    %v5247 = vunpack.c.h.b16 %v1090
    %v5248 = vunpack.c.l.b16 %v1091
    %v5249 = vunpack.c.l.b16 %v1092
    %v5250 = vunpack.c.h.b16 %v1092
    %v5251 = vunpack.c.l.b16 %v1093
    %v5252 = vunpack.c.h.b16 %v1093
    %v5253 = vunpack.c.l.b16 %v1094
    %v5254 = vunpack.c.h.b16 %v1094
    %v5255 = vunpack.c.l.b16 %v1095
    %v5256 = vunpack.c.l.b16 %v1096
    %v5257 = vunpack.c.h.b16 %v1096
    %v5258 = vunpack.c.l.b16 %v1097
    %v5259 = vunpack.c.h.b16 %v1097
    %v5260 = vunpack.c.l.b16 %v1098
    %v5261 = vunpack.c.h.b16 %v1098
    %v5262 = vunpack.c.l.b16 %v1099
    %v5263 = vunpack.c.l.b16 %v1100
    %v5264 = vunpack.c.h.b16 %v1100
    %v5265 = vunpack.c.l.b16 %v1101
    %v5266 = vunpack.c.h.b16 %v1101
    %v5267 = vunpack.c.l.b16 %v1102
    %v5268 = vunpack.c.h.b16 %v1102
    %v5269 = vunpack.c.l.b16 %v1103
    %v5270 = vunpack.c.l.b16 %v1104
    %v5271 = vunpack.c.h.b16 %v1104
    %v5272 = vunpack.c.l.b16 %v1105
    %v5273 = vunpack.c.h.b16 %v1105
    %v5274 = vunpack.c.l.b16 %v1106
    %v5275 = vunpack.c.h.b16 %v1106
    %v5276 = vunpack.c.l.b16 %v1107
    %v5277 = vunpack.c.l.b16 %v1108
    %v5278 = vunpack.c.h.b16 %v1108
    %v5279 = vunpack.c.l.b16 %v1109
    %v5280 = vunpack.c.h.b16 %v1109
    %v5281 = vunpack.c.l.b16 %v1110
    %v5282 = vunpack.c.h.b16 %v1110
    %v5283 = vunpack.c.l.b16 %v1111
    %v5284 = vunpack.c.l.b16 %v1112
    %v5285 = vunpack.c.h.b16 %v1112
    %v5286 = vunpack.c.l.b16 %v1113
    %v5287 = vunpack.c.h.b16 %v1113
    %v5288 = vunpack.c.l.b16 %v1114
    %v5289 = vunpack.c.h.b16 %v1114
    %v5290 = vunpack.c.l.b16 %v1115
    %v5291 = vunpack.c.l.b16 %v1116
    %v5292 = vunpack.c.h.b16 %v1116
    %v5293 = vunpack.c.l.b16 %v1117
    %v5294 = vunpack.c.h.b16 %v1117
    %v5295 = vunpack.c.l.b16 %v1118
    %v5296 = vunpack.c.h.b16 %v1118
    %v5297 = vunpack.c.l.b16 %v1119
    %v5298 = vunpack.c.l.b16 %v1120
    %v5299 = vunpack.c.h.b16 %v1120
    %v5300 = vunpack.c.l.b16 %v1121
    %v5301 = vunpack.c.h.b16 %v1121
    %v5302 = vunpack.c.l.b16 %v1122
    %v5303 = vunpack.c.h.b16 %v1122
    %v5304 = vunpack.c.l.b16 %v1123
    %v5305 = vunpack.c.l.b16 %v1124
    %v5306 = vunpack.c.h.b16 %v1124
    %v5307 = vunpack.c.l.b16 %v1125
    %v5308 = vunpack.c.h.b16 %v1125
    %v5309 = vunpack.c.l.b16 %v1126
    %v5310 = vunpack.c.h.b16 %v1126
    %v5311 = vunpack.c.l.b16 %v1127
    %v5312 = vunpack.c.l.b16 %v1128
    %v5313 = vunpack.c.h.b16 %v1128
    %v5314 = vunpack.c.l.b16 %v1129
    %v5315 = vunpack.c.h.b16 %v1129
    %v5316 = vunpack.c.l.b16 %v1130
    %v5317 = vunpack.c.h.b16 %v1130
    %v5318 = vunpack.c.l.b16 %v1131
    %v5319 = vunpack.c.l.b16 %v1132
    %v5320 = vunpack.c.h.b16 %v1132
    %v5321 = vunpack.c.l.b16 %v1133
    %v5322 = vunpack.c.h.b16 %v1133
    %v5323 = vunpack.c.l.b16 %v1134
    %v5324 = vunpack.c.h.b16 %v1134
    %v5325 = vunpack.c.l.b16 %v1135
    %v5326 = vunpack.c.l.b16 %v1136
    %v5327 = vunpack.c.h.b16 %v1136
    %v5328 = vunpack.c.l.b16 %v1137
    %v5329 = vunpack.c.h.b16 %v1137
    %v5330 = vunpack.c.l.b16 %v1138
    %v5331 = vunpack.c.h.b16 %v1138
    %v5332 = vunpack.c.l.b16 %v1139
    %v5333 = vunpack.c.l.b16 %v1140
    %v5334 = vunpack.c.h.b16 %v1140
    %v5335 = vunpack.c.l.b16 %v1141
    %v5336 = vunpack.c.h.b16 %v1141
    %v5337 = vunpack.c.l.b16 %v1142
    %v5338 = vunpack.c.h.b16 %v1142
    %v5339 = vunpack.c.l.b16 %v1143
    %v5340 = vunpack.c.l.b16 %v1144
    %v5341 = vunpack.c.h.b16 %v1144
    %v5342 = vunpack.c.l.b16 %v1145
    %v5343 = vunpack.c.h.b16 %v1145
    %v5344 = vunpack.c.l.b16 %v1146
    %v5345 = vunpack.c.h.b16 %v1146
    %v5346 = vunpack.c.l.b16 %v1147
    %v5347 = vunpack.c.l.b16 %v1148
    %v5348 = vunpack.c.h.b16 %v1148
    %v5349 = vunpack.c.l.b16 %v1149
    %v5350 = vunpack.c.h.b16 %v1149
    %v5351 = vunpack.c.l.b16 %v1150
    %v5352 = vunpack.c.h.b16 %v1150
    %v5353 = vunpack.c.l.b16 %v1151
    %v5354 = vunpack.c.l.b16 %v1152
    %v5355 = vunpack.c.h.b16 %v1152
    %v5356 = vunpack.c.l.b16 %v1153
    %v5357 = vunpack.c.h.b16 %v1153
    %v5358 = vunpack.c.l.b16 %v1154
    %v5359 = vunpack.c.h.b16 %v1154
    %v5360 = vunpack.c.l.b16 %v1155
    %v5361 = vunpack.c.l.b16 %v1156
    %v5362 = vunpack.c.h.b16 %v1156
    %v5363 = vunpack.c.l.b16 %v1157
    %v5364 = vunpack.c.h.b16 %v1157
    %v5365 = vunpack.c.l.b16 %v1158
    %v5366 = vunpack.c.h.b16 %v1158
    %v5367 = vunpack.c.l.b16 %v1159
    %v5368 = vunpack.c.l.b16 %v1160
    %v5369 = vunpack.c.h.b16 %v1160
    %v5370 = vunpack.c.l.b16 %v1161
    %v5371 = vunpack.c.h.b16 %v1161
    %v5372 = vunpack.c.l.b16 %v1162
    %v5373 = vunpack.c.h.b16 %v1162
    %v5374 = vunpack.c.l.b16 %v1163
    %v5375 = vunpack.c.l.b16 %v1164
    %v5376 = vunpack.c.h.b16 %v1164
    %v5377 = vunpack.c.l.b16 %v1165
    %v5378 = vunpack.c.h.b16 %v1165
    %v5379 = vunpack.c.l.b16 %v1166
    %v5380 = vunpack.c.h.b16 %v1166
    %v5381 = vunpack.c.l.b16 %v1167
    %v5382 = vunpack.c.l.b16 %v1168
    %v5383 = vunpack.c.h.b16 %v1168
    %v5384 = vunpack.c.l.b16 %v1169
    %v5385 = vunpack.c.h.b16 %v1169
    %v5386 = vunpack.c.l.b16 %v1170
    %v5387 = vunpack.c.h.b16 %v1170
    %v5388 = vunpack.c.l.b16 %v1171
    %v5389 = vunpack.c.l.b16 %v1172
    %v5390 = vunpack.c.h.b16 %v1172
    %v5391 = vunpack.c.l.b16 %v1173
    %v5392 = vunpack.c.h.b16 %v1173
    %v5393 = vunpack.c.l.b16 %v1174
    %v5394 = vunpack.c.h.b16 %v1174
    %v5395 = vunpack.c.l.b16 %v1175
    %v5396 = vunpack.c.l.b16 %v1176
    %v5397 = vunpack.c.h.b16 %v1176
    %v5398 = vunpack.c.l.b16 %v1177
    %v5399 = vunpack.c.h.b16 %v1177
    %v5400 = vunpack.c.l.b16 %v1178
    %v5401 = vunpack.c.h.b16 %v1178
    %v5402 = vunpack.c.l.b16 %v1179
    %v5403 = vunpack.c.l.b16 %v1180
    %v5404 = vunpack.c.h.b16 %v1180
    %v5405 = vunpack.c.l.b16 %v1181
    %v5406 = vunpack.c.h.b16 %v1181
    %v5407 = vunpack.c.l.b16 %v1182
    %v5408 = vunpack.c.h.b16 %v1182
    %v5409 = vunpack.c.l.b16 %v1183
    %v5410 = vunpack.c.l.b16 %v1184
    %v5411 = vunpack.c.h.b16 %v1184
    %v5412 = vunpack.c.l.b16 %v1185
    %v5413 = vunpack.c.h.b16 %v1185
    %v5414 = vunpack.c.l.b16 %v1186
    %v5415 = vunpack.c.h.b16 %v1186
    %v5416 = vunpack.c.l.b16 %v1187
    %v5417 = vunpack.c.l.b16 %v1188
    %v5418 = vunpack.c.h.b16 %v1188
    %v5419 = vunpack.c.l.b16 %v1189
    %v5420 = vunpack.c.h.b16 %v1189
    %v5421 = vunpack.c.l.b16 %v1190
    %v5422 = vunpack.c.h.b16 %v1190
    %v5423 = vunpack.c.l.b16 %v1191
    %v5424 = vunpack.c.l.b16 %v1192
    %v5425 = vunpack.c.h.b16 %v1192
    %v5426 = vunpack.c.l.b16 %v1193
    %v5427 = vunpack.c.h.b16 %v1193
    %v5428 = vunpack.c.l.b16 %v1194
    %v5429 = vunpack.c.h.b16 %v1194
    %v5430 = vunpack.c.l.b16 %v1195
    %v5431 = vunpack.c.l.b16 %v1196
    %v5432 = vunpack.c.h.b16 %v1196
    %v5433 = vunpack.c.l.b16 %v1197
    %v5434 = vunpack.c.h.b16 %v1197
    %v5435 = vunpack.c.l.b16 %v1198
    %v5436 = vunpack.c.h.b16 %v1198
    %v5437 = vunpack.c.l.b16 %v1199
    %v5438 = vunpack.c.l.b16 %v1200
    %v5439 = vunpack.c.h.b16 %v1200
    %v5440 = vunpack.c.l.b16 %v1201
    %v5441 = vunpack.c.h.b16 %v1201
    %v5442 = vunpack.c.l.b16 %v1202
    %v5443 = vunpack.c.h.b16 %v1202
    %v5444 = vunpack.c.l.b16 %v1203
    %v5445 = vunpack.c.l.b16 %v1204
    %v5446 = vunpack.c.h.b16 %v1204
    %v5447 = vunpack.c.l.b16 %v1205
    %v5448 = vunpack.c.h.b16 %v1205
    %v5449 = vunpack.c.l.b16 %v1206
    %v5450 = vunpack.c.h.b16 %v1206
    %v5451 = vunpack.c.l.b16 %v1207
    %v5452 = vunpack.c.l.b16 %v1208
    %v5453 = vunpack.c.h.b16 %v1208
    %v5454 = vunpack.c.l.b16 %v1209
    %v5455 = vunpack.c.h.b16 %v1209
    %v5456 = vunpack.c.l.b16 %v1210
    %v5457 = vunpack.c.h.b16 %v1210
    %v5458 = vunpack.c.l.b16 %v1211
    %v5459 = vunpack.c.l.b16 %v1212
    %v5460 = vunpack.c.h.b16 %v1212
    %v5461 = vunpack.c.l.b16 %v1213
    %v5462 = vunpack.c.h.b16 %v1213
    %v5463 = vunpack.c.l.b16 %v1214
    %v5464 = vunpack.c.h.b16 %v1214
    %v5465 = vunpack.c.l.b16 %v1215
    %v5466 = vunpack.c.l.b16 %v1216
    %v5467 = vunpack.c.h.b16 %v1216
    %v5468 = vunpack.c.l.b16 %v1217
    %v5469 = vunpack.c.h.b16 %v1217
    %v5470 = vunpack.c.l.b16 %v1218
    %v5471 = vunpack.c.h.b16 %v1218
    %v5472 = vunpack.c.l.b16 %v1219
    %v5473 = vunpack.c.l.b16 %v1220
    %v5474 = vunpack.c.h.b16 %v1220
    %v5475 = vunpack.c.l.b16 %v1221
    %v5476 = vunpack.c.h.b16 %v1221
    %v5477 = vunpack.c.l.b16 %v1222
    %v5478 = vunpack.c.h.b16 %v1222
    %v5479 = vunpack.c.l.b16 %v1223
    %v5480 = vunpack.c.l.b16 %v1224
    %v5481 = vunpack.c.h.b16 %v1224
    %v5482 = vunpack.c.l.b16 %v1225
    %v5483 = vunpack.c.h.b16 %v1225
    %v5484 = vunpack.c.l.b16 %v1226
    %v5485 = vunpack.c.h.b16 %v1226
    %v5486 = vunpack.c.l.b16 %v1227
    %v5487 = vunpack.c.l.b16 %v1228
    %v5488 = vunpack.c.h.b16 %v1228
    %v5489 = vunpack.c.l.b16 %v1229
    %v5490 = vunpack.c.h.b16 %v1229
    %v5491 = vunpack.c.l.b16 %v1230
    %v5492 = vunpack.c.h.b16 %v1230
    %v5493 = vunpack.c.l.b16 %v1231
    %v5494 = vunpack.c.l.b16 %v1232
    %v5495 = vunpack.c.h.b16 %v1232
    %v5496 = vunpack.c.l.b16 %v1233
    %v5497 = vunpack.c.h.b16 %v1233
    %v5498 = vunpack.c.l.b16 %v1234
    %v5499 = vunpack.c.h.b16 %v1234
    %v5500 = vunpack.c.l.b16 %v1235
    %v5501 = vunpack.c.l.b16 %v1236
    %v5502 = vunpack.c.h.b16 %v1236
    %v5503 = vunpack.c.l.b16 %v1237
    %v5504 = vunpack.c.h.b16 %v1237
    %v5505 = vunpack.c.l.b16 %v1238
    %v5506 = vunpack.c.h.b16 %v1238
    %v5507 = vunpack.c.l.b16 %v1239
    %v5508 = vunpack.c.l.b16 %v1240
    %v5509 = vunpack.c.h.b16 %v1240
    %v5510 = vunpack.c.l.b16 %v1241
    %v5511 = vunpack.c.h.b16 %v1241
    %v5512 = vunpack.c.l.b16 %v1242
    %v5513 = vunpack.c.h.b16 %v1242
    %v5514 = vunpack.c.l.b16 %v1243
    %v5515 = vunpack.c.l.b16 %v1244
    %v5516 = vunpack.c.h.b16 %v1244
    %v5517 = vunpack.c.l.b16 %v1245
    %v5518 = vunpack.c.h.b16 %v1245
    %v5519 = vunpack.c.l.b16 %v1246
    %v5520 = vunpack.c.h.b16 %v1246
    %v5521 = vunpack.c.l.b16 %v1247
    %v5522 = vunpack.c.l.b16 %v1248
    %v5523 = vunpack.c.h.b16 %v1248
    %v5524 = vunpack.c.l.b16 %v1249
    %v5525 = vunpack.c.h.b16 %v1249
    %v5526 = vunpack.c.l.b16 %v1250
    %v5527 = vunpack.c.h.b16 %v1250
    %v5528 = vunpack.c.l.b16 %v1251
    %v5529 = vunpack.c.l.b16 %v1252
    %v5530 = vunpack.c.h.b16 %v1252
    %v5531 = vunpack.c.l.b16 %v1253
    %v5532 = vunpack.c.h.b16 %v1253
    %v5533 = vunpack.c.l.b16 %v1254
    %v5534 = vunpack.c.h.b16 %v1254
    %v5535 = vunpack.c.l.b16 %v1255
    %v5536 = vunpack.c.l.b16 %v1256
    %v5537 = vunpack.c.h.b16 %v1256
    %v5538 = vunpack.c.l.b16 %v1257
    %v5539 = vunpack.c.h.b16 %v1257
    %v5540 = vunpack.c.l.b16 %v1258
    %v5541 = vunpack.c.h.b16 %v1258
    %v5542 = vunpack.c.l.b16 %v1259
    %v5543 = vunpack.c.l.b16 %v1260
    %v5544 = vunpack.c.h.b16 %v1260
    %v5545 = vunpack.c.l.b16 %v1261
    %v5546 = vunpack.c.h.b16 %v1261
    %v5547 = vunpack.c.l.b16 %v1262
    %v5548 = vunpack.c.h.b16 %v1262
    %v5549 = vunpack.c.l.b16 %v1263
    %v5550 = vunpack.c.l.b16 %v1264
    %v5551 = vunpack.c.h.b16 %v1264
    %v5552 = vunpack.c.l.b16 %v1265
    %v5553 = vunpack.c.h.b16 %v1265
    %v5554 = vunpack.c.l.b16 %v1266
    %v5555 = vunpack.c.h.b16 %v1266
    %v5556 = vunpack.c.l.b16 %v1267
    %v5557 = vunpack.c.l.b16 %v1268
    %v5558 = vunpack.c.h.b16 %v1268
    %v5559 = vunpack.c.l.b16 %v1269
    %v5560 = vunpack.c.h.b16 %v1269
    %v5561 = vunpack.c.l.b16 %v1270
    %v5562 = vunpack.c.h.b16 %v1270
    %v5563 = vunpack.c.l.b16 %v1271
    %v5564 = vunpack.c.l.b16 %v1272
    %v5565 = vunpack.c.h.b16 %v1272
    %v5566 = vunpack.c.l.b16 %v1273
    %v5567 = vunpack.c.h.b16 %v1273
    %v5568 = vunpack.c.l.b16 %v1274
    %v5569 = vunpack.c.h.b16 %v1274
    %v5570 = vunpack.c.l.b16 %v1275
    %v5571 = vunpack.c.l.b16 %v1276
    %v5572 = vunpack.c.h.b16 %v1276
    %v5573 = vunpack.c.l.b16 %v1277
    %v5574 = vunpack.c.h.b16 %v1277
    %v5575 = vunpack.c.l.b16 %v1278
    %v5576 = vunpack.c.h.b16 %v1278
    %v5577 = vunpack.c.l.b16 %v1279
    %v5578 = vunpack.c.l.b16 %v1280
    %v5579 = vunpack.c.h.b16 %v1280
    %v5580 = vunpack.c.l.b16 %v1281
    %v5581 = vunpack.c.h.b16 %v1281
    %v5582 = vunpack.c.l.b16 %v1282
    %v5583 = vunpack.c.h.b16 %v1282
    %v5584 = vunpack.c.l.b16 %v1283
    %v5585 = vunpack.c.l.b16 %v1284
    %v5586 = vunpack.c.h.b16 %v1284
    %v5587 = vunpack.c.l.b16 %v1285
    %v5588 = vunpack.c.h.b16 %v1285
    %v5589 = vunpack.c.l.b16 %v1286
    %v5590 = vunpack.c.h.b16 %v1286
    %v5591 = vunpack.c.l.b16 %v1287
    %v5592 = vunpack.c.l.b16 %v1288
    %v5593 = vunpack.c.h.b16 %v1288
    %v5594 = vunpack.c.l.b16 %v1289
    %v5595 = vunpack.c.h.b16 %v1289
    %v5596 = vunpack.c.l.b16 %v1290
    %v5597 = vunpack.c.h.b16 %v1290
    %v5598 = vunpack.c.l.b16 %v1291
    %v5599 = vunpack.c.l.b16 %v1292
    %v5600 = vunpack.c.h.b16 %v1292
    %v5601 = vunpack.c.l.b16 %v1293
    %v5602 = vunpack.c.h.b16 %v1293
    %v5603 = vunpack.c.l.b16 %v1294
    %v5604 = vunpack.c.h.b16 %v1294
    %v5605 = vunpack.c.l.b16 %v1295
    %v5606 = vunpack.c.l.b16 %v1296
    %v5607 = vunpack.c.h.b16 %v1296
    %v5608 = vunpack.c.l.b16 %v1297
    %v5609 = vunpack.c.h.b16 %v1297
    %v5610 = vunpack.c.l.b16 %v1298
    %v5611 = vunpack.c.h.b16 %v1298
    %v5612 = vunpack.c.l.b16 %v1299
    %v5613 = vunpack.c.l.b16 %v1300
    %v5614 = vunpack.c.h.b16 %v1300
    %v5615 = vunpack.c.l.b16 %v1301
    %v5616 = vunpack.c.h.b16 %v1301
    %v5617 = vunpack.c.l.b16 %v1302
    %v5618 = vunpack.c.h.b16 %v1302
    %v5619 = vunpack.c.l.b16 %v1303
    %v5620 = vunpack.c.l.b16 %v1304
    %v5621 = vunpack.c.h.b16 %v1304
    %v5622 = vunpack.c.l.b16 %v1305
    %v5623 = vunpack.c.h.b16 %v1305
    %v5624 = vunpack.c.l.b16 %v1306
    %v5625 = vunpack.c.h.b16 %v1306
    %v5626 = vunpack.c.l.b16 %v1307
    %v5627 = vunpack.c.l.b16 %v1308
    %v5628 = vunpack.c.h.b16 %v1308
    %v5629 = vunpack.c.l.b16 %v1309
    %v5630 = vunpack.c.h.b16 %v1309
    %v5631 = vunpack.c.l.b16 %v1310
    %v5632 = vunpack.c.h.b16 %v1310
    %v5633 = vunpack.c.l.b16 %v1311
    %v5634 = vunpack.c.l.b16 %v1312
    %v5635 = vunpack.c.h.b16 %v1312
    %v5636 = vunpack.c.l.b16 %v1313
    %v5637 = vunpack.c.h.b16 %v1313
    %v5638 = vunpack.c.l.b16 %v1314
    %v5639 = vunpack.c.h.b16 %v1314
    %v5640 = vunpack.c.l.b16 %v1315
    %v5641 = vunpack.c.l.b16 %v1316
    %v5642 = vunpack.c.h.b16 %v1316
    %v5643 = vunpack.c.l.b16 %v1317
    %v5644 = vunpack.c.h.b16 %v1317
    %v5645 = vunpack.c.l.b16 %v1318
    %v5646 = vunpack.c.h.b16 %v1318
    %v5647 = vunpack.c.l.b16 %v1319
    %v5648 = vunpack.c.l.b16 %v1320
    %v5649 = vunpack.c.h.b16 %v1320
    %v5650 = vunpack.c.l.b16 %v1321
    %v5651 = vunpack.c.h.b16 %v1321
    %v5652 = vunpack.c.l.b16 %v1322
    %v5653 = vunpack.c.h.b16 %v1322
    %v5654 = vunpack.c.l.b16 %v1323
    %v5655 = vunpack.c.l.b16 %v1324
    %v5656 = vunpack.c.h.b16 %v1324
    %v5657 = vunpack.c.l.b16 %v1325
    %v5658 = vunpack.c.h.b16 %v1325
    %v5659 = vunpack.c.l.b16 %v1326
    %v5660 = vunpack.c.h.b16 %v1326
    %v5661 = vunpack.c.l.b16 %v1327
    %v5662 = vunpack.c.l.b16 %v1328
    %v5663 = vunpack.c.h.b16 %v1328
    %v5664 = vunpack.c.l.b16 %v1329
    %v5665 = vunpack.c.h.b16 %v1329
    %v5666 = vunpack.c.l.b16 %v1330
    %v5667 = vunpack.c.h.b16 %v1330
    %v5668 = vunpack.c.l.b16 %v1331
    %v5669 = vunpack.c.l.b16 %v1332
    %v5670 = vunpack.c.h.b16 %v1332
    %v5671 = vunpack.c.l.b16 %v1333
    %v5672 = vunpack.c.h.b16 %v1333
    %v5673 = vunpack.c.l.b16 %v1334
    %v5674 = vunpack.c.h.b16 %v1334
    %v5675 = vunpack.c.l.b16 %v1335
    %v5676 = vunpack.c.l.b16 %v1336
    %v5677 = vunpack.c.h.b16 %v1336
    %v5678 = vunpack.c.l.b16 %v1337
    %v5679 = vunpack.c.h.b16 %v1337
    %v5680 = vunpack.c.l.b16 %v1338
    %v5681 = vunpack.c.h.b16 %v1338
    %v5682 = vunpack.c.l.b16 %v1339
    %v5683 = vunpack.c.l.b16 %v1340
    %v5684 = vunpack.c.h.b16 %v1340
    %v5685 = vunpack.c.l.b16 %v1341
    %v5686 = vunpack.c.h.b16 %v1341
    %v5687 = vunpack.c.l.b16 %v1342
    %v5688 = vunpack.c.h.b16 %v1342
    %v5689 = vunpack.c.l.b16 %v1343
    %v5690 = vunpack.c.l.b16 %v1344
    %v5691 = vunpack.c.h.b16 %v1344
    %v5692 = vunpack.c.l.b16 %v1345
    %v5693 = vunpack.c.h.b16 %v1345
    %v5694 = vunpack.c.l.b16 %v1346
    %v5695 = vunpack.c.h.b16 %v1346
    %v5696 = vunpack.c.l.b16 %v1347
    %v5697 = vunpack.c.l.b16 %v1348
    %v5698 = vunpack.c.h.b16 %v1348
    %v5699 = vunpack.c.l.b16 %v1349
    %v5700 = vunpack.c.h.b16 %v1349
    %v5701 = vunpack.c.l.b16 %v1350
    %v5702 = vunpack.c.h.b16 %v1350
    %v5703 = vunpack.c.l.b16 %v1351
    %v5704 = vunpack.c.l.b16 %v1352
    %v5705 = vunpack.c.h.b16 %v1352
    %v5706 = vunpack.c.l.b16 %v1353
    %v5707 = vunpack.c.h.b16 %v1353
    %v5708 = vunpack.c.l.b16 %v1354
    %v5709 = vunpack.c.h.b16 %v1354
    %v5710 = vunpack.c.l.b16 %v1355
    %v5711 = vunpack.c.l.b16 %v1356
    %v5712 = vunpack.c.h.b16 %v1356
    %v5713 = vunpack.c.l.b16 %v1357
    %v5714 = vunpack.c.h.b16 %v1357
    %v5715 = vunpack.c.l.b16 %v1358
    %v5716 = vunpack.c.h.b16 %v1358
    %v5717 = vunpack.c.l.b16 %v1359
    %v5718 = vunpack.c.l.b16 %v1360
    %v5719 = vunpack.c.h.b16 %v1360
    %v5720 = vunpack.c.l.b16 %v1361
    %v5721 = vunpack.c.h.b16 %v1361
    %v5722 = vunpack.c.l.b16 %v1362
    %v5723 = vunpack.c.h.b16 %v1362
    %v5724 = vunpack.c.l.b16 %v1363
    %v5725 = vunpack.c.l.b16 %v1364
    %v5726 = vunpack.c.h.b16 %v1364
    %v5727 = vunpack.c.l.b16 %v1365
    %v5728 = vunpack.c.h.b16 %v1365
    %v5729 = vunpack.c.l.b16 %v1366
    %v5730 = vunpack.c.h.b16 %v1366
    %v5731 = vunpack.c.l.b16 %v1367
    %v5732 = vunpack.c.l.b16 %v1368
    %v5733 = vunpack.c.h.b16 %v1368
    %v5734 = vunpack.c.l.b16 %v1369
    %v5735 = vunpack.c.h.b16 %v1369
    %v5736 = vunpack.c.l.b16 %v1370
    %v5737 = vunpack.c.h.b16 %v1370
    %v5738 = vunpack.c.l.b16 %v1371
    %v5739 = vunpack.c.l.b16 %v1372
    %v5740 = vunpack.c.h.b16 %v1372
    %v5741 = vunpack.c.l.b16 %v1373
    %v5742 = vunpack.c.h.b16 %v1373
    %v5743 = vunpack.c.l.b16 %v1374
    %v5744 = vunpack.c.h.b16 %v1374
    %v5745 = vunpack.c.l.b16 %v1375
    %v5746 = vunpack.c.l.b16 %v1376
    %v5747 = vunpack.c.h.b16 %v1376
    %v5748 = vunpack.c.l.b16 %v1377
    %v5749 = vunpack.c.h.b16 %v1377
    %v5750 = vunpack.c.l.b16 %v1378
    %v5751 = vunpack.c.h.b16 %v1378
    %v5752 = vunpack.c.l.b16 %v1379
    %v5753 = vunpack.c.l.b16 %v1380
    %v5754 = vunpack.c.h.b16 %v1380
    %v5755 = vunpack.c.l.b16 %v1381
    %v5756 = vunpack.c.h.b16 %v1381
    %v5757 = vunpack.c.l.b16 %v1382
    %v5758 = vunpack.c.h.b16 %v1382
    %v5759 = vunpack.c.l.b16 %v1383
    %v5760 = vunpack.c.l.b16 %v1384
    %v5761 = vunpack.c.h.b16 %v1384
    %v5762 = vunpack.c.l.b16 %v1385
    %v5763 = vunpack.c.h.b16 %v1385
    %v5764 = vunpack.c.l.b16 %v1386
    %v5765 = vunpack.c.h.b16 %v1386
    %v5766 = vunpack.c.l.b16 %v1387
    %v5767 = vunpack.c.l.b16 %v1388
    %v5768 = vunpack.c.h.b16 %v1388
    %v5769 = vunpack.c.l.b16 %v1389
    %v5770 = vunpack.c.h.b16 %v1389
    %v5771 = vunpack.c.l.b16 %v1390
    %v5772 = vunpack.c.h.b16 %v1390
    %v5773 = vunpack.c.l.b16 %v1391
    %v5774 = vunpack.c.l.b16 %v1392
    %v5775 = vunpack.c.h.b16 %v1392
    %v5776 = vunpack.c.l.b16 %v1393
    %v5777 = vunpack.c.h.b16 %v1393
    %v5778 = vunpack.c.l.b16 %v1394
    %v5779 = vunpack.c.h.b16 %v1394
    %v5780 = vunpack.c.l.b16 %v1395
    %v5781 = vunpack.c.l.b16 %v1396
    %v5782 = vunpack.c.h.b16 %v1396
    %v5783 = vunpack.c.l.b16 %v1397
    %v5784 = vunpack.c.h.b16 %v1397
    %v5785 = vunpack.c.l.b16 %v1398
    %v5786 = vunpack.c.h.b16 %v1398
    %v5787 = vunpack.c.l.b16 %v1399
    %v5788 = vunpack.c.l.b16 %v1400
    %v5789 = vunpack.c.h.b16 %v1400
    %v5790 = vunpack.c.l.b16 %v1401
    %v5791 = vunpack.c.h.b16 %v1401
    %v5792 = vunpack.c.l.b16 %v1402
    %v5793 = vunpack.c.h.b16 %v1402
    %v5794 = vunpack.c.l.b16 %v1403
    %v5795 = vunpack.c.l.b16 %v1404
    %v5796 = vunpack.c.h.b16 %v1404
    %v5797 = vunpack.c.l.b16 %v1405
    %v5798 = vunpack.c.h.b16 %v1405
    %v5799 = vunpack.c.l.b16 %v1406
    %v5800 = vunpack.c.h.b16 %v1406
    %v5801 = vunpack.c.l.b16 %v1407
    %v5802 = vunpack.c.l.b16 %v1408
    %v5803 = vunpack.c.h.b16 %v1408
    %v5804 = vunpack.c.l.b16 %v1409
    %v5805 = vunpack.c.h.b16 %v1409
    %v5806 = vunpack.c.l.b16 %v1410
    %v5807 = vunpack.c.h.b16 %v1410
    %v5808 = vunpack.c.l.b16 %v1411
    %v5809 = vunpack.c.l.b16 %v1412
    %v5810 = vunpack.c.h.b16 %v1412
    %v5811 = vunpack.c.l.b16 %v1413
    %v5812 = vunpack.c.h.b16 %v1413
    %v5813 = vunpack.c.l.b16 %v1414
    %v5814 = vunpack.c.h.b16 %v1414
    %v5815 = vunpack.c.l.b16 %v1415
    %v5816 = vunpack.c.l.b16 %v1416
    %v5817 = vunpack.c.h.b16 %v1416
    %v5818 = vunpack.c.l.b16 %v1417
    %v5819 = vunpack.c.h.b16 %v1417
    %v5820 = vunpack.c.l.b16 %v1418
    %v5821 = vunpack.c.h.b16 %v1418
    %v5822 = vunpack.c.l.b16 %v1419
    %v5823 = vunpack.c.l.b16 %v1420
    %v5824 = vunpack.c.h.b16 %v1420
    %v5825 = vunpack.c.l.b16 %v1421
    %v5826 = vunpack.c.h.b16 %v1421
    %v5827 = vunpack.c.l.b16 %v1422
    %v5828 = vunpack.c.h.b16 %v1422
    %v5829 = vunpack.c.l.b16 %v1423
    %v5830 = vunpack.c.l.b16 %v1424
    %v5831 = vunpack.c.h.b16 %v1424
    %v5832 = vunpack.c.l.b16 %v1425
    %v5833 = vunpack.c.h.b16 %v1425
    %v5834 = vunpack.c.l.b16 %v1426
    %v5835 = vunpack.c.h.b16 %v1426
    %v5836 = vunpack.c.l.b16 %v1427
    %v5837 = vunpack.c.l.b16 %v1428
    %v5838 = vunpack.c.h.b16 %v1428
    %v5839 = vunpack.c.l.b16 %v1429
    %v5840 = vunpack.c.h.b16 %v1429
    %v5841 = vunpack.c.l.b16 %v1430
    %v5842 = vunpack.c.h.b16 %v1430
    %v5843 = vunpack.c.l.b16 %v1431
    %v5844 = vunpack.c.l.b16 %v1432
    %v5845 = vunpack.c.h.b16 %v1432
    %v5846 = vunpack.c.l.b16 %v1433
    %v5847 = vunpack.c.h.b16 %v1433
    %v5848 = vunpack.c.l.b16 %v1434
    %v5849 = vunpack.c.h.b16 %v1434
    %v5850 = vunpack.c.l.b16 %v1435
    %v5851 = vunpack.c.l.b16 %v1436
    %v5852 = vunpack.c.h.b16 %v1436
    %v5853 = vunpack.c.l.b16 %v1437
    %v5854 = vunpack.c.h.b16 %v1437
    %v5855 = vunpack.c.l.b16 %v1438
    %v5856 = vunpack.c.h.b16 %v1438
    %v5857 = vunpack.c.l.b16 %v1439
    %v5858 = vunpack.c.l.b16 %v1440
    %v5859 = vunpack.c.h.b16 %v1440
    %v5860 = vunpack.c.l.b16 %v1441
    %v5861 = vunpack.c.h.b16 %v1441
    %v5862 = vunpack.c.l.b16 %v1442
    %v5863 = vunpack.c.h.b16 %v1442
    %v5864 = vunpack.c.l.b16 %v1443
    %v5865 = vunpack.c.l.b16 %v1444
    %v5866 = vunpack.c.h.b16 %v1444
    %v5867 = vunpack.c.l.b16 %v1445
    %v5868 = vunpack.c.h.b16 %v1445
    %v5869 = vunpack.c.l.b16 %v1446
    %v5870 = vunpack.c.h.b16 %v1446
    %v5871 = vunpack.c.l.b16 %v1447
    %v5872 = vunpack.c.l.b16 %v1448
    %v5873 = vunpack.c.h.b16 %v1448
    %v5874 = vunpack.c.l.b16 %v1449
    %v5875 = vunpack.c.h.b16 %v1449
    %v5876 = vunpack.c.l.b16 %v1450
    %v5877 = vunpack.c.h.b16 %v1450
    %v5878 = vunpack.c.l.b16 %v1451
    %v5879 = vunpack.c.l.b16 %v1452
    %v5880 = vunpack.c.h.b16 %v1452
    %v5881 = vunpack.c.l.b16 %v1453
    %v5882 = vunpack.c.h.b16 %v1453
    %v5883 = vunpack.c.l.b16 %v1454
    %v5884 = vunpack.c.h.b16 %v1454
    %v5885 = vunpack.c.l.b16 %v1455
    %v5886 = vunpack.c.l.b16 %v1456
    %v5887 = vunpack.c.h.b16 %v1456
    %v5888 = vunpack.c.l.b16 %v1457
    %v5889 = vunpack.c.h.b16 %v1457
    %v5890 = vunpack.c.l.b16 %v1458
    %v5891 = vunpack.c.h.b16 %v1458
    %v5892 = vunpack.c.l.b16 %v1459
    %v5893 = vunpack.c.l.b16 %v1460
    %v5894 = vunpack.c.h.b16 %v1460
    %v5895 = vunpack.c.l.b16 %v1461
    %v5896 = vunpack.c.h.b16 %v1461
    %v5897 = vunpack.c.l.b16 %v1462
    %v5898 = vunpack.c.h.b16 %v1462
    %v5899 = vunpack.c.l.b16 %v1463
    %v5900 = vunpack.c.l.b16 %v1464
    %v5901 = vunpack.c.h.b16 %v1464
    %v5902 = vunpack.c.l.b16 %v1465
    %v5903 = vunpack.c.h.b16 %v1465
    %v5904 = vunpack.c.l.b16 %v1466
    %v5905 = vunpack.c.h.b16 %v1466
    %v5906 = vunpack.c.l.b16 %v1467
    %v5907 = vunpack.c.l.b16 %v1468
    %v5908 = vunpack.c.h.b16 %v1468
    %v5909 = vunpack.c.l.b16 %v1469
    %v5910 = vunpack.c.h.b16 %v1469
    %v5911 = vunpack.c.l.b16 %v1470
    %v5912 = vunpack.c.h.b16 %v1470
    %v5913 = vunpack.c.l.b16 %v1471
    %v5914 = vunpack.c.l.b16 %v1472
    %v5915 = vunpack.c.h.b16 %v1472
    %v5916 = vunpack.c.l.b16 %v1473
    %v5917 = vunpack.c.h.b16 %v1473
    %v5918 = vunpack.c.l.b16 %v1474
    %v5919 = vunpack.c.h.b16 %v1474
    %v5920 = vunpack.c.l.b16 %v1475
    %v5921 = vunpack.c.l.b16 %v1476
    %v5922 = vunpack.c.h.b16 %v1476
    %v5923 = vunpack.c.l.b16 %v1477
    %v5924 = vunpack.c.h.b16 %v1477
    %v5925 = vunpack.c.l.b16 %v1478
    %v5926 = vunpack.c.h.b16 %v1478
    %v5927 = vunpack.c.l.b16 %v1479
    %v5928 = vunpack.c.l.b16 %v1480
    %v5929 = vunpack.c.h.b16 %v1480
    %v5930 = vunpack.c.l.b16 %v1481
    %v5931 = vunpack.c.h.b16 %v1481
    %v5932 = vunpack.c.l.b16 %v1482
    %v5933 = vunpack.c.h.b16 %v1482
    %v5934 = vunpack.c.l.b16 %v1483
    %v5935 = vunpack.c.l.b16 %v1484
    %v5936 = vunpack.c.h.b16 %v1484
    %v5937 = vunpack.c.l.b16 %v1485
    %v5938 = vunpack.c.h.b16 %v1485
    %v5939 = vunpack.c.l.b16 %v1486
    %v5940 = vunpack.c.h.b16 %v1486
    %v5941 = vunpack.c.l.b16 %v1487
    %v5942 = vunpack.c.l.b16 %v1488
    %v5943 = vunpack.c.h.b16 %v1488
    %v5944 = vunpack.c.l.b16 %v1489
    %v5945 = vunpack.c.h.b16 %v1489
    %v5946 = vunpack.c.l.b16 %v1490
    %v5947 = vunpack.c.h.b16 %v1490
    %v5948 = vunpack.c.l.b16 %v1491
    %v5949 = vunpack.c.l.b16 %v1492
    %v5950 = vunpack.c.h.b16 %v1492
    %v5951 = vunpack.c.l.b16 %v1493
    %v5952 = vunpack.c.h.b16 %v1493
    %v5953 = vunpack.c.l.b16 %v1494
    %v5954 = vunpack.c.h.b16 %v1494
    %v5955 = vunpack.c.l.b16 %v1495
    %v5956 = vunpack.c.l.b16 %v1496
    %v5957 = vunpack.c.h.b16 %v1496
    %v5958 = vunpack.c.l.b16 %v1497
    %v5959 = vunpack.c.h.b16 %v1497
    %v5960 = vunpack.c.l.b16 %v1498
    %v5961 = vunpack.c.h.b16 %v1498
    %v5962 = vunpack.c.l.b16 %v1499
    %v5963 = vunpack.c.l.b16 %v1500
    %v5964 = vunpack.c.h.b16 %v1500
    %v5965 = vunpack.c.l.b16 %v1501
    %v5966 = vunpack.c.h.b16 %v1501
    %v5967 = vunpack.c.l.b16 %v1502
    %v5968 = vunpack.c.h.b16 %v1502
    %v5969 = vunpack.c.l.b16 %v1503
    %v5970 = vunpack.c.l.b16 %v1504
    %v5971 = vunpack.c.h.b16 %v1504
    %v5972 = vunpack.c.l.b16 %v1505
    %v5973 = vunpack.c.h.b16 %v1505
    %v5974 = vunpack.c.l.b16 %v1506
    %v5975 = vunpack.c.h.b16 %v1506
    %v5976 = vunpack.c.l.b16 %v1507
    %v5977 = vunpack.c.l.b16 %v1508
    %v5978 = vunpack.c.h.b16 %v1508
    %v5979 = vunpack.c.l.b16 %v1509
    %v5980 = vunpack.c.h.b16 %v1509
    %v5981 = vunpack.c.l.b16 %v1510
    %v5982 = vunpack.c.h.b16 %v1510
    %v5983 = vunpack.c.l.b16 %v1511
    %v5984 = vunpack.c.l.b16 %v1512
    %v5985 = vunpack.c.h.b16 %v1512
    %v5986 = vunpack.c.l.b16 %v1513
    %v5987 = vunpack.c.h.b16 %v1513
    %v5988 = vunpack.c.l.b16 %v1514
    %v5989 = vunpack.c.h.b16 %v1514
    %v5990 = vunpack.c.l.b16 %v1515
    %v5991 = vunpack.c.l.b16 %v1516
    %v5992 = vunpack.c.h.b16 %v1516
    %v5993 = vunpack.c.l.b16 %v1517
    %v5994 = vunpack.c.h.b16 %v1517
    %v5995 = vunpack.c.l.b16 %v1518
    %v5996 = vunpack.c.h.b16 %v1518
    %v5997 = vunpack.c.l.b16 %v1519
    %v5998 = vunpack.c.l.b16 %v1520
    %v5999 = vunpack.c.h.b16 %v1520
    %v6000 = vunpack.c.l.b16 %v1521
    %v6001 = vunpack.c.h.b16 %v1521
    %v6002 = vunpack.c.l.b16 %v1522
    %v6003 = vunpack.c.h.b16 %v1522
    %v6004 = vunpack.c.l.b16 %v1523
    %v6005 = vunpack.c.l.b16 %v1524
    %v6006 = vunpack.c.h.b16 %v1524
    %v6007 = vunpack.c.l.b16 %v1525
    %v6008 = vunpack.c.h.b16 %v1525
    %v6009 = vunpack.c.l.b16 %v1526
    %v6010 = vunpack.c.h.b16 %v1526
    %v6011 = vunpack.c.l.b16 %v1527
    %v6012 = vunpack.c.l.b16 %v1528
    %v6013 = vunpack.c.h.b16 %v1528
    %v6014 = vunpack.c.l.b16 %v1529
    %v6015 = vunpack.c.h.b16 %v1529
    %v6016 = vunpack.c.l.b16 %v1530
    %v6017 = vunpack.c.h.b16 %v1530
    %v6018 = vunpack.c.l.b16 %v1531
    %v6019 = vunpack.c.l.b16 %v1532
    %v6020 = vunpack.c.h.b16 %v1532
    %v6021 = vunpack.c.l.b16 %v1533
    %v6022 = vunpack.c.h.b16 %v1533
    %v6023 = vunpack.c.l.b16 %v1534
    %v6024 = vunpack.c.h.b16 %v1534
    %v6025 = vunpack.c.l.b16 %v1535
    %v6026 = vunpack.c.l.b16 %v1536
    %v6027 = vunpack.c.h.b16 %v1536
    %v6028 = vunpack.c.l.b16 %v1537
    %v6029 = vunpack.c.h.b16 %v1537
    %v6030 = vunpack.c.l.b16 %v1538
    %v6031 = vunpack.c.h.b16 %v1538
    %v6032 = vunpack.c.l.b16 %v1539
    %v6033 = vunpack.c.l.b16 %v1540
    %v6034 = vunpack.c.h.b16 %v1540
    %v6035 = vunpack.c.l.b16 %v1541
    %v6036 = vunpack.c.h.b16 %v1541
    %v6037 = vunpack.c.l.b16 %v1542
    %v6038 = vunpack.c.h.b16 %v1542
    %v6039 = vunpack.c.l.b16 %v1543
    %v6040 = vunpack.c.l.b16 %v1544
    %v6041 = vunpack.c.h.b16 %v1544
    %v6042 = vunpack.c.l.b16 %v1545
    %v6043 = vunpack.c.h.b16 %v1545
    %v6044 = vunpack.c.l.b16 %v1546
    %v6045 = vunpack.c.h.b16 %v1546
    %v6046 = vunpack.c.l.b16 %v1547
    %v6047 = vunpack.c.l.b16 %v1548
    %v6048 = vunpack.c.h.b16 %v1548
    %v6049 = vunpack.c.l.b16 %v1549
    %v6050 = vunpack.c.h.b16 %v1549
    %v6051 = vunpack.c.l.b16 %v1550
    %v6052 = vunpack.c.h.b16 %v1550
    %v6053 = vunpack.c.l.b16 %v1551
    %v6054 = vunpack.c.l.b16 %v1552
    %v6055 = vunpack.c.h.b16 %v1552
    %v6056 = vunpack.c.l.b16 %v1553
    %v6057 = vunpack.c.h.b16 %v1553
    %v6058 = vunpack.c.l.b16 %v1554
    %v6059 = vunpack.c.h.b16 %v1554
    %v6060 = vunpack.c.l.b16 %v1555
    %v6061 = vunpack.c.l.b16 %v1556
    %v6062 = vunpack.c.h.b16 %v1556
    %v6063 = vunpack.c.l.b16 %v1557
    %v6064 = vunpack.c.h.b16 %v1557
    %v6065 = vunpack.c.l.b16 %v1558
    %v6066 = vunpack.c.h.b16 %v1558
    %v6067 = vunpack.c.l.b16 %v1559
    %v6068 = vunpack.c.l.b16 %v1560
    %v6069 = vunpack.c.h.b16 %v1560
    %v6070 = vunpack.c.l.b16 %v1561
    %v6071 = vunpack.c.h.b16 %v1561
    %v6072 = vunpack.c.l.b16 %v1562
    %v6073 = vunpack.c.h.b16 %v1562
    %v6074 = vunpack.c.l.b16 %v1563
    %v6075 = vunpack.c.l.b16 %v1564
    %v6076 = vunpack.c.h.b16 %v1564
    %v6077 = vunpack.c.l.b16 %v1565
    %v6078 = vunpack.c.h.b16 %v1565
    %v6079 = vunpack.c.l.b16 %v1566
    %v6080 = vunpack.c.h.b16 %v1566
    %v6081 = vunpack.c.l.b16 %v1567
    %v6082 = vunpack.c.l.b16 %v1568
    %v6083 = vunpack.c.h.b16 %v1568
    %v6084 = vunpack.c.l.b16 %v1569
    %v6085 = vunpack.c.h.b16 %v1569
    %v6086 = vunpack.c.l.b16 %v1570
    %v6087 = vunpack.c.h.b16 %v1570
    %v6088 = vunpack.c.l.b16 %v1571
    %v6089 = vunpack.c.l.b16 %v1572
    %v6090 = vunpack.c.h.b16 %v1572
    %v6091 = vunpack.c.l.b16 %v1573
    %v6092 = vunpack.c.h.b16 %v1573
    %v6093 = vunpack.c.l.b16 %v1574
    %v6094 = vunpack.c.h.b16 %v1574
    %v6095 = vunpack.c.l.b16 %v1575
    %v6096 = vunpack.c.l.b16 %v1576
    %v6097 = vunpack.c.h.b16 %v1576
    %v6098 = vunpack.c.l.b16 %v1577
    %v6099 = vunpack.c.h.b16 %v1577
    %v6100 = vunpack.c.l.b16 %v1578
    %v6101 = vunpack.c.h.b16 %v1578
    %v6102 = vunpack.c.l.b16 %v1579
    %v6103 = vunpack.c.l.b16 %v1580
    %v6104 = vunpack.c.h.b16 %v1580
    %v6105 = vunpack.c.l.b16 %v1581
    %v6106 = vunpack.c.h.b16 %v1581
    %v6107 = vunpack.c.l.b16 %v1582
    %v6108 = vunpack.c.h.b16 %v1582
    %v6109 = vunpack.c.l.b16 %v1583
    %v6110 = vunpack.c.l.b16 %v1584
    %v6111 = vunpack.c.h.b16 %v1584
    %v6112 = vunpack.c.l.b16 %v1585
    %v6113 = vunpack.c.h.b16 %v1585
    %v6114 = vunpack.c.l.b16 %v1586
    %v6115 = vunpack.c.h.b16 %v1586
    %v6116 = vunpack.c.l.b16 %v1587
    %v6117 = vunpack.c.l.b16 %v1588
    %v6118 = vunpack.c.h.b16 %v1588
    %v6119 = vunpack.c.l.b16 %v1589
    %v6120 = vunpack.c.h.b16 %v1589
    %v6121 = vunpack.c.l.b16 %v1590
    %v6122 = vunpack.c.h.b16 %v1590
    %v6123 = vunpack.c.l.b16 %v1591
    %v6124 = vunpack.c.l.b16 %v1592
    %v6125 = vunpack.c.h.b16 %v1592
    %v6126 = vunpack.c.l.b16 %v1593
    %v6127 = vunpack.c.h.b16 %v1593
    %v6128 = vunpack.c.l.b16 %v1594
    %v6129 = vunpack.c.h.b16 %v1594
    %v6130 = vunpack.c.l.b16 %v1595
    %v6131 = vunpack.c.l.b16 %v1596
    %v6132 = vunpack.c.h.b16 %v1596
    %v6133 = vunpack.c.l.b16 %v1597
    %v6134 = vunpack.c.h.b16 %v1597
    %v6135 = vunpack.c.l.b16 %v1598
    %v6136 = vunpack.c.h.b16 %v1598
    %v6137 = vunpack.c.l.b16 %v1599
    %v6138 = vpack.c.b16 %v3401, %v3394
    %v6139 = vpack.c.b16 %v3402, %v3395
    %v6140 = vpack.c.b16 %v3403, %v3396
    %v6141 = vpack.c.b16 %v3404, %v3397
    %v6142 = vpack.c.b16 %v3405, %v3398
    %v6143 = vpack.c.b16 %v3406, %v3399
    %v6144 = vpack.c.b16 %v3407, %v3400
    %v6145 = vpack.c.b16 %v3415, %v3408
    %v6146 = vpack.c.b16 %v3416, %v3409
    %v6147 = vpack.c.b16 %v3417, %v3410
    %v6148 = vpack.c.b16 %v3418, %v3411
    %v6149 = vpack.c.b16 %v3419, %v3412
    %v6150 = vpack.c.b16 %v3420, %v3413
    %v6151 = vpack.c.b16 %v3421, %v3414
    %v6152 = vpack.c.b16 %v3429, %v3422
    %v6153 = vpack.c.b16 %v3430, %v3423
    %v6154 = vpack.c.b16 %v3431, %v3424
    %v6155 = vpack.c.b16 %v3432, %v3425
    %v6156 = vpack.c.b16 %v3433, %v3426
    %v6157 = vpack.c.b16 %v3434, %v3427
    %v6158 = vpack.c.b16 %v3435, %v3428
    %v6159 = vpack.c.b16 %v3443, %v3436
    %v6160 = vpack.c.b16 %v3444, %v3437
    %v6161 = vpack.c.b16 %v3445, %v3438
    %v6162 = vpack.c.b16 %v3446, %v3439
    %v6163 = vpack.c.b16 %v3447, %v3440
    %v6164 = vpack.c.b16 %v3448, %v3441
    %v6165 = vpack.c.b16 %v3449, %v3442
    %v6166 = vpack.c.b16 %v3457, %v3450
    %v6167 = vpack.c.b16 %v3458, %v3451
    %v6168 = vpack.c.b16 %v3459, %v3452
    %v6169 = vpack.c.b16 %v3460, %v3453
    %v6170 = vpack.c.b16 %v3461, %v3454
    %v6171 = vpack.c.b16 %v3462, %v3455
    %v6172 = vpack.c.b16 %v3463, %v3456
    %v6173 = vpack.c.b16 %v3471, %v3464
    %v6174 = vpack.c.b16 %v3472, %v3465
    %v6175 = vpack.c.b16 %v3473, %v3466
    %v6176 = vpack.c.b16 %v3474, %v3467
    %v6177 = vpack.c.b16 %v3475, %v3468
    %v6178 = vpack.c.b16 %v3476, %v3469
    %v6179 = vpack.c.b16 %v3477, %v3470
    %v6180 = vpack.c.b16 %v3485, %v3478
    %v6181 = vpack.c.b16 %v3486, %v3479
    %v6182 = vpack.c.b16 %v3487, %v3480
    %v6183 = vpack.c.b16 %v3488, %v3481
    %v6184 = vpack.c.b16 %v3489, %v3482
    %v6185 = vpack.c.b16 %v3490, %v3483
    %v6186 = vpack.c.b16 %v3491, %v3484
    %v6187 = vpack.c.b16 %v3499, %v3492
    %v6188 = vpack.c.b16 %v3500, %v3493
    %v6189 = vpack.c.b16 %v3501, %v3494
    %v6190 = vpack.c.b16 %v3502, %v3495
    %v6191 = vpack.c.b16 %v3503, %v3496
    %v6192 = vpack.c.b16 %v3504, %v3497
    %v6193 = vpack.c.b16 %v3505, %v3498
    %v6194 = vpack.c.b16 %v3513, %v3506
    %v6195 = vpack.c.b16 %v3514, %v3507
    %v6196 = vpack.c.b16 %v3515, %v3508
    %v6197 = vpack.c.b16 %v3516, %v3509
    %v6198 = vpack.c.b16 %v3517, %v3510
    %v6199 = vpack.c.b16 %v3518, %v3511
    %v6200 = vpack.c.b16 %v3519, %v3512
    %v6201 = vpack.c.b16 %v3527, %v3520
    %v6202 = vpack.c.b16 %v3528, %v3521
    %v6203 = vpack.c.b16 %v3529, %v3522
    %v6204 = vpack.c.b16 %v3530, %v3523
    %v6205 = vpack.c.b16 %v3531, %v3524
    %v6206 = vpack.c.b16 %v3532, %v3525
    %v6207 = vpack.c.b16 %v3533, %v3526
    %v6208 = vpack.c.b16 %v3541, %v3534
    %v6209 = vpack.c.b16 %v3542, %v3535
    %v6210 = vpack.c.b16 %v3543, %v3536
    %v6211 = vpack.c.b16 %v3544, %v3537
    %v6212 = vpack.c.b16 %v3545, %v3538
    %v6213 = vpack.c.b16 %v3546, %v3539
    %v6214 = vpack.c.b16 %v3547, %v3540
    %v6215 = vpack.c.b16 %v3555, %v3548
    %v6216 = vpack.c.b16 %v3556, %v3549
    %v6217 = vpack.c.b16 %v3557, %v3550
    %v6218 = vpack.c.b16 %v3558, %v3551
    %v6219 = vpack.c.b16 %v3559, %v3552
    %v6220 = vpack.c.b16 %v3560, %v3553
    %v6221 = vpack.c.b16 %v3561, %v3554
    %v6222 = vpack.c.b16 %v3569, %v3562
    %v6223 = vpack.c.b16 %v3570, %v3563
    %v6224 = vpack.c.b16 %v3571, %v3564
    %v6225 = vpack.c.b16 %v3572, %v3565
    %v6226 = vpack.c.b16 %v3573, %v3566
    %v6227 = vpack.c.b16 %v3574, %v3567
    %v6228 = vpack.c.b16 %v3575, %v3568
    %v6229 = vpack.c.b16 %v3583, %v3576
    %v6230 = vpack.c.b16 %v3584, %v3577
    %v6231 = vpack.c.b16 %v3585, %v3578
    %v6232 = vpack.c.b16 %v3586, %v3579
    %v6233 = vpack.c.b16 %v3587, %v3580
    %v6234 = vpack.c.b16 %v3588, %v3581
    %v6235 = vpack.c.b16 %v3589, %v3582
    %v6236 = vpack.c.b16 %v3597, %v3590
    %v6237 = vpack.c.b16 %v3598, %v3591
    %v6238 = vpack.c.b16 %v3599, %v3592
    %v6239 = vpack.c.b16 %v3600, %v3593
    %v6240 = vpack.c.b16 %v3601, %v3594
    %v6241 = vpack.c.b16 %v3602, %v3595
    %v6242 = vpack.c.b16 %v3603, %v3596
    %v6243 = vpack.c.b16 %v3611, %v3604
    %v6244 = vpack.c.b16 %v3612, %v3605
    %v6245 = vpack.c.b16 %v3613, %v3606
    %v6246 = vpack.c.b16 %v3614, %v3607
    %v6247 = vpack.c.b16 %v3615, %v3608
    %v6248 = vpack.c.b16 %v3616, %v3609
    %v6249 = vpack.c.b16 %v3617, %v3610
    %v6250 = vpack.c.b16 %v3625, %v3618
    %v6251 = vpack.c.b16 %v3626, %v3619
    %v6252 = vpack.c.b16 %v3627, %v3620
    %v6253 = vpack.c.b16 %v3628, %v3621
    %v6254 = vpack.c.b16 %v3629, %v3622
    %v6255 = vpack.c.b16 %v3630, %v3623
    %v6256 = vpack.c.b16 %v3631, %v3624
    %v6257 = vpack.c.b16 %v3639, %v3632
    %v6258 = vpack.c.b16 %v3640, %v3633
    %v6259 = vpack.c.b16 %v3641, %v3634
    %v6260 = vpack.c.b16 %v3642, %v3635
    %v6261 = vpack.c.b16 %v3643, %v3636
    %v6262 = vpack.c.b16 %v3644, %v3637
    %v6263 = vpack.c.b16 %v3645, %v3638
    %v6264 = vpack.c.b16 %v3653, %v3646
    %v6265 = vpack.c.b16 %v3654, %v3647
    %v6266 = vpack.c.b16 %v3655, %v3648
    %v6267 = vpack.c.b16 %v3656, %v3649
    %v6268 = vpack.c.b16 %v3657, %v3650
    %v6269 = vpack.c.b16 %v3658, %v3651
    %v6270 = vpack.c.b16 %v3659, %v3652
    %v6271 = vpack.c.b16 %v3667, %v3660
    %v6272 = vpack.c.b16 %v3668, %v3661
    %v6273 = vpack.c.b16 %v3669, %v3662
    %v6274 = vpack.c.b16 %v3670, %v3663
    %v6275 = vpack.c.b16 %v3671, %v3664
    %v6276 = vpack.c.b16 %v3672, %v3665
    %v6277 = vpack.c.b16 %v3673, %v3666
    %v6278 = vpack.c.b16 %v3681, %v3674
    %v6279 = vpack.c.b16 %v3682, %v3675
    %v6280 = vpack.c.b16 %v3683, %v3676
    %v6281 = vpack.c.b16 %v3684, %v3677
    %v6282 = vpack.c.b16 %v3685, %v3678
    %v6283 = vpack.c.b16 %v3686, %v3679
    %v6284 = vpack.c.b16 %v3687, %v3680
    %v6285 = vpack.c.b16 %v3695, %v3688
    %v6286 = vpack.c.b16 %v3696, %v3689
    %v6287 = vpack.c.b16 %v3697, %v3690
    %v6288 = vpack.c.b16 %v3698, %v3691
    %v6289 = vpack.c.b16 %v3699, %v3692
    %v6290 = vpack.c.b16 %v3700, %v3693
    %v6291 = vpack.c.b16 %v3701, %v3694
    %v6292 = vpack.c.b16 %v3709, %v3702
    %v6293 = vpack.c.b16 %v3710, %v3703
    %v6294 = vpack.c.b16 %v3711, %v3704
    %v6295 = vpack.c.b16 %v3712, %v3705
    %v6296 = vpack.c.b16 %v3713, %v3706
    %v6297 = vpack.c.b16 %v3714, %v3707
    %v6298 = vpack.c.b16 %v3715, %v3708
    %v6299 = vpack.c.b16 %v3723, %v3716
    %v6300 = vpack.c.b16 %v3724, %v3717
    %v6301 = vpack.c.b16 %v3725, %v3718
    %v6302 = vpack.c.b16 %v3726, %v3719
    %v6303 = vpack.c.b16 %v3727, %v3720
    %v6304 = vpack.c.b16 %v3728, %v3721
    %v6305 = vpack.c.b16 %v3729, %v3722
    %v6306 = vpack.c.b16 %v3737, %v3730
    %v6307 = vpack.c.b16 %v3738, %v3731
    %v6308 = vpack.c.b16 %v3739, %v3732
    %v6309 = vpack.c.b16 %v3740, %v3733
    %v6310 = vpack.c.b16 %v3741, %v3734
    %v6311 = vpack.c.b16 %v3742, %v3735
    %v6312 = vpack.c.b16 %v3743, %v3736
    %v6313 = vpack.c.b16 %v3751, %v3744
    %v6314 = vpack.c.b16 %v3752, %v3745
    %v6315 = vpack.c.b16 %v3753, %v3746
    %v6316 = vpack.c.b16 %v3754, %v3747
    %v6317 = vpack.c.b16 %v3755, %v3748
    %v6318 = vpack.c.b16 %v3756, %v3749
    %v6319 = vpack.c.b16 %v3757, %v3750
    %v6320 = vpack.c.b16 %v3765, %v3758
    %v6321 = vpack.c.b16 %v3766, %v3759
    %v6322 = vpack.c.b16 %v3767, %v3760
    %v6323 = vpack.c.b16 %v3768, %v3761
    %v6324 = vpack.c.b16 %v3769, %v3762
    %v6325 = vpack.c.b16 %v3770, %v3763
    %v6326 = vpack.c.b16 %v3771, %v3764
    %v6327 = vpack.c.b16 %v3779, %v3772
    %v6328 = vpack.c.b16 %v3780, %v3773
    %v6329 = vpack.c.b16 %v3781, %v3774
    %v6330 = vpack.c.b16 %v3782, %v3775
    %v6331 = vpack.c.b16 %v3783, %v3776
    %v6332 = vpack.c.b16 %v3784, %v3777
    %v6333 = vpack.c.b16 %v3785, %v3778
    %v6334 = vpack.c.b16 %v3793, %v3786
    %v6335 = vpack.c.b16 %v3794, %v3787
    %v6336 = vpack.c.b16 %v3795, %v3788
    %v6337 = vpack.c.b16 %v3796, %v3789
    %v6338 = vpack.c.b16 %v3797, %v3790
    %v6339 = vpack.c.b16 %v3798, %v3791
    %v6340 = vpack.c.b16 %v3799, %v3792
    %v6341 = vpack.c.b16 %v3807, %v3800
    %v6342 = vpack.c.b16 %v3808, %v3801
    %v6343 = vpack.c.b16 %v3809, %v3802
    %v6344 = vpack.c.b16 %v3810, %v3803
    %v6345 = vpack.c.b16 %v3811, %v3804
    %v6346 = vpack.c.b16 %v3812, %v3805
    %v6347 = vpack.c.b16 %v3813, %v3806
    %v6348 = vpack.c.b16 %v3821, %v3814
    %v6349 = vpack.c.b16 %v3822, %v3815
    %v6350 = vpack.c.b16 %v3823, %v3816
    %v6351 = vpack.c.b16 %v3824, %v3817
    %v6352 = vpack.c.b16 %v3825, %v3818
    %v6353 = vpack.c.b16 %v3826, %v3819
    %v6354 = vpack.c.b16 %v3827, %v3820
    %v6355 = vpack.c.b16 %v3835, %v3828
    %v6356 = vpack.c.b16 %v3836, %v3829
    %v6357 = vpack.c.b16 %v3837, %v3830
    %v6358 = vpack.c.b16 %v3838, %v3831
    %v6359 = vpack.c.b16 %v3839, %v3832
    %v6360 = vpack.c.b16 %v3840, %v3833
    %v6361 = vpack.c.b16 %v3841, %v3834
    %v6362 = vpack.c.b16 %v3849, %v3842
    %v6363 = vpack.c.b16 %v3850, %v3843
    %v6364 = vpack.c.b16 %v3851, %v3844
    %v6365 = vpack.c.b16 %v3852, %v3845
    %v6366 = vpack.c.b16 %v3853, %v3846
    %v6367 = vpack.c.b16 %v3854, %v3847
    %v6368 = vpack.c.b16 %v3855, %v3848
    %v6369 = vpack.c.b16 %v3863, %v3856
    %v6370 = vpack.c.b16 %v3864, %v3857
    %v6371 = vpack.c.b16 %v3865, %v3858
    %v6372 = vpack.c.b16 %v3866, %v3859
    %v6373 = vpack.c.b16 %v3867, %v3860
    %v6374 = vpack.c.b16 %v3868, %v3861
    %v6375 = vpack.c.b16 %v3869, %v3862
    %v6376 = vpack.c.b16 %v3877, %v3870
    %v6377 = vpack.c.b16 %v3878, %v3871
    %v6378 = vpack.c.b16 %v3879, %v3872
    %v6379 = vpack.c.b16 %v3880, %v3873
    %v6380 = vpack.c.b16 %v3881, %v3874
    %v6381 = vpack.c.b16 %v3882, %v3875
    %v6382 = vpack.c.b16 %v3883, %v3876
    %v6383 = vpack.c.b16 %v3891, %v3884
    %v6384 = vpack.c.b16 %v3892, %v3885
    %v6385 = vpack.c.b16 %v3893, %v3886
    %v6386 = vpack.c.b16 %v3894, %v3887
    %v6387 = vpack.c.b16 %v3895, %v3888
    %v6388 = vpack.c.b16 %v3896, %v3889
    %v6389 = vpack.c.b16 %v3897, %v3890
    %v6390 = vpack.c.b16 %v3905, %v3898
    %v6391 = vpack.c.b16 %v3906, %v3899
    %v6392 = vpack.c.b16 %v3907, %v3900
    %v6393 = vpack.c.b16 %v3908, %v3901
    %v6394 = vpack.c.b16 %v3909, %v3902
    %v6395 = vpack.c.b16 %v3910, %v3903
    %v6396 = vpack.c.b16 %v3911, %v3904
    %v6397 = vpack.c.b16 %v3919, %v3912
    %v6398 = vpack.c.b16 %v3920, %v3913
    %v6399 = vpack.c.b16 %v3921, %v3914
    %v6400 = vpack.c.b16 %v3922, %v3915
    %v6401 = vpack.c.b16 %v3923, %v3916
    %v6402 = vpack.c.b16 %v3924, %v3917
    %v6403 = vpack.c.b16 %v3925, %v3918
    %v6404 = vpack.c.b16 %v3933, %v3926
    %v6405 = vpack.c.b16 %v3934, %v3927
    %v6406 = vpack.c.b16 %v3935, %v3928
    %v6407 = vpack.c.b16 %v3936, %v3929
    %v6408 = vpack.c.b16 %v3937, %v3930
    %v6409 = vpack.c.b16 %v3938, %v3931
    %v6410 = vpack.c.b16 %v3939, %v3932
    %v6411 = vpack.c.b16 %v3947, %v3940
    %v6412 = vpack.c.b16 %v3948, %v3941
    %v6413 = vpack.c.b16 %v3949, %v3942
    %v6414 = vpack.c.b16 %v3950, %v3943
    %v6415 = vpack.c.b16 %v3951, %v3944
    %v6416 = vpack.c.b16 %v3952, %v3945
    %v6417 = vpack.c.b16 %v3953, %v3946
    %v6418 = vpack.c.b16 %v3961, %v3954
    %v6419 = vpack.c.b16 %v3962, %v3955
    %v6420 = vpack.c.b16 %v3963, %v3956
    %v6421 = vpack.c.b16 %v3964, %v3957
    %v6422 = vpack.c.b16 %v3965, %v3958
    %v6423 = vpack.c.b16 %v3966, %v3959
    %v6424 = vpack.c.b16 %v3967, %v3960
    %v6425 = vpack.c.b16 %v3975, %v3968
    %v6426 = vpack.c.b16 %v3976, %v3969
    %v6427 = vpack.c.b16 %v3977, %v3970
    %v6428 = vpack.c.b16 %v3978, %v3971
    %v6429 = vpack.c.b16 %v3979, %v3972
    %v6430 = vpack.c.b16 %v3980, %v3973
    %v6431 = vpack.c.b16 %v3981, %v3974
    %v6432 = vpack.c.b16 %v3989, %v3982
    %v6433 = vpack.c.b16 %v3990, %v3983
    %v6434 = vpack.c.b16 %v3991, %v3984
    %v6435 = vpack.c.b16 %v3992, %v3985
    %v6436 = vpack.c.b16 %v3993, %v3986
    %v6437 = vpack.c.b16 %v3994, %v3987
    %v6438 = vpack.c.b16 %v3995, %v3988
    %v6439 = vpack.c.b16 %v4003, %v3996
    %v6440 = vpack.c.b16 %v4004, %v3997
    %v6441 = vpack.c.b16 %v4005, %v3998
    %v6442 = vpack.c.b16 %v4006, %v3999
    %v6443 = vpack.c.b16 %v4007, %v4000
    %v6444 = vpack.c.b16 %v4008, %v4001
    %v6445 = vpack.c.b16 %v4009, %v4002
    %v6446 = vpack.c.b16 %v4017, %v4010
    %v6447 = vpack.c.b16 %v4018, %v4011
    %v6448 = vpack.c.b16 %v4019, %v4012
    %v6449 = vpack.c.b16 %v4020, %v4013
    %v6450 = vpack.c.b16 %v4021, %v4014
    %v6451 = vpack.c.b16 %v4022, %v4015
    %v6452 = vpack.c.b16 %v4023, %v4016
    %v6453 = vpack.c.b16 %v4031, %v4024
    %v6454 = vpack.c.b16 %v4032, %v4025
    %v6455 = vpack.c.b16 %v4033, %v4026
    %v6456 = vpack.c.b16 %v4034, %v4027
    %v6457 = vpack.c.b16 %v4035, %v4028
    %v6458 = vpack.c.b16 %v4036, %v4029
    %v6459 = vpack.c.b16 %v4037, %v4030
    %v6460 = vpack.c.b16 %v4045, %v4038
    %v6461 = vpack.c.b16 %v4046, %v4039
    %v6462 = vpack.c.b16 %v4047, %v4040
    %v6463 = vpack.c.b16 %v4048, %v4041
    %v6464 = vpack.c.b16 %v4049, %v4042
    %v6465 = vpack.c.b16 %v4050, %v4043
    %v6466 = vpack.c.b16 %v4051, %v4044
    %v6467 = vpack.c.b16 %v4059, %v4052
    %v6468 = vpack.c.b16 %v4060, %v4053
    %v6469 = vpack.c.b16 %v4061, %v4054
    %v6470 = vpack.c.b16 %v4062, %v4055
    %v6471 = vpack.c.b16 %v4063, %v4056
    %v6472 = vpack.c.b16 %v4064, %v4057
    %v6473 = vpack.c.b16 %v4065, %v4058
    %v6474 = vpack.c.b16 %v4073, %v4066
    %v6475 = vpack.c.b16 %v4074, %v4067
    %v6476 = vpack.c.b16 %v4075, %v4068
    %v6477 = vpack.c.b16 %v4076, %v4069
    %v6478 = vpack.c.b16 %v4077, %v4070
    %v6479 = vpack.c.b16 %v4078, %v4071
    %v6480 = vpack.c.b16 %v4079, %v4072
    %v6481 = vpack.c.b16 %v4087, %v4080
    %v6482 = vpack.c.b16 %v4088, %v4081
    %v6483 = vpack.c.b16 %v4089, %v4082
    %v6484 = vpack.c.b16 %v4090, %v4083
    %v6485 = vpack.c.b16 %v4091, %v4084
    %v6486 = vpack.c.b16 %v4092, %v4085
    %v6487 = vpack.c.b16 %v4093, %v4086
    %v6488 = vpack.c.b16 %v4101, %v4094
    %v6489 = vpack.c.b16 %v4102, %v4095
    %v6490 = vpack.c.b16 %v4103, %v4096
    %v6491 = vpack.c.b16 %v4104, %v4097
    %v6492 = vpack.c.b16 %v4105, %v4098
    %v6493 = vpack.c.b16 %v4106, %v4099
    %v6494 = vpack.c.b16 %v4107, %v4100
    %v6495 = vpack.c.b16 %v4115, %v4108
    %v6496 = vpack.c.b16 %v4116, %v4109
    %v6497 = vpack.c.b16 %v4117, %v4110
    %v6498 = vpack.c.b16 %v4118, %v4111
    %v6499 = vpack.c.b16 %v4119, %v4112
    %v6500 = vpack.c.b16 %v4120, %v4113
    %v6501 = vpack.c.b16 %v4121, %v4114
    %v6502 = vpack.c.b16 %v4129, %v4122
    %v6503 = vpack.c.b16 %v4130, %v4123
    %v6504 = vpack.c.b16 %v4131, %v4124
    %v6505 = vpack.c.b16 %v4132, %v4125
    %v6506 = vpack.c.b16 %v4133, %v4126
    %v6507 = vpack.c.b16 %v4134, %v4127
    %v6508 = vpack.c.b16 %v4135, %v4128
    %v6509 = vpack.c.b16 %v4143, %v4136
    %v6510 = vpack.c.b16 %v4144, %v4137
    %v6511 = vpack.c.b16 %v4145, %v4138
    %v6512 = vpack.c.b16 %v4146, %v4139
    %v6513 = vpack.c.b16 %v4147, %v4140
    %v6514 = vpack.c.b16 %v4148, %v4141
    %v6515 = vpack.c.b16 %v4149, %v4142
    %v6516 = vpack.c.b16 %v4157, %v4150
    %v6517 = vpack.c.b16 %v4158, %v4151
    %v6518 = vpack.c.b16 %v4159, %v4152
    %v6519 = vpack.c.b16 %v4160, %v4153
    %v6520 = vpack.c.b16 %v4161, %v4154
    %v6521 = vpack.c.b16 %v4162, %v4155
    %v6522 = vpack.c.b16 %v4163, %v4156
    %v6523 = vpack.c.b16 %v4171, %v4164
    %v6524 = vpack.c.b16 %v4172, %v4165
    %v6525 = vpack.c.b16 %v4173, %v4166
    %v6526 = vpack.c.b16 %v4174, %v4167
    %v6527 = vpack.c.b16 %v4175, %v4168
    %v6528 = vpack.c.b16 %v4176, %v4169
    %v6529 = vpack.c.b16 %v4177, %v4170
    %v6530 = vpack.c.b16 %v4185, %v4178
    %v6531 = vpack.c.b16 %v4186, %v4179
    %v6532 = vpack.c.b16 %v4187, %v4180
    %v6533 = vpack.c.b16 %v4188, %v4181
    %v6534 = vpack.c.b16 %v4189, %v4182
    %v6535 = vpack.c.b16 %v4190, %v4183
    %v6536 = vpack.c.b16 %v4191, %v4184
    %v6537 = vpack.c.b16 %v4199, %v4192
    %v6538 = vpack.c.b16 %v4200, %v4193
    %v6539 = vpack.c.b16 %v4201, %v4194
    %v6540 = vpack.c.b16 %v4202, %v4195
    %v6541 = vpack.c.b16 %v4203, %v4196
    %v6542 = vpack.c.b16 %v4204, %v4197
    %v6543 = vpack.c.b16 %v4205, %v4198
    %v6544 = vpack.c.b16 %v4213, %v4206
    %v6545 = vpack.c.b16 %v4214, %v4207
    %v6546 = vpack.c.b16 %v4215, %v4208
    %v6547 = vpack.c.b16 %v4216, %v4209
    %v6548 = vpack.c.b16 %v4217, %v4210
    %v6549 = vpack.c.b16 %v4218, %v4211
    %v6550 = vpack.c.b16 %v4219, %v4212
    %v6551 = vpack.c.b16 %v4227, %v4220
    %v6552 = vpack.c.b16 %v4228, %v4221
    %v6553 = vpack.c.b16 %v4229, %v4222
    %v6554 = vpack.c.b16 %v4230, %v4223
    %v6555 = vpack.c.b16 %v4231, %v4224
    %v6556 = vpack.c.b16 %v4232, %v4225
    %v6557 = vpack.c.b16 %v4233, %v4226
    %v6558 = vpack.c.b16 %v4241, %v4234
    %v6559 = vpack.c.b16 %v4242, %v4235
    %v6560 = vpack.c.b16 %v4243, %v4236
    %v6561 = vpack.c.b16 %v4244, %v4237
    %v6562 = vpack.c.b16 %v4245, %v4238
    %v6563 = vpack.c.b16 %v4246, %v4239
    %v6564 = vpack.c.b16 %v4247, %v4240
    %v6565 = vpack.c.b16 %v4255, %v4248
    %v6566 = vpack.c.b16 %v4256, %v4249
    %v6567 = vpack.c.b16 %v4257, %v4250
    %v6568 = vpack.c.b16 %v4258, %v4251
    %v6569 = vpack.c.b16 %v4259, %v4252
    %v6570 = vpack.c.b16 %v4260, %v4253
    %v6571 = vpack.c.b16 %v4261, %v4254
    %v6572 = vpack.c.b16 %v4269, %v4262
    %v6573 = vpack.c.b16 %v4270, %v4263
    %v6574 = vpack.c.b16 %v4271, %v4264
    %v6575 = vpack.c.b16 %v4272, %v4265
    %v6576 = vpack.c.b16 %v4273, %v4266
    %v6577 = vpack.c.b16 %v4274, %v4267
    %v6578 = vpack.c.b16 %v4275, %v4268
    %v6579 = vpack.c.b16 %v4283, %v4276
    %v6580 = vpack.c.b16 %v4284, %v4277
    %v6581 = vpack.c.b16 %v4285, %v4278
    %v6582 = vpack.c.b16 %v4286, %v4279
    %v6583 = vpack.c.b16 %v4287, %v4280
    %v6584 = vpack.c.b16 %v4288, %v4281
    %v6585 = vpack.c.b16 %v4289, %v4282
    %v6586 = vpack.c.b16 %v4297, %v4290
    %v6587 = vpack.c.b16 %v4298, %v4291
    %v6588 = vpack.c.b16 %v4299, %v4292
    %v6589 = vpack.c.b16 %v4300, %v4293
    %v6590 = vpack.c.b16 %v4301, %v4294
    %v6591 = vpack.c.b16 %v4302, %v4295
    %v6592 = vpack.c.b16 %v4303, %v4296
    %v6593 = vpack.c.b16 %v4311, %v4304
    %v6594 = vpack.c.b16 %v4312, %v4305
    %v6595 = vpack.c.b16 %v4313, %v4306
    %v6596 = vpack.c.b16 %v4314, %v4307
    %v6597 = vpack.c.b16 %v4315, %v4308
    %v6598 = vpack.c.b16 %v4316, %v4309
    %v6599 = vpack.c.b16 %v4317, %v4310
    %v6600 = vpack.c.b16 %v4325, %v4318
    %v6601 = vpack.c.b16 %v4326, %v4319
    %v6602 = vpack.c.b16 %v4327, %v4320
    %v6603 = vpack.c.b16 %v4328, %v4321
    %v6604 = vpack.c.b16 %v4329, %v4322
    %v6605 = vpack.c.b16 %v4330, %v4323
    %v6606 = vpack.c.b16 %v4331, %v4324
    %v6607 = vpack.c.b16 %v4339, %v4332
    %v6608 = vpack.c.b16 %v4340, %v4333
    %v6609 = vpack.c.b16 %v4341, %v4334
    %v6610 = vpack.c.b16 %v4342, %v4335
    %v6611 = vpack.c.b16 %v4343, %v4336
    %v6612 = vpack.c.b16 %v4344, %v4337
    %v6613 = vpack.c.b16 %v4345, %v4338
    %v6614 = vpack.c.b16 %v4353, %v4346
    %v6615 = vpack.c.b16 %v4354, %v4347
    %v6616 = vpack.c.b16 %v4355, %v4348
    %v6617 = vpack.c.b16 %v4356, %v4349
    %v6618 = vpack.c.b16 %v4357, %v4350
    %v6619 = vpack.c.b16 %v4358, %v4351
    %v6620 = vpack.c.b16 %v4359, %v4352
    %v6621 = vpack.c.b16 %v4367, %v4360
    %v6622 = vpack.c.b16 %v4368, %v4361
    %v6623 = vpack.c.b16 %v4369, %v4362
    %v6624 = vpack.c.b16 %v4370, %v4363
    %v6625 = vpack.c.b16 %v4371, %v4364
    %v6626 = vpack.c.b16 %v4372, %v4365
    %v6627 = vpack.c.b16 %v4373, %v4366
    %v6628 = vpack.c.b16 %v4381, %v4374
    %v6629 = vpack.c.b16 %v4382, %v4375
    %v6630 = vpack.c.b16 %v4383, %v4376
    %v6631 = vpack.c.b16 %v4384, %v4377
    %v6632 = vpack.c.b16 %v4385, %v4378
    %v6633 = vpack.c.b16 %v4386, %v4379
    %v6634 = vpack.c.b16 %v4387, %v4380
    %v6635 = vpack.c.b16 %v4395, %v4388
    %v6636 = vpack.c.b16 %v4396, %v4389
    %v6637 = vpack.c.b16 %v4397, %v4390
    %v6638 = vpack.c.b16 %v4398, %v4391
    %v6639 = vpack.c.b16 %v4399, %v4392
    %v6640 = vpack.c.b16 %v4400, %v4393
    %v6641 = vpack.c.b16 %v4401, %v4394
    %v6642 = vpack.c.b16 %v4409, %v4402
    %v6643 = vpack.c.b16 %v4410, %v4403
    %v6644 = vpack.c.b16 %v4411, %v4404
    %v6645 = vpack.c.b16 %v4412, %v4405
    %v6646 = vpack.c.b16 %v4413, %v4406
    %v6647 = vpack.c.b16 %v4414, %v4407
    %v6648 = vpack.c.b16 %v4415, %v4408
    %v6649 = vpack.c.b16 %v4423, %v4416
    %v6650 = vpack.c.b16 %v4424, %v4417
    %v6651 = vpack.c.b16 %v4425, %v4418
    %v6652 = vpack.c.b16 %v4426, %v4419
    %v6653 = vpack.c.b16 %v4427, %v4420
    %v6654 = vpack.c.b16 %v4428, %v4421
    %v6655 = vpack.c.b16 %v4429, %v4422
    %v6656 = vpack.c.b16 %v4437, %v4430
    %v6657 = vpack.c.b16 %v4438, %v4431
    %v6658 = vpack.c.b16 %v4439, %v4432
    %v6659 = vpack.c.b16 %v4440, %v4433
    %v6660 = vpack.c.b16 %v4441, %v4434
    %v6661 = vpack.c.b16 %v4442, %v4435
    %v6662 = vpack.c.b16 %v4443, %v4436
    %v6663 = vpack.c.b16 %v4451, %v4444
    %v6664 = vpack.c.b16 %v4452, %v4445
    %v6665 = vpack.c.b16 %v4453, %v4446
    %v6666 = vpack.c.b16 %v4454, %v4447
    %v6667 = vpack.c.b16 %v4455, %v4448
    %v6668 = vpack.c.b16 %v4456, %v4449
    %v6669 = vpack.c.b16 %v4457, %v4450
    %v6670 = vpack.c.b16 %v4465, %v4458
    %v6671 = vpack.c.b16 %v4466, %v4459
    %v6672 = vpack.c.b16 %v4467, %v4460
    %v6673 = vpack.c.b16 %v4468, %v4461
    %v6674 = vpack.c.b16 %v4469, %v4462
    %v6675 = vpack.c.b16 %v4470, %v4463
    %v6676 = vpack.c.b16 %v4471, %v4464
    %v6677 = vpack.c.b16 %v4479, %v4472
    %v6678 = vpack.c.b16 %v4480, %v4473
    %v6679 = vpack.c.b16 %v4481, %v4474
    %v6680 = vpack.c.b16 %v4482, %v4475
    %v6681 = vpack.c.b16 %v4483, %v4476
    %v6682 = vpack.c.b16 %v4484, %v4477
    %v6683 = vpack.c.b16 %v4485, %v4478
    %v6684 = vpack.c.b16 %v4493, %v4486
    %v6685 = vpack.c.b16 %v4494, %v4487
    %v6686 = vpack.c.b16 %v4495, %v4488
    %v6687 = vpack.c.b16 %v4496, %v4489
    %v6688 = vpack.c.b16 %v4497, %v4490
    %v6689 = vpack.c.b16 %v4498, %v4491
    %v6690 = vpack.c.b16 %v4499, %v4492
    %v6691 = vpack.c.b16 %v4507, %v4500
    %v6692 = vpack.c.b16 %v4508, %v4501
    %v6693 = vpack.c.b16 %v4509, %v4502
    %v6694 = vpack.c.b16 %v4510, %v4503
    %v6695 = vpack.c.b16 %v4511, %v4504
    %v6696 = vpack.c.b16 %v4512, %v4505
    %v6697 = vpack.c.b16 %v4513, %v4506
    %v6698 = vpack.c.b16 %v4521, %v4514
    %v6699 = vpack.c.b16 %v4522, %v4515
    %v6700 = vpack.c.b16 %v4523, %v4516
    %v6701 = vpack.c.b16 %v4524, %v4517
    %v6702 = vpack.c.b16 %v4525, %v4518
    %v6703 = vpack.c.b16 %v4526, %v4519
    %v6704 = vpack.c.b16 %v4527, %v4520
    %v6705 = vpack.c.b16 %v4535, %v4528
    %v6706 = vpack.c.b16 %v4536, %v4529
    %v6707 = vpack.c.b16 %v4537, %v4530
    %v6708 = vpack.c.b16 %v4538, %v4531
    %v6709 = vpack.c.b16 %v4539, %v4532
    %v6710 = vpack.c.b16 %v4540, %v4533
    %v6711 = vpack.c.b16 %v4541, %v4534
    %v6712 = vpack.c.b16 %v4549, %v4542
    %v6713 = vpack.c.b16 %v4550, %v4543
    %v6714 = vpack.c.b16 %v4551, %v4544
    %v6715 = vpack.c.b16 %v4552, %v4545
    %v6716 = vpack.c.b16 %v4553, %v4546
    %v6717 = vpack.c.b16 %v4554, %v4547
    %v6718 = vpack.c.b16 %v4555, %v4548
    %v6719 = vpack.c.b16 %v4563, %v4556
    %v6720 = vpack.c.b16 %v4564, %v4557
    %v6721 = vpack.c.b16 %v4565, %v4558
    %v6722 = vpack.c.b16 %v4566, %v4559
    %v6723 = vpack.c.b16 %v4567, %v4560
    %v6724 = vpack.c.b16 %v4568, %v4561
    %v6725 = vpack.c.b16 %v4569, %v4562
    %v6726 = vpack.c.b16 %v4577, %v4570
    %v6727 = vpack.c.b16 %v4578, %v4571
    %v6728 = vpack.c.b16 %v4579, %v4572
    %v6729 = vpack.c.b16 %v4580, %v4573
    %v6730 = vpack.c.b16 %v4581, %v4574
    %v6731 = vpack.c.b16 %v4582, %v4575
    %v6732 = vpack.c.b16 %v4583, %v4576
    %v6733 = vpack.c.b16 %v4591, %v4584
    %v6734 = vpack.c.b16 %v4592, %v4585
    %v6735 = vpack.c.b16 %v4593, %v4586
    %v6736 = vpack.c.b16 %v4594, %v4587
    %v6737 = vpack.c.b16 %v4595, %v4588
    %v6738 = vpack.c.b16 %v4596, %v4589
    %v6739 = vpack.c.b16 %v4597, %v4590
    %v6740 = vpack.c.b16 %v4605, %v4598
    %v6741 = vpack.c.b16 %v4606, %v4599
    %v6742 = vpack.c.b16 %v4607, %v4600
    %v6743 = vpack.c.b16 %v4608, %v4601
    %v6744 = vpack.c.b16 %v4609, %v4602
    %v6745 = vpack.c.b16 %v4610, %v4603
    %v6746 = vpack.c.b16 %v4611, %v4604
    %v6747 = vpack.c.b16 %v4619, %v4612
    %v6748 = vpack.c.b16 %v4620, %v4613
    %v6749 = vpack.c.b16 %v4621, %v4614
    %v6750 = vpack.c.b16 %v4622, %v4615
    %v6751 = vpack.c.b16 %v4623, %v4616
    %v6752 = vpack.c.b16 %v4624, %v4617
    %v6753 = vpack.c.b16 %v4625, %v4618
    %v6754 = vpack.c.b16 %v4633, %v4626
    %v6755 = vpack.c.b16 %v4634, %v4627
    %v6756 = vpack.c.b16 %v4635, %v4628
    %v6757 = vpack.c.b16 %v4636, %v4629
    %v6758 = vpack.c.b16 %v4637, %v4630
    %v6759 = vpack.c.b16 %v4638, %v4631
    %v6760 = vpack.c.b16 %v4639, %v4632
    %v6761 = vpack.c.b16 %v4647, %v4640
    %v6762 = vpack.c.b16 %v4648, %v4641
    %v6763 = vpack.c.b16 %v4649, %v4642
    %v6764 = vpack.c.b16 %v4650, %v4643
    %v6765 = vpack.c.b16 %v4651, %v4644
    %v6766 = vpack.c.b16 %v4652, %v4645
    %v6767 = vpack.c.b16 %v4653, %v4646
    %v6768 = vpack.c.b16 %v4661, %v4654
    %v6769 = vpack.c.b16 %v4662, %v4655
    %v6770 = vpack.c.b16 %v4663, %v4656
    %v6771 = vpack.c.b16 %v4664, %v4657
    %v6772 = vpack.c.b16 %v4665, %v4658
    %v6773 = vpack.c.b16 %v4666, %v4659
    %v6774 = vpack.c.b16 %v4667, %v4660
    %v6775 = vpack.c.b16 %v4675, %v4668
    %v6776 = vpack.c.b16 %v4676, %v4669
    %v6777 = vpack.c.b16 %v4677, %v4670
    %v6778 = vpack.c.b16 %v4678, %v4671
    %v6779 = vpack.c.b16 %v4679, %v4672
    %v6780 = vpack.c.b16 %v4680, %v4673
    %v6781 = vpack.c.b16 %v4681, %v4674
    %v6782 = vpack.c.b16 %v4689, %v4682
    %v6783 = vpack.c.b16 %v4690, %v4683
    %v6784 = vpack.c.b16 %v4691, %v4684
    %v6785 = vpack.c.b16 %v4692, %v4685
    %v6786 = vpack.c.b16 %v4693, %v4686
    %v6787 = vpack.c.b16 %v4694, %v4687
    %v6788 = vpack.c.b16 %v4695, %v4688
    %v6789 = vpack.c.b16 %v4703, %v4696
    %v6790 = vpack.c.b16 %v4704, %v4697
    %v6791 = vpack.c.b16 %v4705, %v4698
    %v6792 = vpack.c.b16 %v4706, %v4699
    %v6793 = vpack.c.b16 %v4707, %v4700
    %v6794 = vpack.c.b16 %v4708, %v4701
    %v6795 = vpack.c.b16 %v4709, %v4702
    %v6796 = vpack.c.b16 %v4717, %v4710
    %v6797 = vpack.c.b16 %v4718, %v4711
    %v6798 = vpack.c.b16 %v4719, %v4712
    %v6799 = vpack.c.b16 %v4720, %v4713
    %v6800 = vpack.c.b16 %v4721, %v4714
    %v6801 = vpack.c.b16 %v4722, %v4715
    %v6802 = vpack.c.b16 %v4723, %v4716
    %v6803 = vpack.c.b16 %v4731, %v4724
    %v6804 = vpack.c.b16 %v4732, %v4725
    %v6805 = vpack.c.b16 %v4733, %v4726
    %v6806 = vpack.c.b16 %v4734, %v4727
    %v6807 = vpack.c.b16 %v4735, %v4728
    %v6808 = vpack.c.b16 %v4736, %v4729
    %v6809 = vpack.c.b16 %v4737, %v4730
    %v6810 = vpack.c.b16 %v4745, %v4738
    %v6811 = vpack.c.b16 %v4746, %v4739
    %v6812 = vpack.c.b16 %v4747, %v4740
    %v6813 = vpack.c.b16 %v4748, %v4741
    %v6814 = vpack.c.b16 %v4749, %v4742
    %v6815 = vpack.c.b16 %v4750, %v4743
    %v6816 = vpack.c.b16 %v4751, %v4744
    %v6817 = vpack.c.b16 %v4759, %v4752
    %v6818 = vpack.c.b16 %v4760, %v4753
    %v6819 = vpack.c.b16 %v4761, %v4754
    %v6820 = vpack.c.b16 %v4762, %v4755
    %v6821 = vpack.c.b16 %v4763, %v4756
    %v6822 = vpack.c.b16 %v4764, %v4757
    %v6823 = vpack.c.b16 %v4765, %v4758
    %v6824 = vpack.c.b16 %v4773, %v4766
    %v6825 = vpack.c.b16 %v4774, %v4767
    %v6826 = vpack.c.b16 %v4775, %v4768
    %v6827 = vpack.c.b16 %v4776, %v4769
    %v6828 = vpack.c.b16 %v4777, %v4770
    %v6829 = vpack.c.b16 %v4778, %v4771
    %v6830 = vpack.c.b16 %v4779, %v4772
    %v6831 = vpack.c.b16 %v4787, %v4780
    %v6832 = vpack.c.b16 %v4788, %v4781
    %v6833 = vpack.c.b16 %v4789, %v4782
    %v6834 = vpack.c.b16 %v4790, %v4783
    %v6835 = vpack.c.b16 %v4791, %v4784
    %v6836 = vpack.c.b16 %v4792, %v4785
    %v6837 = vpack.c.b16 %v4793, %v4786
    %v6838 = vpack.c.b16 %v4801, %v4794
    %v6839 = vpack.c.b16 %v4802, %v4795
    %v6840 = vpack.c.b16 %v4803, %v4796
    %v6841 = vpack.c.b16 %v4804, %v4797
    %v6842 = vpack.c.b16 %v4805, %v4798
    %v6843 = vpack.c.b16 %v4806, %v4799
    %v6844 = vpack.c.b16 %v4807, %v4800
    %v6845 = vpack.c.b16 %v4815, %v4808
    %v6846 = vpack.c.b16 %v4816, %v4809
    %v6847 = vpack.c.b16 %v4817, %v4810
    %v6848 = vpack.c.b16 %v4818, %v4811
    %v6849 = vpack.c.b16 %v4819, %v4812
    %v6850 = vpack.c.b16 %v4820, %v4813
    %v6851 = vpack.c.b16 %v4821, %v4814
    %v6852 = vpack.c.b16 %v4829, %v4822
    %v6853 = vpack.c.b16 %v4830, %v4823
    %v6854 = vpack.c.b16 %v4831, %v4824
    %v6855 = vpack.c.b16 %v4832, %v4825
    %v6856 = vpack.c.b16 %v4833, %v4826
    %v6857 = vpack.c.b16 %v4834, %v4827
    %v6858 = vpack.c.b16 %v4835, %v4828
    %v6859 = vpack.c.b16 %v4843, %v4836
    %v6860 = vpack.c.b16 %v4844, %v4837
    %v6861 = vpack.c.b16 %v4845, %v4838
    %v6862 = vpack.c.b16 %v4846, %v4839
    %v6863 = vpack.c.b16 %v4847, %v4840
    %v6864 = vpack.c.b16 %v4848, %v4841
    %v6865 = vpack.c.b16 %v4849, %v4842
    %v6866 = vpack.c.b16 %v4857, %v4850
    %v6867 = vpack.c.b16 %v4858, %v4851
    %v6868 = vpack.c.b16 %v4859, %v4852
    %v6869 = vpack.c.b16 %v4860, %v4853
    %v6870 = vpack.c.b16 %v4861, %v4854
    %v6871 = vpack.c.b16 %v4862, %v4855
    %v6872 = vpack.c.b16 %v4863, %v4856
    %v6873 = vpack.c.b16 %v4871, %v4864
    %v6874 = vpack.c.b16 %v4872, %v4865
    %v6875 = vpack.c.b16 %v4873, %v4866
    %v6876 = vpack.c.b16 %v4874, %v4867
    %v6877 = vpack.c.b16 %v4875, %v4868
    %v6878 = vpack.c.b16 %v4876, %v4869
    %v6879 = vpack.c.b16 %v4877, %v4870
    %v6880 = vpack.c.b16 %v4885, %v4878
    %v6881 = vpack.c.b16 %v4886, %v4879
    %v6882 = vpack.c.b16 %v4887, %v4880
    %v6883 = vpack.c.b16 %v4888, %v4881
    %v6884 = vpack.c.b16 %v4889, %v4882
    %v6885 = vpack.c.b16 %v4890, %v4883
    %v6886 = vpack.c.b16 %v4891, %v4884
    %v6887 = vpack.c.b16 %v4899, %v4892
    %v6888 = vpack.c.b16 %v4900, %v4893
    %v6889 = vpack.c.b16 %v4901, %v4894
    %v6890 = vpack.c.b16 %v4902, %v4895
    %v6891 = vpack.c.b16 %v4903, %v4896
    %v6892 = vpack.c.b16 %v4904, %v4897
    %v6893 = vpack.c.b16 %v4905, %v4898
    %v6894 = vpack.c.b16 %v4913, %v4906
    %v6895 = vpack.c.b16 %v4914, %v4907
    %v6896 = vpack.c.b16 %v4915, %v4908
    %v6897 = vpack.c.b16 %v4916, %v4909
    %v6898 = vpack.c.b16 %v4917, %v4910
    %v6899 = vpack.c.b16 %v4918, %v4911
    %v6900 = vpack.c.b16 %v4919, %v4912
    %v6901 = vpack.c.b16 %v4927, %v4920
    %v6902 = vpack.c.b16 %v4928, %v4921
    %v6903 = vpack.c.b16 %v4929, %v4922
    %v6904 = vpack.c.b16 %v4930, %v4923
    %v6905 = vpack.c.b16 %v4931, %v4924
    %v6906 = vpack.c.b16 %v4932, %v4925
    %v6907 = vpack.c.b16 %v4933, %v4926
    %v6908 = vpack.c.b16 %v4941, %v4934
    %v6909 = vpack.c.b16 %v4942, %v4935
    %v6910 = vpack.c.b16 %v4943, %v4936
    %v6911 = vpack.c.b16 %v4944, %v4937
    %v6912 = vpack.c.b16 %v4945, %v4938
    %v6913 = vpack.c.b16 %v4946, %v4939
    %v6914 = vpack.c.b16 %v4947, %v4940
    %v6915 = vpack.c.b16 %v4955, %v4948
    %v6916 = vpack.c.b16 %v4956, %v4949
    %v6917 = vpack.c.b16 %v4957, %v4950
    %v6918 = vpack.c.b16 %v4958, %v4951
    %v6919 = vpack.c.b16 %v4959, %v4952
    %v6920 = vpack.c.b16 %v4960, %v4953
    %v6921 = vpack.c.b16 %v4961, %v4954
    %v6922 = vpack.c.b16 %v4969, %v4962
    %v6923 = vpack.c.b16 %v4970, %v4963
    %v6924 = vpack.c.b16 %v4971, %v4964
    %v6925 = vpack.c.b16 %v4972, %v4965
    %v6926 = vpack.c.b16 %v4973, %v4966
    %v6927 = vpack.c.b16 %v4974, %v4967
    %v6928 = vpack.c.b16 %v4975, %v4968
    %v6929 = vpack.c.b16 %v4983, %v4976
    %v6930 = vpack.c.b16 %v4984, %v4977
    %v6931 = vpack.c.b16 %v4985, %v4978
    %v6932 = vpack.c.b16 %v4986, %v4979
    %v6933 = vpack.c.b16 %v4987, %v4980
    %v6934 = vpack.c.b16 %v4988, %v4981
    %v6935 = vpack.c.b16 %v4989, %v4982
    %v6936 = vpack.c.b16 %v4997, %v4990
    %v6937 = vpack.c.b16 %v4998, %v4991
    %v6938 = vpack.c.b16 %v4999, %v4992
    %v6939 = vpack.c.b16 %v5000, %v4993
    %v6940 = vpack.c.b16 %v5001, %v4994
    %v6941 = vpack.c.b16 %v5002, %v4995
    %v6942 = vpack.c.b16 %v5003, %v4996
    %v6943 = vpack.c.b16 %v5011, %v5004
    %v6944 = vpack.c.b16 %v5012, %v5005
    %v6945 = vpack.c.b16 %v5013, %v5006
    %v6946 = vpack.c.b16 %v5014, %v5007
    %v6947 = vpack.c.b16 %v5015, %v5008
    %v6948 = vpack.c.b16 %v5016, %v5009
    %v6949 = vpack.c.b16 %v5017, %v5010
    %v6950 = vpack.c.b16 %v5025, %v5018
    %v6951 = vpack.c.b16 %v5026, %v5019
    %v6952 = vpack.c.b16 %v5027, %v5020
    %v6953 = vpack.c.b16 %v5028, %v5021
    %v6954 = vpack.c.b16 %v5029, %v5022
    %v6955 = vpack.c.b16 %v5030, %v5023
    %v6956 = vpack.c.b16 %v5031, %v5024
    %v6957 = vpack.c.b16 %v5039, %v5032
    %v6958 = vpack.c.b16 %v5040, %v5033
    %v6959 = vpack.c.b16 %v5041, %v5034
    %v6960 = vpack.c.b16 %v5042, %v5035
    %v6961 = vpack.c.b16 %v5043, %v5036
    %v6962 = vpack.c.b16 %v5044, %v5037
    %v6963 = vpack.c.b16 %v5045, %v5038
    %v6964 = vpack.c.b16 %v5053, %v5046
    %v6965 = vpack.c.b16 %v5054, %v5047
    %v6966 = vpack.c.b16 %v5055, %v5048
    %v6967 = vpack.c.b16 %v5056, %v5049
    %v6968 = vpack.c.b16 %v5057, %v5050
    %v6969 = vpack.c.b16 %v5058, %v5051
    %v6970 = vpack.c.b16 %v5059, %v5052
    %v6971 = vpack.c.b16 %v5067, %v5060
    %v6972 = vpack.c.b16 %v5068, %v5061
    %v6973 = vpack.c.b16 %v5069, %v5062
    %v6974 = vpack.c.b16 %v5070, %v5063
    %v6975 = vpack.c.b16 %v5071, %v5064
    %v6976 = vpack.c.b16 %v5072, %v5065
    %v6977 = vpack.c.b16 %v5073, %v5066
    %v6978 = vpack.c.b16 %v5081, %v5074
    %v6979 = vpack.c.b16 %v5082, %v5075
    %v6980 = vpack.c.b16 %v5083, %v5076
    %v6981 = vpack.c.b16 %v5084, %v5077
    %v6982 = vpack.c.b16 %v5085, %v5078
    %v6983 = vpack.c.b16 %v5086, %v5079
    %v6984 = vpack.c.b16 %v5087, %v5080
    %v6985 = vpack.c.b16 %v5095, %v5088
    %v6986 = vpack.c.b16 %v5096, %v5089
    %v6987 = vpack.c.b16 %v5097, %v5090
    %v6988 = vpack.c.b16 %v5098, %v5091
    %v6989 = vpack.c.b16 %v5099, %v5092
    %v6990 = vpack.c.b16 %v5100, %v5093
    %v6991 = vpack.c.b16 %v5101, %v5094
    %v6992 = vpack.c.b16 %v5109, %v5102
    %v6993 = vpack.c.b16 %v5110, %v5103
    %v6994 = vpack.c.b16 %v5111, %v5104
    %v6995 = vpack.c.b16 %v5112, %v5105
    %v6996 = vpack.c.b16 %v5113, %v5106
    %v6997 = vpack.c.b16 %v5114, %v5107
    %v6998 = vpack.c.b16 %v5115, %v5108
    %v6999 = vpack.c.b16 %v5123, %v5116
    %v7000 = vpack.c.b16 %v5124, %v5117
    %v7001 = vpack.c.b16 %v5125, %v5118
    %v7002 = vpack.c.b16 %v5126, %v5119
    %v7003 = vpack.c.b16 %v5127, %v5120
    %v7004 = vpack.c.b16 %v5128, %v5121
    %v7005 = vpack.c.b16 %v5129, %v5122
    %v7006 = vpack.c.b16 %v5137, %v5130
    %v7007 = vpack.c.b16 %v5138, %v5131
    %v7008 = vpack.c.b16 %v5139, %v5132
    %v7009 = vpack.c.b16 %v5140, %v5133
    %v7010 = vpack.c.b16 %v5141, %v5134
    %v7011 = vpack.c.b16 %v5142, %v5135
    %v7012 = vpack.c.b16 %v5143, %v5136
    %v7013 = vpack.c.b16 %v5151, %v5144
    %v7014 = vpack.c.b16 %v5152, %v5145
    %v7015 = vpack.c.b16 %v5153, %v5146
    %v7016 = vpack.c.b16 %v5154, %v5147
    %v7017 = vpack.c.b16 %v5155, %v5148
    %v7018 = vpack.c.b16 %v5156, %v5149
    %v7019 = vpack.c.b16 %v5157, %v5150
    %v7020 = vpack.c.b16 %v5165, %v5158
    %v7021 = vpack.c.b16 %v5166, %v5159
    %v7022 = vpack.c.b16 %v5167, %v5160
    %v7023 = vpack.c.b16 %v5168, %v5161
    %v7024 = vpack.c.b16 %v5169, %v5162
    %v7025 = vpack.c.b16 %v5170, %v5163
    %v7026 = vpack.c.b16 %v5171, %v5164
    %v7027 = vpack.c.b16 %v5179, %v5172
    %v7028 = vpack.c.b16 %v5180, %v5173
    %v7029 = vpack.c.b16 %v5181, %v5174
    %v7030 = vpack.c.b16 %v5182, %v5175
    %v7031 = vpack.c.b16 %v5183, %v5176
    %v7032 = vpack.c.b16 %v5184, %v5177
    %v7033 = vpack.c.b16 %v5185, %v5178
    %v7034 = vpack.c.b16 %v5193, %v5186
    %v7035 = vpack.c.b16 %v5194, %v5187
    %v7036 = vpack.c.b16 %v5195, %v5188
    %v7037 = vpack.c.b16 %v5196, %v5189
    %v7038 = vpack.c.b16 %v5197, %v5190
    %v7039 = vpack.c.b16 %v5198, %v5191
    %v7040 = vpack.c.b16 %v5199, %v5192
    %v7041 = vpack.c.b16 %v5207, %v5200
    %v7042 = vpack.c.b16 %v5208, %v5201
    %v7043 = vpack.c.b16 %v5209, %v5202
    %v7044 = vpack.c.b16 %v5210, %v5203
    %v7045 = vpack.c.b16 %v5211, %v5204
    %v7046 = vpack.c.b16 %v5212, %v5205
    %v7047 = vpack.c.b16 %v5213, %v5206
    %v7048 = vpack.c.b16 %v5221, %v5214
    %v7049 = vpack.c.b16 %v5222, %v5215
    %v7050 = vpack.c.b16 %v5223, %v5216
    %v7051 = vpack.c.b16 %v5224, %v5217
    %v7052 = vpack.c.b16 %v5225, %v5218
    %v7053 = vpack.c.b16 %v5226, %v5219
    %v7054 = vpack.c.b16 %v5227, %v5220
    %v7055 = vpack.c.b16 %v5235, %v5228
    %v7056 = vpack.c.b16 %v5236, %v5229
    %v7057 = vpack.c.b16 %v5237, %v5230
    %v7058 = vpack.c.b16 %v5238, %v5231
    %v7059 = vpack.c.b16 %v5239, %v5232
    %v7060 = vpack.c.b16 %v5240, %v5233
    %v7061 = vpack.c.b16 %v5241, %v5234
    %v7062 = vpack.c.b16 %v5249, %v5242
    %v7063 = vpack.c.b16 %v5250, %v5243
    %v7064 = vpack.c.b16 %v5251, %v5244
    %v7065 = vpack.c.b16 %v5252, %v5245
    %v7066 = vpack.c.b16 %v5253, %v5246
    %v7067 = vpack.c.b16 %v5254, %v5247
    %v7068 = vpack.c.b16 %v5255, %v5248
    %v7069 = vpack.c.b16 %v5263, %v5256
    %v7070 = vpack.c.b16 %v5264, %v5257
    %v7071 = vpack.c.b16 %v5265, %v5258
    %v7072 = vpack.c.b16 %v5266, %v5259
    %v7073 = vpack.c.b16 %v5267, %v5260
    %v7074 = vpack.c.b16 %v5268, %v5261
    %v7075 = vpack.c.b16 %v5269, %v5262
    %v7076 = vpack.c.b16 %v5277, %v5270
    %v7077 = vpack.c.b16 %v5278, %v5271
    %v7078 = vpack.c.b16 %v5279, %v5272
    %v7079 = vpack.c.b16 %v5280, %v5273
    %v7080 = vpack.c.b16 %v5281, %v5274
    %v7081 = vpack.c.b16 %v5282, %v5275
    %v7082 = vpack.c.b16 %v5283, %v5276
    %v7083 = vpack.c.b16 %v5291, %v5284
    %v7084 = vpack.c.b16 %v5292, %v5285
    %v7085 = vpack.c.b16 %v5293, %v5286
    %v7086 = vpack.c.b16 %v5294, %v5287
    %v7087 = vpack.c.b16 %v5295, %v5288
    %v7088 = vpack.c.b16 %v5296, %v5289
    %v7089 = vpack.c.b16 %v5297, %v5290
    %v7090 = vpack.c.b16 %v5305, %v5298
    %v7091 = vpack.c.b16 %v5306, %v5299
    %v7092 = vpack.c.b16 %v5307, %v5300
    %v7093 = vpack.c.b16 %v5308, %v5301
    %v7094 = vpack.c.b16 %v5309, %v5302
    %v7095 = vpack.c.b16 %v5310, %v5303
    %v7096 = vpack.c.b16 %v5311, %v5304
    %v7097 = vpack.c.b16 %v5319, %v5312
    %v7098 = vpack.c.b16 %v5320, %v5313
    %v7099 = vpack.c.b16 %v5321, %v5314
    %v7100 = vpack.c.b16 %v5322, %v5315
    %v7101 = vpack.c.b16 %v5323, %v5316
    %v7102 = vpack.c.b16 %v5324, %v5317
    %v7103 = vpack.c.b16 %v5325, %v5318
    %v7104 = vpack.c.b16 %v5333, %v5326
    %v7105 = vpack.c.b16 %v5334, %v5327
    %v7106 = vpack.c.b16 %v5335, %v5328
    %v7107 = vpack.c.b16 %v5336, %v5329
    %v7108 = vpack.c.b16 %v5337, %v5330
    %v7109 = vpack.c.b16 %v5338, %v5331
    %v7110 = vpack.c.b16 %v5339, %v5332
    %v7111 = vpack.c.b16 %v5347, %v5340
    %v7112 = vpack.c.b16 %v5348, %v5341
    %v7113 = vpack.c.b16 %v5349, %v5342
    %v7114 = vpack.c.b16 %v5350, %v5343
    %v7115 = vpack.c.b16 %v5351, %v5344
    %v7116 = vpack.c.b16 %v5352, %v5345
    %v7117 = vpack.c.b16 %v5353, %v5346
    %v7118 = vpack.c.b16 %v5361, %v5354
    %v7119 = vpack.c.b16 %v5362, %v5355
    %v7120 = vpack.c.b16 %v5363, %v5356
    %v7121 = vpack.c.b16 %v5364, %v5357
    %v7122 = vpack.c.b16 %v5365, %v5358
    %v7123 = vpack.c.b16 %v5366, %v5359
    %v7124 = vpack.c.b16 %v5367, %v5360
    %v7125 = vpack.c.b16 %v5375, %v5368
    %v7126 = vpack.c.b16 %v5376, %v5369
    %v7127 = vpack.c.b16 %v5377, %v5370
    %v7128 = vpack.c.b16 %v5378, %v5371
    %v7129 = vpack.c.b16 %v5379, %v5372
    %v7130 = vpack.c.b16 %v5380, %v5373
    %v7131 = vpack.c.b16 %v5381, %v5374
    %v7132 = vpack.c.b16 %v5389, %v5382
    %v7133 = vpack.c.b16 %v5390, %v5383
    %v7134 = vpack.c.b16 %v5391, %v5384
    %v7135 = vpack.c.b16 %v5392, %v5385
    %v7136 = vpack.c.b16 %v5393, %v5386
    %v7137 = vpack.c.b16 %v5394, %v5387
    %v7138 = vpack.c.b16 %v5395, %v5388
    %v7139 = vpack.c.b16 %v5403, %v5396
    %v7140 = vpack.c.b16 %v5404, %v5397
    %v7141 = vpack.c.b16 %v5405, %v5398
    %v7142 = vpack.c.b16 %v5406, %v5399
    %v7143 = vpack.c.b16 %v5407, %v5400
    %v7144 = vpack.c.b16 %v5408, %v5401
    %v7145 = vpack.c.b16 %v5409, %v5402
    %v7146 = vpack.c.b16 %v5417, %v5410
    %v7147 = vpack.c.b16 %v5418, %v5411
    %v7148 = vpack.c.b16 %v5419, %v5412
    %v7149 = vpack.c.b16 %v5420, %v5413
    %v7150 = vpack.c.b16 %v5421, %v5414
    %v7151 = vpack.c.b16 %v5422, %v5415
    %v7152 = vpack.c.b16 %v5423, %v5416
    %v7153 = vpack.c.b16 %v5431, %v5424
    %v7154 = vpack.c.b16 %v5432, %v5425
    %v7155 = vpack.c.b16 %v5433, %v5426
    %v7156 = vpack.c.b16 %v5434, %v5427
    %v7157 = vpack.c.b16 %v5435, %v5428
    %v7158 = vpack.c.b16 %v5436, %v5429
    %v7159 = vpack.c.b16 %v5437, %v5430
    %v7160 = vpack.c.b16 %v5445, %v5438
    %v7161 = vpack.c.b16 %v5446, %v5439
    %v7162 = vpack.c.b16 %v5447, %v5440
    %v7163 = vpack.c.b16 %v5448, %v5441
    %v7164 = vpack.c.b16 %v5449, %v5442
    %v7165 = vpack.c.b16 %v5450, %v5443
    %v7166 = vpack.c.b16 %v5451, %v5444
    %v7167 = vpack.c.b16 %v5459, %v5452
    %v7168 = vpack.c.b16 %v5460, %v5453
    %v7169 = vpack.c.b16 %v5461, %v5454
    %v7170 = vpack.c.b16 %v5462, %v5455
    %v7171 = vpack.c.b16 %v5463, %v5456
    %v7172 = vpack.c.b16 %v5464, %v5457
    %v7173 = vpack.c.b16 %v5465, %v5458
    %v7174 = vpack.c.b16 %v5473, %v5466
    %v7175 = vpack.c.b16 %v5474, %v5467
    %v7176 = vpack.c.b16 %v5475, %v5468
    %v7177 = vpack.c.b16 %v5476, %v5469
    %v7178 = vpack.c.b16 %v5477, %v5470
    %v7179 = vpack.c.b16 %v5478, %v5471
    %v7180 = vpack.c.b16 %v5479, %v5472
    %v7181 = vpack.c.b16 %v5487, %v5480
    %v7182 = vpack.c.b16 %v5488, %v5481
    %v7183 = vpack.c.b16 %v5489, %v5482
    %v7184 = vpack.c.b16 %v5490, %v5483
    %v7185 = vpack.c.b16 %v5491, %v5484
    %v7186 = vpack.c.b16 %v5492, %v5485
    %v7187 = vpack.c.b16 %v5493, %v5486
    %v7188 = vpack.c.b16 %v5501, %v5494
    %v7189 = vpack.c.b16 %v5502, %v5495
    %v7190 = vpack.c.b16 %v5503, %v5496
    %v7191 = vpack.c.b16 %v5504, %v5497
    %v7192 = vpack.c.b16 %v5505, %v5498
    %v7193 = vpack.c.b16 %v5506, %v5499
    %v7194 = vpack.c.b16 %v5507, %v5500
    %v7195 = vpack.c.b16 %v5515, %v5508
    %v7196 = vpack.c.b16 %v5516, %v5509
    %v7197 = vpack.c.b16 %v5517, %v5510
    %v7198 = vpack.c.b16 %v5518, %v5511
    %v7199 = vpack.c.b16 %v5519, %v5512
    %v7200 = vpack.c.b16 %v5520, %v5513
    %v7201 = vpack.c.b16 %v5521, %v5514
    %v7202 = vpack.c.b16 %v5529, %v5522
    %v7203 = vpack.c.b16 %v5530, %v5523
    %v7204 = vpack.c.b16 %v5531, %v5524
    %v7205 = vpack.c.b16 %v5532, %v5525
    %v7206 = vpack.c.b16 %v5533, %v5526
    %v7207 = vpack.c.b16 %v5534, %v5527
    %v7208 = vpack.c.b16 %v5535, %v5528
    %v7209 = vpack.c.b16 %v5543, %v5536
    %v7210 = vpack.c.b16 %v5544, %v5537
    %v7211 = vpack.c.b16 %v5545, %v5538
    %v7212 = vpack.c.b16 %v5546, %v5539
    %v7213 = vpack.c.b16 %v5547, %v5540
    %v7214 = vpack.c.b16 %v5548, %v5541
    %v7215 = vpack.c.b16 %v5549, %v5542
    %v7216 = vpack.c.b16 %v5557, %v5550
    %v7217 = vpack.c.b16 %v5558, %v5551
    %v7218 = vpack.c.b16 %v5559, %v5552
    %v7219 = vpack.c.b16 %v5560, %v5553
    %v7220 = vpack.c.b16 %v5561, %v5554
    %v7221 = vpack.c.b16 %v5562, %v5555
    %v7222 = vpack.c.b16 %v5563, %v5556
    %v7223 = vpack.c.b16 %v5571, %v5564
    %v7224 = vpack.c.b16 %v5572, %v5565
    %v7225 = vpack.c.b16 %v5573, %v5566
    %v7226 = vpack.c.b16 %v5574, %v5567
    %v7227 = vpack.c.b16 %v5575, %v5568
    %v7228 = vpack.c.b16 %v5576, %v5569
    %v7229 = vpack.c.b16 %v5577, %v5570
    %v7230 = vpack.c.b16 %v5585, %v5578
    %v7231 = vpack.c.b16 %v5586, %v5579
    %v7232 = vpack.c.b16 %v5587, %v5580
    %v7233 = vpack.c.b16 %v5588, %v5581
    %v7234 = vpack.c.b16 %v5589, %v5582
    %v7235 = vpack.c.b16 %v5590, %v5583
    %v7236 = vpack.c.b16 %v5591, %v5584
    %v7237 = vpack.c.b16 %v5599, %v5592
    %v7238 = vpack.c.b16 %v5600, %v5593
    %v7239 = vpack.c.b16 %v5601, %v5594
    %v7240 = vpack.c.b16 %v5602, %v5595
    %v7241 = vpack.c.b16 %v5603, %v5596
    %v7242 = vpack.c.b16 %v5604, %v5597
    %v7243 = vpack.c.b16 %v5605, %v5598
    %v7244 = vpack.c.b16 %v5613, %v5606
    %v7245 = vpack.c.b16 %v5614, %v5607
    %v7246 = vpack.c.b16 %v5615, %v5608
    %v7247 = vpack.c.b16 %v5616, %v5609
    %v7248 = vpack.c.b16 %v5617, %v5610
    %v7249 = vpack.c.b16 %v5618, %v5611
    %v7250 = vpack.c.b16 %v5619, %v5612
    %v7251 = vpack.c.b16 %v5627, %v5620
    %v7252 = vpack.c.b16 %v5628, %v5621
    %v7253 = vpack.c.b16 %v5629, %v5622
    %v7254 = vpack.c.b16 %v5630, %v5623
    %v7255 = vpack.c.b16 %v5631, %v5624
    %v7256 = vpack.c.b16 %v5632, %v5625
    %v7257 = vpack.c.b16 %v5633, %v5626
    %v7258 = vpack.c.b16 %v5641, %v5634
    %v7259 = vpack.c.b16 %v5642, %v5635
    %v7260 = vpack.c.b16 %v5643, %v5636
    %v7261 = vpack.c.b16 %v5644, %v5637
    %v7262 = vpack.c.b16 %v5645, %v5638
    %v7263 = vpack.c.b16 %v5646, %v5639
    %v7264 = vpack.c.b16 %v5647, %v5640
    %v7265 = vpack.c.b16 %v5655, %v5648
    %v7266 = vpack.c.b16 %v5656, %v5649
    %v7267 = vpack.c.b16 %v5657, %v5650
    %v7268 = vpack.c.b16 %v5658, %v5651
    %v7269 = vpack.c.b16 %v5659, %v5652
    %v7270 = vpack.c.b16 %v5660, %v5653
    %v7271 = vpack.c.b16 %v5661, %v5654
    %v7272 = vpack.c.b16 %v5669, %v5662
    %v7273 = vpack.c.b16 %v5670, %v5663
    %v7274 = vpack.c.b16 %v5671, %v5664
    %v7275 = vpack.c.b16 %v5672, %v5665
    %v7276 = vpack.c.b16 %v5673, %v5666
    %v7277 = vpack.c.b16 %v5674, %v5667
    %v7278 = vpack.c.b16 %v5675, %v5668
    %v7279 = vpack.c.b16 %v5683, %v5676
    %v7280 = vpack.c.b16 %v5684, %v5677
    %v7281 = vpack.c.b16 %v5685, %v5678
    %v7282 = vpack.c.b16 %v5686, %v5679
    %v7283 = vpack.c.b16 %v5687, %v5680
    %v7284 = vpack.c.b16 %v5688, %v5681
    %v7285 = vpack.c.b16 %v5689, %v5682
    %v7286 = vpack.c.b16 %v5697, %v5690
    %v7287 = vpack.c.b16 %v5698, %v5691
    %v7288 = vpack.c.b16 %v5699, %v5692
    %v7289 = vpack.c.b16 %v5700, %v5693
    %v7290 = vpack.c.b16 %v5701, %v5694
    %v7291 = vpack.c.b16 %v5702, %v5695
    %v7292 = vpack.c.b16 %v5703, %v5696
    %v7293 = vpack.c.b16 %v5711, %v5704
    %v7294 = vpack.c.b16 %v5712, %v5705
    %v7295 = vpack.c.b16 %v5713, %v5706
    %v7296 = vpack.c.b16 %v5714, %v5707
    %v7297 = vpack.c.b16 %v5715, %v5708
    %v7298 = vpack.c.b16 %v5716, %v5709
    %v7299 = vpack.c.b16 %v5717, %v5710
    %v7300 = vpack.c.b16 %v5725, %v5718
    %v7301 = vpack.c.b16 %v5726, %v5719
    %v7302 = vpack.c.b16 %v5727, %v5720
    %v7303 = vpack.c.b16 %v5728, %v5721
    %v7304 = vpack.c.b16 %v5729, %v5722
    %v7305 = vpack.c.b16 %v5730, %v5723
    %v7306 = vpack.c.b16 %v5731, %v5724
    %v7307 = vpack.c.b16 %v5739, %v5732
    %v7308 = vpack.c.b16 %v5740, %v5733
    %v7309 = vpack.c.b16 %v5741, %v5734
    %v7310 = vpack.c.b16 %v5742, %v5735
    %v7311 = vpack.c.b16 %v5743, %v5736
    %v7312 = vpack.c.b16 %v5744, %v5737
    %v7313 = vpack.c.b16 %v5745, %v5738
    %v7314 = vpack.c.b16 %v5753, %v5746
    %v7315 = vpack.c.b16 %v5754, %v5747
    %v7316 = vpack.c.b16 %v5755, %v5748
    %v7317 = vpack.c.b16 %v5756, %v5749
    %v7318 = vpack.c.b16 %v5757, %v5750
    %v7319 = vpack.c.b16 %v5758, %v5751
    %v7320 = vpack.c.b16 %v5759, %v5752
    %v7321 = vpack.c.b16 %v5767, %v5760
    %v7322 = vpack.c.b16 %v5768, %v5761
    %v7323 = vpack.c.b16 %v5769, %v5762
    %v7324 = vpack.c.b16 %v5770, %v5763
    %v7325 = vpack.c.b16 %v5771, %v5764
    %v7326 = vpack.c.b16 %v5772, %v5765
    %v7327 = vpack.c.b16 %v5773, %v5766
    %v7328 = vpack.c.b16 %v5781, %v5774
    %v7329 = vpack.c.b16 %v5782, %v5775
    %v7330 = vpack.c.b16 %v5783, %v5776
    %v7331 = vpack.c.b16 %v5784, %v5777
    %v7332 = vpack.c.b16 %v5785, %v5778
    %v7333 = vpack.c.b16 %v5786, %v5779
    %v7334 = vpack.c.b16 %v5787, %v5780
    %v7335 = vpack.c.b16 %v5795, %v5788
    %v7336 = vpack.c.b16 %v5796, %v5789
    %v7337 = vpack.c.b16 %v5797, %v5790
    %v7338 = vpack.c.b16 %v5798, %v5791
    %v7339 = vpack.c.b16 %v5799, %v5792
    %v7340 = vpack.c.b16 %v5800, %v5793
    %v7341 = vpack.c.b16 %v5801, %v5794
    %v7342 = vpack.c.b16 %v5809, %v5802
    %v7343 = vpack.c.b16 %v5810, %v5803
    %v7344 = vpack.c.b16 %v5811, %v5804
    %v7345 = vpack.c.b16 %v5812, %v5805
    %v7346 = vpack.c.b16 %v5813, %v5806
    %v7347 = vpack.c.b16 %v5814, %v5807
    %v7348 = vpack.c.b16 %v5815, %v5808
    %v7349 = vpack.c.b16 %v5823, %v5816
    %v7350 = vpack.c.b16 %v5824, %v5817
    %v7351 = vpack.c.b16 %v5825, %v5818
    %v7352 = vpack.c.b16 %v5826, %v5819
    %v7353 = vpack.c.b16 %v5827, %v5820
    %v7354 = vpack.c.b16 %v5828, %v5821
    %v7355 = vpack.c.b16 %v5829, %v5822
    %v7356 = vpack.c.b16 %v5837, %v5830
    %v7357 = vpack.c.b16 %v5838, %v5831
    %v7358 = vpack.c.b16 %v5839, %v5832
    %v7359 = vpack.c.b16 %v5840, %v5833
    %v7360 = vpack.c.b16 %v5841, %v5834
    %v7361 = vpack.c.b16 %v5842, %v5835
    %v7362 = vpack.c.b16 %v5843, %v5836
    %v7363 = vpack.c.b16 %v5851, %v5844
    %v7364 = vpack.c.b16 %v5852, %v5845
    %v7365 = vpack.c.b16 %v5853, %v5846
    %v7366 = vpack.c.b16 %v5854, %v5847
    %v7367 = vpack.c.b16 %v5855, %v5848
    %v7368 = vpack.c.b16 %v5856, %v5849
    %v7369 = vpack.c.b16 %v5857, %v5850
    %v7370 = vpack.c.b16 %v5865, %v5858
    %v7371 = vpack.c.b16 %v5866, %v5859
    %v7372 = vpack.c.b16 %v5867, %v5860
    %v7373 = vpack.c.b16 %v5868, %v5861
    %v7374 = vpack.c.b16 %v5869, %v5862
    %v7375 = vpack.c.b16 %v5870, %v5863
    %v7376 = vpack.c.b16 %v5871, %v5864
    %v7377 = vpack.c.b16 %v5879, %v5872
    %v7378 = vpack.c.b16 %v5880, %v5873
    %v7379 = vpack.c.b16 %v5881, %v5874
    %v7380 = vpack.c.b16 %v5882, %v5875
    %v7381 = vpack.c.b16 %v5883, %v5876
    %v7382 = vpack.c.b16 %v5884, %v5877
    %v7383 = vpack.c.b16 %v5885, %v5878
    %v7384 = vpack.c.b16 %v5893, %v5886
    %v7385 = vpack.c.b16 %v5894, %v5887
    %v7386 = vpack.c.b16 %v5895, %v5888
    %v7387 = vpack.c.b16 %v5896, %v5889
    %v7388 = vpack.c.b16 %v5897, %v5890
    %v7389 = vpack.c.b16 %v5898, %v5891
    %v7390 = vpack.c.b16 %v5899, %v5892
    %v7391 = vpack.c.b16 %v5907, %v5900
    %v7392 = vpack.c.b16 %v5908, %v5901
    %v7393 = vpack.c.b16 %v5909, %v5902
    %v7394 = vpack.c.b16 %v5910, %v5903
    %v7395 = vpack.c.b16 %v5911, %v5904
    %v7396 = vpack.c.b16 %v5912, %v5905
    %v7397 = vpack.c.b16 %v5913, %v5906
    %v7398 = vpack.c.b16 %v5921, %v5914
    %v7399 = vpack.c.b16 %v5922, %v5915
    %v7400 = vpack.c.b16 %v5923, %v5916
    %v7401 = vpack.c.b16 %v5924, %v5917
    %v7402 = vpack.c.b16 %v5925, %v5918
    %v7403 = vpack.c.b16 %v5926, %v5919
    %v7404 = vpack.c.b16 %v5927, %v5920
    %v7405 = vpack.c.b16 %v5935, %v5928
    %v7406 = vpack.c.b16 %v5936, %v5929
    %v7407 = vpack.c.b16 %v5937, %v5930
    %v7408 = vpack.c.b16 %v5938, %v5931
    %v7409 = vpack.c.b16 %v5939, %v5932
    %v7410 = vpack.c.b16 %v5940, %v5933
    %v7411 = vpack.c.b16 %v5941, %v5934
    %v7412 = vpack.c.b16 %v5949, %v5942
    %v7413 = vpack.c.b16 %v5950, %v5943
    %v7414 = vpack.c.b16 %v5951, %v5944
    %v7415 = vpack.c.b16 %v5952, %v5945
    %v7416 = vpack.c.b16 %v5953, %v5946
    %v7417 = vpack.c.b16 %v5954, %v5947
    %v7418 = vpack.c.b16 %v5955, %v5948
    %v7419 = vpack.c.b16 %v5963, %v5956
    %v7420 = vpack.c.b16 %v5964, %v5957
    %v7421 = vpack.c.b16 %v5965, %v5958
    %v7422 = vpack.c.b16 %v5966, %v5959
    %v7423 = vpack.c.b16 %v5967, %v5960
    %v7424 = vpack.c.b16 %v5968, %v5961
    %v7425 = vpack.c.b16 %v5969, %v5962
    %v7426 = vpack.c.b16 %v5977, %v5970
    %v7427 = vpack.c.b16 %v5978, %v5971
    %v7428 = vpack.c.b16 %v5979, %v5972
    %v7429 = vpack.c.b16 %v5980, %v5973
    %v7430 = vpack.c.b16 %v5981, %v5974
    %v7431 = vpack.c.b16 %v5982, %v5975
    %v7432 = vpack.c.b16 %v5983, %v5976
    %v7433 = vpack.c.b16 %v5991, %v5984
    %v7434 = vpack.c.b16 %v5992, %v5985
    %v7435 = vpack.c.b16 %v5993, %v5986
    %v7436 = vpack.c.b16 %v5994, %v5987
    %v7437 = vpack.c.b16 %v5995, %v5988
    %v7438 = vpack.c.b16 %v5996, %v5989
    %v7439 = vpack.c.b16 %v5997, %v5990
    %v7440 = vpack.c.b16 %v6005, %v5998
    %v7441 = vpack.c.b16 %v6006, %v5999
    %v7442 = vpack.c.b16 %v6007, %v6000
    %v7443 = vpack.c.b16 %v6008, %v6001
    %v7444 = vpack.c.b16 %v6009, %v6002
    %v7445 = vpack.c.b16 %v6010, %v6003
    %v7446 = vpack.c.b16 %v6011, %v6004
    %v7447 = vpack.c.b16 %v6019, %v6012
    %v7448 = vpack.c.b16 %v6020, %v6013
    %v7449 = vpack.c.b16 %v6021, %v6014
    %v7450 = vpack.c.b16 %v6022, %v6015
    %v7451 = vpack.c.b16 %v6023, %v6016
    %v7452 = vpack.c.b16 %v6024, %v6017
    %v7453 = vpack.c.b16 %v6025, %v6018
    %v7454 = vpack.c.b16 %v6033, %v6026
    %v7455 = vpack.c.b16 %v6034, %v6027
    %v7456 = vpack.c.b16 %v6035, %v6028
    %v7457 = vpack.c.b16 %v6036, %v6029
    %v7458 = vpack.c.b16 %v6037, %v6030
    %v7459 = vpack.c.b16 %v6038, %v6031
    %v7460 = vpack.c.b16 %v6039, %v6032
    %v7461 = vpack.c.b16 %v6047, %v6040
    %v7462 = vpack.c.b16 %v6048, %v6041
    %v7463 = vpack.c.b16 %v6049, %v6042
    %v7464 = vpack.c.b16 %v6050, %v6043
    %v7465 = vpack.c.b16 %v6051, %v6044
    %v7466 = vpack.c.b16 %v6052, %v6045
    %v7467 = vpack.c.b16 %v6053, %v6046
    %v7468 = vpack.c.b16 %v6061, %v6054
    %v7469 = vpack.c.b16 %v6062, %v6055
    %v7470 = vpack.c.b16 %v6063, %v6056
    %v7471 = vpack.c.b16 %v6064, %v6057
    %v7472 = vpack.c.b16 %v6065, %v6058
    %v7473 = vpack.c.b16 %v6066, %v6059
    %v7474 = vpack.c.b16 %v6067, %v6060
    %v7475 = vpack.c.b16 %v6075, %v6068
    %v7476 = vpack.c.b16 %v6076, %v6069
    %v7477 = vpack.c.b16 %v6077, %v6070
    %v7478 = vpack.c.b16 %v6078, %v6071
    %v7479 = vpack.c.b16 %v6079, %v6072
    %v7480 = vpack.c.b16 %v6080, %v6073
    %v7481 = vpack.c.b16 %v6081, %v6074
    %v7482 = vpack.c.b16 %v6089, %v6082
    %v7483 = vpack.c.b16 %v6090, %v6083
    %v7484 = vpack.c.b16 %v6091, %v6084
    %v7485 = vpack.c.b16 %v6092, %v6085
    %v7486 = vpack.c.b16 %v6093, %v6086
    %v7487 = vpack.c.b16 %v6094, %v6087
    %v7488 = vpack.c.b16 %v6095, %v6088
    %v7489 = vpack.c.b16 %v6103, %v6096
    %v7490 = vpack.c.b16 %v6104, %v6097
    %v7491 = vpack.c.b16 %v6105, %v6098
    %v7492 = vpack.c.b16 %v6106, %v6099
    %v7493 = vpack.c.b16 %v6107, %v6100
    %v7494 = vpack.c.b16 %v6108, %v6101
    %v7495 = vpack.c.b16 %v6109, %v6102
    %v7496 = vpack.c.b16 %v6117, %v6110
    %v7497 = vpack.c.b16 %v6118, %v6111
    %v7498 = vpack.c.b16 %v6119, %v6112
    %v7499 = vpack.c.b16 %v6120, %v6113
    %v7500 = vpack.c.b16 %v6121, %v6114
    %v7501 = vpack.c.b16 %v6122, %v6115
    %v7502 = vpack.c.b16 %v6123, %v6116
    %v7503 = vpack.c.b16 %v6131, %v6124
    %v7504 = vpack.c.b16 %v6132, %v6125
    %v7505 = vpack.c.b16 %v6133, %v6126
    %v7506 = vpack.c.b16 %v6134, %v6127
    %v7507 = vpack.c.b16 %v6135, %v6128
    %v7508 = vpack.c.b16 %v6136, %v6129
    %v7509 = vpack.c.b16 %v6137, %v6130
    %vm8882 = vcmask 523264
    %v8884 = vsel %vm8882, %v1801, 0
    %8886 = vmatprep.subr.bf16.mxu0 %v6139
    %8887 = vmatpush1.bf16.msra.mxu0 %v6138
    %8888 = vmatprep.subr.bf16.mxu0 %v6146
    %8889 = vmatpush1.bf16.msra.mxu0 %v6145
    %8890 = vmatprep.subr.bf16.mxu0 %v6153
    %8891 = vmatpush1.bf16.msra.mxu0 %v6152
    %8892 = vmatprep.subr.bf16.mxu0 %v6160
    %8893 = vmatpush1.bf16.msra.mxu0 %v6159
    %8894 = vmatprep.subr.bf16.mxu0 %v6167
    %8895 = vmatpush1.bf16.msra.mxu0 %v6166
    %8896 = vmatprep.subr.bf16.mxu0 %v6174
    %8897 = vmatpush1.bf16.msra.mxu0 %v6173
    %8898 = vmatprep.subr.bf16.mxu0 %v6181
    %8899 = vmatpush1.bf16.msra.mxu0 %v6180
    %8900 = vmatprep.subr.bf16.mxu0 %v6188
    %8901 = vmatpush1.bf16.msra.mxu0 %v6187
    %8902 = vmatprep.subr.bf16.mxu0 %v6195
    %8903 = vmatpush1.bf16.msra.mxu0 %v6194
    %8904 = vmatprep.subr.bf16.mxu0 %v6202
    %8905 = vmatpush1.bf16.msra.mxu0 %v6201
    %8906 = vmatprep.subr.bf16.mxu0 %v6209
    %8907 = vmatpush1.bf16.msra.mxu0 %v6208
    %8908 = vmatprep.subr.bf16.mxu0 %v6216
    %8909 = vmatpush1.bf16.msra.mxu0 %v6215
    %8910 = vmatprep.subr.bf16.mxu0 %v6223
    %8911 = vmatpush1.bf16.msra.mxu0 %v6222
    %8912 = vmatprep.subr.bf16.mxu0 %v6230
    %8913 = vmatpush1.bf16.msra.mxu0 %v6229
    %8914 = vmatprep.subr.bf16.mxu0 %v6237
    %8915 = vmatpush1.bf16.msra.mxu0 %v6236
    %8916 = vmatprep.subr.bf16.mxu0 %v6244
    %8917 = vmatpush1.bf16.msra.mxu0 %v6243
    %8918 = vmatprep.mubr.bf16.mxu0 %v1678
    %8919 = vmatmul.mubr.bf16.gmra.mrb[0].mxu0 %v1664
    %v8920 = vpop.f32.mrb[0].mxu0
    %v8921 = vadd.f32 %v1605, %v8920
    %v8922 = vpop.f32.mrb[0].mxu0
    %v8923 = vadd.f32 %v1609, %v8922
    %v8924 = vpop.f32.mrb[0].mxu0
    %v8925 = vpop.f32.mrb[0].mxu0
    %8926 = vdwg.mxu0
    %8927 = vmatprep.subr.bf16.mxu0 %v6251
    %8928 = vmatpush1.bf16.msra.mxu0 %v6250
    %8929 = vmatprep.subr.bf16.mxu0 %v6258
    %8930 = vmatpush1.bf16.msra.mxu0 %v6257
    %8931 = vmatprep.subr.bf16.mxu0 %v6265
    %8932 = vmatpush1.bf16.msra.mxu0 %v6264
    %8933 = vmatprep.subr.bf16.mxu0 %v6272
    %8934 = vmatpush1.bf16.msra.mxu0 %v6271
    %8935 = vmatprep.subr.bf16.mxu0 %v6279
    %8936 = vmatpush1.bf16.msra.mxu0 %v6278
    %8937 = vmatprep.subr.bf16.mxu0 %v6286
    %8938 = vmatpush1.bf16.msra.mxu0 %v6285
    %8939 = vmatprep.subr.bf16.mxu0 %v6293
    %8940 = vmatpush1.bf16.msra.mxu0 %v6292
    %8941 = vmatprep.subr.bf16.mxu0 %v6300
    %8942 = vmatpush1.bf16.msra.mxu0 %v6299
    %8943 = vmatprep.subr.bf16.mxu0 %v6307
    %8944 = vmatpush1.bf16.msra.mxu0 %v6306
    %8945 = vmatprep.subr.bf16.mxu0 %v6314
    %8946 = vmatpush1.bf16.msra.mxu0 %v6313
    %8947 = vmatprep.subr.bf16.mxu0 %v6321
    %8948 = vmatpush1.bf16.msra.mxu0 %v6320
    %8949 = vmatprep.subr.bf16.mxu0 %v6328
    %8950 = vmatpush1.bf16.msra.mxu0 %v6327
    %8951 = vmatprep.subr.bf16.mxu0 %v6335
    %8952 = vmatpush1.bf16.msra.mxu0 %v6334
    %8953 = vmatprep.subr.bf16.mxu0 %v6342
    %8954 = vmatpush1.bf16.msra.mxu0 %v6341
    %8955 = vmatprep.subr.bf16.mxu0 %v6349
    %8956 = vmatpush1.bf16.msra.mxu0 %v6348
    %8957 = vmatprep.subr.bf16.mxu0 %v6356
    %8958 = vmatpush1.bf16.msra.mxu0 %v6355
    %8959 = vmatprep.mubr.bf16.mxu0 %v1688
    %8960 = vmatmul.mubr.bf16.gmra.mrb[0].mxu0 %v1686
    %v8961 = vpop.f32.mrb[0].mxu0
    %v8962 = vadd.f32 %v8921, %v8961
    %v8963 = vpop.f32.mrb[0].mxu0
    %v8964 = vadd.f32 %v8923, %v8963
    %v8965 = vpop.f32.mrb[0].mxu0
    %v8966 = vpop.f32.mrb[0].mxu0
    %8967 = vdwg.mxu0
    %8968 = vmatprep.subr.bf16.mxu0 %v6363
    %8969 = vmatpush1.bf16.msra.mxu0 %v6362
    %8970 = vmatprep.subr.bf16.mxu0 %v6370
    %8971 = vmatpush1.bf16.msra.mxu0 %v6369
    %8972 = vmatprep.subr.bf16.mxu0 %v6377
    %8973 = vmatpush1.bf16.msra.mxu0 %v6376
    %8974 = vmatprep.subr.bf16.mxu0 %v6384
    %8975 = vmatpush1.bf16.msra.mxu0 %v6383
    %8976 = vmatprep.subr.bf16.mxu0 %v6391
    %8977 = vmatpush1.bf16.msra.mxu0 %v6390
    %8978 = vmatprep.subr.bf16.mxu0 %v6398
    %8979 = vmatpush1.bf16.msra.mxu0 %v6397
    %8980 = vmatprep.subr.bf16.mxu0 %v6405
    %8981 = vmatpush1.bf16.msra.mxu0 %v6404
    %8982 = vmatprep.subr.bf16.mxu0 %v6412
    %8983 = vmatpush1.bf16.msra.mxu0 %v6411
    %8984 = vmatprep.subr.bf16.mxu0 %v6419
    %8985 = vmatpush1.bf16.msra.mxu0 %v6418
    %8986 = vmatprep.subr.bf16.mxu0 %v6426
    %8987 = vmatpush1.bf16.msra.mxu0 %v6425
    %8988 = vmatprep.subr.bf16.mxu0 %v6433
    %8989 = vmatpush1.bf16.msra.mxu0 %v6432
    %8990 = vmatprep.subr.bf16.mxu0 %v6440
    %8991 = vmatpush1.bf16.msra.mxu0 %v6439
    %8992 = vmatprep.subr.bf16.mxu0 %v6447
    %8993 = vmatpush1.bf16.msra.mxu0 %v6446
    %8994 = vmatprep.subr.bf16.mxu0 %v6454
    %8995 = vmatpush1.bf16.msra.mxu0 %v6453
    %8996 = vmatprep.subr.bf16.mxu0 %v6461
    %8997 = vmatpush1.bf16.msra.mxu0 %v6460
    %8998 = vmatprep.subr.bf16.mxu0 %v6468
    %8999 = vmatpush1.bf16.msra.mxu0 %v6467
    %9000 = vmatprep.mubr.bf16.mxu0 %v1685
    %9001 = vmatmul.mubr.bf16.gmra.mrb[0].mxu0 %v1671
    %v9002 = vpop.f32.mrb[0].mxu0
    %v9003 = vadd.f32 %v8962, %v9002
    %v9004 = vpop.f32.mrb[0].mxu0
    %v9005 = vadd.f32 %v8964, %v9004
    %v9006 = vpop.f32.mrb[0].mxu0
    %v9007 = vpop.f32.mrb[0].mxu0
    %9008 = vdwg.mxu0
    %9009 = vmatprep.subr.bf16.mxu0 %v6475
    %9010 = vmatpush1.bf16.msra.mxu0 %v6474
    %9011 = vmatprep.subr.bf16.mxu0 %v6482
    %9012 = vmatpush1.bf16.msra.mxu0 %v6481
    %9013 = vmatprep.subr.bf16.mxu0 %v6489
    %9014 = vmatpush1.bf16.msra.mxu0 %v6488
    %9015 = vmatprep.subr.bf16.mxu0 %v6496
    %9016 = vmatpush1.bf16.msra.mxu0 %v6495
    %9017 = vmatprep.subr.bf16.mxu0 %v6503
    %9018 = vmatpush1.bf16.msra.mxu0 %v6502
    %9019 = vmatprep.subr.bf16.mxu0 %v6510
    %9020 = vmatpush1.bf16.msra.mxu0 %v6509
    %9021 = vmatprep.subr.bf16.mxu0 %v6517
    %9022 = vmatpush1.bf16.msra.mxu0 %v6516
    %9023 = vmatprep.subr.bf16.mxu0 %v6524
    %9024 = vmatpush1.bf16.msra.mxu0 %v6523
    %9025 = vmatprep.subr.bf16.mxu0 %v6531
    %9026 = vmatpush1.bf16.msra.mxu0 %v6530
    %9027 = vmatprep.subr.bf16.mxu0 %v6538
    %9028 = vmatpush1.bf16.msra.mxu0 %v6537
    %9029 = vmatprep.subr.bf16.mxu0 %v6545
    %9030 = vmatpush1.bf16.msra.mxu0 %v6544
    %9031 = vmatprep.subr.bf16.mxu0 %v6552
    %9032 = vmatpush1.bf16.msra.mxu0 %v6551
    %9033 = vmatprep.subr.bf16.mxu0 %v6559
    %9034 = vmatpush1.bf16.msra.mxu0 %v6558
    %9035 = vmatprep.subr.bf16.mxu0 %v6566
    %9036 = vmatpush1.bf16.msra.mxu0 %v6565
    %9037 = vmatprep.subr.bf16.mxu0 %v6573
    %9038 = vmatpush1.bf16.msra.mxu0 %v6572
    %9039 = vmatprep.subr.bf16.mxu0 %v6580
    %9040 = vmatpush1.bf16.msra.mxu0 %v6579
    %9041 = vmatprep.mubr.bf16.mxu0 %v1689
    %9042 = vmatmul.mubr.bf16.gmra.mrb[0].mxu0 %v1687
    %v9043 = vpop.f32.mrb[0].mxu0
    %v9044 = vadd.f32 %v9003, %v9043
    %v9045 = vpop.f32.mrb[0].mxu0
    %v9046 = vadd.f32 %v9005, %v9045
    %v9047 = vpop.f32.mrb[0].mxu0
    %v9048 = vpop.f32.mrb[0].mxu0
    %9049 = vdwg.mxu0
    %9050 = vmatprep.subr.bf16.mxu0 %v6587
    %9051 = vmatpush1.bf16.msra.mxu0 %v6586
    %9052 = vmatprep.subr.bf16.mxu0 %v6594
    %9053 = vmatpush1.bf16.msra.mxu0 %v6593
    %9054 = vmatprep.subr.bf16.mxu0 %v6601
    %9055 = vmatpush1.bf16.msra.mxu0 %v6600
    %9056 = vmatprep.subr.bf16.mxu0 %v6608
    %9057 = vmatpush1.bf16.msra.mxu0 %v6607
    %9058 = vmatprep.subr.bf16.mxu0 %v6615
    %9059 = vmatpush1.bf16.msra.mxu0 %v6614
    %9060 = vmatprep.subr.bf16.mxu0 %v6622
    %9061 = vmatpush1.bf16.msra.mxu0 %v6621
    %9062 = vmatprep.subr.bf16.mxu0 %v6629
    %9063 = vmatpush1.bf16.msra.mxu0 %v6628
    %9064 = vmatprep.subr.bf16.mxu0 %v6636
    %9065 = vmatpush1.bf16.msra.mxu0 %v6635
    %9066 = vmatprep.subr.bf16.mxu0 %v6643
    %9067 = vmatpush1.bf16.msra.mxu0 %v6642
    %9068 = vmatprep.subr.bf16.mxu0 %v6650
    %9069 = vmatpush1.bf16.msra.mxu0 %v6649
    %9070 = vmatprep.subr.bf16.mxu0 %v6657
    %9071 = vmatpush1.bf16.msra.mxu0 %v6656
    %9072 = vmatprep.subr.bf16.mxu0 %v6664
    %9073 = vmatpush1.bf16.msra.mxu0 %v6663
    %9074 = vmatprep.subr.bf16.mxu0 %v6671
    %9075 = vmatpush1.bf16.msra.mxu0 %v6670
    %9076 = vmatprep.subr.bf16.mxu0 %v6678
    %9077 = vmatpush1.bf16.msra.mxu0 %v6677
    %9078 = vmatprep.subr.bf16.mxu0 %v6685
    %9079 = vmatpush1.bf16.msra.mxu0 %v6684
    %9080 = vmatprep.subr.bf16.mxu0 %v6692
    %9081 = vmatpush1.bf16.msra.mxu0 %v6691
    %9082 = vmatprep.mubr.bf16.mxu0 %v1727
    %9083 = vmatmul.mubr.bf16.gmra.mrb[0].mxu0 %v1713
    %v9084 = vpop.f32.mrb[0].mxu0
    %v9085 = vadd.f32 %v9044, %v9084
    %v9086 = vpop.f32.mrb[0].mxu0
    %v9087 = vadd.f32 %v9046, %v9086
    %v9088 = vpop.f32.mrb[0].mxu0
    %v9089 = vpop.f32.mrb[0].mxu0
    %9090 = vdwg.mxu0
    %9091 = vmatprep.subr.bf16.mxu0 %v6699
    %9092 = vmatpush1.bf16.msra.mxu0 %v6698
    %9093 = vmatprep.subr.bf16.mxu0 %v6706
    %9094 = vmatpush1.bf16.msra.mxu0 %v6705
    %9095 = vmatprep.subr.bf16.mxu0 %v6713
    %9096 = vmatpush1.bf16.msra.mxu0 %v6712
    %9097 = vmatprep.subr.bf16.mxu0 %v6720
    %9098 = vmatpush1.bf16.msra.mxu0 %v6719
    %9099 = vmatprep.subr.bf16.mxu0 %v6727
    %9100 = vmatpush1.bf16.msra.mxu0 %v6726
    %9101 = vmatprep.subr.bf16.mxu0 %v6734
    %9102 = vmatpush1.bf16.msra.mxu0 %v6733
    %9103 = vmatprep.subr.bf16.mxu0 %v6741
    %9104 = vmatpush1.bf16.msra.mxu0 %v6740
    %9105 = vmatprep.subr.bf16.mxu0 %v6748
    %9106 = vmatpush1.bf16.msra.mxu0 %v6747
    %9107 = vmatprep.subr.bf16.mxu0 %v6755
    %9108 = vmatpush1.bf16.msra.mxu0 %v6754
    %9109 = vmatprep.subr.bf16.mxu0 %v6762
    %9110 = vmatpush1.bf16.msra.mxu0 %v6761
    %9111 = vmatprep.subr.bf16.mxu0 %v6769
    %9112 = vmatpush1.bf16.msra.mxu0 %v6768
    %9113 = vmatprep.subr.bf16.mxu0 %v6776
    %9114 = vmatpush1.bf16.msra.mxu0 %v6775
    %9115 = vmatprep.subr.bf16.mxu0 %v6783
    %9116 = vmatpush1.bf16.msra.mxu0 %v6782
    %9117 = vmatprep.subr.bf16.mxu0 %v6790
    %9118 = vmatpush1.bf16.msra.mxu0 %v6789
    %9119 = vmatprep.subr.bf16.mxu0 %v6797
    %9120 = vmatpush1.bf16.msra.mxu0 %v6796
    %9121 = vmatprep.subr.bf16.mxu0 %v6804
    %9122 = vmatpush1.bf16.msra.mxu0 %v6803
    %9123 = vmatprep.mubr.bf16.mxu0 %v1737
    %9124 = vmatmul.mubr.bf16.gmra.mrb[0].mxu0 %v1735
    %v9125 = vpop.f32.mrb[0].mxu0
    %v9126 = vadd.f32 %v9085, %v9125
    %v9127 = vpop.f32.mrb[0].mxu0
    %v9128 = vadd.f32 %v9087, %v9127
    %v9129 = vpop.f32.mrb[0].mxu0
    %v9130 = vpop.f32.mrb[0].mxu0
    %9131 = vdwg.mxu0
    %9132 = vmatprep.subr.bf16.mxu0 %v6811
    %9133 = vmatpush1.bf16.msra.mxu0 %v6810
    %9134 = vmatprep.subr.bf16.mxu0 %v6818
    %9135 = vmatpush1.bf16.msra.mxu0 %v6817
    %9136 = vmatprep.subr.bf16.mxu0 %v6825
    %9137 = vmatpush1.bf16.msra.mxu0 %v6824
    %9138 = vmatprep.subr.bf16.mxu0 %v6832
    %9139 = vmatpush1.bf16.msra.mxu0 %v6831
    %9140 = vmatprep.subr.bf16.mxu0 %v6839
    %9141 = vmatpush1.bf16.msra.mxu0 %v6838
    %9142 = vmatprep.subr.bf16.mxu0 %v6846
    %9143 = vmatpush1.bf16.msra.mxu0 %v6845
    %9144 = vmatprep.subr.bf16.mxu0 %v6853
    %9145 = vmatpush1.bf16.msra.mxu0 %v6852
    %9146 = vmatprep.subr.bf16.mxu0 %v6860
    %9147 = vmatpush1.bf16.msra.mxu0 %v6859
    %9148 = vmatprep.subr.bf16.mxu0 %v6867
    %9149 = vmatpush1.bf16.msra.mxu0 %v6866
    %9150 = vmatprep.subr.bf16.mxu0 %v6874
    %9151 = vmatpush1.bf16.msra.mxu0 %v6873
    %9152 = vmatprep.subr.bf16.mxu0 %v6881
    %9153 = vmatpush1.bf16.msra.mxu0 %v6880
    %9154 = vmatprep.subr.bf16.mxu0 %v6888
    %9155 = vmatpush1.bf16.msra.mxu0 %v6887
    %9156 = vmatprep.subr.bf16.mxu0 %v6895
    %9157 = vmatpush1.bf16.msra.mxu0 %v6894
    %9158 = vmatprep.subr.bf16.mxu0 %v6902
    %9159 = vmatpush1.bf16.msra.mxu0 %v6901
    %9160 = vmatprep.subr.bf16.mxu0 %v6909
    %9161 = vmatpush1.bf16.msra.mxu0 %v6908
    %9162 = vmatprep.subr.bf16.mxu0 %v6916
    %9163 = vmatpush1.bf16.msra.mxu0 %v6915
    %9164 = vmatprep.mubr.bf16.mxu0 %v1734
    %9165 = vmatmul.mubr.bf16.gmra.mrb[0].mxu0 %v1720
    %v9166 = vpop.f32.mrb[0].mxu0
    %v9167 = vadd.f32 %v9126, %v9166
    %v9168 = vpop.f32.mrb[0].mxu0
    %v9169 = vadd.f32 %v9128, %v9168
    %v9170 = vpop.f32.mrb[0].mxu0
    %v9171 = vpop.f32.mrb[0].mxu0
    %9172 = vdwg.mxu0
    %9173 = vmatprep.subr.bf16.mxu0 %v6923
    %9174 = vmatpush1.bf16.msra.mxu0 %v6922
    %9175 = vmatprep.subr.bf16.mxu0 %v6930
    %9176 = vmatpush1.bf16.msra.mxu0 %v6929
    %9177 = vmatprep.subr.bf16.mxu0 %v6937
    %9178 = vmatpush1.bf16.msra.mxu0 %v6936
    %9179 = vmatprep.subr.bf16.mxu0 %v6944
    %9180 = vmatpush1.bf16.msra.mxu0 %v6943
    %9181 = vmatprep.subr.bf16.mxu0 %v6951
    %9182 = vmatpush1.bf16.msra.mxu0 %v6950
    %9183 = vmatprep.subr.bf16.mxu0 %v6958
    %9184 = vmatpush1.bf16.msra.mxu0 %v6957
    %9185 = vmatprep.subr.bf16.mxu0 %v6965
    %9186 = vmatpush1.bf16.msra.mxu0 %v6964
    %9187 = vmatprep.subr.bf16.mxu0 %v6972
    %9188 = vmatpush1.bf16.msra.mxu0 %v6971
    %9189 = vmatprep.subr.bf16.mxu0 %v6979
    %9190 = vmatpush1.bf16.msra.mxu0 %v6978
    %9191 = vmatprep.subr.bf16.mxu0 %v6986
    %9192 = vmatpush1.bf16.msra.mxu0 %v6985
    %9193 = vmatprep.subr.bf16.mxu0 %v6993
    %9194 = vmatpush1.bf16.msra.mxu0 %v6992
    %9195 = vmatprep.subr.bf16.mxu0 %v7000
    %9196 = vmatpush1.bf16.msra.mxu0 %v6999
    %9197 = vmatprep.subr.bf16.mxu0 %v7007
    %9198 = vmatpush1.bf16.msra.mxu0 %v7006
    %9199 = vmatprep.subr.bf16.mxu0 %v7014
    %9200 = vmatpush1.bf16.msra.mxu0 %v7013
    %9201 = vmatprep.subr.bf16.mxu0 %v7021
    %9202 = vmatpush1.bf16.msra.mxu0 %v7020
    %9203 = vmatprep.subr.bf16.mxu0 %v7028
    %9204 = vmatpush1.bf16.msra.mxu0 %v7027
    %9205 = vmatprep.mubr.bf16.mxu0 %v1738
    %9206 = vmatmul.mubr.bf16.gmra.mrb[0].mxu0 %v1736
    %v9207 = vpop.f32.mrb[0].mxu0
    %v9208 = vadd.f32 %v9167, %v9207
    %v9209 = vpop.f32.mrb[0].mxu0
    %v9210 = vadd.f32 %v9169, %v9209
    %v9211 = vpop.f32.mrb[0].mxu0
    %v9212 = vpop.f32.mrb[0].mxu0
    %9213 = vdwg.mxu0
    %9214 = vmatprep.subr.bf16.mxu0 %v7035
    %9215 = vmatpush1.bf16.msra.mxu0 %v7034
    %9216 = vmatprep.subr.bf16.mxu0 %v7042
    %9217 = vmatpush1.bf16.msra.mxu0 %v7041
    %9218 = vmatprep.subr.bf16.mxu0 %v7049
    %9219 = vmatpush1.bf16.msra.mxu0 %v7048
    %9220 = vmatprep.subr.bf16.mxu0 %v7056
    %9221 = vmatpush1.bf16.msra.mxu0 %v7055
    %9222 = vmatprep.subr.bf16.mxu0 %v7063
    %9223 = vmatpush1.bf16.msra.mxu0 %v7062
    %9224 = vmatprep.subr.bf16.mxu0 %v7070
    %9225 = vmatpush1.bf16.msra.mxu0 %v7069
    %9226 = vmatprep.subr.bf16.mxu0 %v7077
    %9227 = vmatpush1.bf16.msra.mxu0 %v7076
    %9228 = vmatprep.subr.bf16.mxu0 %v7084
    %9229 = vmatpush1.bf16.msra.mxu0 %v7083
    %9230 = vmatprep.subr.bf16.mxu0 %v7091
    %9231 = vmatpush1.bf16.msra.mxu0 %v7090
    %9232 = vmatprep.subr.bf16.mxu0 %v7098
    %9233 = vmatpush1.bf16.msra.mxu0 %v7097
    %9234 = vmatprep.subr.bf16.mxu0 %v7105
    %9235 = vmatpush1.bf16.msra.mxu0 %v7104
    %9236 = vmatprep.subr.bf16.mxu0 %v7112
    %9237 = vmatpush1.bf16.msra.mxu0 %v7111
    %9238 = vmatprep.subr.bf16.mxu0 %v7119
    %9239 = vmatpush1.bf16.msra.mxu0 %v7118
    %9240 = vmatprep.subr.bf16.mxu0 %v7126
    %9241 = vmatpush1.bf16.msra.mxu0 %v7125
    %9242 = vmatprep.subr.bf16.mxu0 %v7133
    %9243 = vmatpush1.bf16.msra.mxu0 %v7132
    %9244 = vmatprep.subr.bf16.mxu0 %v7140
    %9245 = vmatpush1.bf16.msra.mxu0 %v7139
    %9246 = vmatprep.mubr.bf16.mxu0 %v1776
    %9247 = vmatmul.mubr.bf16.gmra.mrb[0].mxu0 %v1762
    %v9248 = vpop.f32.mrb[0].mxu0
    %v9249 = vadd.f32 %v9208, %v9248
    %v9250 = vpop.f32.mrb[0].mxu0
    %v9251 = vadd.f32 %v9210, %v9250
    %v9252 = vpop.f32.mrb[0].mxu0
    %v9253 = vpop.f32.mrb[0].mxu0
    %9254 = vdwg.mxu0
    %9255 = vmatprep.subr.bf16.mxu0 %v7147
    %9256 = vmatpush1.bf16.msra.mxu0 %v7146
    %9257 = vmatprep.subr.bf16.mxu0 %v7154
    %9258 = vmatpush1.bf16.msra.mxu0 %v7153
    %9259 = vmatprep.subr.bf16.mxu0 %v7161
    %9260 = vmatpush1.bf16.msra.mxu0 %v7160
    %9261 = vmatprep.subr.bf16.mxu0 %v7168
    %9262 = vmatpush1.bf16.msra.mxu0 %v7167
    %9263 = vmatprep.subr.bf16.mxu0 %v7175
    %9264 = vmatpush1.bf16.msra.mxu0 %v7174
    %9265 = vmatprep.subr.bf16.mxu0 %v7182
    %9266 = vmatpush1.bf16.msra.mxu0 %v7181
    %9267 = vmatprep.subr.bf16.mxu0 %v7189
    %9268 = vmatpush1.bf16.msra.mxu0 %v7188
    %9269 = vmatprep.subr.bf16.mxu0 %v7196
    %9270 = vmatpush1.bf16.msra.mxu0 %v7195
    %9271 = vmatprep.subr.bf16.mxu0 %v7203
    %9272 = vmatpush1.bf16.msra.mxu0 %v7202
    %9273 = vmatprep.subr.bf16.mxu0 %v7210
    %9274 = vmatpush1.bf16.msra.mxu0 %v7209
    %9275 = vmatprep.subr.bf16.mxu0 %v7217
    %9276 = vmatpush1.bf16.msra.mxu0 %v7216
    %9277 = vmatprep.subr.bf16.mxu0 %v7224
    %9278 = vmatpush1.bf16.msra.mxu0 %v7223
    %9279 = vmatprep.subr.bf16.mxu0 %v7231
    %9280 = vmatpush1.bf16.msra.mxu0 %v7230
    %9281 = vmatprep.subr.bf16.mxu0 %v7238
    %9282 = vmatpush1.bf16.msra.mxu0 %v7237
    %9283 = vmatprep.subr.bf16.mxu0 %v7245
    %9284 = vmatpush1.bf16.msra.mxu0 %v7244
    %9285 = vmatprep.subr.bf16.mxu0 %v7252
    %9286 = vmatpush1.bf16.msra.mxu0 %v7251
    %9287 = vmatprep.mubr.bf16.mxu0 %v1786
    %9288 = vmatmul.mubr.bf16.gmra.mrb[0].mxu0 %v1784
    %v9289 = vpop.f32.mrb[0].mxu0
    %v9290 = vadd.f32 %v9249, %v9289
    %v9291 = vpop.f32.mrb[0].mxu0
    %v9292 = vadd.f32 %v9251, %v9291
    %v9293 = vpop.f32.mrb[0].mxu0
    %v9294 = vpop.f32.mrb[0].mxu0
    %9295 = vdwg.mxu0
    %9296 = vmatprep.subr.bf16.mxu0 %v7259
    %9297 = vmatpush1.bf16.msra.mxu0 %v7258
    %9298 = vmatprep.subr.bf16.mxu0 %v7266
    %9299 = vmatpush1.bf16.msra.mxu0 %v7265
    %9300 = vmatprep.subr.bf16.mxu0 %v7273
    %9301 = vmatpush1.bf16.msra.mxu0 %v7272
    %9302 = vmatprep.subr.bf16.mxu0 %v7280
    %9303 = vmatpush1.bf16.msra.mxu0 %v7279
    %9304 = vmatprep.subr.bf16.mxu0 %v7287
    %9305 = vmatpush1.bf16.msra.mxu0 %v7286
    %9306 = vmatprep.subr.bf16.mxu0 %v7294
    %9307 = vmatpush1.bf16.msra.mxu0 %v7293
    %9308 = vmatprep.subr.bf16.mxu0 %v7301
    %9309 = vmatpush1.bf16.msra.mxu0 %v7300
    %9310 = vmatprep.subr.bf16.mxu0 %v7308
    %9311 = vmatpush1.bf16.msra.mxu0 %v7307
    %9312 = vmatprep.subr.bf16.mxu0 %v7315
    %9313 = vmatpush1.bf16.msra.mxu0 %v7314
    %9314 = vmatprep.subr.bf16.mxu0 %v7322
    %9315 = vmatpush1.bf16.msra.mxu0 %v7321
    %9316 = vmatprep.subr.bf16.mxu0 %v7329
    %9317 = vmatpush1.bf16.msra.mxu0 %v7328
    %9318 = vmatprep.subr.bf16.mxu0 %v7336
    %9319 = vmatpush1.bf16.msra.mxu0 %v7335
    %9320 = vmatprep.subr.bf16.mxu0 %v7343
    %9321 = vmatpush1.bf16.msra.mxu0 %v7342
    %9322 = vmatprep.subr.bf16.mxu0 %v7350
    %9323 = vmatpush1.bf16.msra.mxu0 %v7349
    %9324 = vmatprep.subr.bf16.mxu0 %v7357
    %9325 = vmatpush1.bf16.msra.mxu0 %v7356
    %9326 = vmatprep.subr.bf16.mxu0 %v7364
    %9327 = vmatpush1.bf16.msra.mxu0 %v7363
    %9328 = vmatprep.mubr.bf16.mxu0 %v1783
    %9329 = vmatmul.mubr.bf16.gmra.mrb[0].mxu0 %v1769
    %v9330 = vpop.f32.mrb[0].mxu0
    %v9331 = vadd.f32 %v9290, %v9330
    %v9332 = vpop.f32.mrb[0].mxu0
    %v9333 = vadd.f32 %v9292, %v9332
    %v9334 = vpop.f32.mrb[0].mxu0
    %v9335 = vpop.f32.mrb[0].mxu0
    %9336 = vdwg.mxu0
    %9337 = vmatprep.subr.bf16.mxu0 %v7371
    %9338 = vmatpush1.bf16.msra.mxu0 %v7370
    %9339 = vmatprep.subr.bf16.mxu0 %v7378
    %9340 = vmatpush1.bf16.msra.mxu0 %v7377
    %9341 = vmatprep.subr.bf16.mxu0 %v7385
    %9342 = vmatpush1.bf16.msra.mxu0 %v7384
    %9343 = vmatprep.subr.bf16.mxu0 %v7392
    %9344 = vmatpush1.bf16.msra.mxu0 %v7391
    %9345 = vmatprep.subr.bf16.mxu0 %v7399
    %9346 = vmatpush1.bf16.msra.mxu0 %v7398
    %9347 = vmatprep.subr.bf16.mxu0 %v7406
    %9348 = vmatpush1.bf16.msra.mxu0 %v7405
    %9349 = vmatprep.subr.bf16.mxu0 %v7413
    %9350 = vmatpush1.bf16.msra.mxu0 %v7412
    %9351 = vmatprep.subr.bf16.mxu0 %v7420
    %9352 = vmatpush1.bf16.msra.mxu0 %v7419
    %9353 = vmatprep.subr.bf16.mxu0 %v7427
    %9354 = vmatpush1.bf16.msra.mxu0 %v7426
    %9355 = vmatprep.subr.bf16.mxu0 %v7434
    %9356 = vmatpush1.bf16.msra.mxu0 %v7433
    %9357 = vmatprep.subr.bf16.mxu0 %v7441
    %9358 = vmatpush1.bf16.msra.mxu0 %v7440
    %9359 = vmatprep.subr.bf16.mxu0 %v7448
    %9360 = vmatpush1.bf16.msra.mxu0 %v7447
    %9361 = vmatprep.subr.bf16.mxu0 %v7455
    %9362 = vmatpush1.bf16.msra.mxu0 %v7454
    %9363 = vmatprep.subr.bf16.mxu0 %v7462
    %9364 = vmatpush1.bf16.msra.mxu0 %v7461
    %9365 = vmatprep.subr.bf16.mxu0 %v7469
    %9366 = vmatpush1.bf16.msra.mxu0 %v7468
    %9367 = vmatprep.subr.bf16.mxu0 %v7476
    %9368 = vmatpush1.bf16.msra.mxu0 %v7475
    %9369 = vmatprep.mubr.bf16.mxu0 %v1787
    %9370 = vmatmul.mubr.bf16.gmra.mrb[0].mxu0 %v1785
    %v9371 = vpop.f32.mrb[0].mxu0
    %v9372 = vadd.f32 %v9331, %v9371
    %v9373 = vpop.f32.mrb[0].mxu0
    %v9374 = vadd.f32 %v9333, %v9373
    %v9375 = vpop.f32.mrb[0].mxu0
    %v9376 = vpop.f32.mrb[0].mxu0
    %9377 = vdwg.mxu0
    %9378 = vmatprep.subr.bf16.mxu0 %v7483
    %9379 = vmatpush1.bf16.msra.mxu0 %v7482
    %9380 = vmatprep.subr.bf16.mxu0 %v7490
    %9381 = vmatpush1.bf16.msra.mxu0 %v7489
    %9382 = vmatprep.subr.bf16.mxu0 %v7497
    %9383 = vmatpush1.bf16.msra.mxu0 %v7496
    %9384 = vmatprep.subr.bf16.mxu0 %v7504
    %9385 = vmatpush1.bf16.msra.mxu0 %v7503
    %9386 = vmatprep.subr.bf16.mxu0 0
    %9387 = vmatpush1.bf16.msra.mxu0 0
    %9388 = vmatprep.subr.bf16.mxu0 0
    %9389 = vmatpush1.bf16.msra.mxu0 0
    %9390 = vmatprep.subr.bf16.mxu0 0
    %9391 = vmatpush1.bf16.msra.mxu0 0
    %9392 = vmatprep.subr.bf16.mxu0 0
    %9393 = vmatpush1.bf16.msra.mxu0 0
    %9394 = vmatprep.subr.bf16.mxu0 0
    %9395 = vmatpush1.bf16.msra.mxu0 0
    %9396 = vmatprep.subr.bf16.mxu0 0
    %9397 = vmatpush1.bf16.msra.mxu0 0
    %9398 = vmatprep.subr.bf16.mxu0 0
    %9399 = vmatpush1.bf16.msra.mxu0 0
    %9400 = vmatprep.subr.bf16.mxu0 0
    %9401 = vmatpush1.bf16.msra.mxu0 0
    %9402 = vmatprep.subr.bf16.mxu0 0
    %9403 = vmatpush1.bf16.msra.mxu0 0
    %9404 = vmatprep.subr.bf16.mxu0 0
    %9405 = vmatpush1.bf16.msra.mxu0 0
    %9406 = vmatprep.subr.bf16.mxu0 0
    %9407 = vmatpush1.bf16.msra.mxu0 0
    %9408 = vmatprep.subr.bf16.mxu0 0
    %9409 = vmatpush1.bf16.msra.mxu0 0
    %9410 = vmatprep.mubr.bf16.mxu0 0
    %9411 = vmatmul.mubr.bf16.gmra.mrb[0].mxu0 %v8884
    %v9412 = vpop.f32.mrb[0].mxu0
    %v9413 = vadd.f32 %v9372, %v9412
    %v9414 = vpop.f32.mrb[0].mxu0
    %v9415 = vadd.f32 %v9374, %v9414
    %v9416 = vpop.f32.mrb[0].mxu0
    %v9417 = vpop.f32.mrb[0].mxu0
    %9418 = vdwg.mxu0
    %9419 = vmatprep.subr.bf16.mxu0 %v6141
    %9420 = vmatpush1.bf16.msra.mxu0 %v6140
    %9421 = vmatprep.subr.bf16.mxu0 %v6148
    %9422 = vmatpush1.bf16.msra.mxu0 %v6147
    %9423 = vmatprep.subr.bf16.mxu0 %v6155
    %9424 = vmatpush1.bf16.msra.mxu0 %v6154
    %9425 = vmatprep.subr.bf16.mxu0 %v6162
    %9426 = vmatpush1.bf16.msra.mxu0 %v6161
    %9427 = vmatprep.subr.bf16.mxu0 %v6169
    %9428 = vmatpush1.bf16.msra.mxu0 %v6168
    %9429 = vmatprep.subr.bf16.mxu0 %v6176
    %9430 = vmatpush1.bf16.msra.mxu0 %v6175
    %9431 = vmatprep.subr.bf16.mxu0 %v6183
    %9432 = vmatpush1.bf16.msra.mxu0 %v6182
    %9433 = vmatprep.subr.bf16.mxu0 %v6190
    %9434 = vmatpush1.bf16.msra.mxu0 %v6189
    %9435 = vmatprep.subr.bf16.mxu0 %v6197
    %9436 = vmatpush1.bf16.msra.mxu0 %v6196
    %9437 = vmatprep.subr.bf16.mxu0 %v6204
    %9438 = vmatpush1.bf16.msra.mxu0 %v6203
    %9439 = vmatprep.subr.bf16.mxu0 %v6211
    %9440 = vmatpush1.bf16.msra.mxu0 %v6210
    %9441 = vmatprep.subr.bf16.mxu0 %v6218
    %9442 = vmatpush1.bf16.msra.mxu0 %v6217
    %9443 = vmatprep.subr.bf16.mxu0 %v6225
    %9444 = vmatpush1.bf16.msra.mxu0 %v6224
    %9445 = vmatprep.subr.bf16.mxu0 %v6232
    %9446 = vmatpush1.bf16.msra.mxu0 %v6231
    %9447 = vmatprep.subr.bf16.mxu0 %v6239
    %9448 = vmatpush1.bf16.msra.mxu0 %v6238
    %9449 = vmatprep.subr.bf16.mxu0 %v6246
    %9450 = vmatpush1.bf16.msra.mxu0 %v6245
    %9451 = vmatprep.mubr.bf16.mxu0 %v1678
    %9452 = vmatmul.mubr.bf16.gmra.mrb[0].mxu0 %v1664
    %v9453 = vpop.f32.mrb[0].mxu0
    %v9454 = vadd.f32 %v1613, %v9453
    %v9455 = vpop.f32.mrb[0].mxu0
    %v9456 = vadd.f32 %v1617, %v9455
    %v9457 = vpop.f32.mrb[0].mxu0
    %v9458 = vpop.f32.mrb[0].mxu0
    %9459 = vdwg.mxu0
    %9460 = vmatprep.subr.bf16.mxu0 %v6253
    %9461 = vmatpush1.bf16.msra.mxu0 %v6252
    %9462 = vmatprep.subr.bf16.mxu0 %v6260
    %9463 = vmatpush1.bf16.msra.mxu0 %v6259
    %9464 = vmatprep.subr.bf16.mxu0 %v6267
    %9465 = vmatpush1.bf16.msra.mxu0 %v6266
    %9466 = vmatprep.subr.bf16.mxu0 %v6274
    %9467 = vmatpush1.bf16.msra.mxu0 %v6273
    %9468 = vmatprep.subr.bf16.mxu0 %v6281
    %9469 = vmatpush1.bf16.msra.mxu0 %v6280
    %9470 = vmatprep.subr.bf16.mxu0 %v6288
    %9471 = vmatpush1.bf16.msra.mxu0 %v6287
    %9472 = vmatprep.subr.bf16.mxu0 %v6295
    %9473 = vmatpush1.bf16.msra.mxu0 %v6294
    %9474 = vmatprep.subr.bf16.mxu0 %v6302
    %9475 = vmatpush1.bf16.msra.mxu0 %v6301
    %9476 = vmatprep.subr.bf16.mxu0 %v6309
    %9477 = vmatpush1.bf16.msra.mxu0 %v6308
    %9478 = vmatprep.subr.bf16.mxu0 %v6316
    %9479 = vmatpush1.bf16.msra.mxu0 %v6315
    %9480 = vmatprep.subr.bf16.mxu0 %v6323
    %9481 = vmatpush1.bf16.msra.mxu0 %v6322
    %9482 = vmatprep.subr.bf16.mxu0 %v6330
    %9483 = vmatpush1.bf16.msra.mxu0 %v6329
    %9484 = vmatprep.subr.bf16.mxu0 %v6337
    %9485 = vmatpush1.bf16.msra.mxu0 %v6336
    %9486 = vmatprep.subr.bf16.mxu0 %v6344
    %9487 = vmatpush1.bf16.msra.mxu0 %v6343
    %9488 = vmatprep.subr.bf16.mxu0 %v6351
    %9489 = vmatpush1.bf16.msra.mxu0 %v6350
    %9490 = vmatprep.subr.bf16.mxu0 %v6358
    %9491 = vmatpush1.bf16.msra.mxu0 %v6357
    %9492 = vmatprep.mubr.bf16.mxu0 %v1688
    %9493 = vmatmul.mubr.bf16.gmra.mrb[0].mxu0 %v1686
    %v9494 = vpop.f32.mrb[0].mxu0
    %v9495 = vadd.f32 %v9454, %v9494
    %v9496 = vpop.f32.mrb[0].mxu0
    %v9497 = vadd.f32 %v9456, %v9496
    %v9498 = vpop.f32.mrb[0].mxu0
    %v9499 = vpop.f32.mrb[0].mxu0
    %9500 = vdwg.mxu0
    %9501 = vmatprep.subr.bf16.mxu0 %v6365
    %9502 = vmatpush1.bf16.msra.mxu0 %v6364
    %9503 = vmatprep.subr.bf16.mxu0 %v6372
    %9504 = vmatpush1.bf16.msra.mxu0 %v6371
    %9505 = vmatprep.subr.bf16.mxu0 %v6379
    %9506 = vmatpush1.bf16.msra.mxu0 %v6378
    %9507 = vmatprep.subr.bf16.mxu0 %v6386
    %9508 = vmatpush1.bf16.msra.mxu0 %v6385
    %9509 = vmatprep.subr.bf16.mxu0 %v6393
    %9510 = vmatpush1.bf16.msra.mxu0 %v6392
    %9511 = vmatprep.subr.bf16.mxu0 %v6400
    %9512 = vmatpush1.bf16.msra.mxu0 %v6399
    %9513 = vmatprep.subr.bf16.mxu0 %v6407
    %9514 = vmatpush1.bf16.msra.mxu0 %v6406
    %9515 = vmatprep.subr.bf16.mxu0 %v6414
    %9516 = vmatpush1.bf16.msra.mxu0 %v6413
    %9517 = vmatprep.subr.bf16.mxu0 %v6421
    %9518 = vmatpush1.bf16.msra.mxu0 %v6420
    %9519 = vmatprep.subr.bf16.mxu0 %v6428
    %9520 = vmatpush1.bf16.msra.mxu0 %v6427
    %9521 = vmatprep.subr.bf16.mxu0 %v6435
    %9522 = vmatpush1.bf16.msra.mxu0 %v6434
    %9523 = vmatprep.subr.bf16.mxu0 %v6442
    %9524 = vmatpush1.bf16.msra.mxu0 %v6441
    %9525 = vmatprep.subr.bf16.mxu0 %v6449
    %9526 = vmatpush1.bf16.msra.mxu0 %v6448
    %9527 = vmatprep.subr.bf16.mxu0 %v6456
    %9528 = vmatpush1.bf16.msra.mxu0 %v6455
    %9529 = vmatprep.subr.bf16.mxu0 %v6463
    %9530 = vmatpush1.bf16.msra.mxu0 %v6462
    %9531 = vmatprep.subr.bf16.mxu0 %v6470
    %9532 = vmatpush1.bf16.msra.mxu0 %v6469
    %9533 = vmatprep.mubr.bf16.mxu0 %v1685
    %9534 = vmatmul.mubr.bf16.gmra.mrb[0].mxu0 %v1671
    %v9535 = vpop.f32.mrb[0].mxu0
    %v9536 = vadd.f32 %v9495, %v9535
    %v9537 = vpop.f32.mrb[0].mxu0
    %v9538 = vadd.f32 %v9497, %v9537
    %v9539 = vpop.f32.mrb[0].mxu0
    %v9540 = vpop.f32.mrb[0].mxu0
    %9541 = vdwg.mxu0
    %9542 = vmatprep.subr.bf16.mxu0 %v6477
    %9543 = vmatpush1.bf16.msra.mxu0 %v6476
    %9544 = vmatprep.subr.bf16.mxu0 %v6484
    %9545 = vmatpush1.bf16.msra.mxu0 %v6483
    %9546 = vmatprep.subr.bf16.mxu0 %v6491
    %9547 = vmatpush1.bf16.msra.mxu0 %v6490
    %9548 = vmatprep.subr.bf16.mxu0 %v6498
    %9549 = vmatpush1.bf16.msra.mxu0 %v6497
    %9550 = vmatprep.subr.bf16.mxu0 %v6505
    %9551 = vmatpush1.bf16.msra.mxu0 %v6504
    %9552 = vmatprep.subr.bf16.mxu0 %v6512
    %9553 = vmatpush1.bf16.msra.mxu0 %v6511
    %9554 = vmatprep.subr.bf16.mxu0 %v6519
    %9555 = vmatpush1.bf16.msra.mxu0 %v6518
    %9556 = vmatprep.subr.bf16.mxu0 %v6526
    %9557 = vmatpush1.bf16.msra.mxu0 %v6525
    %9558 = vmatprep.subr.bf16.mxu0 %v6533
    %9559 = vmatpush1.bf16.msra.mxu0 %v6532
    %9560 = vmatprep.subr.bf16.mxu0 %v6540
    %9561 = vmatpush1.bf16.msra.mxu0 %v6539
    %9562 = vmatprep.subr.bf16.mxu0 %v6547
    %9563 = vmatpush1.bf16.msra.mxu0 %v6546
    %9564 = vmatprep.subr.bf16.mxu0 %v6554
    %9565 = vmatpush1.bf16.msra.mxu0 %v6553
    %9566 = vmatprep.subr.bf16.mxu0 %v6561
    %9567 = vmatpush1.bf16.msra.mxu0 %v6560
    %9568 = vmatprep.subr.bf16.mxu0 %v6568
    %9569 = vmatpush1.bf16.msra.mxu0 %v6567
    %9570 = vmatprep.subr.bf16.mxu0 %v6575
    %9571 = vmatpush1.bf16.msra.mxu0 %v6574
    %9572 = vmatprep.subr.bf16.mxu0 %v6582
    %9573 = vmatpush1.bf16.msra.mxu0 %v6581
    %9574 = vmatprep.mubr.bf16.mxu0 %v1689
    %9575 = vmatmul.mubr.bf16.gmra.mrb[0].mxu0 %v1687
    %v9576 = vpop.f32.mrb[0].mxu0
    %v9577 = vadd.f32 %v9536, %v9576
    %v9578 = vpop.f32.mrb[0].mxu0
    %v9579 = vadd.f32 %v9538, %v9578
    %v9580 = vpop.f32.mrb[0].mxu0
    %v9581 = vpop.f32.mrb[0].mxu0
    %9582 = vdwg.mxu0
    %9583 = vmatprep.subr.bf16.mxu0 %v6589
    %9584 = vmatpush1.bf16.msra.mxu0 %v6588
    %9585 = vmatprep.subr.bf16.mxu0 %v6596
    %9586 = vmatpush1.bf16.msra.mxu0 %v6595
    %9587 = vmatprep.subr.bf16.mxu0 %v6603
    %9588 = vmatpush1.bf16.msra.mxu0 %v6602
    %9589 = vmatprep.subr.bf16.mxu0 %v6610
    %9590 = vmatpush1.bf16.msra.mxu0 %v6609
    %9591 = vmatprep.subr.bf16.mxu0 %v6617
    %9592 = vmatpush1.bf16.msra.mxu0 %v6616
    %9593 = vmatprep.subr.bf16.mxu0 %v6624
    %9594 = vmatpush1.bf16.msra.mxu0 %v6623
    %9595 = vmatprep.subr.bf16.mxu0 %v6631
    %9596 = vmatpush1.bf16.msra.mxu0 %v6630
    %9597 = vmatprep.subr.bf16.mxu0 %v6638
    %9598 = vmatpush1.bf16.msra.mxu0 %v6637
    %9599 = vmatprep.subr.bf16.mxu0 %v6645
    %9600 = vmatpush1.bf16.msra.mxu0 %v6644
    %9601 = vmatprep.subr.bf16.mxu0 %v6652
    %9602 = vmatpush1.bf16.msra.mxu0 %v6651
    %9603 = vmatprep.subr.bf16.mxu0 %v6659
    %9604 = vmatpush1.bf16.msra.mxu0 %v6658
    %9605 = vmatprep.subr.bf16.mxu0 %v6666
    %9606 = vmatpush1.bf16.msra.mxu0 %v6665
    %9607 = vmatprep.subr.bf16.mxu0 %v6673
    %9608 = vmatpush1.bf16.msra.mxu0 %v6672
    %9609 = vmatprep.subr.bf16.mxu0 %v6680
    %9610 = vmatpush1.bf16.msra.mxu0 %v6679
    %9611 = vmatprep.subr.bf16.mxu0 %v6687
    %9612 = vmatpush1.bf16.msra.mxu0 %v6686
    %9613 = vmatprep.subr.bf16.mxu0 %v6694
    %9614 = vmatpush1.bf16.msra.mxu0 %v6693
    %9615 = vmatprep.mubr.bf16.mxu0 %v1727
    %9616 = vmatmul.mubr.bf16.gmra.mrb[0].mxu0 %v1713
    %v9617 = vpop.f32.mrb[0].mxu0
    %v9618 = vadd.f32 %v9577, %v9617
    %v9619 = vpop.f32.mrb[0].mxu0
    %v9620 = vadd.f32 %v9579, %v9619
    %v9621 = vpop.f32.mrb[0].mxu0
    %v9622 = vpop.f32.mrb[0].mxu0
    %9623 = vdwg.mxu0
    %9624 = vmatprep.subr.bf16.mxu0 %v6701
    %9625 = vmatpush1.bf16.msra.mxu0 %v6700
    %9626 = vmatprep.subr.bf16.mxu0 %v6708
    %9627 = vmatpush1.bf16.msra.mxu0 %v6707
    %9628 = vmatprep.subr.bf16.mxu0 %v6715
    %9629 = vmatpush1.bf16.msra.mxu0 %v6714
    %9630 = vmatprep.subr.bf16.mxu0 %v6722
    %9631 = vmatpush1.bf16.msra.mxu0 %v6721
    %9632 = vmatprep.subr.bf16.mxu0 %v6729
    %9633 = vmatpush1.bf16.msra.mxu0 %v6728
    %9634 = vmatprep.subr.bf16.mxu0 %v6736
    %9635 = vmatpush1.bf16.msra.mxu0 %v6735
    %9636 = vmatprep.subr.bf16.mxu0 %v6743
    %9637 = vmatpush1.bf16.msra.mxu0 %v6742
    %9638 = vmatprep.subr.bf16.mxu0 %v6750
    %9639 = vmatpush1.bf16.msra.mxu0 %v6749
    %9640 = vmatprep.subr.bf16.mxu0 %v6757
    %9641 = vmatpush1.bf16.msra.mxu0 %v6756
    %9642 = vmatprep.subr.bf16.mxu0 %v6764
    %9643 = vmatpush1.bf16.msra.mxu0 %v6763
    %9644 = vmatprep.subr.bf16.mxu0 %v6771
    %9645 = vmatpush1.bf16.msra.mxu0 %v6770
    %9646 = vmatprep.subr.bf16.mxu0 %v6778
    %9647 = vmatpush1.bf16.msra.mxu0 %v6777
    %9648 = vmatprep.subr.bf16.mxu0 %v6785
    %9649 = vmatpush1.bf16.msra.mxu0 %v6784
    %9650 = vmatprep.subr.bf16.mxu0 %v6792
    %9651 = vmatpush1.bf16.msra.mxu0 %v6791
    %9652 = vmatprep.subr.bf16.mxu0 %v6799
    %9653 = vmatpush1.bf16.msra.mxu0 %v6798
    %9654 = vmatprep.subr.bf16.mxu0 %v6806
    %9655 = vmatpush1.bf16.msra.mxu0 %v6805
    %9656 = vmatprep.mubr.bf16.mxu0 %v1737
    %9657 = vmatmul.mubr.bf16.gmra.mrb[0].mxu0 %v1735
    %v9658 = vpop.f32.mrb[0].mxu0
    %v9659 = vadd.f32 %v9618, %v9658
    %v9660 = vpop.f32.mrb[0].mxu0
    %v9661 = vadd.f32 %v9620, %v9660
    %v9662 = vpop.f32.mrb[0].mxu0
    %v9663 = vpop.f32.mrb[0].mxu0
    %9664 = vdwg.mxu0
    %9665 = vmatprep.subr.bf16.mxu0 %v6813
    %9666 = vmatpush1.bf16.msra.mxu0 %v6812
    %9667 = vmatprep.subr.bf16.mxu0 %v6820
    %9668 = vmatpush1.bf16.msra.mxu0 %v6819
    %9669 = vmatprep.subr.bf16.mxu0 %v6827
    %9670 = vmatpush1.bf16.msra.mxu0 %v6826
    %9671 = vmatprep.subr.bf16.mxu0 %v6834
    %9672 = vmatpush1.bf16.msra.mxu0 %v6833
    %9673 = vmatprep.subr.bf16.mxu0 %v6841
    %9674 = vmatpush1.bf16.msra.mxu0 %v6840
    %9675 = vmatprep.subr.bf16.mxu0 %v6848
    %9676 = vmatpush1.bf16.msra.mxu0 %v6847
    %9677 = vmatprep.subr.bf16.mxu0 %v6855
    %9678 = vmatpush1.bf16.msra.mxu0 %v6854
    %9679 = vmatprep.subr.bf16.mxu0 %v6862
    %9680 = vmatpush1.bf16.msra.mxu0 %v6861
    %9681 = vmatprep.subr.bf16.mxu0 %v6869
    %9682 = vmatpush1.bf16.msra.mxu0 %v6868
    %9683 = vmatprep.subr.bf16.mxu0 %v6876
    %9684 = vmatpush1.bf16.msra.mxu0 %v6875
    %9685 = vmatprep.subr.bf16.mxu0 %v6883
    %9686 = vmatpush1.bf16.msra.mxu0 %v6882
    %9687 = vmatprep.subr.bf16.mxu0 %v6890
    %9688 = vmatpush1.bf16.msra.mxu0 %v6889
    %9689 = vmatprep.subr.bf16.mxu0 %v6897
    %9690 = vmatpush1.bf16.msra.mxu0 %v6896
    %9691 = vmatprep.subr.bf16.mxu0 %v6904
    %9692 = vmatpush1.bf16.msra.mxu0 %v6903
    %9693 = vmatprep.subr.bf16.mxu0 %v6911
    %9694 = vmatpush1.bf16.msra.mxu0 %v6910
    %9695 = vmatprep.subr.bf16.mxu0 %v6918
    %9696 = vmatpush1.bf16.msra.mxu0 %v6917
    %9697 = vmatprep.mubr.bf16.mxu0 %v1734
    %9698 = vmatmul.mubr.bf16.gmra.mrb[0].mxu0 %v1720
    %v9699 = vpop.f32.mrb[0].mxu0
    %v9700 = vadd.f32 %v9659, %v9699
    %v9701 = vpop.f32.mrb[0].mxu0
    %v9702 = vadd.f32 %v9661, %v9701
    %v9703 = vpop.f32.mrb[0].mxu0
    %v9704 = vpop.f32.mrb[0].mxu0
    %9705 = vdwg.mxu0
    %9706 = vmatprep.subr.bf16.mxu0 %v6925
    %9707 = vmatpush1.bf16.msra.mxu0 %v6924
    %9708 = vmatprep.subr.bf16.mxu0 %v6932
    %9709 = vmatpush1.bf16.msra.mxu0 %v6931
    %9710 = vmatprep.subr.bf16.mxu0 %v6939
    %9711 = vmatpush1.bf16.msra.mxu0 %v6938
    %9712 = vmatprep.subr.bf16.mxu0 %v6946
    %9713 = vmatpush1.bf16.msra.mxu0 %v6945
    %9714 = vmatprep.subr.bf16.mxu0 %v6953
    %9715 = vmatpush1.bf16.msra.mxu0 %v6952
    %9716 = vmatprep.subr.bf16.mxu0 %v6960
    %9717 = vmatpush1.bf16.msra.mxu0 %v6959
    %9718 = vmatprep.subr.bf16.mxu0 %v6967
    %9719 = vmatpush1.bf16.msra.mxu0 %v6966
    %9720 = vmatprep.subr.bf16.mxu0 %v6974
    %9721 = vmatpush1.bf16.msra.mxu0 %v6973
    %9722 = vmatprep.subr.bf16.mxu0 %v6981
    %9723 = vmatpush1.bf16.msra.mxu0 %v6980
    %9724 = vmatprep.subr.bf16.mxu0 %v6988
    %9725 = vmatpush1.bf16.msra.mxu0 %v6987
    %9726 = vmatprep.subr.bf16.mxu0 %v6995
    %9727 = vmatpush1.bf16.msra.mxu0 %v6994
    %9728 = vmatprep.subr.bf16.mxu0 %v7002
    %9729 = vmatpush1.bf16.msra.mxu0 %v7001
    %9730 = vmatprep.subr.bf16.mxu0 %v7009
    %9731 = vmatpush1.bf16.msra.mxu0 %v7008
    %9732 = vmatprep.subr.bf16.mxu0 %v7016
    %9733 = vmatpush1.bf16.msra.mxu0 %v7015
    %9734 = vmatprep.subr.bf16.mxu0 %v7023
    %9735 = vmatpush1.bf16.msra.mxu0 %v7022
    %9736 = vmatprep.subr.bf16.mxu0 %v7030
    %9737 = vmatpush1.bf16.msra.mxu0 %v7029
    %9738 = vmatprep.mubr.bf16.mxu0 %v1738
    %9739 = vmatmul.mubr.bf16.gmra.mrb[0].mxu0 %v1736
    %v9740 = vpop.f32.mrb[0].mxu0
    %v9741 = vadd.f32 %v9700, %v9740
    %v9742 = vpop.f32.mrb[0].mxu0
    %v9743 = vadd.f32 %v9702, %v9742
    %v9744 = vpop.f32.mrb[0].mxu0
    %v9745 = vpop.f32.mrb[0].mxu0
    %9746 = vdwg.mxu0
    %9747 = vmatprep.subr.bf16.mxu0 %v7037
    %9748 = vmatpush1.bf16.msra.mxu0 %v7036
    %9749 = vmatprep.subr.bf16.mxu0 %v7044
    %9750 = vmatpush1.bf16.msra.mxu0 %v7043
    %9751 = vmatprep.subr.bf16.mxu0 %v7051
    %9752 = vmatpush1.bf16.msra.mxu0 %v7050
    %9753 = vmatprep.subr.bf16.mxu0 %v7058
    %9754 = vmatpush1.bf16.msra.mxu0 %v7057
    %9755 = vmatprep.subr.bf16.mxu0 %v7065
    %9756 = vmatpush1.bf16.msra.mxu0 %v7064
    %9757 = vmatprep.subr.bf16.mxu0 %v7072
    %9758 = vmatpush1.bf16.msra.mxu0 %v7071
    %9759 = vmatprep.subr.bf16.mxu0 %v7079
    %9760 = vmatpush1.bf16.msra.mxu0 %v7078
    %9761 = vmatprep.subr.bf16.mxu0 %v7086
    %9762 = vmatpush1.bf16.msra.mxu0 %v7085
    %9763 = vmatprep.subr.bf16.mxu0 %v7093
    %9764 = vmatpush1.bf16.msra.mxu0 %v7092
    %9765 = vmatprep.subr.bf16.mxu0 %v7100
    %9766 = vmatpush1.bf16.msra.mxu0 %v7099
    %9767 = vmatprep.subr.bf16.mxu0 %v7107
    %9768 = vmatpush1.bf16.msra.mxu0 %v7106
    %9769 = vmatprep.subr.bf16.mxu0 %v7114
    %9770 = vmatpush1.bf16.msra.mxu0 %v7113
    %9771 = vmatprep.subr.bf16.mxu0 %v7121
    %9772 = vmatpush1.bf16.msra.mxu0 %v7120
    %9773 = vmatprep.subr.bf16.mxu0 %v7128
    %9774 = vmatpush1.bf16.msra.mxu0 %v7127
    %9775 = vmatprep.subr.bf16.mxu0 %v7135
    %9776 = vmatpush1.bf16.msra.mxu0 %v7134
    %9777 = vmatprep.subr.bf16.mxu0 %v7142
    %9778 = vmatpush1.bf16.msra.mxu0 %v7141
    %9779 = vmatprep.mubr.bf16.mxu0 %v1776
    %9780 = vmatmul.mubr.bf16.gmra.mrb[0].mxu0 %v1762
    %v9781 = vpop.f32.mrb[0].mxu0
    %v9782 = vadd.f32 %v9741, %v9781
    %v9783 = vpop.f32.mrb[0].mxu0
    %v9784 = vadd.f32 %v9743, %v9783
    %v9785 = vpop.f32.mrb[0].mxu0
    %v9786 = vpop.f32.mrb[0].mxu0
    %9787 = vdwg.mxu0
    %9788 = vmatprep.subr.bf16.mxu0 %v7149
    %9789 = vmatpush1.bf16.msra.mxu0 %v7148
    %9790 = vmatprep.subr.bf16.mxu0 %v7156
    %9791 = vmatpush1.bf16.msra.mxu0 %v7155
    %9792 = vmatprep.subr.bf16.mxu0 %v7163
    %9793 = vmatpush1.bf16.msra.mxu0 %v7162
    %9794 = vmatprep.subr.bf16.mxu0 %v7170
    %9795 = vmatpush1.bf16.msra.mxu0 %v7169
    %9796 = vmatprep.subr.bf16.mxu0 %v7177
    %9797 = vmatpush1.bf16.msra.mxu0 %v7176
    %9798 = vmatprep.subr.bf16.mxu0 %v7184
    %9799 = vmatpush1.bf16.msra.mxu0 %v7183
    %9800 = vmatprep.subr.bf16.mxu0 %v7191
    %9801 = vmatpush1.bf16.msra.mxu0 %v7190
    %9802 = vmatprep.subr.bf16.mxu0 %v7198
    %9803 = vmatpush1.bf16.msra.mxu0 %v7197
    %9804 = vmatprep.subr.bf16.mxu0 %v7205
    %9805 = vmatpush1.bf16.msra.mxu0 %v7204
    %9806 = vmatprep.subr.bf16.mxu0 %v7212
    %9807 = vmatpush1.bf16.msra.mxu0 %v7211
    %9808 = vmatprep.subr.bf16.mxu0 %v7219
    %9809 = vmatpush1.bf16.msra.mxu0 %v7218
    %9810 = vmatprep.subr.bf16.mxu0 %v7226
    %9811 = vmatpush1.bf16.msra.mxu0 %v7225
    %9812 = vmatprep.subr.bf16.mxu0 %v7233
    %9813 = vmatpush1.bf16.msra.mxu0 %v7232
    %9814 = vmatprep.subr.bf16.mxu0 %v7240
    %9815 = vmatpush1.bf16.msra.mxu0 %v7239
    %9816 = vmatprep.subr.bf16.mxu0 %v7247
    %9817 = vmatpush1.bf16.msra.mxu0 %v7246
    %9818 = vmatprep.subr.bf16.mxu0 %v7254
    %9819 = vmatpush1.bf16.msra.mxu0 %v7253
    %9820 = vmatprep.mubr.bf16.mxu0 %v1786
    %9821 = vmatmul.mubr.bf16.gmra.mrb[0].mxu0 %v1784
    %v9822 = vpop.f32.mrb[0].mxu0
    %v9823 = vadd.f32 %v9782, %v9822
    %v9824 = vpop.f32.mrb[0].mxu0
    %v9825 = vadd.f32 %v9784, %v9824
    %v9826 = vpop.f32.mrb[0].mxu0
    %v9827 = vpop.f32.mrb[0].mxu0
    %9828 = vdwg.mxu0
    %9829 = vmatprep.subr.bf16.mxu0 %v7261
    %9830 = vmatpush1.bf16.msra.mxu0 %v7260
    %9831 = vmatprep.subr.bf16.mxu0 %v7268
    %9832 = vmatpush1.bf16.msra.mxu0 %v7267
    %9833 = vmatprep.subr.bf16.mxu0 %v7275
    %9834 = vmatpush1.bf16.msra.mxu0 %v7274
    %9835 = vmatprep.subr.bf16.mxu0 %v7282
    %9836 = vmatpush1.bf16.msra.mxu0 %v7281
    %9837 = vmatprep.subr.bf16.mxu0 %v7289
    %9838 = vmatpush1.bf16.msra.mxu0 %v7288
    %9839 = vmatprep.subr.bf16.mxu0 %v7296
    %9840 = vmatpush1.bf16.msra.mxu0 %v7295
    %9841 = vmatprep.subr.bf16.mxu0 %v7303
    %9842 = vmatpush1.bf16.msra.mxu0 %v7302
    %9843 = vmatprep.subr.bf16.mxu0 %v7310
    %9844 = vmatpush1.bf16.msra.mxu0 %v7309
    %9845 = vmatprep.subr.bf16.mxu0 %v7317
    %9846 = vmatpush1.bf16.msra.mxu0 %v7316
    %9847 = vmatprep.subr.bf16.mxu0 %v7324
    %9848 = vmatpush1.bf16.msra.mxu0 %v7323
    %9849 = vmatprep.subr.bf16.mxu0 %v7331
    %9850 = vmatpush1.bf16.msra.mxu0 %v7330
    %9851 = vmatprep.subr.bf16.mxu0 %v7338
    %9852 = vmatpush1.bf16.msra.mxu0 %v7337
    %9853 = vmatprep.subr.bf16.mxu0 %v7345
    %9854 = vmatpush1.bf16.msra.mxu0 %v7344
    %9855 = vmatprep.subr.bf16.mxu0 %v7352
    %9856 = vmatpush1.bf16.msra.mxu0 %v7351
    %9857 = vmatprep.subr.bf16.mxu0 %v7359
    %9858 = vmatpush1.bf16.msra.mxu0 %v7358
    %9859 = vmatprep.subr.bf16.mxu0 %v7366
    %9860 = vmatpush1.bf16.msra.mxu0 %v7365
    %9861 = vmatprep.mubr.bf16.mxu0 %v1783
    %9862 = vmatmul.mubr.bf16.gmra.mrb[0].mxu0 %v1769
    %v9863 = vpop.f32.mrb[0].mxu0
    %v9864 = vadd.f32 %v9823, %v9863
    %v9865 = vpop.f32.mrb[0].mxu0
    %v9866 = vadd.f32 %v9825, %v9865
    %v9867 = vpop.f32.mrb[0].mxu0
    %v9868 = vpop.f32.mrb[0].mxu0
    %9869 = vdwg.mxu0
    %9870 = vmatprep.subr.bf16.mxu0 %v7373
    %9871 = vmatpush1.bf16.msra.mxu0 %v7372
    %9872 = vmatprep.subr.bf16.mxu0 %v7380
    %9873 = vmatpush1.bf16.msra.mxu0 %v7379
    %9874 = vmatprep.subr.bf16.mxu0 %v7387
    %9875 = vmatpush1.bf16.msra.mxu0 %v7386
    %9876 = vmatprep.subr.bf16.mxu0 %v7394
    %9877 = vmatpush1.bf16.msra.mxu0 %v7393
    %9878 = vmatprep.subr.bf16.mxu0 %v7401
    %9879 = vmatpush1.bf16.msra.mxu0 %v7400
    %9880 = vmatprep.subr.bf16.mxu0 %v7408
    %9881 = vmatpush1.bf16.msra.mxu0 %v7407
    %9882 = vmatprep.subr.bf16.mxu0 %v7415
    %9883 = vmatpush1.bf16.msra.mxu0 %v7414
    %9884 = vmatprep.subr.bf16.mxu0 %v7422
    %9885 = vmatpush1.bf16.msra.mxu0 %v7421
    %9886 = vmatprep.subr.bf16.mxu0 %v7429
    %9887 = vmatpush1.bf16.msra.mxu0 %v7428
    %9888 = vmatprep.subr.bf16.mxu0 %v7436
    %9889 = vmatpush1.bf16.msra.mxu0 %v7435
    %9890 = vmatprep.subr.bf16.mxu0 %v7443
    %9891 = vmatpush1.bf16.msra.mxu0 %v7442
    %9892 = vmatprep.subr.bf16.mxu0 %v7450
    %9893 = vmatpush1.bf16.msra.mxu0 %v7449
    %9894 = vmatprep.subr.bf16.mxu0 %v7457
    %9895 = vmatpush1.bf16.msra.mxu0 %v7456
    %9896 = vmatprep.subr.bf16.mxu0 %v7464
    %9897 = vmatpush1.bf16.msra.mxu0 %v7463
    %9898 = vmatprep.subr.bf16.mxu0 %v7471
    %9899 = vmatpush1.bf16.msra.mxu0 %v7470
    %9900 = vmatprep.subr.bf16.mxu0 %v7478
    %9901 = vmatpush1.bf16.msra.mxu0 %v7477
    %9902 = vmatprep.mubr.bf16.mxu0 %v1787
    %9903 = vmatmul.mubr.bf16.gmra.mrb[0].mxu0 %v1785
    %v9904 = vpop.f32.mrb[0].mxu0
    %v9905 = vadd.f32 %v9864, %v9904
    %v9906 = vpop.f32.mrb[0].mxu0
    %v9907 = vadd.f32 %v9866, %v9906
    %v9908 = vpop.f32.mrb[0].mxu0
    %v9909 = vpop.f32.mrb[0].mxu0
    %9910 = vdwg.mxu0
    %9911 = vmatprep.subr.bf16.mxu0 %v7485
    %9912 = vmatpush1.bf16.msra.mxu0 %v7484
    %9913 = vmatprep.subr.bf16.mxu0 %v7492
    %9914 = vmatpush1.bf16.msra.mxu0 %v7491
    %9915 = vmatprep.subr.bf16.mxu0 %v7499
    %9916 = vmatpush1.bf16.msra.mxu0 %v7498
    %9917 = vmatprep.subr.bf16.mxu0 %v7506
    %9918 = vmatpush1.bf16.msra.mxu0 %v7505
    %9919 = vmatprep.subr.bf16.mxu0 0
    %9920 = vmatpush1.bf16.msra.mxu0 0
    %9921 = vmatprep.subr.bf16.mxu0 0
    %9922 = vmatpush1.bf16.msra.mxu0 0
    %9923 = vmatprep.subr.bf16.mxu0 0
    %9924 = vmatpush1.bf16.msra.mxu0 0
    %9925 = vmatprep.subr.bf16.mxu0 0
    %9926 = vmatpush1.bf16.msra.mxu0 0
    %9927 = vmatprep.subr.bf16.mxu0 0
    %9928 = vmatpush1.bf16.msra.mxu0 0
    %9929 = vmatprep.subr.bf16.mxu0 0
    %9930 = vmatpush1.bf16.msra.mxu0 0
    %9931 = vmatprep.subr.bf16.mxu0 0
    %9932 = vmatpush1.bf16.msra.mxu0 0
    %9933 = vmatprep.subr.bf16.mxu0 0
    %9934 = vmatpush1.bf16.msra.mxu0 0
    %9935 = vmatprep.subr.bf16.mxu0 0
    %9936 = vmatpush1.bf16.msra.mxu0 0
    %9937 = vmatprep.subr.bf16.mxu0 0
    %9938 = vmatpush1.bf16.msra.mxu0 0
    %9939 = vmatprep.subr.bf16.mxu0 0
    %9940 = vmatpush1.bf16.msra.mxu0 0
    %9941 = vmatprep.subr.bf16.mxu0 0
    %9942 = vmatpush1.bf16.msra.mxu0 0
    %9943 = vmatprep.mubr.bf16.mxu0 0
    %9944 = vmatmul.mubr.bf16.gmra.mrb[0].mxu0 %v8884
    %v9945 = vpop.f32.mrb[0].mxu0
    %v9946 = vadd.f32 %v9905, %v9945
    %v9947 = vpop.f32.mrb[0].mxu0
    %v9948 = vadd.f32 %v9907, %v9947
    %v9949 = vpop.f32.mrb[0].mxu0
    %v9950 = vpop.f32.mrb[0].mxu0
    %9951 = vdwg.mxu0
    %9952 = vmatprep.subr.bf16.mxu0 %v6143
    %9953 = vmatpush1.bf16.msra.mxu0 %v6142
    %9954 = vmatprep.subr.bf16.mxu0 %v6150
    %9955 = vmatpush1.bf16.msra.mxu0 %v6149
    %9956 = vmatprep.subr.bf16.mxu0 %v6157
    %9957 = vmatpush1.bf16.msra.mxu0 %v6156
    %9958 = vmatprep.subr.bf16.mxu0 %v6164
    %9959 = vmatpush1.bf16.msra.mxu0 %v6163
    %9960 = vmatprep.subr.bf16.mxu0 %v6171
    %9961 = vmatpush1.bf16.msra.mxu0 %v6170
    %9962 = vmatprep.subr.bf16.mxu0 %v6178
    %9963 = vmatpush1.bf16.msra.mxu0 %v6177
    %9964 = vmatprep.subr.bf16.mxu0 %v6185
    %9965 = vmatpush1.bf16.msra.mxu0 %v6184
    %9966 = vmatprep.subr.bf16.mxu0 %v6192
    %9967 = vmatpush1.bf16.msra.mxu0 %v6191
    %9968 = vmatprep.subr.bf16.mxu0 %v6199
    %9969 = vmatpush1.bf16.msra.mxu0 %v6198
    %9970 = vmatprep.subr.bf16.mxu0 %v6206
    %9971 = vmatpush1.bf16.msra.mxu0 %v6205
    %9972 = vmatprep.subr.bf16.mxu0 %v6213
    %9973 = vmatpush1.bf16.msra.mxu0 %v6212
    %9974 = vmatprep.subr.bf16.mxu0 %v6220
    %9975 = vmatpush1.bf16.msra.mxu0 %v6219
    %9976 = vmatprep.subr.bf16.mxu0 %v6227
    %9977 = vmatpush1.bf16.msra.mxu0 %v6226
    %9978 = vmatprep.subr.bf16.mxu0 %v6234
    %9979 = vmatpush1.bf16.msra.mxu0 %v6233
    %9980 = vmatprep.subr.bf16.mxu0 %v6241
    %9981 = vmatpush1.bf16.msra.mxu0 %v6240
    %9982 = vmatprep.subr.bf16.mxu0 %v6248
    %9983 = vmatpush1.bf16.msra.mxu0 %v6247
    %9984 = vmatprep.mubr.bf16.mxu0 %v1678
    %9985 = vmatmul.mubr.bf16.gmra.mrb[0].mxu0 %v1664
    %v9986 = vpop.f32.mrb[0].mxu0
    %v9987 = vadd.f32 %v1621, %v9986
    %v9988 = vpop.f32.mrb[0].mxu0
    %v9989 = vadd.f32 %v1625, %v9988
    %v9990 = vpop.f32.mrb[0].mxu0
    %v9991 = vpop.f32.mrb[0].mxu0
    %9992 = vdwg.mxu0
    %9993 = vmatprep.subr.bf16.mxu0 %v6255
    %9994 = vmatpush1.bf16.msra.mxu0 %v6254
    %9995 = vmatprep.subr.bf16.mxu0 %v6262
    %9996 = vmatpush1.bf16.msra.mxu0 %v6261
    %9997 = vmatprep.subr.bf16.mxu0 %v6269
    %9998 = vmatpush1.bf16.msra.mxu0 %v6268
    %9999 = vmatprep.subr.bf16.mxu0 %v6276
    %10000 = vmatpush1.bf16.msra.mxu0 %v6275
    %10001 = vmatprep.subr.bf16.mxu0 %v6283
    %10002 = vmatpush1.bf16.msra.mxu0 %v6282
    %10003 = vmatprep.subr.bf16.mxu0 %v6290
    %10004 = vmatpush1.bf16.msra.mxu0 %v6289
    %10005 = vmatprep.subr.bf16.mxu0 %v6297
    %10006 = vmatpush1.bf16.msra.mxu0 %v6296
    %10007 = vmatprep.subr.bf16.mxu0 %v6304
    %10008 = vmatpush1.bf16.msra.mxu0 %v6303
    %10009 = vmatprep.subr.bf16.mxu0 %v6311
    %10010 = vmatpush1.bf16.msra.mxu0 %v6310
    %10011 = vmatprep.subr.bf16.mxu0 %v6318
    %10012 = vmatpush1.bf16.msra.mxu0 %v6317
    %10013 = vmatprep.subr.bf16.mxu0 %v6325
    %10014 = vmatpush1.bf16.msra.mxu0 %v6324
    %10015 = vmatprep.subr.bf16.mxu0 %v6332
    %10016 = vmatpush1.bf16.msra.mxu0 %v6331
    %10017 = vmatprep.subr.bf16.mxu0 %v6339
    %10018 = vmatpush1.bf16.msra.mxu0 %v6338
    %10019 = vmatprep.subr.bf16.mxu0 %v6346
    %10020 = vmatpush1.bf16.msra.mxu0 %v6345
    %10021 = vmatprep.subr.bf16.mxu0 %v6353
    %10022 = vmatpush1.bf16.msra.mxu0 %v6352
    %10023 = vmatprep.subr.bf16.mxu0 %v6360
    %10024 = vmatpush1.bf16.msra.mxu0 %v6359
    %10025 = vmatprep.mubr.bf16.mxu0 %v1688
    %10026 = vmatmul.mubr.bf16.gmra.mrb[0].mxu0 %v1686
    %v10027 = vpop.f32.mrb[0].mxu0
    %v10028 = vadd.f32 %v9987, %v10027
    %v10029 = vpop.f32.mrb[0].mxu0
    %v10030 = vadd.f32 %v9989, %v10029
    %v10031 = vpop.f32.mrb[0].mxu0
    %v10032 = vpop.f32.mrb[0].mxu0
    %10033 = vdwg.mxu0
    %10034 = vmatprep.subr.bf16.mxu0 %v6367
    %10035 = vmatpush1.bf16.msra.mxu0 %v6366
    %10036 = vmatprep.subr.bf16.mxu0 %v6374
    %10037 = vmatpush1.bf16.msra.mxu0 %v6373
    %10038 = vmatprep.subr.bf16.mxu0 %v6381
    %10039 = vmatpush1.bf16.msra.mxu0 %v6380
    %10040 = vmatprep.subr.bf16.mxu0 %v6388
    %10041 = vmatpush1.bf16.msra.mxu0 %v6387
    %10042 = vmatprep.subr.bf16.mxu0 %v6395
    %10043 = vmatpush1.bf16.msra.mxu0 %v6394
    %10044 = vmatprep.subr.bf16.mxu0 %v6402
    %10045 = vmatpush1.bf16.msra.mxu0 %v6401
    %10046 = vmatprep.subr.bf16.mxu0 %v6409
    %10047 = vmatpush1.bf16.msra.mxu0 %v6408
    %10048 = vmatprep.subr.bf16.mxu0 %v6416
    %10049 = vmatpush1.bf16.msra.mxu0 %v6415
    %10050 = vmatprep.subr.bf16.mxu0 %v6423
    %10051 = vmatpush1.bf16.msra.mxu0 %v6422
    %10052 = vmatprep.subr.bf16.mxu0 %v6430
    %10053 = vmatpush1.bf16.msra.mxu0 %v6429
    %10054 = vmatprep.subr.bf16.mxu0 %v6437
    %10055 = vmatpush1.bf16.msra.mxu0 %v6436
    %10056 = vmatprep.subr.bf16.mxu0 %v6444
    %10057 = vmatpush1.bf16.msra.mxu0 %v6443
    %10058 = vmatprep.subr.bf16.mxu0 %v6451
    %10059 = vmatpush1.bf16.msra.mxu0 %v6450
    %10060 = vmatprep.subr.bf16.mxu0 %v6458
    %10061 = vmatpush1.bf16.msra.mxu0 %v6457
    %10062 = vmatprep.subr.bf16.mxu0 %v6465
    %10063 = vmatpush1.bf16.msra.mxu0 %v6464
    %10064 = vmatprep.subr.bf16.mxu0 %v6472
    %10065 = vmatpush1.bf16.msra.mxu0 %v6471
    %10066 = vmatprep.mubr.bf16.mxu0 %v1685
    %10067 = vmatmul.mubr.bf16.gmra.mrb[0].mxu0 %v1671
    %v10068 = vpop.f32.mrb[0].mxu0
    %v10069 = vadd.f32 %v10028, %v10068
    %v10070 = vpop.f32.mrb[0].mxu0
    %v10071 = vadd.f32 %v10030, %v10070
    %v10072 = vpop.f32.mrb[0].mxu0
    %v10073 = vpop.f32.mrb[0].mxu0
    %10074 = vdwg.mxu0
    %10075 = vmatprep.subr.bf16.mxu0 %v6479
    %10076 = vmatpush1.bf16.msra.mxu0 %v6478
    %10077 = vmatprep.subr.bf16.mxu0 %v6486
    %10078 = vmatpush1.bf16.msra.mxu0 %v6485
    %10079 = vmatprep.subr.bf16.mxu0 %v6493
    %10080 = vmatpush1.bf16.msra.mxu0 %v6492
    %10081 = vmatprep.subr.bf16.mxu0 %v6500
    %10082 = vmatpush1.bf16.msra.mxu0 %v6499
    %10083 = vmatprep.subr.bf16.mxu0 %v6507
    %10084 = vmatpush1.bf16.msra.mxu0 %v6506
    %10085 = vmatprep.subr.bf16.mxu0 %v6514
    %10086 = vmatpush1.bf16.msra.mxu0 %v6513
    %10087 = vmatprep.subr.bf16.mxu0 %v6521
    %10088 = vmatpush1.bf16.msra.mxu0 %v6520
    %10089 = vmatprep.subr.bf16.mxu0 %v6528
    %10090 = vmatpush1.bf16.msra.mxu0 %v6527
    %10091 = vmatprep.subr.bf16.mxu0 %v6535
    %10092 = vmatpush1.bf16.msra.mxu0 %v6534
    %10093 = vmatprep.subr.bf16.mxu0 %v6542
    %10094 = vmatpush1.bf16.msra.mxu0 %v6541
    %10095 = vmatprep.subr.bf16.mxu0 %v6549
    %10096 = vmatpush1.bf16.msra.mxu0 %v6548
    %10097 = vmatprep.subr.bf16.mxu0 %v6556
    %10098 = vmatpush1.bf16.msra.mxu0 %v6555
    %10099 = vmatprep.subr.bf16.mxu0 %v6563
    %10100 = vmatpush1.bf16.msra.mxu0 %v6562
    %10101 = vmatprep.subr.bf16.mxu0 %v6570
    %10102 = vmatpush1.bf16.msra.mxu0 %v6569
    %10103 = vmatprep.subr.bf16.mxu0 %v6577
    %10104 = vmatpush1.bf16.msra.mxu0 %v6576
    %10105 = vmatprep.subr.bf16.mxu0 %v6584
    %10106 = vmatpush1.bf16.msra.mxu0 %v6583
    %10107 = vmatprep.mubr.bf16.mxu0 %v1689
    %10108 = vmatmul.mubr.bf16.gmra.mrb[0].mxu0 %v1687
    %v10109 = vpop.f32.mrb[0].mxu0
    %v10110 = vadd.f32 %v10069, %v10109
    %v10111 = vpop.f32.mrb[0].mxu0
    %v10112 = vadd.f32 %v10071, %v10111
    %v10113 = vpop.f32.mrb[0].mxu0
    %v10114 = vpop.f32.mrb[0].mxu0
    %10115 = vdwg.mxu0
    %10116 = vmatprep.subr.bf16.mxu0 %v6591
    %10117 = vmatpush1.bf16.msra.mxu0 %v6590
    %10118 = vmatprep.subr.bf16.mxu0 %v6598
    %10119 = vmatpush1.bf16.msra.mxu0 %v6597
    %10120 = vmatprep.subr.bf16.mxu0 %v6605
    %10121 = vmatpush1.bf16.msra.mxu0 %v6604
    %10122 = vmatprep.subr.bf16.mxu0 %v6612
    %10123 = vmatpush1.bf16.msra.mxu0 %v6611
    %10124 = vmatprep.subr.bf16.mxu0 %v6619
    %10125 = vmatpush1.bf16.msra.mxu0 %v6618
    %10126 = vmatprep.subr.bf16.mxu0 %v6626
    %10127 = vmatpush1.bf16.msra.mxu0 %v6625
    %10128 = vmatprep.subr.bf16.mxu0 %v6633
    %10129 = vmatpush1.bf16.msra.mxu0 %v6632
    %10130 = vmatprep.subr.bf16.mxu0 %v6640
    %10131 = vmatpush1.bf16.msra.mxu0 %v6639
    %10132 = vmatprep.subr.bf16.mxu0 %v6647
    %10133 = vmatpush1.bf16.msra.mxu0 %v6646
    %10134 = vmatprep.subr.bf16.mxu0 %v6654
    %10135 = vmatpush1.bf16.msra.mxu0 %v6653
    %10136 = vmatprep.subr.bf16.mxu0 %v6661
    %10137 = vmatpush1.bf16.msra.mxu0 %v6660
    %10138 = vmatprep.subr.bf16.mxu0 %v6668
    %10139 = vmatpush1.bf16.msra.mxu0 %v6667
    %10140 = vmatprep.subr.bf16.mxu0 %v6675
    %10141 = vmatpush1.bf16.msra.mxu0 %v6674
    %10142 = vmatprep.subr.bf16.mxu0 %v6682
    %10143 = vmatpush1.bf16.msra.mxu0 %v6681
    %10144 = vmatprep.subr.bf16.mxu0 %v6689
    %10145 = vmatpush1.bf16.msra.mxu0 %v6688
    %10146 = vmatprep.subr.bf16.mxu0 %v6696
    %10147 = vmatpush1.bf16.msra.mxu0 %v6695
    %10148 = vmatprep.mubr.bf16.mxu0 %v1727
    %10149 = vmatmul.mubr.bf16.gmra.mrb[0].mxu0 %v1713
    %v10150 = vpop.f32.mrb[0].mxu0
    %v10151 = vadd.f32 %v10110, %v10150
    %v10152 = vpop.f32.mrb[0].mxu0
    %v10153 = vadd.f32 %v10112, %v10152
    %v10154 = vpop.f32.mrb[0].mxu0
    %v10155 = vpop.f32.mrb[0].mxu0
    %10156 = vdwg.mxu0
    %10157 = vmatprep.subr.bf16.mxu0 %v6703
    %10158 = vmatpush1.bf16.msra.mxu0 %v6702
    %10159 = vmatprep.subr.bf16.mxu0 %v6710
    %10160 = vmatpush1.bf16.msra.mxu0 %v6709
    %10161 = vmatprep.subr.bf16.mxu0 %v6717
    %10162 = vmatpush1.bf16.msra.mxu0 %v6716
    %10163 = vmatprep.subr.bf16.mxu0 %v6724
    %10164 = vmatpush1.bf16.msra.mxu0 %v6723
    %10165 = vmatprep.subr.bf16.mxu0 %v6731
    %10166 = vmatpush1.bf16.msra.mxu0 %v6730
    %10167 = vmatprep.subr.bf16.mxu0 %v6738
    %10168 = vmatpush1.bf16.msra.mxu0 %v6737
    %10169 = vmatprep.subr.bf16.mxu0 %v6745
    %10170 = vmatpush1.bf16.msra.mxu0 %v6744
    %10171 = vmatprep.subr.bf16.mxu0 %v6752
    %10172 = vmatpush1.bf16.msra.mxu0 %v6751
    %10173 = vmatprep.subr.bf16.mxu0 %v6759
    %10174 = vmatpush1.bf16.msra.mxu0 %v6758
    %10175 = vmatprep.subr.bf16.mxu0 %v6766
    %10176 = vmatpush1.bf16.msra.mxu0 %v6765
    %10177 = vmatprep.subr.bf16.mxu0 %v6773
    %10178 = vmatpush1.bf16.msra.mxu0 %v6772
    %10179 = vmatprep.subr.bf16.mxu0 %v6780
    %10180 = vmatpush1.bf16.msra.mxu0 %v6779
    %10181 = vmatprep.subr.bf16.mxu0 %v6787
    %10182 = vmatpush1.bf16.msra.mxu0 %v6786
    %10183 = vmatprep.subr.bf16.mxu0 %v6794
    %10184 = vmatpush1.bf16.msra.mxu0 %v6793
    %10185 = vmatprep.subr.bf16.mxu0 %v6801
    %10186 = vmatpush1.bf16.msra.mxu0 %v6800
    %10187 = vmatprep.subr.bf16.mxu0 %v6808
    %10188 = vmatpush1.bf16.msra.mxu0 %v6807
    %10189 = vmatprep.mubr.bf16.mxu0 %v1737
    %10190 = vmatmul.mubr.bf16.gmra.mrb[0].mxu0 %v1735
    %v10191 = vpop.f32.mrb[0].mxu0
    %v10192 = vadd.f32 %v10151, %v10191
    %v10193 = vpop.f32.mrb[0].mxu0
    %v10194 = vadd.f32 %v10153, %v10193
    %v10195 = vpop.f32.mrb[0].mxu0
    %v10196 = vpop.f32.mrb[0].mxu0
    %10197 = vdwg.mxu0
    %10198 = vmatprep.subr.bf16.mxu0 %v6815
    %10199 = vmatpush1.bf16.msra.mxu0 %v6814
    %10200 = vmatprep.subr.bf16.mxu0 %v6822
    %10201 = vmatpush1.bf16.msra.mxu0 %v6821
    %10202 = vmatprep.subr.bf16.mxu0 %v6829
    %10203 = vmatpush1.bf16.msra.mxu0 %v6828
    %10204 = vmatprep.subr.bf16.mxu0 %v6836
    %10205 = vmatpush1.bf16.msra.mxu0 %v6835
    %10206 = vmatprep.subr.bf16.mxu0 %v6843
    %10207 = vmatpush1.bf16.msra.mxu0 %v6842
    %10208 = vmatprep.subr.bf16.mxu0 %v6850
    %10209 = vmatpush1.bf16.msra.mxu0 %v6849
    %10210 = vmatprep.subr.bf16.mxu0 %v6857
    %10211 = vmatpush1.bf16.msra.mxu0 %v6856
    %10212 = vmatprep.subr.bf16.mxu0 %v6864
    %10213 = vmatpush1.bf16.msra.mxu0 %v6863
    %10214 = vmatprep.subr.bf16.mxu0 %v6871
    %10215 = vmatpush1.bf16.msra.mxu0 %v6870
    %10216 = vmatprep.subr.bf16.mxu0 %v6878
    %10217 = vmatpush1.bf16.msra.mxu0 %v6877
    %10218 = vmatprep.subr.bf16.mxu0 %v6885
    %10219 = vmatpush1.bf16.msra.mxu0 %v6884
    %10220 = vmatprep.subr.bf16.mxu0 %v6892
    %10221 = vmatpush1.bf16.msra.mxu0 %v6891
    %10222 = vmatprep.subr.bf16.mxu0 %v6899
    %10223 = vmatpush1.bf16.msra.mxu0 %v6898
    %10224 = vmatprep.subr.bf16.mxu0 %v6906
    %10225 = vmatpush1.bf16.msra.mxu0 %v6905
    %10226 = vmatprep.subr.bf16.mxu0 %v6913
    %10227 = vmatpush1.bf16.msra.mxu0 %v6912
    %10228 = vmatprep.subr.bf16.mxu0 %v6920
    %10229 = vmatpush1.bf16.msra.mxu0 %v6919
    %10230 = vmatprep.mubr.bf16.mxu0 %v1734
    %10231 = vmatmul.mubr.bf16.gmra.mrb[0].mxu0 %v1720
    %v10232 = vpop.f32.mrb[0].mxu0
    %v10233 = vadd.f32 %v10192, %v10232
    %v10234 = vpop.f32.mrb[0].mxu0
    %v10235 = vadd.f32 %v10194, %v10234
    %v10236 = vpop.f32.mrb[0].mxu0
    %v10237 = vpop.f32.mrb[0].mxu0
    %10238 = vdwg.mxu0
    %10239 = vmatprep.subr.bf16.mxu0 %v6927
    %10240 = vmatpush1.bf16.msra.mxu0 %v6926
    %10241 = vmatprep.subr.bf16.mxu0 %v6934
    %10242 = vmatpush1.bf16.msra.mxu0 %v6933
    %10243 = vmatprep.subr.bf16.mxu0 %v6941
    %10244 = vmatpush1.bf16.msra.mxu0 %v6940
    %10245 = vmatprep.subr.bf16.mxu0 %v6948
    %10246 = vmatpush1.bf16.msra.mxu0 %v6947
    %10247 = vmatprep.subr.bf16.mxu0 %v6955
    %10248 = vmatpush1.bf16.msra.mxu0 %v6954
    %10249 = vmatprep.subr.bf16.mxu0 %v6962
    %10250 = vmatpush1.bf16.msra.mxu0 %v6961
    %10251 = vmatprep.subr.bf16.mxu0 %v6969
    %10252 = vmatpush1.bf16.msra.mxu0 %v6968
    %10253 = vmatprep.subr.bf16.mxu0 %v6976
    %10254 = vmatpush1.bf16.msra.mxu0 %v6975
    %10255 = vmatprep.subr.bf16.mxu0 %v6983
    %10256 = vmatpush1.bf16.msra.mxu0 %v6982
    %10257 = vmatprep.subr.bf16.mxu0 %v6990
    %10258 = vmatpush1.bf16.msra.mxu0 %v6989
    %10259 = vmatprep.subr.bf16.mxu0 %v6997
    %10260 = vmatpush1.bf16.msra.mxu0 %v6996
    %10261 = vmatprep.subr.bf16.mxu0 %v7004
    %10262 = vmatpush1.bf16.msra.mxu0 %v7003
    %10263 = vmatprep.subr.bf16.mxu0 %v7011
    %10264 = vmatpush1.bf16.msra.mxu0 %v7010
    %10265 = vmatprep.subr.bf16.mxu0 %v7018
    %10266 = vmatpush1.bf16.msra.mxu0 %v7017
    %10267 = vmatprep.subr.bf16.mxu0 %v7025
    %10268 = vmatpush1.bf16.msra.mxu0 %v7024
    %10269 = vmatprep.subr.bf16.mxu0 %v7032
    %10270 = vmatpush1.bf16.msra.mxu0 %v7031
    %10271 = vmatprep.mubr.bf16.mxu0 %v1738
    %10272 = vmatmul.mubr.bf16.gmra.mrb[0].mxu0 %v1736
    %v10273 = vpop.f32.mrb[0].mxu0
    %v10274 = vadd.f32 %v10233, %v10273
    %v10275 = vpop.f32.mrb[0].mxu0
    %v10276 = vadd.f32 %v10235, %v10275
    %v10277 = vpop.f32.mrb[0].mxu0
    %v10278 = vpop.f32.mrb[0].mxu0
    %10279 = vdwg.mxu0
    %10280 = vmatprep.subr.bf16.mxu0 %v7039
    %10281 = vmatpush1.bf16.msra.mxu0 %v7038
    %10282 = vmatprep.subr.bf16.mxu0 %v7046
    %10283 = vmatpush1.bf16.msra.mxu0 %v7045
    %10284 = vmatprep.subr.bf16.mxu0 %v7053
    %10285 = vmatpush1.bf16.msra.mxu0 %v7052
    %10286 = vmatprep.subr.bf16.mxu0 %v7060
    %10287 = vmatpush1.bf16.msra.mxu0 %v7059
    %10288 = vmatprep.subr.bf16.mxu0 %v7067
    %10289 = vmatpush1.bf16.msra.mxu0 %v7066
    %10290 = vmatprep.subr.bf16.mxu0 %v7074
    %10291 = vmatpush1.bf16.msra.mxu0 %v7073
    %10292 = vmatprep.subr.bf16.mxu0 %v7081
    %10293 = vmatpush1.bf16.msra.mxu0 %v7080
    %10294 = vmatprep.subr.bf16.mxu0 %v7088
    %10295 = vmatpush1.bf16.msra.mxu0 %v7087
    %10296 = vmatprep.subr.bf16.mxu0 %v7095
    %10297 = vmatpush1.bf16.msra.mxu0 %v7094
    %10298 = vmatprep.subr.bf16.mxu0 %v7102
    %10299 = vmatpush1.bf16.msra.mxu0 %v7101
    %10300 = vmatprep.subr.bf16.mxu0 %v7109
    %10301 = vmatpush1.bf16.msra.mxu0 %v7108
    %10302 = vmatprep.subr.bf16.mxu0 %v7116
    %10303 = vmatpush1.bf16.msra.mxu0 %v7115
    %10304 = vmatprep.subr.bf16.mxu0 %v7123
    %10305 = vmatpush1.bf16.msra.mxu0 %v7122
    %10306 = vmatprep.subr.bf16.mxu0 %v7130
    %10307 = vmatpush1.bf16.msra.mxu0 %v7129
    %10308 = vmatprep.subr.bf16.mxu0 %v7137
    %10309 = vmatpush1.bf16.msra.mxu0 %v7136
    %10310 = vmatprep.subr.bf16.mxu0 %v7144
    %10311 = vmatpush1.bf16.msra.mxu0 %v7143
    %10312 = vmatprep.mubr.bf16.mxu0 %v1776
    %10313 = vmatmul.mubr.bf16.gmra.mrb[0].mxu0 %v1762
    %v10314 = vpop.f32.mrb[0].mxu0
    %v10315 = vadd.f32 %v10274, %v10314
    %v10316 = vpop.f32.mrb[0].mxu0
    %v10317 = vadd.f32 %v10276, %v10316
    %v10318 = vpop.f32.mrb[0].mxu0
    %v10319 = vpop.f32.mrb[0].mxu0
    %10320 = vdwg.mxu0
    %10321 = vmatprep.subr.bf16.mxu0 %v7151
    %10322 = vmatpush1.bf16.msra.mxu0 %v7150
    %10323 = vmatprep.subr.bf16.mxu0 %v7158
    %10324 = vmatpush1.bf16.msra.mxu0 %v7157
    %10325 = vmatprep.subr.bf16.mxu0 %v7165
    %10326 = vmatpush1.bf16.msra.mxu0 %v7164
    %10327 = vmatprep.subr.bf16.mxu0 %v7172
    %10328 = vmatpush1.bf16.msra.mxu0 %v7171
    %10329 = vmatprep.subr.bf16.mxu0 %v7179
    %10330 = vmatpush1.bf16.msra.mxu0 %v7178
    %10331 = vmatprep.subr.bf16.mxu0 %v7186
    %10332 = vmatpush1.bf16.msra.mxu0 %v7185
    %10333 = vmatprep.subr.bf16.mxu0 %v7193
    %10334 = vmatpush1.bf16.msra.mxu0 %v7192
    %10335 = vmatprep.subr.bf16.mxu0 %v7200
    %10336 = vmatpush1.bf16.msra.mxu0 %v7199
    %10337 = vmatprep.subr.bf16.mxu0 %v7207
    %10338 = vmatpush1.bf16.msra.mxu0 %v7206
    %10339 = vmatprep.subr.bf16.mxu0 %v7214
    %10340 = vmatpush1.bf16.msra.mxu0 %v7213
    %10341 = vmatprep.subr.bf16.mxu0 %v7221
    %10342 = vmatpush1.bf16.msra.mxu0 %v7220
    %10343 = vmatprep.subr.bf16.mxu0 %v7228
    %10344 = vmatpush1.bf16.msra.mxu0 %v7227
    %10345 = vmatprep.subr.bf16.mxu0 %v7235
    %10346 = vmatpush1.bf16.msra.mxu0 %v7234
    %10347 = vmatprep.subr.bf16.mxu0 %v7242
    %10348 = vmatpush1.bf16.msra.mxu0 %v7241
    %10349 = vmatprep.subr.bf16.mxu0 %v7249
    %10350 = vmatpush1.bf16.msra.mxu0 %v7248
    %10351 = vmatprep.subr.bf16.mxu0 %v7256
    %10352 = vmatpush1.bf16.msra.mxu0 %v7255
    %10353 = vmatprep.mubr.bf16.mxu0 %v1786
    %10354 = vmatmul.mubr.bf16.gmra.mrb[0].mxu0 %v1784
    %v10355 = vpop.f32.mrb[0].mxu0
    %v10356 = vadd.f32 %v10315, %v10355
    %v10357 = vpop.f32.mrb[0].mxu0
    %v10358 = vadd.f32 %v10317, %v10357
    %v10359 = vpop.f32.mrb[0].mxu0
    %v10360 = vpop.f32.mrb[0].mxu0
    %10361 = vdwg.mxu0
    %10362 = vmatprep.subr.bf16.mxu0 %v7263
    %10363 = vmatpush1.bf16.msra.mxu0 %v7262
    %10364 = vmatprep.subr.bf16.mxu0 %v7270
    %10365 = vmatpush1.bf16.msra.mxu0 %v7269
    %10366 = vmatprep.subr.bf16.mxu0 %v7277
    %10367 = vmatpush1.bf16.msra.mxu0 %v7276
    %10368 = vmatprep.subr.bf16.mxu0 %v7284
    %10369 = vmatpush1.bf16.msra.mxu0 %v7283
    %10370 = vmatprep.subr.bf16.mxu0 %v7291
    %10371 = vmatpush1.bf16.msra.mxu0 %v7290
    %10372 = vmatprep.subr.bf16.mxu0 %v7298
    %10373 = vmatpush1.bf16.msra.mxu0 %v7297
    %10374 = vmatprep.subr.bf16.mxu0 %v7305
    %10375 = vmatpush1.bf16.msra.mxu0 %v7304
    %10376 = vmatprep.subr.bf16.mxu0 %v7312
    %10377 = vmatpush1.bf16.msra.mxu0 %v7311
    %10378 = vmatprep.subr.bf16.mxu0 %v7319
    %10379 = vmatpush1.bf16.msra.mxu0 %v7318
    %10380 = vmatprep.subr.bf16.mxu0 %v7326
    %10381 = vmatpush1.bf16.msra.mxu0 %v7325
    %10382 = vmatprep.subr.bf16.mxu0 %v7333
    %10383 = vmatpush1.bf16.msra.mxu0 %v7332
    %10384 = vmatprep.subr.bf16.mxu0 %v7340
    %10385 = vmatpush1.bf16.msra.mxu0 %v7339
    %10386 = vmatprep.subr.bf16.mxu0 %v7347
    %10387 = vmatpush1.bf16.msra.mxu0 %v7346
    %10388 = vmatprep.subr.bf16.mxu0 %v7354
    %10389 = vmatpush1.bf16.msra.mxu0 %v7353
    %10390 = vmatprep.subr.bf16.mxu0 %v7361
    %10391 = vmatpush1.bf16.msra.mxu0 %v7360
    %10392 = vmatprep.subr.bf16.mxu0 %v7368
    %10393 = vmatpush1.bf16.msra.mxu0 %v7367
    %10394 = vmatprep.mubr.bf16.mxu0 %v1783
    %10395 = vmatmul.mubr.bf16.gmra.mrb[0].mxu0 %v1769
    %v10396 = vpop.f32.mrb[0].mxu0
    %v10397 = vadd.f32 %v10356, %v10396
    %v10398 = vpop.f32.mrb[0].mxu0
    %v10399 = vadd.f32 %v10358, %v10398
    %v10400 = vpop.f32.mrb[0].mxu0
    %v10401 = vpop.f32.mrb[0].mxu0
    %10402 = vdwg.mxu0
    %10403 = vmatprep.subr.bf16.mxu0 %v7375
    %10404 = vmatpush1.bf16.msra.mxu0 %v7374
    %10405 = vmatprep.subr.bf16.mxu0 %v7382
    %10406 = vmatpush1.bf16.msra.mxu0 %v7381
    %10407 = vmatprep.subr.bf16.mxu0 %v7389
    %10408 = vmatpush1.bf16.msra.mxu0 %v7388
    %10409 = vmatprep.subr.bf16.mxu0 %v7396
    %10410 = vmatpush1.bf16.msra.mxu0 %v7395
    %10411 = vmatprep.subr.bf16.mxu0 %v7403
    %10412 = vmatpush1.bf16.msra.mxu0 %v7402
    %10413 = vmatprep.subr.bf16.mxu0 %v7410
    %10414 = vmatpush1.bf16.msra.mxu0 %v7409
    %10415 = vmatprep.subr.bf16.mxu0 %v7417
    %10416 = vmatpush1.bf16.msra.mxu0 %v7416
    %10417 = vmatprep.subr.bf16.mxu0 %v7424
    %10418 = vmatpush1.bf16.msra.mxu0 %v7423
    %10419 = vmatprep.subr.bf16.mxu0 %v7431
    %10420 = vmatpush1.bf16.msra.mxu0 %v7430
    %10421 = vmatprep.subr.bf16.mxu0 %v7438
    %10422 = vmatpush1.bf16.msra.mxu0 %v7437
    %10423 = vmatprep.subr.bf16.mxu0 %v7445
    %10424 = vmatpush1.bf16.msra.mxu0 %v7444
    %10425 = vmatprep.subr.bf16.mxu0 %v7452
    %10426 = vmatpush1.bf16.msra.mxu0 %v7451
    %10427 = vmatprep.subr.bf16.mxu0 %v7459
    %10428 = vmatpush1.bf16.msra.mxu0 %v7458
    %10429 = vmatprep.subr.bf16.mxu0 %v7466
    %10430 = vmatpush1.bf16.msra.mxu0 %v7465
    %10431 = vmatprep.subr.bf16.mxu0 %v7473
    %10432 = vmatpush1.bf16.msra.mxu0 %v7472
    %10433 = vmatprep.subr.bf16.mxu0 %v7480
    %10434 = vmatpush1.bf16.msra.mxu0 %v7479
    %10435 = vmatprep.mubr.bf16.mxu0 %v1787
    %10436 = vmatmul.mubr.bf16.gmra.mrb[0].mxu0 %v1785
    %v10437 = vpop.f32.mrb[0].mxu0
    %v10438 = vadd.f32 %v10397, %v10437
    %v10439 = vpop.f32.mrb[0].mxu0
    %v10440 = vadd.f32 %v10399, %v10439
    %v10441 = vpop.f32.mrb[0].mxu0
    %v10442 = vpop.f32.mrb[0].mxu0
    %10443 = vdwg.mxu0
    %10444 = vmatprep.subr.bf16.mxu0 %v7487
    %10445 = vmatpush1.bf16.msra.mxu0 %v7486
    %10446 = vmatprep.subr.bf16.mxu0 %v7494
    %10447 = vmatpush1.bf16.msra.mxu0 %v7493
    %10448 = vmatprep.subr.bf16.mxu0 %v7501
    %10449 = vmatpush1.bf16.msra.mxu0 %v7500
    %10450 = vmatprep.subr.bf16.mxu0 %v7508
    %10451 = vmatpush1.bf16.msra.mxu0 %v7507
    %10452 = vmatprep.subr.bf16.mxu0 0
    %10453 = vmatpush1.bf16.msra.mxu0 0
    %10454 = vmatprep.subr.bf16.mxu0 0
    %10455 = vmatpush1.bf16.msra.mxu0 0
    %10456 = vmatprep.subr.bf16.mxu0 0
    %10457 = vmatpush1.bf16.msra.mxu0 0
    %10458 = vmatprep.subr.bf16.mxu0 0
    %10459 = vmatpush1.bf16.msra.mxu0 0
    %10460 = vmatprep.subr.bf16.mxu0 0
    %10461 = vmatpush1.bf16.msra.mxu0 0
    %10462 = vmatprep.subr.bf16.mxu0 0
    %10463 = vmatpush1.bf16.msra.mxu0 0
    %10464 = vmatprep.subr.bf16.mxu0 0
    %10465 = vmatpush1.bf16.msra.mxu0 0
    %10466 = vmatprep.subr.bf16.mxu0 0
    %10467 = vmatpush1.bf16.msra.mxu0 0
    %10468 = vmatprep.subr.bf16.mxu0 0
    %10469 = vmatpush1.bf16.msra.mxu0 0
    %10470 = vmatprep.subr.bf16.mxu0 0
    %10471 = vmatpush1.bf16.msra.mxu0 0
    %10472 = vmatprep.subr.bf16.mxu0 0
    %10473 = vmatpush1.bf16.msra.mxu0 0
    %10474 = vmatprep.subr.bf16.mxu0 0
    %10475 = vmatpush1.bf16.msra.mxu0 0
    %10476 = vmatprep.mubr.bf16.mxu0 0
    %10477 = vmatmul.mubr.bf16.gmra.mrb[0].mxu0 %v8884
    %v10478 = vpop.f32.mrb[0].mxu0
    %v10479 = vadd.f32 %v10438, %v10478
    %v10480 = vpop.f32.mrb[0].mxu0
    %v10481 = vadd.f32 %v10440, %v10480
    %v10482 = vpop.f32.mrb[0].mxu0
    %v10483 = vpop.f32.mrb[0].mxu0
    %10484 = vdwg.mxu0
    %10485 = vmatprep.subr.bf16.mxu0 0
    %10486 = vmatpush1.bf16.msra.mxu0 %v6144
    %10487 = vmatprep.subr.bf16.mxu0 0
    %10488 = vmatpush1.bf16.msra.mxu0 %v6151
    %10489 = vmatprep.subr.bf16.mxu0 0
    %10490 = vmatpush1.bf16.msra.mxu0 %v6158
    %10491 = vmatprep.subr.bf16.mxu0 0
    %10492 = vmatpush1.bf16.msra.mxu0 %v6165
    %10493 = vmatprep.subr.bf16.mxu0 0
    %10494 = vmatpush1.bf16.msra.mxu0 %v6172
    %10495 = vmatprep.subr.bf16.mxu0 0
    %10496 = vmatpush1.bf16.msra.mxu0 %v6179
    %10497 = vmatprep.subr.bf16.mxu0 0
    %10498 = vmatpush1.bf16.msra.mxu0 %v6186
    %10499 = vmatprep.subr.bf16.mxu0 0
    %10500 = vmatpush1.bf16.msra.mxu0 %v6193
    %10501 = vmatprep.subr.bf16.mxu0 0
    %10502 = vmatpush1.bf16.msra.mxu0 %v6200
    %10503 = vmatprep.subr.bf16.mxu0 0
    %10504 = vmatpush1.bf16.msra.mxu0 %v6207
    %10505 = vmatprep.subr.bf16.mxu0 0
    %10506 = vmatpush1.bf16.msra.mxu0 %v6214
    %10507 = vmatprep.subr.bf16.mxu0 0
    %10508 = vmatpush1.bf16.msra.mxu0 %v6221
    %10509 = vmatprep.subr.bf16.mxu0 0
    %10510 = vmatpush1.bf16.msra.mxu0 %v6228
    %10511 = vmatprep.subr.bf16.mxu0 0
    %10512 = vmatpush1.bf16.msra.mxu0 %v6235
    %10513 = vmatprep.subr.bf16.mxu0 0
    %10514 = vmatpush1.bf16.msra.mxu0 %v6242
    %10515 = vmatprep.subr.bf16.mxu0 0
    %10516 = vmatpush1.bf16.msra.mxu0 %v6249
    %10517 = vmatprep.mubr.bf16.mxu0 %v1678
    %10518 = vmatmul.mubr.bf16.gmra.mrb[0].mxu0 %v1664
    %v10519 = vpop.f32.mrb[0].mxu0
    %v10520 = vadd.f32 %v1629, %v10519
    %v10521 = vpop.f32.mrb[0].mxu0
    %v10522 = vpop.f32.mrb[0].mxu0
    %v10523 = vpop.f32.mrb[0].mxu0
    %10524 = vdwg.mxu0
    %10525 = vmatprep.subr.bf16.mxu0 0
    %10526 = vmatpush1.bf16.msra.mxu0 %v6256
    %10527 = vmatprep.subr.bf16.mxu0 0
    %10528 = vmatpush1.bf16.msra.mxu0 %v6263
    %10529 = vmatprep.subr.bf16.mxu0 0
    %10530 = vmatpush1.bf16.msra.mxu0 %v6270
    %10531 = vmatprep.subr.bf16.mxu0 0
    %10532 = vmatpush1.bf16.msra.mxu0 %v6277
    %10533 = vmatprep.subr.bf16.mxu0 0
    %10534 = vmatpush1.bf16.msra.mxu0 %v6284
    %10535 = vmatprep.subr.bf16.mxu0 0
    %10536 = vmatpush1.bf16.msra.mxu0 %v6291
    %10537 = vmatprep.subr.bf16.mxu0 0
    %10538 = vmatpush1.bf16.msra.mxu0 %v6298
    %10539 = vmatprep.subr.bf16.mxu0 0
    %10540 = vmatpush1.bf16.msra.mxu0 %v6305
    %10541 = vmatprep.subr.bf16.mxu0 0
    %10542 = vmatpush1.bf16.msra.mxu0 %v6312
    %10543 = vmatprep.subr.bf16.mxu0 0
    %10544 = vmatpush1.bf16.msra.mxu0 %v6319
    %10545 = vmatprep.subr.bf16.mxu0 0
    %10546 = vmatpush1.bf16.msra.mxu0 %v6326
    %10547 = vmatprep.subr.bf16.mxu0 0
    %10548 = vmatpush1.bf16.msra.mxu0 %v6333
    %10549 = vmatprep.subr.bf16.mxu0 0
    %10550 = vmatpush1.bf16.msra.mxu0 %v6340
    %10551 = vmatprep.subr.bf16.mxu0 0
    %10552 = vmatpush1.bf16.msra.mxu0 %v6347
    %10553 = vmatprep.subr.bf16.mxu0 0
    %10554 = vmatpush1.bf16.msra.mxu0 %v6354
    %10555 = vmatprep.subr.bf16.mxu0 0
    %10556 = vmatpush1.bf16.msra.mxu0 %v6361
    %10557 = vmatprep.mubr.bf16.mxu0 %v1688
    %10558 = vmatmul.mubr.bf16.gmra.mrb[0].mxu0 %v1686
    %v10559 = vpop.f32.mrb[0].mxu0
    %v10560 = vadd.f32 %v10520, %v10559
    %v10561 = vpop.f32.mrb[0].mxu0
    %v10562 = vpop.f32.mrb[0].mxu0
    %v10563 = vpop.f32.mrb[0].mxu0
    %10564 = vdwg.mxu0
    %10565 = vmatprep.subr.bf16.mxu0 0
    %10566 = vmatpush1.bf16.msra.mxu0 %v6368
    %10567 = vmatprep.subr.bf16.mxu0 0
    %10568 = vmatpush1.bf16.msra.mxu0 %v6375
    %10569 = vmatprep.subr.bf16.mxu0 0
    %10570 = vmatpush1.bf16.msra.mxu0 %v6382
    %10571 = vmatprep.subr.bf16.mxu0 0
    %10572 = vmatpush1.bf16.msra.mxu0 %v6389
    %10573 = vmatprep.subr.bf16.mxu0 0
    %10574 = vmatpush1.bf16.msra.mxu0 %v6396
    %10575 = vmatprep.subr.bf16.mxu0 0
    %10576 = vmatpush1.bf16.msra.mxu0 %v6403
    %10577 = vmatprep.subr.bf16.mxu0 0
    %10578 = vmatpush1.bf16.msra.mxu0 %v6410
    %10579 = vmatprep.subr.bf16.mxu0 0
    %10580 = vmatpush1.bf16.msra.mxu0 %v6417
    %10581 = vmatprep.subr.bf16.mxu0 0
    %10582 = vmatpush1.bf16.msra.mxu0 %v6424
    %10583 = vmatprep.subr.bf16.mxu0 0
    %10584 = vmatpush1.bf16.msra.mxu0 %v6431
    %10585 = vmatprep.subr.bf16.mxu0 0
    %10586 = vmatpush1.bf16.msra.mxu0 %v6438
    %10587 = vmatprep.subr.bf16.mxu0 0
    %10588 = vmatpush1.bf16.msra.mxu0 %v6445
    %10589 = vmatprep.subr.bf16.mxu0 0
    %10590 = vmatpush1.bf16.msra.mxu0 %v6452
    %10591 = vmatprep.subr.bf16.mxu0 0
    %10592 = vmatpush1.bf16.msra.mxu0 %v6459
    %10593 = vmatprep.subr.bf16.mxu0 0
    %10594 = vmatpush1.bf16.msra.mxu0 %v6466
    %10595 = vmatprep.subr.bf16.mxu0 0
    %10596 = vmatpush1.bf16.msra.mxu0 %v6473
    %10597 = vmatprep.mubr.bf16.mxu0 %v1685
    %10598 = vmatmul.mubr.bf16.gmra.mrb[0].mxu0 %v1671
    %v10599 = vpop.f32.mrb[0].mxu0
    %v10600 = vadd.f32 %v10560, %v10599
    %v10601 = vpop.f32.mrb[0].mxu0
    %v10602 = vpop.f32.mrb[0].mxu0
    %v10603 = vpop.f32.mrb[0].mxu0
    %10604 = vdwg.mxu0
    %10605 = vmatprep.subr.bf16.mxu0 0
    %10606 = vmatpush1.bf16.msra.mxu0 %v6480
    %10607 = vmatprep.subr.bf16.mxu0 0
    %10608 = vmatpush1.bf16.msra.mxu0 %v6487
    %10609 = vmatprep.subr.bf16.mxu0 0
    %10610 = vmatpush1.bf16.msra.mxu0 %v6494
    %10611 = vmatprep.subr.bf16.mxu0 0
    %10612 = vmatpush1.bf16.msra.mxu0 %v6501
    %10613 = vmatprep.subr.bf16.mxu0 0
    %10614 = vmatpush1.bf16.msra.mxu0 %v6508
    %10615 = vmatprep.subr.bf16.mxu0 0
    %10616 = vmatpush1.bf16.msra.mxu0 %v6515
    %10617 = vmatprep.subr.bf16.mxu0 0
    %10618 = vmatpush1.bf16.msra.mxu0 %v6522
    %10619 = vmatprep.subr.bf16.mxu0 0
    %10620 = vmatpush1.bf16.msra.mxu0 %v6529
    %10621 = vmatprep.subr.bf16.mxu0 0
    %10622 = vmatpush1.bf16.msra.mxu0 %v6536
    %10623 = vmatprep.subr.bf16.mxu0 0
    %10624 = vmatpush1.bf16.msra.mxu0 %v6543
    %10625 = vmatprep.subr.bf16.mxu0 0
    %10626 = vmatpush1.bf16.msra.mxu0 %v6550
    %10627 = vmatprep.subr.bf16.mxu0 0
    %10628 = vmatpush1.bf16.msra.mxu0 %v6557
    %10629 = vmatprep.subr.bf16.mxu0 0
    %10630 = vmatpush1.bf16.msra.mxu0 %v6564
    %10631 = vmatprep.subr.bf16.mxu0 0
    %10632 = vmatpush1.bf16.msra.mxu0 %v6571
    %10633 = vmatprep.subr.bf16.mxu0 0
    %10634 = vmatpush1.bf16.msra.mxu0 %v6578
    %10635 = vmatprep.subr.bf16.mxu0 0
    %10636 = vmatpush1.bf16.msra.mxu0 %v6585
    %10637 = vmatprep.mubr.bf16.mxu0 %v1689
    %10638 = vmatmul.mubr.bf16.gmra.mrb[0].mxu0 %v1687
    %v10639 = vpop.f32.mrb[0].mxu0
    %v10640 = vadd.f32 %v10600, %v10639
    %v10641 = vpop.f32.mrb[0].mxu0
    %v10642 = vpop.f32.mrb[0].mxu0
    %v10643 = vpop.f32.mrb[0].mxu0
    %10644 = vdwg.mxu0
    %10645 = vmatprep.subr.bf16.mxu0 0
    %10646 = vmatpush1.bf16.msra.mxu0 %v6592
    %10647 = vmatprep.subr.bf16.mxu0 0
    %10648 = vmatpush1.bf16.msra.mxu0 %v6599
    %10649 = vmatprep.subr.bf16.mxu0 0
    %10650 = vmatpush1.bf16.msra.mxu0 %v6606
    %10651 = vmatprep.subr.bf16.mxu0 0
    %10652 = vmatpush1.bf16.msra.mxu0 %v6613
    %10653 = vmatprep.subr.bf16.mxu0 0
    %10654 = vmatpush1.bf16.msra.mxu0 %v6620
    %10655 = vmatprep.subr.bf16.mxu0 0
    %10656 = vmatpush1.bf16.msra.mxu0 %v6627
    %10657 = vmatprep.subr.bf16.mxu0 0
    %10658 = vmatpush1.bf16.msra.mxu0 %v6634
    %10659 = vmatprep.subr.bf16.mxu0 0
    %10660 = vmatpush1.bf16.msra.mxu0 %v6641
    %10661 = vmatprep.subr.bf16.mxu0 0
    %10662 = vmatpush1.bf16.msra.mxu0 %v6648
    %10663 = vmatprep.subr.bf16.mxu0 0
    %10664 = vmatpush1.bf16.msra.mxu0 %v6655
    %10665 = vmatprep.subr.bf16.mxu0 0
    %10666 = vmatpush1.bf16.msra.mxu0 %v6662
    %10667 = vmatprep.subr.bf16.mxu0 0
    %10668 = vmatpush1.bf16.msra.mxu0 %v6669
    %10669 = vmatprep.subr.bf16.mxu0 0
    %10670 = vmatpush1.bf16.msra.mxu0 %v6676
    %10671 = vmatprep.subr.bf16.mxu0 0
    %10672 = vmatpush1.bf16.msra.mxu0 %v6683
    %10673 = vmatprep.subr.bf16.mxu0 0
    %10674 = vmatpush1.bf16.msra.mxu0 %v6690
    %10675 = vmatprep.subr.bf16.mxu0 0
    %10676 = vmatpush1.bf16.msra.mxu0 %v6697
    %10677 = vmatprep.mubr.bf16.mxu0 %v1727
    %10678 = vmatmul.mubr.bf16.gmra.mrb[0].mxu0 %v1713
    %v10679 = vpop.f32.mrb[0].mxu0
    %v10680 = vadd.f32 %v10640, %v10679
    %v10681 = vpop.f32.mrb[0].mxu0
    %v10682 = vpop.f32.mrb[0].mxu0
    %v10683 = vpop.f32.mrb[0].mxu0
    %10684 = vdwg.mxu0
    %10685 = vmatprep.subr.bf16.mxu0 0
    %10686 = vmatpush1.bf16.msra.mxu0 %v6704
    %10687 = vmatprep.subr.bf16.mxu0 0
    %10688 = vmatpush1.bf16.msra.mxu0 %v6711
    %10689 = vmatprep.subr.bf16.mxu0 0
    %10690 = vmatpush1.bf16.msra.mxu0 %v6718
    %10691 = vmatprep.subr.bf16.mxu0 0
    %10692 = vmatpush1.bf16.msra.mxu0 %v6725
    %10693 = vmatprep.subr.bf16.mxu0 0
    %10694 = vmatpush1.bf16.msra.mxu0 %v6732
    %10695 = vmatprep.subr.bf16.mxu0 0
    %10696 = vmatpush1.bf16.msra.mxu0 %v6739
    %10697 = vmatprep.subr.bf16.mxu0 0
    %10698 = vmatpush1.bf16.msra.mxu0 %v6746
    %10699 = vmatprep.subr.bf16.mxu0 0
    %10700 = vmatpush1.bf16.msra.mxu0 %v6753
    %10701 = vmatprep.subr.bf16.mxu0 0
    %10702 = vmatpush1.bf16.msra.mxu0 %v6760
    %10703 = vmatprep.subr.bf16.mxu0 0
    %10704 = vmatpush1.bf16.msra.mxu0 %v6767
    %10705 = vmatprep.subr.bf16.mxu0 0
    %10706 = vmatpush1.bf16.msra.mxu0 %v6774
    %10707 = vmatprep.subr.bf16.mxu0 0
    %10708 = vmatpush1.bf16.msra.mxu0 %v6781
    %10709 = vmatprep.subr.bf16.mxu0 0
    %10710 = vmatpush1.bf16.msra.mxu0 %v6788
    %10711 = vmatprep.subr.bf16.mxu0 0
    %10712 = vmatpush1.bf16.msra.mxu0 %v6795
    %10713 = vmatprep.subr.bf16.mxu0 0
    %10714 = vmatpush1.bf16.msra.mxu0 %v6802
    %10715 = vmatprep.subr.bf16.mxu0 0
    %10716 = vmatpush1.bf16.msra.mxu0 %v6809
    %10717 = vmatprep.mubr.bf16.mxu0 %v1737
    %10718 = vmatmul.mubr.bf16.gmra.mrb[0].mxu0 %v1735
    %v10719 = vpop.f32.mrb[0].mxu0
    %v10720 = vadd.f32 %v10680, %v10719
    %v10721 = vpop.f32.mrb[0].mxu0
    %v10722 = vpop.f32.mrb[0].mxu0
    %v10723 = vpop.f32.mrb[0].mxu0
    %10724 = vdwg.mxu0
    %10725 = vmatprep.subr.bf16.mxu0 0
    %10726 = vmatpush1.bf16.msra.mxu0 %v6816
    %10727 = vmatprep.subr.bf16.mxu0 0
    %10728 = vmatpush1.bf16.msra.mxu0 %v6823
    %10729 = vmatprep.subr.bf16.mxu0 0
    %10730 = vmatpush1.bf16.msra.mxu0 %v6830
    %10731 = vmatprep.subr.bf16.mxu0 0
    %10732 = vmatpush1.bf16.msra.mxu0 %v6837
    %10733 = vmatprep.subr.bf16.mxu0 0
    %10734 = vmatpush1.bf16.msra.mxu0 %v6844
    %10735 = vmatprep.subr.bf16.mxu0 0
    %10736 = vmatpush1.bf16.msra.mxu0 %v6851
    %10737 = vmatprep.subr.bf16.mxu0 0
    %10738 = vmatpush1.bf16.msra.mxu0 %v6858
    %10739 = vmatprep.subr.bf16.mxu0 0
    %10740 = vmatpush1.bf16.msra.mxu0 %v6865
    %10741 = vmatprep.subr.bf16.mxu0 0
    %10742 = vmatpush1.bf16.msra.mxu0 %v6872
    %10743 = vmatprep.subr.bf16.mxu0 0
    %10744 = vmatpush1.bf16.msra.mxu0 %v6879
    %10745 = vmatprep.subr.bf16.mxu0 0
    %10746 = vmatpush1.bf16.msra.mxu0 %v6886
    %10747 = vmatprep.subr.bf16.mxu0 0
    %10748 = vmatpush1.bf16.msra.mxu0 %v6893
    %10749 = vmatprep.subr.bf16.mxu0 0
    %10750 = vmatpush1.bf16.msra.mxu0 %v6900
    %10751 = vmatprep.subr.bf16.mxu0 0
    %10752 = vmatpush1.bf16.msra.mxu0 %v6907
    %10753 = vmatprep.subr.bf16.mxu0 0
    %10754 = vmatpush1.bf16.msra.mxu0 %v6914
    %10755 = vmatprep.subr.bf16.mxu0 0
    %10756 = vmatpush1.bf16.msra.mxu0 %v6921
    %10757 = vmatprep.mubr.bf16.mxu0 %v1734
    %10758 = vmatmul.mubr.bf16.gmra.mrb[0].mxu0 %v1720
    %v10759 = vpop.f32.mrb[0].mxu0
    %v10760 = vadd.f32 %v10720, %v10759
    %v10761 = vpop.f32.mrb[0].mxu0
    %v10762 = vpop.f32.mrb[0].mxu0
    %v10763 = vpop.f32.mrb[0].mxu0
    %10764 = vdwg.mxu0
    %10765 = vmatprep.subr.bf16.mxu0 0
    %10766 = vmatpush1.bf16.msra.mxu0 %v6928
    %10767 = vmatprep.subr.bf16.mxu0 0
    %10768 = vmatpush1.bf16.msra.mxu0 %v6935
    %10769 = vmatprep.subr.bf16.mxu0 0
    %10770 = vmatpush1.bf16.msra.mxu0 %v6942
    %10771 = vmatprep.subr.bf16.mxu0 0
    %10772 = vmatpush1.bf16.msra.mxu0 %v6949
    %10773 = vmatprep.subr.bf16.mxu0 0
    %10774 = vmatpush1.bf16.msra.mxu0 %v6956
    %10775 = vmatprep.subr.bf16.mxu0 0
    %10776 = vmatpush1.bf16.msra.mxu0 %v6963
    %10777 = vmatprep.subr.bf16.mxu0 0
    %10778 = vmatpush1.bf16.msra.mxu0 %v6970
    %10779 = vmatprep.subr.bf16.mxu0 0
    %10780 = vmatpush1.bf16.msra.mxu0 %v6977
    %10781 = vmatprep.subr.bf16.mxu0 0
    %10782 = vmatpush1.bf16.msra.mxu0 %v6984
    %10783 = vmatprep.subr.bf16.mxu0 0
    %10784 = vmatpush1.bf16.msra.mxu0 %v6991
    %10785 = vmatprep.subr.bf16.mxu0 0
    %10786 = vmatpush1.bf16.msra.mxu0 %v6998
    %10787 = vmatprep.subr.bf16.mxu0 0
    %10788 = vmatpush1.bf16.msra.mxu0 %v7005
    %10789 = vmatprep.subr.bf16.mxu0 0
    %10790 = vmatpush1.bf16.msra.mxu0 %v7012
    %10791 = vmatprep.subr.bf16.mxu0 0
    %10792 = vmatpush1.bf16.msra.mxu0 %v7019
    %10793 = vmatprep.subr.bf16.mxu0 0
    %10794 = vmatpush1.bf16.msra.mxu0 %v7026
    %10795 = vmatprep.subr.bf16.mxu0 0
    %10796 = vmatpush1.bf16.msra.mxu0 %v7033
    %10797 = vmatprep.mubr.bf16.mxu0 %v1738
    %10798 = vmatmul.mubr.bf16.gmra.mrb[0].mxu0 %v1736
    %v10799 = vpop.f32.mrb[0].mxu0
    %v10800 = vadd.f32 %v10760, %v10799
    %v10801 = vpop.f32.mrb[0].mxu0
    %v10802 = vpop.f32.mrb[0].mxu0
    %v10803 = vpop.f32.mrb[0].mxu0
    %10804 = vdwg.mxu0
    %10805 = vmatprep.subr.bf16.mxu0 0
    %10806 = vmatpush1.bf16.msra.mxu0 %v7040
    %10807 = vmatprep.subr.bf16.mxu0 0
    %10808 = vmatpush1.bf16.msra.mxu0 %v7047
    %10809 = vmatprep.subr.bf16.mxu0 0
    %10810 = vmatpush1.bf16.msra.mxu0 %v7054
    %10811 = vmatprep.subr.bf16.mxu0 0
    %10812 = vmatpush1.bf16.msra.mxu0 %v7061
    %10813 = vmatprep.subr.bf16.mxu0 0
    %10814 = vmatpush1.bf16.msra.mxu0 %v7068
    %10815 = vmatprep.subr.bf16.mxu0 0
    %10816 = vmatpush1.bf16.msra.mxu0 %v7075
    %10817 = vmatprep.subr.bf16.mxu0 0
    %10818 = vmatpush1.bf16.msra.mxu0 %v7082
    %10819 = vmatprep.subr.bf16.mxu0 0
    %10820 = vmatpush1.bf16.msra.mxu0 %v7089
    %10821 = vmatprep.subr.bf16.mxu0 0
    %10822 = vmatpush1.bf16.msra.mxu0 %v7096
    %10823 = vmatprep.subr.bf16.mxu0 0
    %10824 = vmatpush1.bf16.msra.mxu0 %v7103
    %10825 = vmatprep.subr.bf16.mxu0 0
    %10826 = vmatpush1.bf16.msra.mxu0 %v7110
    %10827 = vmatprep.subr.bf16.mxu0 0
    %10828 = vmatpush1.bf16.msra.mxu0 %v7117
    %10829 = vmatprep.subr.bf16.mxu0 0
    %10830 = vmatpush1.bf16.msra.mxu0 %v7124
    %10831 = vmatprep.subr.bf16.mxu0 0
    %10832 = vmatpush1.bf16.msra.mxu0 %v7131
    %10833 = vmatprep.subr.bf16.mxu0 0
    %10834 = vmatpush1.bf16.msra.mxu0 %v7138
    %10835 = vmatprep.subr.bf16.mxu0 0
    %10836 = vmatpush1.bf16.msra.mxu0 %v7145
    %10837 = vmatprep.mubr.bf16.mxu0 %v1776
    %10838 = vmatmul.mubr.bf16.gmra.mrb[0].mxu0 %v1762
    %v10839 = vpop.f32.mrb[0].mxu0
    %v10840 = vadd.f32 %v10800, %v10839
    %v10841 = vpop.f32.mrb[0].mxu0
    %v10842 = vpop.f32.mrb[0].mxu0
    %v10843 = vpop.f32.mrb[0].mxu0
    %10844 = vdwg.mxu0
    %10845 = vmatprep.subr.bf16.mxu0 0
    %10846 = vmatpush1.bf16.msra.mxu0 %v7152
    %10847 = vmatprep.subr.bf16.mxu0 0
    %10848 = vmatpush1.bf16.msra.mxu0 %v7159
    %10849 = vmatprep.subr.bf16.mxu0 0
    %10850 = vmatpush1.bf16.msra.mxu0 %v7166
    %10851 = vmatprep.subr.bf16.mxu0 0
    %10852 = vmatpush1.bf16.msra.mxu0 %v7173
    %10853 = vmatprep.subr.bf16.mxu0 0
    %10854 = vmatpush1.bf16.msra.mxu0 %v7180
    %10855 = vmatprep.subr.bf16.mxu0 0
    %10856 = vmatpush1.bf16.msra.mxu0 %v7187
    %10857 = vmatprep.subr.bf16.mxu0 0
    %10858 = vmatpush1.bf16.msra.mxu0 %v7194
    %10859 = vmatprep.subr.bf16.mxu0 0
    %10860 = vmatpush1.bf16.msra.mxu0 %v7201
    %10861 = vmatprep.subr.bf16.mxu0 0
    %10862 = vmatpush1.bf16.msra.mxu0 %v7208
    %10863 = vmatprep.subr.bf16.mxu0 0
    %10864 = vmatpush1.bf16.msra.mxu0 %v7215
    %10865 = vmatprep.subr.bf16.mxu0 0
    %10866 = vmatpush1.bf16.msra.mxu0 %v7222
    %10867 = vmatprep.subr.bf16.mxu0 0
    %10868 = vmatpush1.bf16.msra.mxu0 %v7229
    %10869 = vmatprep.subr.bf16.mxu0 0
    %10870 = vmatpush1.bf16.msra.mxu0 %v7236
    %10871 = vmatprep.subr.bf16.mxu0 0
    %10872 = vmatpush1.bf16.msra.mxu0 %v7243
    %10873 = vmatprep.subr.bf16.mxu0 0
    %10874 = vmatpush1.bf16.msra.mxu0 %v7250
    %10875 = vmatprep.subr.bf16.mxu0 0
    %10876 = vmatpush1.bf16.msra.mxu0 %v7257
    %10877 = vmatprep.mubr.bf16.mxu0 %v1786
    %10878 = vmatmul.mubr.bf16.gmra.mrb[0].mxu0 %v1784
    %v10879 = vpop.f32.mrb[0].mxu0
    %v10880 = vadd.f32 %v10840, %v10879
    %v10881 = vpop.f32.mrb[0].mxu0
    %v10882 = vpop.f32.mrb[0].mxu0
    %v10883 = vpop.f32.mrb[0].mxu0
    %10884 = vdwg.mxu0
    %10885 = vmatprep.subr.bf16.mxu0 0
    %10886 = vmatpush1.bf16.msra.mxu0 %v7264
    %10887 = vmatprep.subr.bf16.mxu0 0
    %10888 = vmatpush1.bf16.msra.mxu0 %v7271
    %10889 = vmatprep.subr.bf16.mxu0 0
    %10890 = vmatpush1.bf16.msra.mxu0 %v7278
    %10891 = vmatprep.subr.bf16.mxu0 0
    %10892 = vmatpush1.bf16.msra.mxu0 %v7285
    %10893 = vmatprep.subr.bf16.mxu0 0
    %10894 = vmatpush1.bf16.msra.mxu0 %v7292
    %10895 = vmatprep.subr.bf16.mxu0 0
    %10896 = vmatpush1.bf16.msra.mxu0 %v7299
    %10897 = vmatprep.subr.bf16.mxu0 0
    %10898 = vmatpush1.bf16.msra.mxu0 %v7306
    %10899 = vmatprep.subr.bf16.mxu0 0
    %10900 = vmatpush1.bf16.msra.mxu0 %v7313
    %10901 = vmatprep.subr.bf16.mxu0 0
    %10902 = vmatpush1.bf16.msra.mxu0 %v7320
    %10903 = vmatprep.subr.bf16.mxu0 0
    %10904 = vmatpush1.bf16.msra.mxu0 %v7327
    %10905 = vmatprep.subr.bf16.mxu0 0
    %10906 = vmatpush1.bf16.msra.mxu0 %v7334
    %10907 = vmatprep.subr.bf16.mxu0 0
    %10908 = vmatpush1.bf16.msra.mxu0 %v7341
    %10909 = vmatprep.subr.bf16.mxu0 0
    %10910 = vmatpush1.bf16.msra.mxu0 %v7348
    %10911 = vmatprep.subr.bf16.mxu0 0
    %10912 = vmatpush1.bf16.msra.mxu0 %v7355
    %10913 = vmatprep.subr.bf16.mxu0 0
    %10914 = vmatpush1.bf16.msra.mxu0 %v7362
    %10915 = vmatprep.subr.bf16.mxu0 0
    %10916 = vmatpush1.bf16.msra.mxu0 %v7369
    %10917 = vmatprep.mubr.bf16.mxu0 %v1783
    %10918 = vmatmul.mubr.bf16.gmra.mrb[0].mxu0 %v1769
    %v10919 = vpop.f32.mrb[0].mxu0
    %v10920 = vadd.f32 %v10880, %v10919
    %v10921 = vpop.f32.mrb[0].mxu0
    %v10922 = vpop.f32.mrb[0].mxu0
    %v10923 = vpop.f32.mrb[0].mxu0
    %10924 = vdwg.mxu0
    %10925 = vmatprep.subr.bf16.mxu0 0
    %10926 = vmatpush1.bf16.msra.mxu0 %v7376
    %10927 = vmatprep.subr.bf16.mxu0 0
    %10928 = vmatpush1.bf16.msra.mxu0 %v7383
    %10929 = vmatprep.subr.bf16.mxu0 0
    %10930 = vmatpush1.bf16.msra.mxu0 %v7390
    %10931 = vmatprep.subr.bf16.mxu0 0
    %10932 = vmatpush1.bf16.msra.mxu0 %v7397
    %10933 = vmatprep.subr.bf16.mxu0 0
    %10934 = vmatpush1.bf16.msra.mxu0 %v7404
    %10935 = vmatprep.subr.bf16.mxu0 0
    %10936 = vmatpush1.bf16.msra.mxu0 %v7411
    %10937 = vmatprep.subr.bf16.mxu0 0
    %10938 = vmatpush1.bf16.msra.mxu0 %v7418
    %10939 = vmatprep.subr.bf16.mxu0 0
    %10940 = vmatpush1.bf16.msra.mxu0 %v7425
    %10941 = vmatprep.subr.bf16.mxu0 0
    %10942 = vmatpush1.bf16.msra.mxu0 %v7432
    %10943 = vmatprep.subr.bf16.mxu0 0
    %10944 = vmatpush1.bf16.msra.mxu0 %v7439
    %10945 = vmatprep.subr.bf16.mxu0 0
    %10946 = vmatpush1.bf16.msra.mxu0 %v7446
    %10947 = vmatprep.subr.bf16.mxu0 0
    %10948 = vmatpush1.bf16.msra.mxu0 %v7453
    %10949 = vmatprep.subr.bf16.mxu0 0
    %10950 = vmatpush1.bf16.msra.mxu0 %v7460
    %10951 = vmatprep.subr.bf16.mxu0 0
    %10952 = vmatpush1.bf16.msra.mxu0 %v7467
    %10953 = vmatprep.subr.bf16.mxu0 0
    %10954 = vmatpush1.bf16.msra.mxu0 %v7474
    %10955 = vmatprep.subr.bf16.mxu0 0
    %10956 = vmatpush1.bf16.msra.mxu0 %v7481
    %10957 = vmatprep.mubr.bf16.mxu0 %v1787
    %10958 = vmatmul.mubr.bf16.gmra.mrb[0].mxu0 %v1785
    %v10959 = vpop.f32.mrb[0].mxu0
    %v10960 = vadd.f32 %v10920, %v10959
    %v10961 = vpop.f32.mrb[0].mxu0
    %v10962 = vpop.f32.mrb[0].mxu0
    %v10963 = vpop.f32.mrb[0].mxu0
    %10964 = vdwg.mxu0
    %10965 = vmatprep.subr.bf16.mxu0 0
    %10966 = vmatpush1.bf16.msra.mxu0 %v7488
    %10967 = vmatprep.subr.bf16.mxu0 0
    %10968 = vmatpush1.bf16.msra.mxu0 %v7495
    %10969 = vmatprep.subr.bf16.mxu0 0
    %10970 = vmatpush1.bf16.msra.mxu0 %v7502
    %10971 = vmatprep.subr.bf16.mxu0 0
    %10972 = vmatpush1.bf16.msra.mxu0 %v7509
    %10973 = vmatprep.subr.bf16.mxu0 0
    %10974 = vmatpush1.bf16.msra.mxu0 0
    %10975 = vmatprep.subr.bf16.mxu0 0
    %10976 = vmatpush1.bf16.msra.mxu0 0
    %10977 = vmatprep.subr.bf16.mxu0 0
    %10978 = vmatpush1.bf16.msra.mxu0 0
    %10979 = vmatprep.subr.bf16.mxu0 0
    %10980 = vmatpush1.bf16.msra.mxu0 0
    %10981 = vmatprep.subr.bf16.mxu0 0
    %10982 = vmatpush1.bf16.msra.mxu0 0
    %10983 = vmatprep.subr.bf16.mxu0 0
    %10984 = vmatpush1.bf16.msra.mxu0 0
    %10985 = vmatprep.subr.bf16.mxu0 0
    %10986 = vmatpush1.bf16.msra.mxu0 0
    %10987 = vmatprep.subr.bf16.mxu0 0
    %10988 = vmatpush1.bf16.msra.mxu0 0
    %10989 = vmatprep.subr.bf16.mxu0 0
    %10990 = vmatpush1.bf16.msra.mxu0 0
    %10991 = vmatprep.subr.bf16.mxu0 0
    %10992 = vmatpush1.bf16.msra.mxu0 0
    %10993 = vmatprep.subr.bf16.mxu0 0
    %10994 = vmatpush1.bf16.msra.mxu0 0
    %10995 = vmatprep.subr.bf16.mxu0 0
    %10996 = vmatpush1.bf16.msra.mxu0 0
    %10997 = vmatprep.mubr.bf16.mxu0 0
    %10998 = vmatmul.mubr.bf16.gmra.mrb[0].mxu0 %v8884
    %v10999 = vpop.f32.mrb[0].mxu0
    %v11000 = vadd.f32 %v10960, %v10999
    %v11001 = vpop.f32.mrb[0].mxu0
    %v11002 = vpop.f32.mrb[0].mxu0
    %v11003 = vpop.f32.mrb[0].mxu0
    %11004 = vdwg.mxu0
    %v11005 = vmax.f32 %v9413, 0.0
    %v11006 = vmax.f32 %v9415, 0.0
    %v11007 = vmax.f32 %v9946, 0.0
    %v11008 = vmax.f32 %v9948, 0.0
    %v11009 = vmax.f32 %v10479, 0.0
    %v11010 = vmax.f32 %v10481, 0.0
    %v11011 = vmax.f32 %v11000, 0.0
    %v11012 = vpack.c.bf16 %v11005, %v11005
    %v11013 = vpack.c.bf16 %v11006, %v11006
    %v11014 = vpack.c.bf16 %v11007, %v11007
    %v11015 = vpack.c.bf16 %v11008, %v11008
    %v11016 = vpack.c.bf16 %v11009, %v11009
    %v11017 = vpack.c.bf16 %v11010, %v11010
    %v11018 = vpack.c.bf16 %v11011, %v11011
    %v11019 = vld [vmem:[%s3] sm:$0xf]
    %v11020 = vld [vmem:[%s3 + $0x4] sm:$0xf]
    %v11021 = vld [vmem:[%s3 + $0x8] sm:$0xf]
    %v11022 = vld [vmem:[%s3 + $0xc] sm:$0xf]
    %v11023 = vld [vmem:[%s3 + $0x10] sm:$0xf]
    %v11024 = vld [vmem:[%s3 + $0x14] sm:$0xf]
    %v11025 = vld [vmem:[%s3 + $0x18] sm:$0xf]
    %v11026 = vld [vmem:[%s3 + $0x1c] sm:$0xf]
    %v11027 = vld [vmem:[%s3 + $0x20] sm:$0xf]
    %v11028 = vld [vmem:[%s3 + $0x24] sm:$0xf]
    %v11029 = vld [vmem:[%s3 + $0x28] sm:$0xf]
    %v11030 = vld [vmem:[%s3 + $0x2c] sm:$0xf]
    %v11031 = vld [vmem:[%s3 + $0x30] sm:$0xf]
    %v11032 = vld [vmem:[%s3 + $0x34] sm:$0xf]
    %v11033 = vld [vmem:[%s3 + $0x38] sm:$0xf]
    %v11034 = vld [vmem:[%s3 + $0x3c] sm:$0xf]
    %v11035 = vld [vmem:[%s3 + $0x40] sm:$0xf]
    %v11036 = vld [vmem:[%s3 + $0x44] sm:$0xf]
    %v11037 = vld [vmem:[%s3 + $0x48] sm:$0xf]
    %v11038 = vld [vmem:[%s3 + $0x4c] sm:$0xf]
    %v11039 = vld [vmem:[%s3 + $0x50] sm:$0xf]
    %v11040 = vld [vmem:[%s3 + $0x54] sm:$0xf]
    %v11041 = vld [vmem:[%s3 + $0x58] sm:$0xf]
    %v11042 = vld [vmem:[%s3 + $0x5c] sm:$0xf]
    %v11043 = vld [vmem:[%s3 + $0x60] sm:$0xf]
    %v11044 = vld [vmem:[%s3 + $0x64] sm:$0xf]
    %v11045 = vld [vmem:[%s3 + $0x68] sm:$0xf]
    %v11046 = vld [vmem:[%s3 + $0x6c] sm:$0xf]
    %v11047 = vld [vmem:[%s3 + $0x70] sm:$0xf]
    %v11048 = vld [vmem:[%s3 + $0x74] sm:$0xf]
    %v11049 = vld [vmem:[%s3 + $0x78] sm:$0xf]
    %v11050 = vld [vmem:[%s3 + $0x7c] sm:$0xf]
    %v11051 = vld [vmem:[%s3 + $0x80] sm:$0xf]
    %v11052 = vld [vmem:[%s3 + $0x84] sm:$0xf]
    %v11053 = vld [vmem:[%s3 + $0x88] sm:$0xf]
    %v11054 = vld [vmem:[%s3 + $0x8c] sm:$0xf]
    %v11055 = vld [vmem:[%s3 + $0x90] sm:$0xf]
    %v11056 = vld [vmem:[%s3 + $0x94] sm:$0xf]
    %v11057 = vld [vmem:[%s3 + $0x98] sm:$0xf]
    %v11058 = vld [vmem:[%s3 + $0x9c] sm:$0xf]
    %v11059 = vld [vmem:[%s3 + $0xa0] sm:$0xf]
    %v11060 = vld [vmem:[%s3 + $0xa4] sm:$0xf]
    %v11061 = vld [vmem:[%s3 + $0xa8] sm:$0xf]
    %v11062 = vld [vmem:[%s3 + $0xac] sm:$0xf]
    %v11063 = vld [vmem:[%s3 + $0xb0] sm:$0xf]
    %v11064 = vld [vmem:[%s3 + $0xb4] sm:$0xf]
    %v11065 = vld [vmem:[%s3 + $0xb8] sm:$0xf]
    %v11066 = vld [vmem:[%s3 + $0xbc] sm:$0xf]
    %v11067 = vld [vmem:[%s3 + $0xc0] sm:$0xf]
    %v11068 = vld [vmem:[%s3 + $0xc4] sm:$0xf]
    %v11069 = vld [vmem:[%s3 + $0xc8] sm:$0xf]
    %v11070 = vld [vmem:[%s3 + $0xcc] sm:$0xf]
    %v11071 = vld [vmem:[%s3 + $0xd0] sm:$0xf]
    %v11072 = vld [vmem:[%s3 + $0xd4] sm:$0xf]
    %v11073 = vld [vmem:[%s3 + $0xd8] sm:$0xf]
    %v11074 = vld [vmem:[%s3 + $0xdc] sm:$0xf]
    %v11075 = vld [vmem:[%s3 + $0xe0] sm:$0xf]
    %v11076 = vld [vmem:[%s3 + $0xe4] sm:$0xf]
    %v11077 = vld [vmem:[%s3 + $0xe8] sm:$0xf]
    %v11078 = vld [vmem:[%s3 + $0xec] sm:$0xf]
    %v11079 = vld [vmem:[%s3 + $0xf0] sm:$0xf]
    %v11080 = vld [vmem:[%s3 + $0xf4] sm:$0xf]
    %v11081 = vld [vmem:[%s3 + $0xf8] sm:$0xf]
    %v11082 = vld [vmem:[%s3 + $0xfc] sm:$0xf]
    %v11083 = vld [vmem:[%s3 + $0x100] sm:$0xf]
    %v11084 = vld [vmem:[%s3 + $0x104] sm:$0xf]
    %v11085 = vld [vmem:[%s3 + $0x108] sm:$0xf]
    %v11086 = vld [vmem:[%s3 + $0x10c] sm:$0xf]
    %v11087 = vld [vmem:[%s3 + $0x110] sm:$0xf]
    %v11088 = vld [vmem:[%s3 + $0x114] sm:$0xf]
    %v11089 = vld [vmem:[%s3 + $0x118] sm:$0xf]
    %v11090 = vld [vmem:[%s3 + $0x11c] sm:$0xf]
    %v11091 = vld [vmem:[%s3 + $0x120] sm:$0xf]
    %v11092 = vld [vmem:[%s3 + $0x124] sm:$0xf]
    %v11093 = vld [vmem:[%s3 + $0x128] sm:$0xf]
    %v11094 = vld [vmem:[%s3 + $0x12c] sm:$0xf]
    %v11095 = vld [vmem:[%s3 + $0x130] sm:$0xf]
    %v11096 = vld [vmem:[%s3 + $0x134] sm:$0xf]
    %v11097 = vld [vmem:[%s3 + $0x138] sm:$0xf]
    %v11098 = vld [vmem:[%s3 + $0x13c] sm:$0xf]
    %v11099 = vld [vmem:[%s3 + $0x140] sm:$0xf]
    %v11100 = vld [vmem:[%s3 + $0x144] sm:$0xf]
    %v11101 = vld [vmem:[%s3 + $0x148] sm:$0xf]
    %v11102 = vld [vmem:[%s3 + $0x14c] sm:$0xf]
    %v11103 = vld [vmem:[%s3 + $0x150] sm:$0xf]
    %v11104 = vld [vmem:[%s3 + $0x154] sm:$0xf]
    %v11105 = vld [vmem:[%s3 + $0x158] sm:$0xf]
    %v11106 = vld [vmem:[%s3 + $0x15c] sm:$0xf]
    %v11107 = vld [vmem:[%s3 + $0x160] sm:$0xf]
    %v11108 = vld [vmem:[%s3 + $0x164] sm:$0xf]
    %v11109 = vld [vmem:[%s3 + $0x168] sm:$0xf]
    %v11110 = vld [vmem:[%s3 + $0x16c] sm:$0xf]
    %v11111 = vld [vmem:[%s3 + $0x170] sm:$0xf]
    %v11112 = vld [vmem:[%s3 + $0x174] sm:$0xf]
    %v11113 = vld [vmem:[%s3 + $0x178] sm:$0xf]
    %v11114 = vld [vmem:[%s3 + $0x17c] sm:$0xf]
    %v11115 = vld [vmem:[%s3 + $0x180] sm:$0xf]
    %v11116 = vld [vmem:[%s3 + $0x184] sm:$0xf]
    %v11117 = vld [vmem:[%s4] sm:$0x1]
    %v11119 = vlaneseq
    %v11120 = vshrl.u32 %v11119, 7
    %v11121 = vsub.s32 0, %v11120
    %v11122 = vrot.slane %v11117, %v11121
    %v11222 = vunpack.c.l.b16 %v11019
    %v11223 = vunpack.c.l.b16 %v11020
    %v11224 = vunpack.c.l.b16 %v11021
    %v11225 = vunpack.c.l.b16 %v11022
    %v11226 = vunpack.c.l.b16 %v11023
    %v11227 = vunpack.c.l.b16 %v11024
    %v11228 = vunpack.c.l.b16 %v11025
    %v11229 = vunpack.c.l.b16 %v11026
    %v11230 = vunpack.c.l.b16 %v11027
    %v11231 = vunpack.c.l.b16 %v11028
    %v11232 = vunpack.c.l.b16 %v11029
    %v11233 = vunpack.c.l.b16 %v11030
    %v11234 = vunpack.c.l.b16 %v11031
    %v11235 = vunpack.c.l.b16 %v11032
    %v11236 = vunpack.c.l.b16 %v11033
    %v11237 = vunpack.c.l.b16 %v11034
    %v11238 = vunpack.c.l.b16 %v11035
    %v11239 = vunpack.c.l.b16 %v11036
    %v11240 = vunpack.c.l.b16 %v11037
    %v11241 = vunpack.c.l.b16 %v11038
    %v11242 = vunpack.c.l.b16 %v11039
    %v11243 = vunpack.c.l.b16 %v11040
    %v11244 = vunpack.c.l.b16 %v11041
    %v11245 = vunpack.c.l.b16 %v11042
    %v11246 = vunpack.c.l.b16 %v11043
    %v11247 = vunpack.c.l.b16 %v11044
    %v11248 = vunpack.c.l.b16 %v11045
    %v11249 = vunpack.c.l.b16 %v11046
    %v11250 = vunpack.c.l.b16 %v11047
    %v11251 = vunpack.c.l.b16 %v11048
    %v11252 = vunpack.c.l.b16 %v11049
    %v11253 = vunpack.c.l.b16 %v11050
    %v11254 = vunpack.c.l.b16 %v11051
    %v11255 = vunpack.c.l.b16 %v11052
    %v11256 = vunpack.c.l.b16 %v11053
    %v11257 = vunpack.c.l.b16 %v11054
    %v11258 = vunpack.c.l.b16 %v11055
    %v11259 = vunpack.c.l.b16 %v11056
    %v11260 = vunpack.c.l.b16 %v11057
    %v11261 = vunpack.c.l.b16 %v11058
    %v11262 = vunpack.c.l.b16 %v11059
    %v11263 = vunpack.c.l.b16 %v11060
    %v11264 = vunpack.c.l.b16 %v11061
    %v11265 = vunpack.c.l.b16 %v11062
    %v11266 = vunpack.c.l.b16 %v11063
    %v11267 = vunpack.c.l.b16 %v11064
    %v11268 = vunpack.c.l.b16 %v11065
    %v11269 = vunpack.c.l.b16 %v11066
    %v11270 = vunpack.c.l.b16 %v11067
    %v11271 = vunpack.c.l.b16 %v11068
    %v11272 = vunpack.c.l.b16 %v11069
    %v11273 = vunpack.c.l.b16 %v11070
    %v11274 = vunpack.c.l.b16 %v11071
    %v11275 = vunpack.c.l.b16 %v11072
    %v11276 = vunpack.c.l.b16 %v11073
    %v11277 = vunpack.c.l.b16 %v11074
    %v11278 = vunpack.c.l.b16 %v11075
    %v11279 = vunpack.c.l.b16 %v11076
    %v11280 = vunpack.c.l.b16 %v11077
    %v11281 = vunpack.c.l.b16 %v11078
    %v11282 = vunpack.c.l.b16 %v11079
    %v11283 = vunpack.c.l.b16 %v11080
    %v11284 = vunpack.c.l.b16 %v11081
    %v11285 = vunpack.c.l.b16 %v11082
    %v11286 = vunpack.c.l.b16 %v11083
    %v11287 = vunpack.c.l.b16 %v11084
    %v11288 = vunpack.c.l.b16 %v11085
    %v11289 = vunpack.c.l.b16 %v11086
    %v11290 = vunpack.c.l.b16 %v11087
    %v11291 = vunpack.c.l.b16 %v11088
    %v11292 = vunpack.c.l.b16 %v11089
    %v11293 = vunpack.c.l.b16 %v11090
    %v11294 = vunpack.c.l.b16 %v11091
    %v11295 = vunpack.c.l.b16 %v11092
    %v11296 = vunpack.c.l.b16 %v11093
    %v11297 = vunpack.c.l.b16 %v11094
    %v11298 = vunpack.c.l.b16 %v11095
    %v11299 = vunpack.c.l.b16 %v11096
    %v11300 = vunpack.c.l.b16 %v11097
    %v11301 = vunpack.c.l.b16 %v11098
    %v11302 = vunpack.c.l.b16 %v11099
    %v11303 = vunpack.c.l.b16 %v11100
    %v11304 = vunpack.c.l.b16 %v11101
    %v11305 = vunpack.c.l.b16 %v11102
    %v11306 = vunpack.c.l.b16 %v11103
    %v11307 = vunpack.c.l.b16 %v11104
    %v11308 = vunpack.c.l.b16 %v11105
    %v11309 = vunpack.c.l.b16 %v11106
    %v11310 = vunpack.c.l.b16 %v11107
    %v11311 = vunpack.c.l.b16 %v11108
    %v11312 = vunpack.c.l.b16 %v11109
    %v11313 = vunpack.c.l.b16 %v11110
    %v11314 = vunpack.c.l.b16 %v11111
    %v11315 = vunpack.c.l.b16 %v11112
    %v11316 = vunpack.c.l.b16 %v11113
    %v11317 = vunpack.c.l.b16 %v11114
    %v11318 = vunpack.c.l.b16 %v11115
    %v11319 = vunpack.c.l.b16 %v11116
    %v11320 = vpack.c.b16 %v11223, %v11222
    %v11321 = vpack.c.b16 %v11225, %v11224
    %v11322 = vpack.c.b16 %v11227, %v11226
    %v11323 = vpack.c.b16 %v11229, %v11228
    %v11324 = vpack.c.b16 %v11231, %v11230
    %v11325 = vpack.c.b16 %v11233, %v11232
    %v11326 = vpack.c.b16 %v11235, %v11234
    %v11327 = vpack.c.b16 %v11237, %v11236
    %v11328 = vpack.c.b16 %v11239, %v11238
    %v11329 = vpack.c.b16 %v11241, %v11240
    %v11330 = vpack.c.b16 %v11243, %v11242
    %v11331 = vpack.c.b16 %v11245, %v11244
    %v11332 = vpack.c.b16 %v11247, %v11246
    %v11333 = vpack.c.b16 %v11249, %v11248
    %v11334 = vpack.c.b16 %v11251, %v11250
    %v11335 = vpack.c.b16 %v11253, %v11252
    %v11336 = vpack.c.b16 %v11255, %v11254
    %v11337 = vpack.c.b16 %v11257, %v11256
    %v11338 = vpack.c.b16 %v11259, %v11258
    %v11339 = vpack.c.b16 %v11261, %v11260
    %v11340 = vpack.c.b16 %v11263, %v11262
    %v11341 = vpack.c.b16 %v11265, %v11264
    %v11342 = vpack.c.b16 %v11267, %v11266
    %v11343 = vpack.c.b16 %v11269, %v11268
    %v11344 = vpack.c.b16 %v11271, %v11270
    %v11345 = vpack.c.b16 %v11273, %v11272
    %v11346 = vpack.c.b16 %v11275, %v11274
    %v11347 = vpack.c.b16 %v11277, %v11276
    %v11348 = vpack.c.b16 %v11279, %v11278
    %v11349 = vpack.c.b16 %v11281, %v11280
    %v11350 = vpack.c.b16 %v11283, %v11282
    %v11351 = vpack.c.b16 %v11285, %v11284
    %v11352 = vpack.c.b16 %v11287, %v11286
    %v11353 = vpack.c.b16 %v11289, %v11288
    %v11354 = vpack.c.b16 %v11291, %v11290
    %v11355 = vpack.c.b16 %v11293, %v11292
    %v11356 = vpack.c.b16 %v11295, %v11294
    %v11357 = vpack.c.b16 %v11297, %v11296
    %v11358 = vpack.c.b16 %v11299, %v11298
    %v11359 = vpack.c.b16 %v11301, %v11300
    %v11360 = vpack.c.b16 %v11303, %v11302
    %v11361 = vpack.c.b16 %v11305, %v11304
    %v11362 = vpack.c.b16 %v11307, %v11306
    %v11363 = vpack.c.b16 %v11309, %v11308
    %v11364 = vpack.c.b16 %v11311, %v11310
    %v11365 = vpack.c.b16 %v11313, %v11312
    %v11366 = vpack.c.b16 %v11315, %v11314
    %v11367 = vpack.c.b16 %v11317, %v11316
    %v11368 = vpack.c.b16 %v11319, %v11318
    %vm11418 = vcmask 130048
    %v11420 = vsel %vm11418, %v11018, 0
    %11422 = vmatprep.subr.bf16.mxu0 0
    %11423 = vmatpush1.bf16.msra.mxu0 %v11320
    %11424 = vmatprep.subr.bf16.mxu0 0
    %11425 = vmatpush1.bf16.msra.mxu0 %v11321
    %11426 = vmatprep.subr.bf16.mxu0 0
    %11427 = vmatpush1.bf16.msra.mxu0 %v11322
    %11428 = vmatprep.subr.bf16.mxu0 0
    %11429 = vmatpush1.bf16.msra.mxu0 %v11323
    %11430 = vmatprep.subr.bf16.mxu0 0
    %11431 = vmatpush1.bf16.msra.mxu0 %v11324
    %11432 = vmatprep.subr.bf16.mxu0 0
    %11433 = vmatpush1.bf16.msra.mxu0 %v11325
    %11434 = vmatprep.subr.bf16.mxu0 0
    %11435 = vmatpush1.bf16.msra.mxu0 %v11326
    %11436 = vmatprep.subr.bf16.mxu0 0
    %11437 = vmatpush1.bf16.msra.mxu0 %v11327
    %11438 = vmatprep.subr.bf16.mxu0 0
    %11439 = vmatpush1.bf16.msra.mxu0 %v11328
    %11440 = vmatprep.subr.bf16.mxu0 0
    %11441 = vmatpush1.bf16.msra.mxu0 %v11329
    %11442 = vmatprep.subr.bf16.mxu0 0
    %11443 = vmatpush1.bf16.msra.mxu0 %v11330
    %11444 = vmatprep.subr.bf16.mxu0 0
    %11445 = vmatpush1.bf16.msra.mxu0 %v11331
    %11446 = vmatprep.subr.bf16.mxu0 0
    %11447 = vmatpush1.bf16.msra.mxu0 %v11332
    %11448 = vmatprep.subr.bf16.mxu0 0
    %11449 = vmatpush1.bf16.msra.mxu0 %v11333
    %11450 = vmatprep.subr.bf16.mxu0 0
    %11451 = vmatpush1.bf16.msra.mxu0 %v11334
    %11452 = vmatprep.subr.bf16.mxu0 0
    %11453 = vmatpush1.bf16.msra.mxu0 %v11335
    %11454 = vmatprep.mubr.bf16.mxu0 %v11013
    %11455 = vmatmul.mubr.bf16.gmra.mrb[0].mxu0 %v11012
    %v11456 = vpop.f32.mrb[0].mxu0
    %v11457 = vadd.f32 %v11122, %v11456
    %v11458 = vpop.f32.mrb[0].mxu0
    %v11459 = vpop.f32.mrb[0].mxu0
    %v11460 = vpop.f32.mrb[0].mxu0
    %11461 = vdwg.mxu0
    %11462 = vmatprep.subr.bf16.mxu0 0
    %11463 = vmatpush1.bf16.msra.mxu0 %v11336
    %11464 = vmatprep.subr.bf16.mxu0 0
    %11465 = vmatpush1.bf16.msra.mxu0 %v11337
    %11466 = vmatprep.subr.bf16.mxu0 0
    %11467 = vmatpush1.bf16.msra.mxu0 %v11338
    %11468 = vmatprep.subr.bf16.mxu0 0
    %11469 = vmatpush1.bf16.msra.mxu0 %v11339
    %11470 = vmatprep.subr.bf16.mxu0 0
    %11471 = vmatpush1.bf16.msra.mxu0 %v11340
    %11472 = vmatprep.subr.bf16.mxu0 0
    %11473 = vmatpush1.bf16.msra.mxu0 %v11341
    %11474 = vmatprep.subr.bf16.mxu0 0
    %11475 = vmatpush1.bf16.msra.mxu0 %v11342
    %11476 = vmatprep.subr.bf16.mxu0 0
    %11477 = vmatpush1.bf16.msra.mxu0 %v11343
    %11478 = vmatprep.subr.bf16.mxu0 0
    %11479 = vmatpush1.bf16.msra.mxu0 %v11344
    %11480 = vmatprep.subr.bf16.mxu0 0
    %11481 = vmatpush1.bf16.msra.mxu0 %v11345
    %11482 = vmatprep.subr.bf16.mxu0 0
    %11483 = vmatpush1.bf16.msra.mxu0 %v11346
    %11484 = vmatprep.subr.bf16.mxu0 0
    %11485 = vmatpush1.bf16.msra.mxu0 %v11347
    %11486 = vmatprep.subr.bf16.mxu0 0
    %11487 = vmatpush1.bf16.msra.mxu0 %v11348
    %11488 = vmatprep.subr.bf16.mxu0 0
    %11489 = vmatpush1.bf16.msra.mxu0 %v11349
    %11490 = vmatprep.subr.bf16.mxu0 0
    %11491 = vmatpush1.bf16.msra.mxu0 %v11350
    %11492 = vmatprep.subr.bf16.mxu0 0
    %11493 = vmatpush1.bf16.msra.mxu0 %v11351
    %11494 = vmatprep.mubr.bf16.mxu0 %v11015
    %11495 = vmatmul.mubr.bf16.gmra.mrb[0].mxu0 %v11014
    %v11496 = vpop.f32.mrb[0].mxu0
    %v11497 = vadd.f32 %v11457, %v11496
    %v11498 = vpop.f32.mrb[0].mxu0
    %v11499 = vpop.f32.mrb[0].mxu0
    %v11500 = vpop.f32.mrb[0].mxu0
    %11501 = vdwg.mxu0
    %11502 = vmatprep.subr.bf16.mxu0 0
    %11503 = vmatpush1.bf16.msra.mxu0 %v11352
    %11504 = vmatprep.subr.bf16.mxu0 0
    %11505 = vmatpush1.bf16.msra.mxu0 %v11353
    %11506 = vmatprep.subr.bf16.mxu0 0
    %11507 = vmatpush1.bf16.msra.mxu0 %v11354
    %11508 = vmatprep.subr.bf16.mxu0 0
    %11509 = vmatpush1.bf16.msra.mxu0 %v11355
    %11510 = vmatprep.subr.bf16.mxu0 0
    %11511 = vmatpush1.bf16.msra.mxu0 %v11356
    %11512 = vmatprep.subr.bf16.mxu0 0
    %11513 = vmatpush1.bf16.msra.mxu0 %v11357
    %11514 = vmatprep.subr.bf16.mxu0 0
    %11515 = vmatpush1.bf16.msra.mxu0 %v11358
    %11516 = vmatprep.subr.bf16.mxu0 0
    %11517 = vmatpush1.bf16.msra.mxu0 %v11359
    %11518 = vmatprep.subr.bf16.mxu0 0
    %11519 = vmatpush1.bf16.msra.mxu0 %v11360
    %11520 = vmatprep.subr.bf16.mxu0 0
    %11521 = vmatpush1.bf16.msra.mxu0 %v11361
    %11522 = vmatprep.subr.bf16.mxu0 0
    %11523 = vmatpush1.bf16.msra.mxu0 %v11362
    %11524 = vmatprep.subr.bf16.mxu0 0
    %11525 = vmatpush1.bf16.msra.mxu0 %v11363
    %11526 = vmatprep.subr.bf16.mxu0 0
    %11527 = vmatpush1.bf16.msra.mxu0 %v11364
    %11528 = vmatprep.subr.bf16.mxu0 0
    %11529 = vmatpush1.bf16.msra.mxu0 %v11365
    %11530 = vmatprep.subr.bf16.mxu0 0
    %11531 = vmatpush1.bf16.msra.mxu0 %v11366
    %11532 = vmatprep.subr.bf16.mxu0 0
    %11533 = vmatpush1.bf16.msra.mxu0 %v11367
    %11534 = vmatprep.mubr.bf16.mxu0 %v11017
    %11535 = vmatmul.mubr.bf16.gmra.mrb[0].mxu0 %v11016
    %v11536 = vpop.f32.mrb[0].mxu0
    %v11537 = vadd.f32 %v11497, %v11536
    %v11538 = vpop.f32.mrb[0].mxu0
    %v11539 = vpop.f32.mrb[0].mxu0
    %v11540 = vpop.f32.mrb[0].mxu0
    %11541 = vdwg.mxu0
    %11542 = vmatprep.subr.bf16.mxu0 0
    %11543 = vmatpush1.bf16.msra.mxu0 %v11368
    %11544 = vmatprep.subr.bf16.mxu0 0
    %11545 = vmatpush1.bf16.msra.mxu0 0
    %11546 = vmatprep.subr.bf16.mxu0 0
    %11547 = vmatpush1.bf16.msra.mxu0 0
    %11548 = vmatprep.subr.bf16.mxu0 0
    %11549 = vmatpush1.bf16.msra.mxu0 0
    %11550 = vmatprep.subr.bf16.mxu0 0
    %11551 = vmatpush1.bf16.msra.mxu0 0
    %11552 = vmatprep.subr.bf16.mxu0 0
    %11553 = vmatpush1.bf16.msra.mxu0 0
    %11554 = vmatprep.subr.bf16.mxu0 0
    %11555 = vmatpush1.bf16.msra.mxu0 0
    %11556 = vmatprep.subr.bf16.mxu0 0
    %11557 = vmatpush1.bf16.msra.mxu0 0
    %11558 = vmatprep.subr.bf16.mxu0 0
    %11559 = vmatpush1.bf16.msra.mxu0 0
    %11560 = vmatprep.subr.bf16.mxu0 0
    %11561 = vmatpush1.bf16.msra.mxu0 0
    %11562 = vmatprep.subr.bf16.mxu0 0
    %11563 = vmatpush1.bf16.msra.mxu0 0
    %11564 = vmatprep.subr.bf16.mxu0 0
    %11565 = vmatpush1.bf16.msra.mxu0 0
    %11566 = vmatprep.subr.bf16.mxu0 0
    %11567 = vmatpush1.bf16.msra.mxu0 0
    %11568 = vmatprep.subr.bf16.mxu0 0
    %11569 = vmatpush1.bf16.msra.mxu0 0
    %11570 = vmatprep.subr.bf16.mxu0 0
    %11571 = vmatpush1.bf16.msra.mxu0 0
    %11572 = vmatprep.subr.bf16.mxu0 0
    %11573 = vmatpush1.bf16.msra.mxu0 0
    %11574 = vmatprep.mubr.bf16.mxu0 0
    %11575 = vmatmul.mubr.bf16.gmra.mrb[0].mxu0 %v11420
    %v11576 = vpop.f32.mrb[0].mxu0
    %v11577 = vadd.f32 %v11537, %v11576
    %v11578 = vpop.f32.mrb[0].mxu0
    %v11579 = vpop.f32.mrb[0].mxu0
    %v11580 = vpop.f32.mrb[0].mxu0
    %11581 = vdwg.mxu0
    %v11582 = vmax.f32 %v11577, 0.0
    %v11583 = vpack.c.bf16 %v11582, %v11582
    %v11584 = vld [vmem:[%s5] sm:$0xf]
    %v11585 = vld [vmem:[%s5 + $0x4] sm:$0xf]
    %v11586 = vld [vmem:[%s5 + $0x8] sm:$0xf]
    %v11587 = vld [vmem:[%s5 + $0xc] sm:$0xf]
    %v11588 = vld [vmem:[%s5 + $0x10] sm:$0xf]
    %v11589 = vld [vmem:[%s5 + $0x14] sm:$0xf]
    %v11590 = vld [vmem:[%s5 + $0x18] sm:$0xf]
    %v11591 = vld [vmem:[%s5 + $0x1c] sm:$0xf]
    %v11592 = vld [vmem:[%s5 + $0x20] sm:$0xf]
    %v11593 = vld [vmem:[%s5 + $0x24] sm:$0xf]
    %v11594 = vld [vmem:[%s5 + $0x28] sm:$0xf]
    %v11595 = vld [vmem:[%s5 + $0x2c] sm:$0xf]
    %v11596 = vld [vmem:[%s5 + $0x30] sm:$0x1]
    %v11597 = vld [vmem:[%s6] sm:$0x1]
    %v11599 = vlaneseq
    %v11600 = vshrl.u32 %v11599, 7
    %v11601 = vsub.s32 0, %v11600
    %v11602 = vrot.slane %v11597, %v11601
    %v11617 = vunpack.c.l.b16 %v11584
    %v11618 = vunpack.c.l.b16 %v11585
    %v11619 = vunpack.c.l.b16 %v11586
    %v11620 = vunpack.c.l.b16 %v11587
    %v11621 = vunpack.c.l.b16 %v11588
    %v11622 = vunpack.c.l.b16 %v11589
    %v11623 = vunpack.c.l.b16 %v11590
    %v11624 = vunpack.c.l.b16 %v11591
    %v11625 = vunpack.c.l.b16 %v11592
    %v11626 = vunpack.c.l.b16 %v11593
    %v11627 = vunpack.c.l.b16 %v11594
    %v11628 = vunpack.c.l.b16 %v11595
    %v11629 = vunpack.c.l.b16 %v11596
    %v11630 = vpack.c.b16 %v11618, %v11617
    %v11631 = vpack.c.b16 %v11620, %v11619
    %v11632 = vpack.c.b16 %v11622, %v11621
    %v11633 = vpack.c.b16 %v11624, %v11623
    %v11634 = vpack.c.b16 %v11626, %v11625
    %v11635 = vpack.c.b16 %v11628, %v11627
    %v11636 = vpack.c.b16 %v11629, %v11629
    %vm11643 = vcmask 801792
    %v11645 = vsel %vm11643, %v11583, 0
    %vm11647 = vcmask 1040384
    %v11649 = vsel %vm11647, %v11636, 0
    %11651 = vmatprep.subr.bf16.mxu0 0
    %11652 = vmatpush1.bf16.msra.mxu0 %v11630
    %11653 = vmatprep.subr.bf16.mxu0 0
    %11654 = vmatpush1.bf16.msra.mxu0 %v11631
    %11655 = vmatprep.subr.bf16.mxu0 0
    %11656 = vmatpush1.bf16.msra.mxu0 %v11632
    %11657 = vmatprep.subr.bf16.mxu0 0
    %11658 = vmatpush1.bf16.msra.mxu0 %v11633
    %11659 = vmatprep.subr.bf16.mxu0 0
    %11660 = vmatpush1.bf16.msra.mxu0 %v11634
    %11661 = vmatprep.subr.bf16.mxu0 0
    %11662 = vmatpush1.bf16.msra.mxu0 %v11635
    %11663 = vmatprep.subr.bf16.mxu0 0
    %11664 = vmatpush1.bf16.msra.mxu0 %v11649
    %11665 = vmatprep.subr.bf16.mxu0 0
    %11666 = vmatpush1.bf16.msra.mxu0 0
    %11667 = vmatprep.subr.bf16.mxu0 0
    %11668 = vmatpush1.bf16.msra.mxu0 0
    %11669 = vmatprep.subr.bf16.mxu0 0
    %11670 = vmatpush1.bf16.msra.mxu0 0
    %11671 = vmatprep.subr.bf16.mxu0 0
    %11672 = vmatpush1.bf16.msra.mxu0 0
    %11673 = vmatprep.subr.bf16.mxu0 0
    %11674 = vmatpush1.bf16.msra.mxu0 0
    %11675 = vmatprep.subr.bf16.mxu0 0
    %11676 = vmatpush1.bf16.msra.mxu0 0
    %11677 = vmatprep.subr.bf16.mxu0 0
    %11678 = vmatpush1.bf16.msra.mxu0 0
    %11679 = vmatprep.subr.bf16.mxu0 0
    %11680 = vmatpush1.bf16.msra.mxu0 0
    %11681 = vmatprep.subr.bf16.mxu0 0
    %11682 = vmatpush1.bf16.msra.mxu0 0
    %11683 = vmatprep.mubr.bf16.mxu0 0
    %11684 = vmatmul.mubr.bf16.gmra.mrb[0].mxu0 %v11645
    %v11685 = vpop.f32.mrb[0].mxu0
    %v11686 = vadd.f32 %v11602, %v11685
    %v11687 = vpop.f32.mrb[0].mxu0
    %v11688 = vpop.f32.mrb[0].mxu0
    %v11689 = vpop.f32.mrb[0].mxu0
    %11690 = vdwg.mxu0
    %vm11691 = vcmask 9216
    %11692 = vst.msk [vmem:[#allocation2] sm:$0x3] %vm11691, %v11686
    // Predicated region
    $region30: #{dqn_forward.7} parent=1 // pred_check
      _
    $region31: #{dqn_forward.7} parent=1 // pred_check_branch
      %11694 = sbr.rel (0) target = $region33
    $region32: #{dqn_forward.7} parent=1 // pred_region
      %s11696 = ssub.s32 32, 32
      %11697 = vsyncadd [#allocation3], %s11696
      %s11699 = sshll.u32 [#allocation2], 4
      %s11700 = int_to_ptr.vmem [resolvable:$true] %s11699
      %11702 = dma.vmem_to_hbm [thread:$0]  %s11700, 32, %s7, [#allocation3]
    $region33: #{dqn_forward.7} parent=1 // pred_fallthru
      _
    // Predicated region
    $region34: #{dqn_forward.7} parent=1 // pred_check
      _
    $region35: #{dqn_forward.7} parent=1 // pred_check_branch
      %11704 = sbr.rel (0) target = $region37
    $region36: #{dqn_forward.7} parent=1 // pred_region
      %11705 = dma.done [#allocation3], 32
    $region37: #{dqn_forward.7} parent=1 // pred_fallthru
      _
    %11706 = vsyncpa [#allocation3], 1

</llo_original>
